<compile_context>
chip_gen: v5e
topology: v5e:2x2
jax: 0.10.0
libtpu: 0.0.40
codegen_flags: <defaults>
</compile_context>

<pallas_src>
import jax
import jax.numpy as jnp
from jax import lax
from jax.experimental import pallas as pl
from jax.experimental.pallas import tpu as pltpu

MIN_VALUE = -1.7320508075688772
MAX_VALUE = 3.732050807568877

_GROUP = 128   # original rows packed per lane-dense group
_LANE = 128


def _round_up(x, m):
    return ((x + m - 1) // m) * m


# -----------------------------------------------------------------------------
# Fast path: packed lane-dense layout, all relayout work done inside the kernel.
# -----------------------------------------------------------------------------
def _linear_clamp_packed_kernel(x_ref, w2_ref, b2_ref, o_ref, g_ref, acc_ref):
    # x_ref  : (TG, 384)   128-row groups of x, flattened row-major (free view)
    # w2_ref : (24, 3)     weight tiled twice along the output dim
    # b2_ref : (24, 1)     bias tiled twice
    # o_ref  : (TG, 1536)  128-row groups of the output (free view of (M, 12))
    # g_ref  : VMEM (384, TG) scratch  -- channel-major view of the input tile
    # acc_ref: VMEM (1536, TG) scratch -- channel-major result tile
    tg = x_ref.shape[0]
    n2, k_dim = w2_ref.shape          # (24, 3)
    n_out = n2 // 2                   # 12

    # Tile-aligned XLU transpose: g_ref[3*i + k, g] = x[128*g + i, k].
    g_ref[...] = x_ref[...].T.astype(g_ref.dtype)

    # Hoisted broadcasts (kept outside the unrolled loop).
    wb = [jnp.broadcast_to(w2_ref[:, k:k + 1], (n2, tg)) for k in range(k_dim)]
    bb = jnp.broadcast_to(b2_ref[...], (n2, tg))
    row = lax.broadcasted_iota(jnp.int32, (n2, tg), 0)
    first_half = row < n_out

    # Unrolled VPU contraction.  Each piece covers two row-offsets i
    # (= 24 output rows) so every scratch-store offset stays sublane aligned.
    for p in range(_GROUP // 2):
        base = 2 * k_dim * p
        acc = bb
        for k in range(k_dim):
            xk = jnp.where(first_half,
                           g_ref[base + k:base + k + 1, :],
                           g_ref[base + k_dim + k:base + k_dim + k + 1, :])
            acc = acc + wb[k] * xk
        acc_ref[n2 * p:n2 * (p + 1), :] = jnp.clip(acc, MIN_VALUE, MAX_VALUE)

    # Second tile-aligned transpose back to the packed row-major layout; the
    # HBM writeback of this block is fully contiguous (== rows of (M, 12)).
    o_ref[...] = acc_ref[...].T.astype(o_ref.dtype)


def _linear_clamp_packed(x, weight, bias, *, tile_groups=512):
    orig_shape = x.shape
    k_dim = orig_shape[-1]
    n_out = weight.shape[0]
    lead = orig_shape[:-1]
    m = 1
    for d in lead:
        m *= d

    x2d = x.reshape(m, k_dim)
    m_pad = _round_up(m, _GROUP)
    mg = m_pad // _GROUP
    if mg < _LANE:
        # Tiny inputs: pad up to one full tile (< 200 KiB of zeros) so the
        # single grid step maps exactly onto the arrays.
        mg = _LANE
        m_pad = mg * _GROUP
    if m_pad != m:
        x2d = jnp.pad(x2d, ((0, m_pad - m), (0, 0)))

    # Free (contiguous) packed views -- no XLA transpose of x or of the result.
    xg = x2d.reshape(mg, _GROUP * k_dim)             # (Mg, 384)
    w2 = jnp.tile(weight, (2, 1))                    # (24, 3)
    b2 = jnp.tile(bias, 2).reshape(2 * n_out, 1)     # (24, 1)

    # Tile the group axis: multiples of 128 groups (keeps the in-kernel
    # transposes tile-aligned) and >= 2 grid steps when possible (v7x has two
    # TensorCores sharing the "parallel" axis).  Ragged group counts use a
    # cdiv grid with a clipped trailing block (no full-tile padding).
    half = (mg + 1) // 2
    tg = max(_LANE, min(_round_up(tile_groups, _LANE), _round_up(half, _LANE)))
    grid = (pl.cdiv(mg, tg),)

    compiler_kwargs = dict(dimension_semantics=("parallel",))
    if tg > 256:
        # Large tiles: double-buffered (TG,384)+(TG,1536) blocks plus the two
        # channel-major scratch buffers exceed the default scoped VMEM on some
        # generations (v5e default is 16 MiB).
        compiler_kwargs["vmem_limit_bytes"] = 48 * 1024 * 1024

    out_g = pl.pallas_call(
        _linear_clamp_packed_kernel,
        out_shape=jax.ShapeDtypeStruct((mg, _GROUP * n_out), x.dtype),
        grid=grid,
        in_specs=[
            pl.BlockSpec((tg, _GROUP * k_dim), lambda i: (i, 0)),   # x groups
            pl.BlockSpec((2 * n_out, k_dim), lambda i: (0, 0)),     # weight
            pl.BlockSpec((2 * n_out, 1), lambda i: (0, 0)),         # bias
        ],
        out_specs=pl.BlockSpec((tg, _GROUP * n_out), lambda i: (i, 0)),
        scratch_shapes=[
            pltpu.VMEM((_GROUP * k_dim, tg), jnp.float32),
            pltpu.VMEM((_GROUP * n_out, tg), jnp.float32),
        ],
        compiler_params=pltpu.CompilerParams(**compiler_kwargs),
    )(xg, w2, b2)

    out2d = out_g.reshape(m_pad, n_out)
    if m_pad != m:
        out2d = out2d[:m]
    return out2d.reshape(*lead, n_out)


# -----------------------------------------------------------------------------
# Fallback: previously validated column-major kernel (used only if the packed
# layout fails to lower on the running jax/libtpu version).
# -----------------------------------------------------------------------------
def _linear_clamp_colmajor_kernel(x_ref, w_ref, b_ref, o_ref):
    # x_ref: (K, TM)   w_ref: (N, K)   b_ref: (N, 1)   o_ref: (N, TM)
    x = x_ref[...]
    w = w_ref[...]
    b = b_ref[...]
    acc = w[:, 0:1] * x[0:1, :]
    for k in range(1, x.shape[0]):
        acc = acc + w[:, k:k + 1] * x[k:k + 1, :]
    acc = acc + b
    o_ref[...] = jnp.clip(acc, MIN_VALUE, MAX_VALUE).astype(o_ref.dtype)


def _linear_clamp_colmajor(x, weight, bias, *, tm=32768):
    orig_shape = x.shape
    k_dim = orig_shape[-1]
    n_out = weight.shape[0]
    lead = orig_shape[:-1]
    m = 1
    for d in lead:
        m *= d

    xt = x.reshape(m, k_dim).T                       # (K, M)
    tm_eff = min(_round_up(tm, _LANE), _round_up(m, _LANE))
    m_pad = _round_up(m, tm_eff)
    if m_pad != m:
        xt = jnp.pad(xt, ((0, 0), (0, m_pad - m)))
    b2d = bias.reshape(n_out, 1)

    out_t = pl.pallas_call(
        _linear_clamp_colmajor_kernel,
        out_shape=jax.ShapeDtypeStruct((n_out, m_pad), x.dtype),
        grid=(m_pad // tm_eff,),
        in_specs=[
            pl.BlockSpec((k_dim, tm_eff), lambda i: (0, i)),
            pl.BlockSpec((n_out, k_dim), lambda i: (0, 0)),
            pl.BlockSpec((n_out, 1), lambda i: (0, 0)),
        ],
        out_specs=pl.BlockSpec((n_out, tm_eff), lambda i: (0, i)),
        compiler_params=pltpu.CompilerParams(
            dimension_semantics=("parallel",)),
    )(xt, weight, b2d)

    return out_t[:, :m].T.reshape(*lead, n_out)


_PACKED_OK = None


def linear_clamp(x, weight, bias):
    """clamp(x @ weight.T + bias, MIN_VALUE, MAX_VALUE) via Pallas TPU."""
    global _PACKED_OK
    if _PACKED_OK is None or _PACKED_OK:
        try:
            out = _linear_clamp_packed(x, weight, bias)
            _PACKED_OK = True
            return out
        except Exception:
            # Packed-layout lowering not available on this jax/libtpu version;
            # fall back to the proven (but slower) column-major kernel.
            _PACKED_OK = False
    return _linear_clamp_colmajor(x, weight, bias)


def reference(x, weight, bias):
    y = jnp.einsum("...k,nk->...n", x, weight,
                   precision=jax.lax.Precision.HIGHEST) + bias
    return jnp.clip(y, MIN_VALUE, MAX_VALUE)


if __name__ == "__main__":
    key = jax.random.PRNGKey(0)
    kx1, kx2, kx3, kw, kb = jax.random.split(key, 5)

    weight = jax.random.uniform(kw, (12, 3), dtype=jnp.float32)
    bias = jax.random.uniform(kb, (12,), dtype=jnp.float32)

    # Case 1: the module's 1x64x64 spatial grid with the 3 input channels last.
    x1 = jax.random.normal(kx1, (1, 64, 64, 3), dtype=jnp.float32)
    out1 = jax.block_until_ready(linear_clamp(x1, weight, bias))
    ref1 = reference(x1, weight, bias)
    assert out1.shape == (1, 64, 64, 12)
    assert jnp.allclose(out1, ref1, atol=1e-5, rtol=1e-5)

    # Case 2: ragged row count (not a multiple of the 128-row packing group).
    x2 = jax.random.normal(kx2, (4, 257, 3), dtype=jnp.float32)
    out2 = jax.block_until_ready(linear_clamp(x2, weight, bias))
    ref2 = reference(x2, weight, bias)
    assert out2.shape == (4, 257, 12)
    assert jnp.allclose(out2, ref2, atol=1e-5, rtol=1e-5)

    # Case 3: aligned, multi-step parallel grid (2 steps -> both v7x cores).
    x3 = jax.random.normal(kx3, (2, 128, 128, 3), dtype=jnp.float32)
    out3 = jax.block_until_ready(linear_clamp(x3, weight, bias))
    ref3 = reference(x3, weight, bias)
    assert out3.shape == (2, 128, 128, 12)
    assert jnp.allclose(out3, ref3, atol=1e-5, rtol=1e-5)

    print("KERNEL_OK")
</pallas_src>

<mosaic_0001>
module attributes {stable_mosaic.version = 11 : i64} {
  func.func @_linear_clamp_packed_kernel(%arg0: i32, %arg1: memref<128x384xf32, #tpu.memory_space<vmem>>, %arg2: memref<24x3xf32, #tpu.memory_space<vmem>>, %arg3: memref<24x1xf32, #tpu.memory_space<vmem>>, %arg4: memref<128x1536xf32, #tpu.memory_space<vmem>>, %arg5: memref<384x128xf32, #tpu.memory_space<vmem>>, %arg6: memref<1536x128xf32, #tpu.memory_space<vmem>>) attributes {dimension_semantics = [#tpu.dimension_semantics<parallel>], iteration_bounds = array<i64: 1>, scalar_prefetch = 0 : i64, scratch_operands = 2 : i64, tpu.core_type = #tpu.core_type<tc>, window_params = [{transform_indices = @transform_0, window_bounds = array<i64: 128, 384>}, {pipeline_mode = #tpu.pipeline_mode<synchronous>, transform_indices = @transform_1, window_bounds = array<i64: 24, 3>}, {pipeline_mode = #tpu.pipeline_mode<synchronous>, transform_indices = @transform_2, window_bounds = array<i64: 24, 1>}, {transform_indices = @transform_3, window_bounds = array<i64: 128, 1536>}]} {
    %c0 = arith.constant 0 : index
    %c0_0 = arith.constant 0 : index
    %0 = vector.load %arg1[%c0, %c0_0] : memref<128x384xf32, #tpu.memory_space<vmem>>, vector<128x384xf32>
    %1 = tpu.transpose %0, [1, 0] : vector<128x384xf32> -> vector<384x128xf32>
    %c0_1 = arith.constant 0 : index
    %c0_2 = arith.constant 0 : index
    %2 = vector.load %arg5[%c0_1, %c0_2] : memref<384x128xf32, #tpu.memory_space<vmem>>, vector<384x128xf32>
    tpu.vector_store %arg5[%c0_1, %c0_2], %1 {strides = array<i32>} : memref<384x128xf32, #tpu.memory_space<vmem>>, vector<384x128xf32>,
    %c0_3 = arith.constant 0 : index
    %c0_4 = arith.constant 0 : index
    %3 = vector.load %arg2[%c0_3, %c0_4] : memref<24x3xf32, #tpu.memory_space<vmem>>, vector<24x1xf32>
    %4 = vector.shape_cast %3 : vector<24x1xf32> to vector<24x1xf32>
    %5 = vector.broadcast %4 : vector<24x1xf32> to vector<24x128xf32>
    %c0_5 = arith.constant 0 : index
    %c1 = arith.constant 1 : index
    %6 = vector.load %arg2[%c0_5, %c1] : memref<24x3xf32, #tpu.memory_space<vmem>>, vector<24x1xf32>
    %7 = vector.shape_cast %6 : vector<24x1xf32> to vector<24x1xf32>
    %8 = vector.broadcast %7 : vector<24x1xf32> to vector<24x128xf32>
    %c0_6 = arith.constant 0 : index
    %c2 = arith.constant 2 : index
    %9 = vector.load %arg2[%c0_6, %c2] : memref<24x3xf32, #tpu.memory_space<vmem>>, vector<24x1xf32>
    %10 = vector.shape_cast %9 : vector<24x1xf32> to vector<24x1xf32>
    %11 = vector.broadcast %10 : vector<24x1xf32> to vector<24x128xf32>
    %c0_7 = arith.constant 0 : index
    %c0_8 = arith.constant 0 : index
    %12 = vector.load %arg3[%c0_7, %c0_8] : memref<24x1xf32, #tpu.memory_space<vmem>>, vector<24x1xf32>
    %13 = vector.shape_cast %12 : vector<24x1xf32> to vector<24x1xf32>
    %14 = vector.broadcast %13 : vector<24x1xf32> to vector<24x128xf32>
    %15 = tpu.iota {dimensions = array<i32: 0>} : vector<24x128xi32>
    %c12_i32 = arith.constant 12 : i32
    %16 = vector.broadcast %c12_i32 : i32 to vector<24x128xi32>
    %17 = arith.cmpi slt, %15, %16 : vector<24x128xi32>
    %c0_9 = arith.constant 0 : index
    %c0_10 = arith.constant 0 : index
    %18 = vector.load %arg5[%c0_9, %c0_10] : memref<384x128xf32, #tpu.memory_space<vmem>>, vector<1x128xf32>
    %c3 = arith.constant 3 : index
    %c0_11 = arith.constant 0 : index
    %19 = vector.load %arg5[%c3, %c0_11] : memref<384x128xf32, #tpu.memory_space<vmem>>, vector<1x128xf32>
    %20 = vector.shape_cast %18 : vector<1x128xf32> to vector<1x128xf32>
    %21 = vector.broadcast %20 : vector<1x128xf32> to vector<24x128xf32>
    %22 = vector.shape_cast %19 : vector<1x128xf32> to vector<1x128xf32>
    %23 = vector.broadcast %22 : vector<1x128xf32> to vector<24x128xf32>
    %24 = arith.select %17, %21, %23 : vector<24x128xi1>, vector<24x128xf32>
    %25 = arith.mulf %5, %24 : vector<24x128xf32>
    %26 = arith.addf %14, %25 : vector<24x128xf32>
    %c1_12 = arith.constant 1 : index
    %c0_13 = arith.constant 0 : index
    %27 = vector.load %arg5[%c1_12, %c0_13] : memref<384x128xf32, #tpu.memory_space<vmem>>, vector<1x128xf32>
    %c4 = arith.constant 4 : index
    %c0_14 = arith.constant 0 : index
    %28 = vector.load %arg5[%c4, %c0_14] : memref<384x128xf32, #tpu.memory_space<vmem>>, vector<1x128xf32>
    %29 = vector.shape_cast %27 : vector<1x128xf32> to vector<1x128xf32>
    %30 = vector.broadcast %29 : vector<1x128xf32> to vector<24x128xf32>
    %31 = vector.shape_cast %28 : vector<1x128xf32> to vector<1x128xf32>
    %32 = vector.broadcast %31 : vector<1x128xf32> to vector<24x128xf32>
    %33 = arith.select %17, %30, %32 : vector<24x128xi1>, vector<24x128xf32>
    %34 = arith.mulf %8, %33 : vector<24x128xf32>
    %35 = arith.addf %26, %34 : vector<24x128xf32>
    %c2_15 = arith.constant 2 : index
    %c0_16 = arith.constant 0 : index
    %36 = vector.load %arg5[%c2_15, %c0_16] : memref<384x128xf32, #tpu.memory_space<vmem>>, vector<1x128xf32>
    %c5 = arith.constant 5 : index
    %c0_17 = arith.constant 0 : index
    %37 = vector.load %arg5[%c5, %c0_17] : memref<384x128xf32, #tpu.memory_space<vmem>>, vector<1x128xf32>
    %38 = vector.shape_cast %36 : vector<1x128xf32> to vector<1x128xf32>
    %39 = vector.broadcast %38 : vector<1x128xf32> to vector<24x128xf32>
    %40 = vector.shape_cast %37 : vector<1x128xf32> to vector<1x128xf32>
    %41 = vector.broadcast %40 : vector<1x128xf32> to vector<24x128xf32>
    %42 = arith.select %17, %39, %41 : vector<24x128xi1>, vector<24x128xf32>
    %43 = arith.mulf %11, %42 : vector<24x128xf32>
    %44 = arith.addf %35, %43 : vector<24x128xf32>
    %cst = arith.constant -1.73205078 : f32
    %cst_18 = arith.constant 3.7320509 : f32
    %45 = vector.broadcast %cst : f32 to vector<24x128xf32>
    %46 = arith.maximumf %45, %44 : vector<24x128xf32>
    %47 = vector.broadcast %cst_18 : f32 to vector<24x128xf32>
    %48 = arith.minimumf %47, %46 : vector<24x128xf32>
    %c0_19 = arith.constant 0 : index
    %c0_20 = arith.constant 0 : index
    %49 = vector.load %arg6[%c0_19, %c0_20] : memref<1536x128xf32, #tpu.memory_space<vmem>>, vector<24x128xf32>
    tpu.vector_store %arg6[%c0_19, %c0_20], %48 {strides = array<i32>} : memref<1536x128xf32, #tpu.memory_space<vmem>>, vector<24x128xf32>,
    %c6 = arith.constant 6 : index
    %c0_21 = arith.constant 0 : index
    %50 = vector.load %arg5[%c6, %c0_21] : memref<384x128xf32, #tpu.memory_space<vmem>>, vector<1x128xf32>
    %c9 = arith.constant 9 : index
    %c0_22 = arith.constant 0 : index
    %51 = vector.load %arg5[%c9, %c0_22] : memref<384x128xf32, #tpu.memory_space<vmem>>, vector<1x128xf32>
    %52 = vector.shape_cast %50 : vector<1x128xf32> to vector<1x128xf32>
    %53 = vector.broadcast %52 : vector<1x128xf32> to vector<24x128xf32>
    %54 = vector.shape_cast %51 : vector<1x128xf32> to vector<1x128xf32>
    %55 = vector.broadcast %54 : vector<1x128xf32> to vector<24x128xf32>
    %56 = arith.select %17, %53, %55 : vector<24x128xi1>, vector<24x128xf32>
    %57 = arith.mulf %5, %56 : vector<24x128xf32>
    %58 = arith.addf %14, %57 : vector<24x128xf32>
    %c7 = arith.constant 7 : index
    %c0_23 = arith.constant 0 : index
    %59 = vector.load %arg5[%c7, %c0_23] : memref<384x128xf32, #tpu.memory_space<vmem>>, vector<1x128xf32>
    %c10 = arith.constant 10 : index
    %c0_24 = arith.constant 0 : index
    %60 = vector.load %arg5[%c10, %c0_24] : memref<384x128xf32, #tpu.memory_space<vmem>>, vector<1x128xf32>
    %61 = vector.shape_cast %59 : vector<1x128xf32> to vector<1x128xf32>
    %62 = vector.broadcast %61 : vector<1x128xf32> to vector<24x128xf32>
    %63 = vector.shape_cast %60 : vector<1x128xf32> to vector<1x128xf32>
    %64 = vector.broadcast %63 : vector<1x128xf32> to vector<24x128xf32>
    %65 = arith.select %17, %62, %64 : vector<24x128xi1>, vector<24x128xf32>
    %66 = arith.mulf %8, %65 : vector<24x128xf32>
    %67 = arith.addf %58, %66 : vector<24x128xf32>
    %c8 = arith.constant 8 : index
    %c0_25 = arith.constant 0 : index
    %68 = vector.load %arg5[%c8, %c0_25] : memref<384x128xf32, #tpu.memory_space<vmem>>, vector<1x128xf32>
    %c11 = arith.constant 11 : index
    %c0_26 = arith.constant 0 : index
    %69 = vector.load %arg5[%c11, %c0_26] : memref<384x128xf32, #tpu.memory_space<vmem>>, vector<1x128xf32>
    %70 = vector.shape_cast %68 : vector<1x128xf32> to vector<1x128xf32>
    %71 = vector.broadcast %70 : vector<1x128xf32> to vector<24x128xf32>
    %72 = vector.shape_cast %69 : vector<1x128xf32> to vector<1x128xf32>
    %73 = vector.broadcast %72 : vector<1x128xf32> to vector<24x128xf32>
    %74 = arith.select %17, %71, %73 : vector<24x128xi1>, vector<24x128xf32>
    %75 = arith.mulf %11, %74 : vector<24x128xf32>
    %76 = arith.addf %67, %75 : vector<24x128xf32>
    %cst_27 = arith.constant -1.73205078 : f32
    %cst_28 = arith.constant 3.7320509 : f32
    %77 = vector.broadcast %cst_27 : f32 to vector<24x128xf32>
    %78 = arith.maximumf %77, %76 : vector<24x128xf32>
    %79 = vector.broadcast %cst_28 : f32 to vector<24x128xf32>
    %80 = arith.minimumf %79, %78 : vector<24x128xf32>
    %c24 = arith.constant 24 : index
    %c0_29 = arith.constant 0 : index
    %81 = vector.load %arg6[%c24, %c0_29] : memref<1536x128xf32, #tpu.memory_space<vmem>>, vector<24x128xf32>
    tpu.vector_store %arg6[%c24, %c0_29], %80 {strides = array<i32>} : memref<1536x128xf32, #tpu.memory_space<vmem>>, vector<24x128xf32>,
    %c12 = arith.constant 12 : index
    %c0_30 = arith.constant 0 : index
    %82 = vector.load %arg5[%c12, %c0_30] : memref<384x128xf32, #tpu.memory_space<vmem>>, vector<1x128xf32>
    %c15 = arith.constant 15 : index
    %c0_31 = arith.constant 0 : index
    %83 = vector.load %arg5[%c15, %c0_31] : memref<384x128xf32, #tpu.memory_space<vmem>>, vector<1x128xf32>
    %84 = vector.shape_cast %82 : vector<1x128xf32> to vector<1x128xf32>
    %85 = vector.broadcast %84 : vector<1x128xf32> to vector<24x128xf32>
    %86 = vector.shape_cast %83 : vector<1x128xf32> to vector<1x128xf32>
    %87 = vector.broadcast %86 : vector<1x128xf32> to vector<24x128xf32>
    %88 = arith.select %17, %85, %87 : vector<24x128xi1>, vector<24x128xf32>
    %89 = arith.mulf %5, %88 : vector<24x128xf32>
    %90 = arith.addf %14, %89 : vector<24x128xf32>
    %c13 = arith.constant 13 : index
    %c0_32 = arith.constant 0 : index
    %91 = vector.load %arg5[%c13, %c0_32] : memref<384x128xf32, #tpu.memory_space<vmem>>, vector<1x128xf32>
    %c16 = arith.constant 16 : index
    %c0_33 = arith.constant 0 : index
    %92 = vector.load %arg5[%c16, %c0_33] : memref<384x128xf32, #tpu.memory_space<vmem>>, vector<1x128xf32>
    %93 = vector.shape_cast %91 : vector<1x128xf32> to vector<1x128xf32>
    %94 = vector.broadcast %93 : vector<1x128xf32> to vector<24x128xf32>
    %95 = vector.shape_cast %92 : vector<1x128xf32> to vector<1x128xf32>
    %96 = vector.broadcast %95 : vector<1x128xf32> to vector<24x128xf32>
    %97 = arith.select %17, %94, %96 : vector<24x128xi1>, vector<24x128xf32>
    %98 = arith.mulf %8, %97 : vector<24x128xf32>
    %99 = arith.addf %90, %98 : vector<24x128xf32>
    %c14 = arith.constant 14 : index
    %c0_34 = arith.constant 0 : index
    %100 = vector.load %arg5[%c14, %c0_34] : memref<384x128xf32, #tpu.memory_space<vmem>>, vector<1x128xf32>
    %c17 = arith.constant 17 : index
    %c0_35 = arith.constant 0 : index
    %101 = vector.load %arg5[%c17, %c0_35] : memref<384x128xf32, #tpu.memory_space<vmem>>, vector<1x128xf32>
    %102 = vector.shape_cast %100 : vector<1x128xf32> to vector<1x128xf32>
    %103 = vector.broadcast %102 : vector<1x128xf32> to vector<24x128xf32>
    %104 = vector.shape_cast %101 : vector<1x128xf32> to vector<1x128xf32>
    %105 = vector.broadcast %104 : vector<1x128xf32> to vector<24x128xf32>
    %106 = arith.select %17, %103, %105 : vector<24x128xi1>, vector<24x128xf32>
    %107 = arith.mulf %11, %106 : vector<24x128xf32>
    %108 = arith.addf %99, %107 : vector<24x128xf32>
    %cst_36 = arith.constant -1.73205078 : f32
    %cst_37 = arith.constant 3.7320509 : f32
    %109 = vector.broadcast %cst_36 : f32 to vector<24x128xf32>
    %110 = arith.maximumf %109, %108 : vector<24x128xf32>
    %111 = vector.broadcast %cst_37 : f32 to vector<24x128xf32>
    %112 = arith.minimumf %111, %110 : vector<24x128xf32>
    %c48 = arith.constant 48 : index
    %c0_38 = arith.constant 0 : index
    %113 = vector.load %arg6[%c48, %c0_38] : memref<1536x128xf32, #tpu.memory_space<vmem>>, vector<24x128xf32>
    tpu.vector_store %arg6[%c48, %c0_38], %112 {strides = array<i32>} : memref<1536x128xf32, #tpu.memory_space<vmem>>, vector<24x128xf32>,
    %c18 = arith.constant 18 : index
    %c0_39 = arith.constant 0 : index
    %114 = vector.load %arg5[%c18, %c0_39] : memref<384x128xf32, #tpu.memory_space<vmem>>, vector<1x128xf32>
    %c21 = arith.constant 21 : index
    %c0_40 = arith.constant 0 : index
    %115 = vector.load %arg5[%c21, %c0_40] : memref<384x128xf32, #tpu.memory_space<vmem>>, vector<1x128xf32>
    %116 = vector.shape_cast %114 : vector<1x128xf32> to vector<1x128xf32>
    %117 = vector.broadcast %116 : vector<1x128xf32> to vector<24x128xf32>
    %118 = vector.shape_cast %115 : vector<1x128xf32> to vector<1x128xf32>
    %119 = vector.broadcast %118 : vector<1x128xf32> to vector<24x128xf32>
    %120 = arith.select %17, %117, %119 : vector<24x128xi1>, vector<24x128xf32>
    %121 = arith.mulf %5, %120 : vector<24x128xf32>
    %122 = arith.addf %14, %121 : vector<24x128xf32>
    %c19 = arith.constant 19 : index
    %c0_41 = arith.constant 0 : index
    %123 = vector.load %arg5[%c19, %c0_41] : memref<384x128xf32, #tpu.memory_space<vmem>>, vector<1x128xf32>
    %c22 = arith.constant 22 : index
    %c0_42 = arith.constant 0 : index
    %124 = vector.load %arg5[%c22, %c0_42] : memref<384x128xf32, #tpu.memory_space<vmem>>, vector<1x128xf32>
    %125 = vector.shape_cast %123 : vector<1x128xf32> to vector<1x128xf32>
    %126 = vector.broadcast %125 : vector<1x128xf32> to vector<24x128xf32>
    %127 = vector.shape_cast %124 : vector<1x128xf32> to vector<1x128xf32>
    %128 = vector.broadcast %127 : vector<1x128xf32> to vector<24x128xf32>
    %129 = arith.select %17, %126, %128 : vector<24x128xi1>, vector<24x128xf32>
    %130 = arith.mulf %8, %129 : vector<24x128xf32>
    %131 = arith.addf %122, %130 : vector<24x128xf32>
    %c20 = arith.constant 20 : index
    %c0_43 = arith.constant 0 : index
    %132 = vector.load %arg5[%c20, %c0_43] : memref<384x128xf32, #tpu.memory_space<vmem>>, vector<1x128xf32>
    %c23 = arith.constant 23 : index
    %c0_44 = arith.constant 0 : index
    %133 = vector.load %arg5[%c23, %c0_44] : memref<384x128xf32, #tpu.memory_space<vmem>>, vector<1x128xf32>
    %134 = vector.shape_cast %132 : vector<1x128xf32> to vector<1x128xf32>
    %135 = vector.broadcast %134 : vector<1x128xf32> to vector<24x128xf32>
    %136 = vector.shape_cast %133 : vector<1x128xf32> to vector<1x128xf32>
    %137 = vector.broadcast %136 : vector<1x128xf32> to vector<24x128xf32>
    %138 = arith.select %17, %135, %137 : vector<24x128xi1>, vector<24x128xf32>
    %139 = arith.mulf %11, %138 : vector<24x128xf32>
    %140 = arith.addf %131, %139 : vector<24x128xf32>
    %cst_45 = arith.constant -1.73205078 : f32
    %cst_46 = arith.constant 3.7320509 : f32
    %141 = vector.broadcast %cst_45 : f32 to vector<24x128xf32>
    %142 = arith.maximumf %141, %140 : vector<24x128xf32>
    %143 = vector.broadcast %cst_46 : f32 to vector<24x128xf32>
    %144 = arith.minimumf %143, %142 : vector<24x128xf32>
    %c72 = arith.constant 72 : index
    %c0_47 = arith.constant 0 : index
    %145 = vector.load %arg6[%c72, %c0_47] : memref<1536x128xf32, #tpu.memory_space<vmem>>, vector<24x128xf32>
    tpu.vector_store %arg6[%c72, %c0_47], %144 {strides = array<i32>} : memref<1536x128xf32, #tpu.memory_space<vmem>>, vector<24x128xf32>,
    %c24_48 = arith.constant 24 : index
    %c0_49 = arith.constant 0 : index
    %146 = vector.load %arg5[%c24_48, %c0_49] : memref<384x128xf32, #tpu.memory_space<vmem>>, vector<1x128xf32>
    %c27 = arith.constant 27 : index
    %c0_50 = arith.constant 0 : index
    %147 = vector.load %arg5[%c27, %c0_50] : memref<384x128xf32, #tpu.memory_space<vmem>>, vector<1x128xf32>
    %148 = vector.shape_cast %146 : vector<1x128xf32> to vector<1x128xf32>
    %149 = vector.broadcast %148 : vector<1x128xf32> to vector<24x128xf32>
    %150 = vector.shape_cast %147 : vector<1x128xf32> to vector<1x128xf32>
    %151 = vector.broadcast %150 : vector<1x128xf32> to vector<24x128xf32>
    %152 = arith.select %17, %149, %151 : vector<24x128xi1>, vector<24x128xf32>
    %153 = arith.mulf %5, %152 : vector<24x128xf32>
    %154 = arith.addf %14, %153 : vector<24x128xf32>
    %c25 = arith.constant 25 : index
    %c0_51 = arith.constant 0 : index
    %155 = vector.load %arg5[%c25, %c0_51] : memref<384x128xf32, #tpu.memory_space<vmem>>, vector<1x128xf32>
    %c28 = arith.constant 28 : index
    %c0_52 = arith.constant 0 : index
    %156 = vector.load %arg5[%c28, %c0_52] : memref<384x128xf32, #tpu.memory_space<vmem>>, vector<1x128xf32>
    %157 = vector.shape_cast %155 : vector<1x128xf32> to vector<1x128xf32>
    %158 = vector.broadcast %157 : vector<1x128xf32> to vector<24x128xf32>
    %159 = vector.shape_cast %156 : vector<1x128xf32> to vector<1x128xf32>
    %160 = vector.broadcast %159 : vector<1x128xf32> to vector<24x128xf32>
    %161 = arith.select %17, %158, %160 : vector<24x128xi1>, vector<24x128xf32>
    %162 = arith.mulf %8, %161 : vector<24x128xf32>
    %163 = arith.addf %154, %162 : vector<24x128xf32>
    %c26 = arith.constant 26 : index
    %c0_53 = arith.constant 0 : index
    %164 = vector.load %arg5[%c26, %c0_53] : memref<384x128xf32, #tpu.memory_space<vmem>>, vector<1x128xf32>
    %c29 = arith.constant 29 : index
    %c0_54 = arith.constant 0 : index
    %165 = vector.load %arg5[%c29, %c0_54] : memref<384x128xf32, #tpu.memory_space<vmem>>, vector<1x128xf32>
    %166 = vector.shape_cast %164 : vector<1x128xf32> to vector<1x128xf32>
    %167 = vector.broadcast %166 : vector<1x128xf32> to vector<24x128xf32>
    %168 = vector.shape_cast %165 : vector<1x128xf32> to vector<1x128xf32>
    %169 = vector.broadcast %168 : vector<1x128xf32> to vector<24x128xf32>
    %170 = arith.select %17, %167, %169 : vector<24x128xi1>, vector<24x128xf32>
    %171 = arith.mulf %11, %170 : vector<24x128xf32>
    %172 = arith.addf %163, %171 : vector<24x128xf32>
    %cst_55 = arith.constant -1.73205078 : f32
    %cst_56 = arith.constant 3.7320509 : f32
    %173 = vector.broadcast %cst_55 : f32 to vector<24x128xf32>
    %174 = arith.maximumf %173, %172 : vector<24x128xf32>
    %175 = vector.broadcast %cst_56 : f32 to vector<24x128xf32>
    %176 = arith.minimumf %175, %174 : vector<24x128xf32>
    %c96 = arith.constant 96 : index
    %c0_57 = arith.constant 0 : index
    %177 = vector.load %arg6[%c96, %c0_57] : memref<1536x128xf32, #tpu.memory_space<vmem>>, vector<24x128xf32>
    tpu.vector_store %arg6[%c96, %c0_57], %176 {strides = array<i32>} : memref<1536x128xf32, #tpu.memory_space<vmem>>, vector<24x128xf32>,
    %c30 = arith.constant 30 : index
    %c0_58 = arith.constant 0 : index
    %178 = vector.load %arg5[%c30, %c0_58] : memref<384x128xf32, #tpu.memory_space<vmem>>, vector<1x128xf32>
    %c33 = arith.constant 33 : index
    %c0_59 = arith.constant 0 : index
    %179 = vector.load %arg5[%c33, %c0_59] : memref<384x128xf32, #tpu.memory_space<vmem>>, vector<1x128xf32>
    %180 = vector.shape_cast %178 : vector<1x128xf32> to vector<1x128xf32>
    %181 = vector.broadcast %180 : vector<1x128xf32> to vector<24x128xf32>
    %182 = vector.shape_cast %179 : vector<1x128xf32> to vector<1x128xf32>
    %183 = vector.broadcast %182 : vector<1x128xf32> to vector<24x128xf32>
    %184 = arith.select %17, %181, %183 : vector<24x128xi1>, vector<24x128xf32>
    %185 = arith.mulf %5, %184 : vector<24x128xf32>
    %186 = arith.addf %14, %185 : vector<24x128xf32>
    %c31 = arith.constant 31 : index
    %c0_60 = arith.constant 0 : index
    %187 = vector.load %arg5[%c31, %c0_60] : memref<384x128xf32, #tpu.memory_space<vmem>>, vector<1x128xf32>
    %c34 = arith.constant 34 : index
    %c0_61 = arith.constant 0 : index
    %188 = vector.load %arg5[%c34, %c0_61] : memref<384x128xf32, #tpu.memory_space<vmem>>, vector<1x128xf32>
    %189 = vector.shape_cast %187 : vector<1x128xf32> to vector<1x128xf32>
    %190 = vector.broadcast %189 : vector<1x128xf32> to vector<24x128xf32>
    %191 = vector.shape_cast %188 : vector<1x128xf32> to vector<1x128xf32>
    %192 = vector.broadcast %191 : vector<1x128xf32> to vector<24x128xf32>
    %193 = arith.select %17, %190, %192 : vector<24x128xi1>, vector<24x128xf32>
    %194 = arith.mulf %8, %193 : vector<24x128xf32>
    %195 = arith.addf %186, %194 : vector<24x128xf32>
    %c32 = arith.constant 32 : index
    %c0_62 = arith.constant 0 : index
    %196 = vector.load %arg5[%c32, %c0_62] : memref<384x128xf32, #tpu.memory_space<vmem>>, vector<1x128xf32>
    %c35 = arith.constant 35 : index
    %c0_63 = arith.constant 0 : index
    %197 = vector.load %arg5[%c35, %c0_63] : memref<384x128xf32, #tpu.memory_space<vmem>>, vector<1x128xf32>
    %198 = vector.shape_cast %196 : vector<1x128xf32> to vector<1x128xf32>
    %199 = vector.broadcast %198 : vector<1x128xf32> to vector<24x128xf32>
    %200 = vector.shape_cast %197 : vector<1x128xf32> to vector<1x128xf32>
    %201 = vector.broadcast %200 : vector<1x128xf32> to vector<24x128xf32>
    %202 = arith.select %17, %199, %201 : vector<24x128xi1>, vector<24x128xf32>
    %203 = arith.mulf %11, %202 : vector<24x128xf32>
    %204 = arith.addf %195, %203 : vector<24x128xf32>
    %cst_64 = arith.constant -1.73205078 : f32
    %cst_65 = arith.constant 3.7320509 : f32
    %205 = vector.broadcast %cst_64 : f32 to vector<24x128xf32>
    %206 = arith.maximumf %205, %204 : vector<24x128xf32>
    %207 = vector.broadcast %cst_65 : f32 to vector<24x128xf32>
    %208 = arith.minimumf %207, %206 : vector<24x128xf32>
    %c120 = arith.constant 120 : index
    %c0_66 = arith.constant 0 : index
    %209 = vector.load %arg6[%c120, %c0_66] : memref<1536x128xf32, #tpu.memory_space<vmem>>, vector<24x128xf32>
    tpu.vector_store %arg6[%c120, %c0_66], %208 {strides = array<i32>} : memref<1536x128xf32, #tpu.memory_space<vmem>>, vector<24x128xf32>,
    %c36 = arith.constant 36 : index
    %c0_67 = arith.constant 0 : index
    %210 = vector.load %arg5[%c36, %c0_67] : memref<384x128xf32, #tpu.memory_space<vmem>>, vector<1x128xf32>
    %c39 = arith.constant 39 : index
    %c0_68 = arith.constant 0 : index
    %211 = vector.load %arg5[%c39, %c0_68] : memref<384x128xf32, #tpu.memory_space<vmem>>, vector<1x128xf32>
    %212 = vector.shape_cast %210 : vector<1x128xf32> to vector<1x128xf32>
    %213 = vector.broadcast %212 : vector<1x128xf32> to vector<24x128xf32>
    %214 = vector.shape_cast %211 : vector<1x128xf32> to vector<1x128xf32>
    %215 = vector.broadcast %214 : vector<1x128xf32> to vector<24x128xf32>
    %216 = arith.select %17, %213, %215 : vector<24x128xi1>, vector<24x128xf32>
    %217 = arith.mulf %5, %216 : vector<24x128xf32>
    %218 = arith.addf %14, %217 : vector<24x128xf32>
    %c37 = arith.constant 37 : index
    %c0_69 = arith.constant 0 : index
    %219 = vector.load %arg5[%c37, %c0_69] : memref<384x128xf32, #tpu.memory_space<vmem>>, vector<1x128xf32>
    %c40 = arith.constant 40 : index
    %c0_70 = arith.constant 0 : index
    %220 = vector.load %arg5[%c40, %c0_70] : memref<384x128xf32, #tpu.memory_space<vmem>>, vector<1x128xf32>
    %221 = vector.shape_cast %219 : vector<1x128xf32> to vector<1x128xf32>
    %222 = vector.broadcast %221 : vector<1x128xf32> to vector<24x128xf32>
    %223 = vector.shape_cast %220 : vector<1x128xf32> to vector<1x128xf32>
    %224 = vector.broadcast %223 : vector<1x128xf32> to vector<24x128xf32>
    %225 = arith.select %17, %222, %224 : vector<24x128xi1>, vector<24x128xf32>
    %226 = arith.mulf %8, %225 : vector<24x128xf32>
    %227 = arith.addf %218, %226 : vector<24x128xf32>
    %c38 = arith.constant 38 : index
    %c0_71 = arith.constant 0 : index
    %228 = vector.load %arg5[%c38, %c0_71] : memref<384x128xf32, #tpu.memory_space<vmem>>, vector<1x128xf32>
    %c41 = arith.constant 41 : index
    %c0_72 = arith.constant 0 : index
    %229 = vector.load %arg5[%c41, %c0_72] : memref<384x128xf32, #tpu.memory_space<vmem>>, vector<1x128xf32>
    %230 = vector.shape_cast %228 : vector<1x128xf32> to vector<1x128xf32>
    %231 = vector.broadcast %230 : vector<1x128xf32> to vector<24x128xf32>
    %232 = vector.shape_cast %229 : vector<1x128xf32> to vector<1x128xf32>
    %233 = vector.broadcast %232 : vector<1x128xf32> to vector<24x128xf32>
    %234 = arith.select %17, %231, %233 : vector<24x128xi1>, vector<24x128xf32>
    %235 = arith.mulf %11, %234 : vector<24x128xf32>
    %236 = arith.addf %227, %235 : vector<24x128xf32>
    %cst_73 = arith.constant -1.73205078 : f32
    %cst_74 = arith.constant 3.7320509 : f32
    %237 = vector.broadcast %cst_73 : f32 to vector<24x128xf32>
    %238 = arith.maximumf %237, %236 : vector<24x128xf32>
    %239 = vector.broadcast %cst_74 : f32 to vector<24x128xf32>
    %240 = arith.minimumf %239, %238 : vector<24x128xf32>
    %c144 = arith.constant 144 : index
    %c0_75 = arith.constant 0 : index
    %241 = vector.load %arg6[%c144, %c0_75] : memref<1536x128xf32, #tpu.memory_space<vmem>>, vector<24x128xf32>
    tpu.vector_store %arg6[%c144, %c0_75], %240 {strides = array<i32>} : memref<1536x128xf32, #tpu.memory_space<vmem>>, vector<24x128xf32>,
    %c42 = arith.constant 42 : index
    %c0_76 = arith.constant 0 : index
    %242 = vector.load %arg5[%c42, %c0_76] : memref<384x128xf32, #tpu.memory_space<vmem>>, vector<1x128xf32>
    %c45 = arith.constant 45 : index
    %c0_77 = arith.constant 0 : index
    %243 = vector.load %arg5[%c45, %c0_77] : memref<384x128xf32, #tpu.memory_space<vmem>>, vector<1x128xf32>
    %244 = vector.shape_cast %242 : vector<1x128xf32> to vector<1x128xf32>
    %245 = vector.broadcast %244 : vector<1x128xf32> to vector<24x128xf32>
    %246 = vector.shape_cast %243 : vector<1x128xf32> to vector<1x128xf32>
    %247 = vector.broadcast %246 : vector<1x128xf32> to vector<24x128xf32>
    %248 = arith.select %17, %245, %247 : vector<24x128xi1>, vector<24x128xf32>
    %249 = arith.mulf %5, %248 : vector<24x128xf32>
    %250 = arith.addf %14, %249 : vector<24x128xf32>
    %c43 = arith.constant 43 : index
    %c0_78 = arith.constant 0 : index
    %251 = vector.load %arg5[%c43, %c0_78] : memref<384x128xf32, #tpu.memory_space<vmem>>, vector<1x128xf32>
    %c46 = arith.constant 46 : index
    %c0_79 = arith.constant 0 : index
    %252 = vector.load %arg5[%c46, %c0_79] : memref<384x128xf32, #tpu.memory_space<vmem>>, vector<1x128xf32>
    %253 = vector.shape_cast %251 : vector<1x128xf32> to vector<1x128xf32>
    %254 = vector.broadcast %253 : vector<1x128xf32> to vector<24x128xf32>
    %255 = vector.shape_cast %252 : vector<1x128xf32> to vector<1x128xf32>
    %256 = vector.broadcast %255 : vector<1x128xf32> to vector<24x128xf32>
    %257 = arith.select %17, %254, %256 : vector<24x128xi1>, vector<24x128xf32>
    %258 = arith.mulf %8, %257 : vector<24x128xf32>
    %259 = arith.addf %250, %258 : vector<24x128xf32>
    %c44 = arith.constant 44 : index
    %c0_80 = arith.constant 0 : index
    %260 = vector.load %arg5[%c44, %c0_80] : memref<384x128xf32, #tpu.memory_space<vmem>>, vector<1x128xf32>
    %c47 = arith.constant 47 : index
    %c0_81 = arith.constant 0 : index
    %261 = vector.load %arg5[%c47, %c0_81] : memref<384x128xf32, #tpu.memory_space<vmem>>, vector<1x128xf32>
    %262 = vector.shape_cast %260 : vector<1x128xf32> to vector<1x128xf32>
    %263 = vector.broadcast %262 : vector<1x128xf32> to vector<24x128xf32>
    %264 = vector.shape_cast %261 : vector<1x128xf32> to vector<1x128xf32>
    %265 = vector.broadcast %264 : vector<1x128xf32> to vector<24x128xf32>
    %266 = arith.select %17, %263, %265 : vector<24x128xi1>, vector<24x128xf32>
    %267 = arith.mulf %11, %266 : vector<24x128xf32>
    %268 = arith.addf %259, %267 : vector<24x128xf32>
    %cst_82 = arith.constant -1.73205078 : f32
    %cst_83 = arith.constant 3.7320509 : f32
    %269 = vector.broadcast %cst_82 : f32 to vector<24x128xf32>
    %270 = arith.maximumf %269, %268 : vector<24x128xf32>
    %271 = vector.broadcast %cst_83 : f32 to vector<24x128xf32>
    %272 = arith.minimumf %271, %270 : vector<24x128xf32>
    %c168 = arith.constant 168 : index
    %c0_84 = arith.constant 0 : index
    %273 = vector.load %arg6[%c168, %c0_84] : memref<1536x128xf32, #tpu.memory_space<vmem>>, vector<24x128xf32>
    tpu.vector_store %arg6[%c168, %c0_84], %272 {strides = array<i32>} : memref<1536x128xf32, #tpu.memory_space<vmem>>, vector<24x128xf32>,
    %c48_85 = arith.constant 48 : index
    %c0_86 = arith.constant 0 : index
    %274 = vector.load %arg5[%c48_85, %c0_86] : memref<384x128xf32, #tpu.memory_space<vmem>>, vector<1x128xf32>
    %c51 = arith.constant 51 : index
    %c0_87 = arith.constant 0 : index
    %275 = vector.load %arg5[%c51, %c0_87] : memref<384x128xf32, #tpu.memory_space<vmem>>, vector<1x128xf32>
    %276 = vector.shape_cast %274 : vector<1x128xf32> to vector<1x128xf32>
    %277 = vector.broadcast %276 : vector<1x128xf32> to vector<24x128xf32>
    %278 = vector.shape_cast %275 : vector<1x128xf32> to vector<1x128xf32>
    %279 = vector.broadcast %278 : vector<1x128xf32> to vector<24x128xf32>
    %280 = arith.select %17, %277, %279 : vector<24x128xi1>, vector<24x128xf32>
    %281 = arith.mulf %5, %280 : vector<24x128xf32>
    %282 = arith.addf %14, %281 : vector<24x128xf32>
    %c49 = arith.constant 49 : index
    %c0_88 = arith.constant 0 : index
    %283 = vector.load %arg5[%c49, %c0_88] : memref<384x128xf32, #tpu.memory_space<vmem>>, vector<1x128xf32>
    %c52 = arith.constant 52 : index
    %c0_89 = arith.constant 0 : index
    %284 = vector.load %arg5[%c52, %c0_89] : memref<384x128xf32, #tpu.memory_space<vmem>>, vector<1x128xf32>
    %285 = vector.shape_cast %283 : vector<1x128xf32> to vector<1x128xf32>
    %286 = vector.broadcast %285 : vector<1x128xf32> to vector<24x128xf32>
    %287 = vector.shape_cast %284 : vector<1x128xf32> to vector<1x128xf32>
    %288 = vector.broadcast %287 : vector<1x128xf32> to vector<24x128xf32>
    %289 = arith.select %17, %286, %288 : vector<24x128xi1>, vector<24x128xf32>
    %290 = arith.mulf %8, %289 : vector<24x128xf32>
    %291 = arith.addf %282, %290 : vector<24x128xf32>
    %c50 = arith.constant 50 : index
    %c0_90 = arith.constant 0 : index
    %292 = vector.load %arg5[%c50, %c0_90] : memref<384x128xf32, #tpu.memory_space<vmem>>, vector<1x128xf32>
    %c53 = arith.constant 53 : index
    %c0_91 = arith.constant 0 : index
    %293 = vector.load %arg5[%c53, %c0_91] : memref<384x128xf32, #tpu.memory_space<vmem>>, vector<1x128xf32>
    %294 = vector.shape_cast %292 : vector<1x128xf32> to vector<1x128xf32>
    %295 = vector.broadcast %294 : vector<1x128xf32> to vector<24x128xf32>
    %296 = vector.shape_cast %293 : vector<1x128xf32> to vector<1x128xf32>
    %297 = vector.broadcast %296 : vector<1x128xf32> to vector<24x128xf32>
    %298 = arith.select %17, %295, %297 : vector<24x128xi1>, vector<24x128xf32>
    %299 = arith.mulf %11, %298 : vector<24x128xf32>
    %300 = arith.addf %291, %299 : vector<24x128xf32>
    %cst_92 = arith.constant -1.73205078 : f32
    %cst_93 = arith.constant 3.7320509 : f32
    %301 = vector.broadcast %cst_92 : f32 to vector<24x128xf32>
    %302 = arith.maximumf %301, %300 : vector<24x128xf32>
    %303 = vector.broadcast %cst_93 : f32 to vector<24x128xf32>
    %304 = arith.minimumf %303, %302 : vector<24x128xf32>
    %c192 = arith.constant 192 : index
    %c0_94 = arith.constant 0 : index
    %305 = vector.load %arg6[%c192, %c0_94] : memref<1536x128xf32, #tpu.memory_space<vmem>>, vector<24x128xf32>
    tpu.vector_store %arg6[%c192, %c0_94], %304 {strides = array<i32>} : memref<1536x128xf32, #tpu.memory_space<vmem>>, vector<24x128xf32>,
    %c54 = arith.constant 54 : index
    %c0_95 = arith.constant 0 : index
    %306 = vector.load %arg5[%c54, %c0_95] : memref<384x128xf32, #tpu.memory_space<vmem>>, vector<1x128xf32>
    %c57 = arith.constant 57 : index
    %c0_96 = arith.constant 0 : index
    %307 = vector.load %arg5[%c57, %c0_96] : memref<384x128xf32, #tpu.memory_space<vmem>>, vector<1x128xf32>
    %308 = vector.shape_cast %306 : vector<1x128xf32> to vector<1x128xf32>
    %309 = vector.broadcast %308 : vector<1x128xf32> to vector<24x128xf32>
    %310 = vector.shape_cast %307 : vector<1x128xf32> to vector<1x128xf32>
    %311 = vector.broadcast %310 : vector<1x128xf32> to vector<24x128xf32>
    %312 = arith.select %17, %309, %311 : vector<24x128xi1>, vector<24x128xf32>
    %313 = arith.mulf %5, %312 : vector<24x128xf32>
    %314 = arith.addf %14, %313 : vector<24x128xf32>
    %c55 = arith.constant 55 : index
    %c0_97 = arith.constant 0 : index
    %315 = vector.load %arg5[%c55, %c0_97] : memref<384x128xf32, #tpu.memory_space<vmem>>, vector<1x128xf32>
    %c58 = arith.constant 58 : index
    %c0_98 = arith.constant 0 : index
    %316 = vector.load %arg5[%c58, %c0_98] : memref<384x128xf32, #tpu.memory_space<vmem>>, vector<1x128xf32>
    %317 = vector.shape_cast %315 : vector<1x128xf32> to vector<1x128xf32>
    %318 = vector.broadcast %317 : vector<1x128xf32> to vector<24x128xf32>
    %319 = vector.shape_cast %316 : vector<1x128xf32> to vector<1x128xf32>
    %320 = vector.broadcast %319 : vector<1x128xf32> to vector<24x128xf32>
    %321 = arith.select %17, %318, %320 : vector<24x128xi1>, vector<24x128xf32>
    %322 = arith.mulf %8, %321 : vector<24x128xf32>
    %323 = arith.addf %314, %322 : vector<24x128xf32>
    %c56 = arith.constant 56 : index
    %c0_99 = arith.constant 0 : index
    %324 = vector.load %arg5[%c56, %c0_99] : memref<384x128xf32, #tpu.memory_space<vmem>>, vector<1x128xf32>
    %c59 = arith.constant 59 : index
    %c0_100 = arith.constant 0 : index
    %325 = vector.load %arg5[%c59, %c0_100] : memref<384x128xf32, #tpu.memory_space<vmem>>, vector<1x128xf32>
    %326 = vector.shape_cast %324 : vector<1x128xf32> to vector<1x128xf32>
    %327 = vector.broadcast %326 : vector<1x128xf32> to vector<24x128xf32>
    %328 = vector.shape_cast %325 : vector<1x128xf32> to vector<1x128xf32>
    %329 = vector.broadcast %328 : vector<1x128xf32> to vector<24x128xf32>
    %330 = arith.select %17, %327, %329 : vector<24x128xi1>, vector<24x128xf32>
    %331 = arith.mulf %11, %330 : vector<24x128xf32>
    %332 = arith.addf %323, %331 : vector<24x128xf32>
    %cst_101 = arith.constant -1.73205078 : f32
    %cst_102 = arith.constant 3.7320509 : f32
    %333 = vector.broadcast %cst_101 : f32 to vector<24x128xf32>
    %334 = arith.maximumf %333, %332 : vector<24x128xf32>
    %335 = vector.broadcast %cst_102 : f32 to vector<24x128xf32>
    %336 = arith.minimumf %335, %334 : vector<24x128xf32>
    %c216 = arith.constant 216 : index
    %c0_103 = arith.constant 0 : index
    %337 = vector.load %arg6[%c216, %c0_103] : memref<1536x128xf32, #tpu.memory_space<vmem>>, vector<24x128xf32>
    tpu.vector_store %arg6[%c216, %c0_103], %336 {strides = array<i32>} : memref<1536x128xf32, #tpu.memory_space<vmem>>, vector<24x128xf32>,
    %c60 = arith.constant 60 : index
    %c0_104 = arith.constant 0 : index
    %338 = vector.load %arg5[%c60, %c0_104] : memref<384x128xf32, #tpu.memory_space<vmem>>, vector<1x128xf32>
    %c63 = arith.constant 63 : index
    %c0_105 = arith.constant 0 : index
    %339 = vector.load %arg5[%c63, %c0_105] : memref<384x128xf32, #tpu.memory_space<vmem>>, vector<1x128xf32>
    %340 = vector.shape_cast %338 : vector<1x128xf32> to vector<1x128xf32>
    %341 = vector.broadcast %340 : vector<1x128xf32> to vector<24x128xf32>
    %342 = vector.shape_cast %339 : vector<1x128xf32> to vector<1x128xf32>
    %343 = vector.broadcast %342 : vector<1x128xf32> to vector<24x128xf32>
    %344 = arith.select %17, %341, %343 : vector<24x128xi1>, vector<24x128xf32>
    %345 = arith.mulf %5, %344 : vector<24x128xf32>
    %346 = arith.addf %14, %345 : vector<24x128xf32>
    %c61 = arith.constant 61 : index
    %c0_106 = arith.constant 0 : index
    %347 = vector.load %arg5[%c61, %c0_106] : memref<384x128xf32, #tpu.memory_space<vmem>>, vector<1x128xf32>
    %c64 = arith.constant 64 : index
    %c0_107 = arith.constant 0 : index
    %348 = vector.load %arg5[%c64, %c0_107] : memref<384x128xf32, #tpu.memory_space<vmem>>, vector<1x128xf32>
    %349 = vector.shape_cast %347 : vector<1x128xf32> to vector<1x128xf32>
    %350 = vector.broadcast %349 : vector<1x128xf32> to vector<24x128xf32>
    %351 = vector.shape_cast %348 : vector<1x128xf32> to vector<1x128xf32>
    %352 = vector.broadcast %351 : vector<1x128xf32> to vector<24x128xf32>
    %353 = arith.select %17, %350, %352 : vector<24x128xi1>, vector<24x128xf32>
    %354 = arith.mulf %8, %353 : vector<24x128xf32>
    %355 = arith.addf %346, %354 : vector<24x128xf32>
    %c62 = arith.constant 62 : index
    %c0_108 = arith.constant 0 : index
    %356 = vector.load %arg5[%c62, %c0_108] : memref<384x128xf32, #tpu.memory_space<vmem>>, vector<1x128xf32>
    %c65 = arith.constant 65 : index
    %c0_109 = arith.constant 0 : index
    %357 = vector.load %arg5[%c65, %c0_109] : memref<384x128xf32, #tpu.memory_space<vmem>>, vector<1x128xf32>
    %358 = vector.shape_cast %356 : vector<1x128xf32> to vector<1x128xf32>
    %359 = vector.broadcast %358 : vector<1x128xf32> to vector<24x128xf32>
    %360 = vector.shape_cast %357 : vector<1x128xf32> to vector<1x128xf32>
    %361 = vector.broadcast %360 : vector<1x128xf32> to vector<24x128xf32>
    %362 = arith.select %17, %359, %361 : vector<24x128xi1>, vector<24x128xf32>
    %363 = arith.mulf %11, %362 : vector<24x128xf32>
    %364 = arith.addf %355, %363 : vector<24x128xf32>
    %cst_110 = arith.constant -1.73205078 : f32
    %cst_111 = arith.constant 3.7320509 : f32
    %365 = vector.broadcast %cst_110 : f32 to vector<24x128xf32>
    %366 = arith.maximumf %365, %364 : vector<24x128xf32>
    %367 = vector.broadcast %cst_111 : f32 to vector<24x128xf32>
    %368 = arith.minimumf %367, %366 : vector<24x128xf32>
    %c240 = arith.constant 240 : index
    %c0_112 = arith.constant 0 : index
    %369 = vector.load %arg6[%c240, %c0_112] : memref<1536x128xf32, #tpu.memory_space<vmem>>, vector<24x128xf32>
    tpu.vector_store %arg6[%c240, %c0_112], %368 {strides = array<i32>} : memref<1536x128xf32, #tpu.memory_space<vmem>>, vector<24x128xf32>,
    %c66 = arith.constant 66 : index
    %c0_113 = arith.constant 0 : index
    %370 = vector.load %arg5[%c66, %c0_113] : memref<384x128xf32, #tpu.memory_space<vmem>>, vector<1x128xf32>
    %c69 = arith.constant 69 : index
    %c0_114 = arith.constant 0 : index
    %371 = vector.load %arg5[%c69, %c0_114] : memref<384x128xf32, #tpu.memory_space<vmem>>, vector<1x128xf32>
    %372 = vector.shape_cast %370 : vector<1x128xf32> to vector<1x128xf32>
    %373 = vector.broadcast %372 : vector<1x128xf32> to vector<24x128xf32>
    %374 = vector.shape_cast %371 : vector<1x128xf32> to vector<1x128xf32>
    %375 = vector.broadcast %374 : vector<1x128xf32> to vector<24x128xf32>
    %376 = arith.select %17, %373, %375 : vector<24x128xi1>, vector<24x128xf32>
    %377 = arith.mulf %5, %376 : vector<24x128xf32>
    %378 = arith.addf %14, %377 : vector<24x128xf32>
    %c67 = arith.constant 67 : index
    %c0_115 = arith.constant 0 : index
    %379 = vector.load %arg5[%c67, %c0_115] : memref<384x128xf32, #tpu.memory_space<vmem>>, vector<1x128xf32>
    %c70 = arith.constant 70 : index
    %c0_116 = arith.constant 0 : index
    %380 = vector.load %arg5[%c70, %c0_116] : memref<384x128xf32, #tpu.memory_space<vmem>>, vector<1x128xf32>
    %381 = vector.shape_cast %379 : vector<1x128xf32> to vector<1x128xf32>
    %382 = vector.broadcast %381 : vector<1x128xf32> to vector<24x128xf32>
    %383 = vector.shape_cast %380 : vector<1x128xf32> to vector<1x128xf32>
    %384 = vector.broadcast %383 : vector<1x128xf32> to vector<24x128xf32>
    %385 = arith.select %17, %382, %384 : vector<24x128xi1>, vector<24x128xf32>
    %386 = arith.mulf %8, %385 : vector<24x128xf32>
    %387 = arith.addf %378, %386 : vector<24x128xf32>
    %c68 = arith.constant 68 : index
    %c0_117 = arith.constant 0 : index
    %388 = vector.load %arg5[%c68, %c0_117] : memref<384x128xf32, #tpu.memory_space<vmem>>, vector<1x128xf32>
    %c71 = arith.constant 71 : index
    %c0_118 = arith.constant 0 : index
    %389 = vector.load %arg5[%c71, %c0_118] : memref<384x128xf32, #tpu.memory_space<vmem>>, vector<1x128xf32>
    %390 = vector.shape_cast %388 : vector<1x128xf32> to vector<1x128xf32>
    %391 = vector.broadcast %390 : vector<1x128xf32> to vector<24x128xf32>
    %392 = vector.shape_cast %389 : vector<1x128xf32> to vector<1x128xf32>
    %393 = vector.broadcast %392 : vector<1x128xf32> to vector<24x128xf32>
    %394 = arith.select %17, %391, %393 : vector<24x128xi1>, vector<24x128xf32>
    %395 = arith.mulf %11, %394 : vector<24x128xf32>
    %396 = arith.addf %387, %395 : vector<24x128xf32>
    %cst_119 = arith.constant -1.73205078 : f32
    %cst_120 = arith.constant 3.7320509 : f32
    %397 = vector.broadcast %cst_119 : f32 to vector<24x128xf32>
    %398 = arith.maximumf %397, %396 : vector<24x128xf32>
    %399 = vector.broadcast %cst_120 : f32 to vector<24x128xf32>
    %400 = arith.minimumf %399, %398 : vector<24x128xf32>
    %c264 = arith.constant 264 : index
    %c0_121 = arith.constant 0 : index
    %401 = vector.load %arg6[%c264, %c0_121] : memref<1536x128xf32, #tpu.memory_space<vmem>>, vector<24x128xf32>
    tpu.vector_store %arg6[%c264, %c0_121], %400 {strides = array<i32>} : memref<1536x128xf32, #tpu.memory_space<vmem>>, vector<24x128xf32>,
    %c72_122 = arith.constant 72 : index
    %c0_123 = arith.constant 0 : index
    %402 = vector.load %arg5[%c72_122, %c0_123] : memref<384x128xf32, #tpu.memory_space<vmem>>, vector<1x128xf32>
    %c75 = arith.constant 75 : index
    %c0_124 = arith.constant 0 : index
    %403 = vector.load %arg5[%c75, %c0_124] : memref<384x128xf32, #tpu.memory_space<vmem>>, vector<1x128xf32>
    %404 = vector.shape_cast %402 : vector<1x128xf32> to vector<1x128xf32>
    %405 = vector.broadcast %404 : vector<1x128xf32> to vector<24x128xf32>
    %406 = vector.shape_cast %403 : vector<1x128xf32> to vector<1x128xf32>
    %407 = vector.broadcast %406 : vector<1x128xf32> to vector<24x128xf32>
    %408 = arith.select %17, %405, %407 : vector<24x128xi1>, vector<24x128xf32>
    %409 = arith.mulf %5, %408 : vector<24x128xf32>
    %410 = arith.addf %14, %409 : vector<24x128xf32>
    %c73 = arith.constant 73 : index
    %c0_125 = arith.constant 0 : index
    %411 = vector.load %arg5[%c73, %c0_125] : memref<384x128xf32, #tpu.memory_space<vmem>>, vector<1x128xf32>
    %c76 = arith.constant 76 : index
    %c0_126 = arith.constant 0 : index
    %412 = vector.load %arg5[%c76, %c0_126] : memref<384x128xf32, #tpu.memory_space<vmem>>, vector<1x128xf32>
    %413 = vector.shape_cast %411 : vector<1x128xf32> to vector<1x128xf32>
    %414 = vector.broadcast %413 : vector<1x128xf32> to vector<24x128xf32>
    %415 = vector.shape_cast %412 : vector<1x128xf32> to vector<1x128xf32>
    %416 = vector.broadcast %415 : vector<1x128xf32> to vector<24x128xf32>
    %417 = arith.select %17, %414, %416 : vector<24x128xi1>, vector<24x128xf32>
    %418 = arith.mulf %8, %417 : vector<24x128xf32>
    %419 = arith.addf %410, %418 : vector<24x128xf32>
    %c74 = arith.constant 74 : index
    %c0_127 = arith.constant 0 : index
    %420 = vector.load %arg5[%c74, %c0_127] : memref<384x128xf32, #tpu.memory_space<vmem>>, vector<1x128xf32>
    %c77 = arith.constant 77 : index
    %c0_128 = arith.constant 0 : index
    %421 = vector.load %arg5[%c77, %c0_128] : memref<384x128xf32, #tpu.memory_space<vmem>>, vector<1x128xf32>
    %422 = vector.shape_cast %420 : vector<1x128xf32> to vector<1x128xf32>
    %423 = vector.broadcast %422 : vector<1x128xf32> to vector<24x128xf32>
    %424 = vector.shape_cast %421 : vector<1x128xf32> to vector<1x128xf32>
    %425 = vector.broadcast %424 : vector<1x128xf32> to vector<24x128xf32>
    %426 = arith.select %17, %423, %425 : vector<24x128xi1>, vector<24x128xf32>
    %427 = arith.mulf %11, %426 : vector<24x128xf32>
    %428 = arith.addf %419, %427 : vector<24x128xf32>
    %cst_129 = arith.constant -1.73205078 : f32
    %cst_130 = arith.constant 3.7320509 : f32
    %429 = vector.broadcast %cst_129 : f32 to vector<24x128xf32>
    %430 = arith.maximumf %429, %428 : vector<24x128xf32>
    %431 = vector.broadcast %cst_130 : f32 to vector<24x128xf32>
    %432 = arith.minimumf %431, %430 : vector<24x128xf32>
    %c288 = arith.constant 288 : index
    %c0_131 = arith.constant 0 : index
    %433 = vector.load %arg6[%c288, %c0_131] : memref<1536x128xf32, #tpu.memory_space<vmem>>, vector<24x128xf32>
    tpu.vector_store %arg6[%c288, %c0_131], %432 {strides = array<i32>} : memref<1536x128xf32, #tpu.memory_space<vmem>>, vector<24x128xf32>,
    %c78 = arith.constant 78 : index
    %c0_132 = arith.constant 0 : index
    %434 = vector.load %arg5[%c78, %c0_132] : memref<384x128xf32, #tpu.memory_space<vmem>>, vector<1x128xf32>
    %c81 = arith.constant 81 : index
    %c0_133 = arith.constant 0 : index
    %435 = vector.load %arg5[%c81, %c0_133] : memref<384x128xf32, #tpu.memory_space<vmem>>, vector<1x128xf32>
    %436 = vector.shape_cast %434 : vector<1x128xf32> to vector<1x128xf32>
    %437 = vector.broadcast %436 : vector<1x128xf32> to vector<24x128xf32>
    %438 = vector.shape_cast %435 : vector<1x128xf32> to vector<1x128xf32>
    %439 = vector.broadcast %438 : vector<1x128xf32> to vector<24x128xf32>
    %440 = arith.select %17, %437, %439 : vector<24x128xi1>, vector<24x128xf32>
    %441 = arith.mulf %5, %440 : vector<24x128xf32>
    %442 = arith.addf %14, %441 : vector<24x128xf32>
    %c79 = arith.constant 79 : index
    %c0_134 = arith.constant 0 : index
    %443 = vector.load %arg5[%c79, %c0_134] : memref<384x128xf32, #tpu.memory_space<vmem>>, vector<1x128xf32>
    %c82 = arith.constant 82 : index
    %c0_135 = arith.constant 0 : index
    %444 = vector.load %arg5[%c82, %c0_135] : memref<384x128xf32, #tpu.memory_space<vmem>>, vector<1x128xf32>
    %445 = vector.shape_cast %443 : vector<1x128xf32> to vector<1x128xf32>
    %446 = vector.broadcast %445 : vector<1x128xf32> to vector<24x128xf32>
    %447 = vector.shape_cast %444 : vector<1x128xf32> to vector<1x128xf32>
    %448 = vector.broadcast %447 : vector<1x128xf32> to vector<24x128xf32>
    %449 = arith.select %17, %446, %448 : vector<24x128xi1>, vector<24x128xf32>
    %450 = arith.mulf %8, %449 : vector<24x128xf32>
    %451 = arith.addf %442, %450 : vector<24x128xf32>
    %c80 = arith.constant 80 : index
    %c0_136 = arith.constant 0 : index
    %452 = vector.load %arg5[%c80, %c0_136] : memref<384x128xf32, #tpu.memory_space<vmem>>, vector<1x128xf32>
    %c83 = arith.constant 83 : index
    %c0_137 = arith.constant 0 : index
    %453 = vector.load %arg5[%c83, %c0_137] : memref<384x128xf32, #tpu.memory_space<vmem>>, vector<1x128xf32>
    %454 = vector.shape_cast %452 : vector<1x128xf32> to vector<1x128xf32>
    %455 = vector.broadcast %454 : vector<1x128xf32> to vector<24x128xf32>
    %456 = vector.shape_cast %453 : vector<1x128xf32> to vector<1x128xf32>
    %457 = vector.broadcast %456 : vector<1x128xf32> to vector<24x128xf32>
    %458 = arith.select %17, %455, %457 : vector<24x128xi1>, vector<24x128xf32>
    %459 = arith.mulf %11, %458 : vector<24x128xf32>
    %460 = arith.addf %451, %459 : vector<24x128xf32>
    %cst_138 = arith.constant -1.73205078 : f32
    %cst_139 = arith.constant 3.7320509 : f32
    %461 = vector.broadcast %cst_138 : f32 to vector<24x128xf32>
    %462 = arith.maximumf %461, %460 : vector<24x128xf32>
    %463 = vector.broadcast %cst_139 : f32 to vector<24x128xf32>
    %464 = arith.minimumf %463, %462 : vector<24x128xf32>
    %c312 = arith.constant 312 : index
    %c0_140 = arith.constant 0 : index
    %465 = vector.load %arg6[%c312, %c0_140] : memref<1536x128xf32, #tpu.memory_space<vmem>>, vector<24x128xf32>
    tpu.vector_store %arg6[%c312, %c0_140], %464 {strides = array<i32>} : memref<1536x128xf32, #tpu.memory_space<vmem>>, vector<24x128xf32>,
    %c84 = arith.constant 84 : index
    %c0_141 = arith.constant 0 : index
    %466 = vector.load %arg5[%c84, %c0_141] : memref<384x128xf32, #tpu.memory_space<vmem>>, vector<1x128xf32>
    %c87 = arith.constant 87 : index
    %c0_142 = arith.constant 0 : index
    %467 = vector.load %arg5[%c87, %c0_142] : memref<384x128xf32, #tpu.memory_space<vmem>>, vector<1x128xf32>
    %468 = vector.shape_cast %466 : vector<1x128xf32> to vector<1x128xf32>
    %469 = vector.broadcast %468 : vector<1x128xf32> to vector<24x128xf32>
    %470 = vector.shape_cast %467 : vector<1x128xf32> to vector<1x128xf32>
    %471 = vector.broadcast %470 : vector<1x128xf32> to vector<24x128xf32>
    %472 = arith.select %17, %469, %471 : vector<24x128xi1>, vector<24x128xf32>
    %473 = arith.mulf %5, %472 : vector<24x128xf32>
    %474 = arith.addf %14, %473 : vector<24x128xf32>
    %c85 = arith.constant 85 : index
    %c0_143 = arith.constant 0 : index
    %475 = vector.load %arg5[%c85, %c0_143] : memref<384x128xf32, #tpu.memory_space<vmem>>, vector<1x128xf32>
    %c88 = arith.constant 88 : index
    %c0_144 = arith.constant 0 : index
    %476 = vector.load %arg5[%c88, %c0_144] : memref<384x128xf32, #tpu.memory_space<vmem>>, vector<1x128xf32>
    %477 = vector.shape_cast %475 : vector<1x128xf32> to vector<1x128xf32>
    %478 = vector.broadcast %477 : vector<1x128xf32> to vector<24x128xf32>
    %479 = vector.shape_cast %476 : vector<1x128xf32> to vector<1x128xf32>
    %480 = vector.broadcast %479 : vector<1x128xf32> to vector<24x128xf32>
    %481 = arith.select %17, %478, %480 : vector<24x128xi1>, vector<24x128xf32>
    %482 = arith.mulf %8, %481 : vector<24x128xf32>
    %483 = arith.addf %474, %482 : vector<24x128xf32>
    %c86 = arith.constant 86 : index
    %c0_145 = arith.constant 0 : index
    %484 = vector.load %arg5[%c86, %c0_145] : memref<384x128xf32, #tpu.memory_space<vmem>>, vector<1x128xf32>
    %c89 = arith.constant 89 : index
    %c0_146 = arith.constant 0 : index
    %485 = vector.load %arg5[%c89, %c0_146] : memref<384x128xf32, #tpu.memory_space<vmem>>, vector<1x128xf32>
    %486 = vector.shape_cast %484 : vector<1x128xf32> to vector<1x128xf32>
    %487 = vector.broadcast %486 : vector<1x128xf32> to vector<24x128xf32>
    %488 = vector.shape_cast %485 : vector<1x128xf32> to vector<1x128xf32>
    %489 = vector.broadcast %488 : vector<1x128xf32> to vector<24x128xf32>
    %490 = arith.select %17, %487, %489 : vector<24x128xi1>, vector<24x128xf32>
    %491 = arith.mulf %11, %490 : vector<24x128xf32>
    %492 = arith.addf %483, %491 : vector<24x128xf32>
    %cst_147 = arith.constant -1.73205078 : f32
    %cst_148 = arith.constant 3.7320509 : f32
    %493 = vector.broadcast %cst_147 : f32 to vector<24x128xf32>
    %494 = arith.maximumf %493, %492 : vector<24x128xf32>
    %495 = vector.broadcast %cst_148 : f32 to vector<24x128xf32>
    %496 = arith.minimumf %495, %494 : vector<24x128xf32>
    %c336 = arith.constant 336 : index
    %c0_149 = arith.constant 0 : index
    %497 = vector.load %arg6[%c336, %c0_149] : memref<1536x128xf32, #tpu.memory_space<vmem>>, vector<24x128xf32>
    tpu.vector_store %arg6[%c336, %c0_149], %496 {strides = array<i32>} : memref<1536x128xf32, #tpu.memory_space<vmem>>, vector<24x128xf32>,
    %c90 = arith.constant 90 : index
    %c0_150 = arith.constant 0 : index
    %498 = vector.load %arg5[%c90, %c0_150] : memref<384x128xf32, #tpu.memory_space<vmem>>, vector<1x128xf32>
    %c93 = arith.constant 93 : index
    %c0_151 = arith.constant 0 : index
    %499 = vector.load %arg5[%c93, %c0_151] : memref<384x128xf32, #tpu.memory_space<vmem>>, vector<1x128xf32>
    %500 = vector.shape_cast %498 : vector<1x128xf32> to vector<1x128xf32>
    %501 = vector.broadcast %500 : vector<1x128xf32> to vector<24x128xf32>
    %502 = vector.shape_cast %499 : vector<1x128xf32> to vector<1x128xf32>
    %503 = vector.broadcast %502 : vector<1x128xf32> to vector<24x128xf32>
    %504 = arith.select %17, %501, %503 : vector<24x128xi1>, vector<24x128xf32>
    %505 = arith.mulf %5, %504 : vector<24x128xf32>
    %506 = arith.addf %14, %505 : vector<24x128xf32>
    %c91 = arith.constant 91 : index
    %c0_152 = arith.constant 0 : index
    %507 = vector.load %arg5[%c91, %c0_152] : memref<384x128xf32, #tpu.memory_space<vmem>>, vector<1x128xf32>
    %c94 = arith.constant 94 : index
    %c0_153 = arith.constant 0 : index
    %508 = vector.load %arg5[%c94, %c0_153] : memref<384x128xf32, #tpu.memory_space<vmem>>, vector<1x128xf32>
    %509 = vector.shape_cast %507 : vector<1x128xf32> to vector<1x128xf32>
    %510 = vector.broadcast %509 : vector<1x128xf32> to vector<24x128xf32>
    %511 = vector.shape_cast %508 : vector<1x128xf32> to vector<1x128xf32>
    %512 = vector.broadcast %511 : vector<1x128xf32> to vector<24x128xf32>
    %513 = arith.select %17, %510, %512 : vector<24x128xi1>, vector<24x128xf32>
    %514 = arith.mulf %8, %513 : vector<24x128xf32>
    %515 = arith.addf %506, %514 : vector<24x128xf32>
    %c92 = arith.constant 92 : index
    %c0_154 = arith.constant 0 : index
    %516 = vector.load %arg5[%c92, %c0_154] : memref<384x128xf32, #tpu.memory_space<vmem>>, vector<1x128xf32>
    %c95 = arith.constant 95 : index
    %c0_155 = arith.constant 0 : index
    %517 = vector.load %arg5[%c95, %c0_155] : memref<384x128xf32, #tpu.memory_space<vmem>>, vector<1x128xf32>
    %518 = vector.shape_cast %516 : vector<1x128xf32> to vector<1x128xf32>
    %519 = vector.broadcast %518 : vector<1x128xf32> to vector<24x128xf32>
    %520 = vector.shape_cast %517 : vector<1x128xf32> to vector<1x128xf32>
    %521 = vector.broadcast %520 : vector<1x128xf32> to vector<24x128xf32>
    %522 = arith.select %17, %519, %521 : vector<24x128xi1>, vector<24x128xf32>
    %523 = arith.mulf %11, %522 : vector<24x128xf32>
    %524 = arith.addf %515, %523 : vector<24x128xf32>
    %cst_156 = arith.constant -1.73205078 : f32
    %cst_157 = arith.constant 3.7320509 : f32
    %525 = vector.broadcast %cst_156 : f32 to vector<24x128xf32>
    %526 = arith.maximumf %525, %524 : vector<24x128xf32>
    %527 = vector.broadcast %cst_157 : f32 to vector<24x128xf32>
    %528 = arith.minimumf %527, %526 : vector<24x128xf32>
    %c360 = arith.constant 360 : index
    %c0_158 = arith.constant 0 : index
    %529 = vector.load %arg6[%c360, %c0_158] : memref<1536x128xf32, #tpu.memory_space<vmem>>, vector<24x128xf32>
    tpu.vector_store %arg6[%c360, %c0_158], %528 {strides = array<i32>} : memref<1536x128xf32, #tpu.memory_space<vmem>>, vector<24x128xf32>,
    %c96_159 = arith.constant 96 : index
    %c0_160 = arith.constant 0 : index
    %530 = vector.load %arg5[%c96_159, %c0_160] : memref<384x128xf32, #tpu.memory_space<vmem>>, vector<1x128xf32>
    %c99 = arith.constant 99 : index
    %c0_161 = arith.constant 0 : index
    %531 = vector.load %arg5[%c99, %c0_161] : memref<384x128xf32, #tpu.memory_space<vmem>>, vector<1x128xf32>
    %532 = vector.shape_cast %530 : vector<1x128xf32> to vector<1x128xf32>
    %533 = vector.broadcast %532 : vector<1x128xf32> to vector<24x128xf32>
    %534 = vector.shape_cast %531 : vector<1x128xf32> to vector<1x128xf32>
    %535 = vector.broadcast %534 : vector<1x128xf32> to vector<24x128xf32>
    %536 = arith.select %17, %533, %535 : vector<24x128xi1>, vector<24x128xf32>
    %537 = arith.mulf %5, %536 : vector<24x128xf32>
    %538 = arith.addf %14, %537 : vector<24x128xf32>
    %c97 = arith.constant 97 : index
    %c0_162 = arith.constant 0 : index
    %539 = vector.load %arg5[%c97, %c0_162] : memref<384x128xf32, #tpu.memory_space<vmem>>, vector<1x128xf32>
    %c100 = arith.constant 100 : index
    %c0_163 = arith.constant 0 : index
    %540 = vector.load %arg5[%c100, %c0_163] : memref<384x128xf32, #tpu.memory_space<vmem>>, vector<1x128xf32>
    %541 = vector.shape_cast %539 : vector<1x128xf32> to vector<1x128xf32>
    %542 = vector.broadcast %541 : vector<1x128xf32> to vector<24x128xf32>
    %543 = vector.shape_cast %540 : vector<1x128xf32> to vector<1x128xf32>
    %544 = vector.broadcast %543 : vector<1x128xf32> to vector<24x128xf32>
    %545 = arith.select %17, %542, %544 : vector<24x128xi1>, vector<24x128xf32>
    %546 = arith.mulf %8, %545 : vector<24x128xf32>
    %547 = arith.addf %538, %546 : vector<24x128xf32>
    %c98 = arith.constant 98 : index
    %c0_164 = arith.constant 0 : index
    %548 = vector.load %arg5[%c98, %c0_164] : memref<384x128xf32, #tpu.memory_space<vmem>>, vector<1x128xf32>
    %c101 = arith.constant 101 : index
    %c0_165 = arith.constant 0 : index
    %549 = vector.load %arg5[%c101, %c0_165] : memref<384x128xf32, #tpu.memory_space<vmem>>, vector<1x128xf32>
    %550 = vector.shape_cast %548 : vector<1x128xf32> to vector<1x128xf32>
    %551 = vector.broadcast %550 : vector<1x128xf32> to vector<24x128xf32>
    %552 = vector.shape_cast %549 : vector<1x128xf32> to vector<1x128xf32>
    %553 = vector.broadcast %552 : vector<1x128xf32> to vector<24x128xf32>
    %554 = arith.select %17, %551, %553 : vector<24x128xi1>, vector<24x128xf32>
    %555 = arith.mulf %11, %554 : vector<24x128xf32>
    %556 = arith.addf %547, %555 : vector<24x128xf32>
    %cst_166 = arith.constant -1.73205078 : f32
    %cst_167 = arith.constant 3.7320509 : f32
    %557 = vector.broadcast %cst_166 : f32 to vector<24x128xf32>
    %558 = arith.maximumf %557, %556 : vector<24x128xf32>
    %559 = vector.broadcast %cst_167 : f32 to vector<24x128xf32>
    %560 = arith.minimumf %559, %558 : vector<24x128xf32>
    %c384 = arith.constant 384 : index
    %c0_168 = arith.constant 0 : index
    %561 = vector.load %arg6[%c384, %c0_168] : memref<1536x128xf32, #tpu.memory_space<vmem>>, vector<24x128xf32>
    tpu.vector_store %arg6[%c384, %c0_168], %560 {strides = array<i32>} : memref<1536x128xf32, #tpu.memory_space<vmem>>, vector<24x128xf32>,
    %c102 = arith.constant 102 : index
    %c0_169 = arith.constant 0 : index
    %562 = vector.load %arg5[%c102, %c0_169] : memref<384x128xf32, #tpu.memory_space<vmem>>, vector<1x128xf32>
    %c105 = arith.constant 105 : index
    %c0_170 = arith.constant 0 : index
    %563 = vector.load %arg5[%c105, %c0_170] : memref<384x128xf32, #tpu.memory_space<vmem>>, vector<1x128xf32>
    %564 = vector.shape_cast %562 : vector<1x128xf32> to vector<1x128xf32>
    %565 = vector.broadcast %564 : vector<1x128xf32> to vector<24x128xf32>
    %566 = vector.shape_cast %563 : vector<1x128xf32> to vector<1x128xf32>
    %567 = vector.broadcast %566 : vector<1x128xf32> to vector<24x128xf32>
    %568 = arith.select %17, %565, %567 : vector<24x128xi1>, vector<24x128xf32>
    %569 = arith.mulf %5, %568 : vector<24x128xf32>
    %570 = arith.addf %14, %569 : vector<24x128xf32>
    %c103 = arith.constant 103 : index
    %c0_171 = arith.constant 0 : index
    %571 = vector.load %arg5[%c103, %c0_171] : memref<384x128xf32, #tpu.memory_space<vmem>>, vector<1x128xf32>
    %c106 = arith.constant 106 : index
    %c0_172 = arith.constant 0 : index
    %572 = vector.load %arg5[%c106, %c0_172] : memref<384x128xf32, #tpu.memory_space<vmem>>, vector<1x128xf32>
    %573 = vector.shape_cast %571 : vector<1x128xf32> to vector<1x128xf32>
    %574 = vector.broadcast %573 : vector<1x128xf32> to vector<24x128xf32>
    %575 = vector.shape_cast %572 : vector<1x128xf32> to vector<1x128xf32>
    %576 = vector.broadcast %575 : vector<1x128xf32> to vector<24x128xf32>
    %577 = arith.select %17, %574, %576 : vector<24x128xi1>, vector<24x128xf32>
    %578 = arith.mulf %8, %577 : vector<24x128xf32>
    %579 = arith.addf %570, %578 : vector<24x128xf32>
    %c104 = arith.constant 104 : index
    %c0_173 = arith.constant 0 : index
    %580 = vector.load %arg5[%c104, %c0_173] : memref<384x128xf32, #tpu.memory_space<vmem>>, vector<1x128xf32>
    %c107 = arith.constant 107 : index
    %c0_174 = arith.constant 0 : index
    %581 = vector.load %arg5[%c107, %c0_174] : memref<384x128xf32, #tpu.memory_space<vmem>>, vector<1x128xf32>
    %582 = vector.shape_cast %580 : vector<1x128xf32> to vector<1x128xf32>
    %583 = vector.broadcast %582 : vector<1x128xf32> to vector<24x128xf32>
    %584 = vector.shape_cast %581 : vector<1x128xf32> to vector<1x128xf32>
    %585 = vector.broadcast %584 : vector<1x128xf32> to vector<24x128xf32>
    %586 = arith.select %17, %583, %585 : vector<24x128xi1>, vector<24x128xf32>
    %587 = arith.mulf %11, %586 : vector<24x128xf32>
    %588 = arith.addf %579, %587 : vector<24x128xf32>
    %cst_175 = arith.constant -1.73205078 : f32
    %cst_176 = arith.constant 3.7320509 : f32
    %589 = vector.broadcast %cst_175 : f32 to vector<24x128xf32>
    %590 = arith.maximumf %589, %588 : vector<24x128xf32>
    %591 = vector.broadcast %cst_176 : f32 to vector<24x128xf32>
    %592 = arith.minimumf %591, %590 : vector<24x128xf32>
    %c408 = arith.constant 408 : index
    %c0_177 = arith.constant 0 : index
    %593 = vector.load %arg6[%c408, %c0_177] : memref<1536x128xf32, #tpu.memory_space<vmem>>, vector<24x128xf32>
    tpu.vector_store %arg6[%c408, %c0_177], %592 {strides = array<i32>} : memref<1536x128xf32, #tpu.memory_space<vmem>>, vector<24x128xf32>,
    %c108 = arith.constant 108 : index
    %c0_178 = arith.constant 0 : index
    %594 = vector.load %arg5[%c108, %c0_178] : memref<384x128xf32, #tpu.memory_space<vmem>>, vector<1x128xf32>
    %c111 = arith.constant 111 : index
    %c0_179 = arith.constant 0 : index
    %595 = vector.load %arg5[%c111, %c0_179] : memref<384x128xf32, #tpu.memory_space<vmem>>, vector<1x128xf32>
    %596 = vector.shape_cast %594 : vector<1x128xf32> to vector<1x128xf32>
    %597 = vector.broadcast %596 : vector<1x128xf32> to vector<24x128xf32>
    %598 = vector.shape_cast %595 : vector<1x128xf32> to vector<1x128xf32>
    %599 = vector.broadcast %598 : vector<1x128xf32> to vector<24x128xf32>
    %600 = arith.select %17, %597, %599 : vector<24x128xi1>, vector<24x128xf32>
    %601 = arith.mulf %5, %600 : vector<24x128xf32>
    %602 = arith.addf %14, %601 : vector<24x128xf32>
    %c109 = arith.constant 109 : index
    %c0_180 = arith.constant 0 : index
    %603 = vector.load %arg5[%c109, %c0_180] : memref<384x128xf32, #tpu.memory_space<vmem>>, vector<1x128xf32>
    %c112 = arith.constant 112 : index
    %c0_181 = arith.constant 0 : index
    %604 = vector.load %arg5[%c112, %c0_181] : memref<384x128xf32, #tpu.memory_space<vmem>>, vector<1x128xf32>
    %605 = vector.shape_cast %603 : vector<1x128xf32> to vector<1x128xf32>
    %606 = vector.broadcast %605 : vector<1x128xf32> to vector<24x128xf32>
    %607 = vector.shape_cast %604 : vector<1x128xf32> to vector<1x128xf32>
    %608 = vector.broadcast %607 : vector<1x128xf32> to vector<24x128xf32>
    %609 = arith.select %17, %606, %608 : vector<24x128xi1>, vector<24x128xf32>
    %610 = arith.mulf %8, %609 : vector<24x128xf32>
    %611 = arith.addf %602, %610 : vector<24x128xf32>
    %c110 = arith.constant 110 : index
    %c0_182 = arith.constant 0 : index
    %612 = vector.load %arg5[%c110, %c0_182] : memref<384x128xf32, #tpu.memory_space<vmem>>, vector<1x128xf32>
    %c113 = arith.constant 113 : index
    %c0_183 = arith.constant 0 : index
    %613 = vector.load %arg5[%c113, %c0_183] : memref<384x128xf32, #tpu.memory_space<vmem>>, vector<1x128xf32>
    %614 = vector.shape_cast %612 : vector<1x128xf32> to vector<1x128xf32>
    %615 = vector.broadcast %614 : vector<1x128xf32> to vector<24x128xf32>
    %616 = vector.shape_cast %613 : vector<1x128xf32> to vector<1x128xf32>
    %617 = vector.broadcast %616 : vector<1x128xf32> to vector<24x128xf32>
    %618 = arith.select %17, %615, %617 : vector<24x128xi1>, vector<24x128xf32>
    %619 = arith.mulf %11, %618 : vector<24x128xf32>
    %620 = arith.addf %611, %619 : vector<24x128xf32>
    %cst_184 = arith.constant -1.73205078 : f32
    %cst_185 = arith.constant 3.7320509 : f32
    %621 = vector.broadcast %cst_184 : f32 to vector<24x128xf32>
    %622 = arith.maximumf %621, %620 : vector<24x128xf32>
    %623 = vector.broadcast %cst_185 : f32 to vector<24x128xf32>
    %624 = arith.minimumf %623, %622 : vector<24x128xf32>
    %c432 = arith.constant 432 : index
    %c0_186 = arith.constant 0 : index
    %625 = vector.load %arg6[%c432, %c0_186] : memref<1536x128xf32, #tpu.memory_space<vmem>>, vector<24x128xf32>
    tpu.vector_store %arg6[%c432, %c0_186], %624 {strides = array<i32>} : memref<1536x128xf32, #tpu.memory_space<vmem>>, vector<24x128xf32>,
    %c114 = arith.constant 114 : index
    %c0_187 = arith.constant 0 : index
    %626 = vector.load %arg5[%c114, %c0_187] : memref<384x128xf32, #tpu.memory_space<vmem>>, vector<1x128xf32>
    %c117 = arith.constant 117 : index
    %c0_188 = arith.constant 0 : index
    %627 = vector.load %arg5[%c117, %c0_188] : memref<384x128xf32, #tpu.memory_space<vmem>>, vector<1x128xf32>
    %628 = vector.shape_cast %626 : vector<1x128xf32> to vector<1x128xf32>
    %629 = vector.broadcast %628 : vector<1x128xf32> to vector<24x128xf32>
    %630 = vector.shape_cast %627 : vector<1x128xf32> to vector<1x128xf32>
    %631 = vector.broadcast %630 : vector<1x128xf32> to vector<24x128xf32>
    %632 = arith.select %17, %629, %631 : vector<24x128xi1>, vector<24x128xf32>
    %633 = arith.mulf %5, %632 : vector<24x128xf32>
    %634 = arith.addf %14, %633 : vector<24x128xf32>
    %c115 = arith.constant 115 : index
    %c0_189 = arith.constant 0 : index
    %635 = vector.load %arg5[%c115, %c0_189] : memref<384x128xf32, #tpu.memory_space<vmem>>, vector<1x128xf32>
    %c118 = arith.constant 118 : index
    %c0_190 = arith.constant 0 : index
    %636 = vector.load %arg5[%c118, %c0_190] : memref<384x128xf32, #tpu.memory_space<vmem>>, vector<1x128xf32>
    %637 = vector.shape_cast %635 : vector<1x128xf32> to vector<1x128xf32>
    %638 = vector.broadcast %637 : vector<1x128xf32> to vector<24x128xf32>
    %639 = vector.shape_cast %636 : vector<1x128xf32> to vector<1x128xf32>
    %640 = vector.broadcast %639 : vector<1x128xf32> to vector<24x128xf32>
    %641 = arith.select %17, %638, %640 : vector<24x128xi1>, vector<24x128xf32>
    %642 = arith.mulf %8, %641 : vector<24x128xf32>
    %643 = arith.addf %634, %642 : vector<24x128xf32>
    %c116 = arith.constant 116 : index
    %c0_191 = arith.constant 0 : index
    %644 = vector.load %arg5[%c116, %c0_191] : memref<384x128xf32, #tpu.memory_space<vmem>>, vector<1x128xf32>
    %c119 = arith.constant 119 : index
    %c0_192 = arith.constant 0 : index
    %645 = vector.load %arg5[%c119, %c0_192] : memref<384x128xf32, #tpu.memory_space<vmem>>, vector<1x128xf32>
    %646 = vector.shape_cast %644 : vector<1x128xf32> to vector<1x128xf32>
    %647 = vector.broadcast %646 : vector<1x128xf32> to vector<24x128xf32>
    %648 = vector.shape_cast %645 : vector<1x128xf32> to vector<1x128xf32>
    %649 = vector.broadcast %648 : vector<1x128xf32> to vector<24x128xf32>
    %650 = arith.select %17, %647, %649 : vector<24x128xi1>, vector<24x128xf32>
    %651 = arith.mulf %11, %650 : vector<24x128xf32>
    %652 = arith.addf %643, %651 : vector<24x128xf32>
    %cst_193 = arith.constant -1.73205078 : f32
    %cst_194 = arith.constant 3.7320509 : f32
    %653 = vector.broadcast %cst_193 : f32 to vector<24x128xf32>
    %654 = arith.maximumf %653, %652 : vector<24x128xf32>
    %655 = vector.broadcast %cst_194 : f32 to vector<24x128xf32>
    %656 = arith.minimumf %655, %654 : vector<24x128xf32>
    %c456 = arith.constant 456 : index
    %c0_195 = arith.constant 0 : index
    %657 = vector.load %arg6[%c456, %c0_195] : memref<1536x128xf32, #tpu.memory_space<vmem>>, vector<24x128xf32>
    tpu.vector_store %arg6[%c456, %c0_195], %656 {strides = array<i32>} : memref<1536x128xf32, #tpu.memory_space<vmem>>, vector<24x128xf32>,
    %c120_196 = arith.constant 120 : index
    %c0_197 = arith.constant 0 : index
    %658 = vector.load %arg5[%c120_196, %c0_197] : memref<384x128xf32, #tpu.memory_space<vmem>>, vector<1x128xf32>
    %c123 = arith.constant 123 : index
    %c0_198 = arith.constant 0 : index
    %659 = vector.load %arg5[%c123, %c0_198] : memref<384x128xf32, #tpu.memory_space<vmem>>, vector<1x128xf32>
    %660 = vector.shape_cast %658 : vector<1x128xf32> to vector<1x128xf32>
    %661 = vector.broadcast %660 : vector<1x128xf32> to vector<24x128xf32>
    %662 = vector.shape_cast %659 : vector<1x128xf32> to vector<1x128xf32>
    %663 = vector.broadcast %662 : vector<1x128xf32> to vector<24x128xf32>
    %664 = arith.select %17, %661, %663 : vector<24x128xi1>, vector<24x128xf32>
    %665 = arith.mulf %5, %664 : vector<24x128xf32>
    %666 = arith.addf %14, %665 : vector<24x128xf32>
    %c121 = arith.constant 121 : index
    %c0_199 = arith.constant 0 : index
    %667 = vector.load %arg5[%c121, %c0_199] : memref<384x128xf32, #tpu.memory_space<vmem>>, vector<1x128xf32>
    %c124 = arith.constant 124 : index
    %c0_200 = arith.constant 0 : index
    %668 = vector.load %arg5[%c124, %c0_200] : memref<384x128xf32, #tpu.memory_space<vmem>>, vector<1x128xf32>
    %669 = vector.shape_cast %667 : vector<1x128xf32> to vector<1x128xf32>
    %670 = vector.broadcast %669 : vector<1x128xf32> to vector<24x128xf32>
    %671 = vector.shape_cast %668 : vector<1x128xf32> to vector<1x128xf32>
    %672 = vector.broadcast %671 : vector<1x128xf32> to vector<24x128xf32>
    %673 = arith.select %17, %670, %672 : vector<24x128xi1>, vector<24x128xf32>
    %674 = arith.mulf %8, %673 : vector<24x128xf32>
    %675 = arith.addf %666, %674 : vector<24x128xf32>
    %c122 = arith.constant 122 : index
    %c0_201 = arith.constant 0 : index
    %676 = vector.load %arg5[%c122, %c0_201] : memref<384x128xf32, #tpu.memory_space<vmem>>, vector<1x128xf32>
    %c125 = arith.constant 125 : index
    %c0_202 = arith.constant 0 : index
    %677 = vector.load %arg5[%c125, %c0_202] : memref<384x128xf32, #tpu.memory_space<vmem>>, vector<1x128xf32>
    %678 = vector.shape_cast %676 : vector<1x128xf32> to vector<1x128xf32>
    %679 = vector.broadcast %678 : vector<1x128xf32> to vector<24x128xf32>
    %680 = vector.shape_cast %677 : vector<1x128xf32> to vector<1x128xf32>
    %681 = vector.broadcast %680 : vector<1x128xf32> to vector<24x128xf32>
    %682 = arith.select %17, %679, %681 : vector<24x128xi1>, vector<24x128xf32>
    %683 = arith.mulf %11, %682 : vector<24x128xf32>
    %684 = arith.addf %675, %683 : vector<24x128xf32>
    %cst_203 = arith.constant -1.73205078 : f32
    %cst_204 = arith.constant 3.7320509 : f32
    %685 = vector.broadcast %cst_203 : f32 to vector<24x128xf32>
    %686 = arith.maximumf %685, %684 : vector<24x128xf32>
    %687 = vector.broadcast %cst_204 : f32 to vector<24x128xf32>
    %688 = arith.minimumf %687, %686 : vector<24x128xf32>
    %c480 = arith.constant 480 : index
    %c0_205 = arith.constant 0 : index
    %689 = vector.load %arg6[%c480, %c0_205] : memref<1536x128xf32, #tpu.memory_space<vmem>>, vector<24x128xf32>
    tpu.vector_store %arg6[%c480, %c0_205], %688 {strides = array<i32>} : memref<1536x128xf32, #tpu.memory_space<vmem>>, vector<24x128xf32>,
    %c126 = arith.constant 126 : index
    %c0_206 = arith.constant 0 : index
    %690 = vector.load %arg5[%c126, %c0_206] : memref<384x128xf32, #tpu.memory_space<vmem>>, vector<1x128xf32>
    %c129 = arith.constant 129 : index
    %c0_207 = arith.constant 0 : index
    %691 = vector.load %arg5[%c129, %c0_207] : memref<384x128xf32, #tpu.memory_space<vmem>>, vector<1x128xf32>
    %692 = vector.shape_cast %690 : vector<1x128xf32> to vector<1x128xf32>
    %693 = vector.broadcast %692 : vector<1x128xf32> to vector<24x128xf32>
    %694 = vector.shape_cast %691 : vector<1x128xf32> to vector<1x128xf32>
    %695 = vector.broadcast %694 : vector<1x128xf32> to vector<24x128xf32>
    %696 = arith.select %17, %693, %695 : vector<24x128xi1>, vector<24x128xf32>
    %697 = arith.mulf %5, %696 : vector<24x128xf32>
    %698 = arith.addf %14, %697 : vector<24x128xf32>
    %c127 = arith.constant 127 : index
    %c0_208 = arith.constant 0 : index
    %699 = vector.load %arg5[%c127, %c0_208] : memref<384x128xf32, #tpu.memory_space<vmem>>, vector<1x128xf32>
    %c130 = arith.constant 130 : index
    %c0_209 = arith.constant 0 : index
    %700 = vector.load %arg5[%c130, %c0_209] : memref<384x128xf32, #tpu.memory_space<vmem>>, vector<1x128xf32>
    %701 = vector.shape_cast %699 : vector<1x128xf32> to vector<1x128xf32>
    %702 = vector.broadcast %701 : vector<1x128xf32> to vector<24x128xf32>
    %703 = vector.shape_cast %700 : vector<1x128xf32> to vector<1x128xf32>
    %704 = vector.broadcast %703 : vector<1x128xf32> to vector<24x128xf32>
    %705 = arith.select %17, %702, %704 : vector<24x128xi1>, vector<24x128xf32>
    %706 = arith.mulf %8, %705 : vector<24x128xf32>
    %707 = arith.addf %698, %706 : vector<24x128xf32>
    %c128 = arith.constant 128 : index
    %c0_210 = arith.constant 0 : index
    %708 = vector.load %arg5[%c128, %c0_210] : memref<384x128xf32, #tpu.memory_space<vmem>>, vector<1x128xf32>
    %c131 = arith.constant 131 : index
    %c0_211 = arith.constant 0 : index
    %709 = vector.load %arg5[%c131, %c0_211] : memref<384x128xf32, #tpu.memory_space<vmem>>, vector<1x128xf32>
    %710 = vector.shape_cast %708 : vector<1x128xf32> to vector<1x128xf32>
    %711 = vector.broadcast %710 : vector<1x128xf32> to vector<24x128xf32>
    %712 = vector.shape_cast %709 : vector<1x128xf32> to vector<1x128xf32>
    %713 = vector.broadcast %712 : vector<1x128xf32> to vector<24x128xf32>
    %714 = arith.select %17, %711, %713 : vector<24x128xi1>, vector<24x128xf32>
    %715 = arith.mulf %11, %714 : vector<24x128xf32>
    %716 = arith.addf %707, %715 : vector<24x128xf32>
    %cst_212 = arith.constant -1.73205078 : f32
    %cst_213 = arith.constant 3.7320509 : f32
    %717 = vector.broadcast %cst_212 : f32 to vector<24x128xf32>
    %718 = arith.maximumf %717, %716 : vector<24x128xf32>
    %719 = vector.broadcast %cst_213 : f32 to vector<24x128xf32>
    %720 = arith.minimumf %719, %718 : vector<24x128xf32>
    %c504 = arith.constant 504 : index
    %c0_214 = arith.constant 0 : index
    %721 = vector.load %arg6[%c504, %c0_214] : memref<1536x128xf32, #tpu.memory_space<vmem>>, vector<24x128xf32>
    tpu.vector_store %arg6[%c504, %c0_214], %720 {strides = array<i32>} : memref<1536x128xf32, #tpu.memory_space<vmem>>, vector<24x128xf32>,
    %c132 = arith.constant 132 : index
    %c0_215 = arith.constant 0 : index
    %722 = vector.load %arg5[%c132, %c0_215] : memref<384x128xf32, #tpu.memory_space<vmem>>, vector<1x128xf32>
    %c135 = arith.constant 135 : index
    %c0_216 = arith.constant 0 : index
    %723 = vector.load %arg5[%c135, %c0_216] : memref<384x128xf32, #tpu.memory_space<vmem>>, vector<1x128xf32>
    %724 = vector.shape_cast %722 : vector<1x128xf32> to vector<1x128xf32>
    %725 = vector.broadcast %724 : vector<1x128xf32> to vector<24x128xf32>
    %726 = vector.shape_cast %723 : vector<1x128xf32> to vector<1x128xf32>
    %727 = vector.broadcast %726 : vector<1x128xf32> to vector<24x128xf32>
    %728 = arith.select %17, %725, %727 : vector<24x128xi1>, vector<24x128xf32>
    %729 = arith.mulf %5, %728 : vector<24x128xf32>
    %730 = arith.addf %14, %729 : vector<24x128xf32>
    %c133 = arith.constant 133 : index
    %c0_217 = arith.constant 0 : index
    %731 = vector.load %arg5[%c133, %c0_217] : memref<384x128xf32, #tpu.memory_space<vmem>>, vector<1x128xf32>
    %c136 = arith.constant 136 : index
    %c0_218 = arith.constant 0 : index
    %732 = vector.load %arg5[%c136, %c0_218] : memref<384x128xf32, #tpu.memory_space<vmem>>, vector<1x128xf32>
    %733 = vector.shape_cast %731 : vector<1x128xf32> to vector<1x128xf32>
    %734 = vector.broadcast %733 : vector<1x128xf32> to vector<24x128xf32>
    %735 = vector.shape_cast %732 : vector<1x128xf32> to vector<1x128xf32>
    %736 = vector.broadcast %735 : vector<1x128xf32> to vector<24x128xf32>
    %737 = arith.select %17, %734, %736 : vector<24x128xi1>, vector<24x128xf32>
    %738 = arith.mulf %8, %737 : vector<24x128xf32>
    %739 = arith.addf %730, %738 : vector<24x128xf32>
    %c134 = arith.constant 134 : index
    %c0_219 = arith.constant 0 : index
    %740 = vector.load %arg5[%c134, %c0_219] : memref<384x128xf32, #tpu.memory_space<vmem>>, vector<1x128xf32>
    %c137 = arith.constant 137 : index
    %c0_220 = arith.constant 0 : index
    %741 = vector.load %arg5[%c137, %c0_220] : memref<384x128xf32, #tpu.memory_space<vmem>>, vector<1x128xf32>
    %742 = vector.shape_cast %740 : vector<1x128xf32> to vector<1x128xf32>
    %743 = vector.broadcast %742 : vector<1x128xf32> to vector<24x128xf32>
    %744 = vector.shape_cast %741 : vector<1x128xf32> to vector<1x128xf32>
    %745 = vector.broadcast %744 : vector<1x128xf32> to vector<24x128xf32>
    %746 = arith.select %17, %743, %745 : vector<24x128xi1>, vector<24x128xf32>
    %747 = arith.mulf %11, %746 : vector<24x128xf32>
    %748 = arith.addf %739, %747 : vector<24x128xf32>
    %cst_221 = arith.constant -1.73205078 : f32
    %cst_222 = arith.constant 3.7320509 : f32
    %749 = vector.broadcast %cst_221 : f32 to vector<24x128xf32>
    %750 = arith.maximumf %749, %748 : vector<24x128xf32>
    %751 = vector.broadcast %cst_222 : f32 to vector<24x128xf32>
    %752 = arith.minimumf %751, %750 : vector<24x128xf32>
    %c528 = arith.constant 528 : index
    %c0_223 = arith.constant 0 : index
    %753 = vector.load %arg6[%c528, %c0_223] : memref<1536x128xf32, #tpu.memory_space<vmem>>, vector<24x128xf32>
    tpu.vector_store %arg6[%c528, %c0_223], %752 {strides = array<i32>} : memref<1536x128xf32, #tpu.memory_space<vmem>>, vector<24x128xf32>,
    %c138 = arith.constant 138 : index
    %c0_224 = arith.constant 0 : index
    %754 = vector.load %arg5[%c138, %c0_224] : memref<384x128xf32, #tpu.memory_space<vmem>>, vector<1x128xf32>
    %c141 = arith.constant 141 : index
    %c0_225 = arith.constant 0 : index
    %755 = vector.load %arg5[%c141, %c0_225] : memref<384x128xf32, #tpu.memory_space<vmem>>, vector<1x128xf32>
    %756 = vector.shape_cast %754 : vector<1x128xf32> to vector<1x128xf32>
    %757 = vector.broadcast %756 : vector<1x128xf32> to vector<24x128xf32>
    %758 = vector.shape_cast %755 : vector<1x128xf32> to vector<1x128xf32>
    %759 = vector.broadcast %758 : vector<1x128xf32> to vector<24x128xf32>
    %760 = arith.select %17, %757, %759 : vector<24x128xi1>, vector<24x128xf32>
    %761 = arith.mulf %5, %760 : vector<24x128xf32>
    %762 = arith.addf %14, %761 : vector<24x128xf32>
    %c139 = arith.constant 139 : index
    %c0_226 = arith.constant 0 : index
    %763 = vector.load %arg5[%c139, %c0_226] : memref<384x128xf32, #tpu.memory_space<vmem>>, vector<1x128xf32>
    %c142 = arith.constant 142 : index
    %c0_227 = arith.constant 0 : index
    %764 = vector.load %arg5[%c142, %c0_227] : memref<384x128xf32, #tpu.memory_space<vmem>>, vector<1x128xf32>
    %765 = vector.shape_cast %763 : vector<1x128xf32> to vector<1x128xf32>
    %766 = vector.broadcast %765 : vector<1x128xf32> to vector<24x128xf32>
    %767 = vector.shape_cast %764 : vector<1x128xf32> to vector<1x128xf32>
    %768 = vector.broadcast %767 : vector<1x128xf32> to vector<24x128xf32>
    %769 = arith.select %17, %766, %768 : vector<24x128xi1>, vector<24x128xf32>
    %770 = arith.mulf %8, %769 : vector<24x128xf32>
    %771 = arith.addf %762, %770 : vector<24x128xf32>
    %c140 = arith.constant 140 : index
    %c0_228 = arith.constant 0 : index
    %772 = vector.load %arg5[%c140, %c0_228] : memref<384x128xf32, #tpu.memory_space<vmem>>, vector<1x128xf32>
    %c143 = arith.constant 143 : index
    %c0_229 = arith.constant 0 : index
    %773 = vector.load %arg5[%c143, %c0_229] : memref<384x128xf32, #tpu.memory_space<vmem>>, vector<1x128xf32>
    %774 = vector.shape_cast %772 : vector<1x128xf32> to vector<1x128xf32>
    %775 = vector.broadcast %774 : vector<1x128xf32> to vector<24x128xf32>
    %776 = vector.shape_cast %773 : vector<1x128xf32> to vector<1x128xf32>
    %777 = vector.broadcast %776 : vector<1x128xf32> to vector<24x128xf32>
    %778 = arith.select %17, %775, %777 : vector<24x128xi1>, vector<24x128xf32>
    %779 = arith.mulf %11, %778 : vector<24x128xf32>
    %780 = arith.addf %771, %779 : vector<24x128xf32>
    %cst_230 = arith.constant -1.73205078 : f32
    %cst_231 = arith.constant 3.7320509 : f32
    %781 = vector.broadcast %cst_230 : f32 to vector<24x128xf32>
    %782 = arith.maximumf %781, %780 : vector<24x128xf32>
    %783 = vector.broadcast %cst_231 : f32 to vector<24x128xf32>
    %784 = arith.minimumf %783, %782 : vector<24x128xf32>
    %c552 = arith.constant 552 : index
    %c0_232 = arith.constant 0 : index
    %785 = vector.load %arg6[%c552, %c0_232] : memref<1536x128xf32, #tpu.memory_space<vmem>>, vector<24x128xf32>
    tpu.vector_store %arg6[%c552, %c0_232], %784 {strides = array<i32>} : memref<1536x128xf32, #tpu.memory_space<vmem>>, vector<24x128xf32>,
    %c144_233 = arith.constant 144 : index
    %c0_234 = arith.constant 0 : index
    %786 = vector.load %arg5[%c144_233, %c0_234] : memref<384x128xf32, #tpu.memory_space<vmem>>, vector<1x128xf32>
    %c147 = arith.constant 147 : index
    %c0_235 = arith.constant 0 : index
    %787 = vector.load %arg5[%c147, %c0_235] : memref<384x128xf32, #tpu.memory_space<vmem>>, vector<1x128xf32>
    %788 = vector.shape_cast %786 : vector<1x128xf32> to vector<1x128xf32>
    %789 = vector.broadcast %788 : vector<1x128xf32> to vector<24x128xf32>
    %790 = vector.shape_cast %787 : vector<1x128xf32> to vector<1x128xf32>
    %791 = vector.broadcast %790 : vector<1x128xf32> to vector<24x128xf32>
    %792 = arith.select %17, %789, %791 : vector<24x128xi1>, vector<24x128xf32>
    %793 = arith.mulf %5, %792 : vector<24x128xf32>
    %794 = arith.addf %14, %793 : vector<24x128xf32>
    %c145 = arith.constant 145 : index
    %c0_236 = arith.constant 0 : index
    %795 = vector.load %arg5[%c145, %c0_236] : memref<384x128xf32, #tpu.memory_space<vmem>>, vector<1x128xf32>
    %c148 = arith.constant 148 : index
    %c0_237 = arith.constant 0 : index
    %796 = vector.load %arg5[%c148, %c0_237] : memref<384x128xf32, #tpu.memory_space<vmem>>, vector<1x128xf32>
    %797 = vector.shape_cast %795 : vector<1x128xf32> to vector<1x128xf32>
    %798 = vector.broadcast %797 : vector<1x128xf32> to vector<24x128xf32>
    %799 = vector.shape_cast %796 : vector<1x128xf32> to vector<1x128xf32>
    %800 = vector.broadcast %799 : vector<1x128xf32> to vector<24x128xf32>
    %801 = arith.select %17, %798, %800 : vector<24x128xi1>, vector<24x128xf32>
    %802 = arith.mulf %8, %801 : vector<24x128xf32>
    %803 = arith.addf %794, %802 : vector<24x128xf32>
    %c146 = arith.constant 146 : index
    %c0_238 = arith.constant 0 : index
    %804 = vector.load %arg5[%c146, %c0_238] : memref<384x128xf32, #tpu.memory_space<vmem>>, vector<1x128xf32>
    %c149 = arith.constant 149 : index
    %c0_239 = arith.constant 0 : index
    %805 = vector.load %arg5[%c149, %c0_239] : memref<384x128xf32, #tpu.memory_space<vmem>>, vector<1x128xf32>
    %806 = vector.shape_cast %804 : vector<1x128xf32> to vector<1x128xf32>
    %807 = vector.broadcast %806 : vector<1x128xf32> to vector<24x128xf32>
    %808 = vector.shape_cast %805 : vector<1x128xf32> to vector<1x128xf32>
    %809 = vector.broadcast %808 : vector<1x128xf32> to vector<24x128xf32>
    %810 = arith.select %17, %807, %809 : vector<24x128xi1>, vector<24x128xf32>
    %811 = arith.mulf %11, %810 : vector<24x128xf32>
    %812 = arith.addf %803, %811 : vector<24x128xf32>
    %cst_240 = arith.constant -1.73205078 : f32
    %cst_241 = arith.constant 3.7320509 : f32
    %813 = vector.broadcast %cst_240 : f32 to vector<24x128xf32>
    %814 = arith.maximumf %813, %812 : vector<24x128xf32>
    %815 = vector.broadcast %cst_241 : f32 to vector<24x128xf32>
    %816 = arith.minimumf %815, %814 : vector<24x128xf32>
    %c576 = arith.constant 576 : index
    %c0_242 = arith.constant 0 : index
    %817 = vector.load %arg6[%c576, %c0_242] : memref<1536x128xf32, #tpu.memory_space<vmem>>, vector<24x128xf32>
    tpu.vector_store %arg6[%c576, %c0_242], %816 {strides = array<i32>} : memref<1536x128xf32, #tpu.memory_space<vmem>>, vector<24x128xf32>,
    %c150 = arith.constant 150 : index
    %c0_243 = arith.constant 0 : index
    %818 = vector.load %arg5[%c150, %c0_243] : memref<384x128xf32, #tpu.memory_space<vmem>>, vector<1x128xf32>
    %c153 = arith.constant 153 : index
    %c0_244 = arith.constant 0 : index
    %819 = vector.load %arg5[%c153, %c0_244] : memref<384x128xf32, #tpu.memory_space<vmem>>, vector<1x128xf32>
    %820 = vector.shape_cast %818 : vector<1x128xf32> to vector<1x128xf32>
    %821 = vector.broadcast %820 : vector<1x128xf32> to vector<24x128xf32>
    %822 = vector.shape_cast %819 : vector<1x128xf32> to vector<1x128xf32>
    %823 = vector.broadcast %822 : vector<1x128xf32> to vector<24x128xf32>
    %824 = arith.select %17, %821, %823 : vector<24x128xi1>, vector<24x128xf32>
    %825 = arith.mulf %5, %824 : vector<24x128xf32>
    %826 = arith.addf %14, %825 : vector<24x128xf32>
    %c151 = arith.constant 151 : index
    %c0_245 = arith.constant 0 : index
    %827 = vector.load %arg5[%c151, %c0_245] : memref<384x128xf32, #tpu.memory_space<vmem>>, vector<1x128xf32>
    %c154 = arith.constant 154 : index
    %c0_246 = arith.constant 0 : index
    %828 = vector.load %arg5[%c154, %c0_246] : memref<384x128xf32, #tpu.memory_space<vmem>>, vector<1x128xf32>
    %829 = vector.shape_cast %827 : vector<1x128xf32> to vector<1x128xf32>
    %830 = vector.broadcast %829 : vector<1x128xf32> to vector<24x128xf32>
    %831 = vector.shape_cast %828 : vector<1x128xf32> to vector<1x128xf32>
    %832 = vector.broadcast %831 : vector<1x128xf32> to vector<24x128xf32>
    %833 = arith.select %17, %830, %832 : vector<24x128xi1>, vector<24x128xf32>
    %834 = arith.mulf %8, %833 : vector<24x128xf32>
    %835 = arith.addf %826, %834 : vector<24x128xf32>
    %c152 = arith.constant 152 : index
    %c0_247 = arith.constant 0 : index
    %836 = vector.load %arg5[%c152, %c0_247] : memref<384x128xf32, #tpu.memory_space<vmem>>, vector<1x128xf32>
    %c155 = arith.constant 155 : index
    %c0_248 = arith.constant 0 : index
    %837 = vector.load %arg5[%c155, %c0_248] : memref<384x128xf32, #tpu.memory_space<vmem>>, vector<1x128xf32>
    %838 = vector.shape_cast %836 : vector<1x128xf32> to vector<1x128xf32>
    %839 = vector.broadcast %838 : vector<1x128xf32> to vector<24x128xf32>
    %840 = vector.shape_cast %837 : vector<1x128xf32> to vector<1x128xf32>
    %841 = vector.broadcast %840 : vector<1x128xf32> to vector<24x128xf32>
    %842 = arith.select %17, %839, %841 : vector<24x128xi1>, vector<24x128xf32>
    %843 = arith.mulf %11, %842 : vector<24x128xf32>
    %844 = arith.addf %835, %843 : vector<24x128xf32>
    %cst_249 = arith.constant -1.73205078 : f32
    %cst_250 = arith.constant 3.7320509 : f32
    %845 = vector.broadcast %cst_249 : f32 to vector<24x128xf32>
    %846 = arith.maximumf %845, %844 : vector<24x128xf32>
    %847 = vector.broadcast %cst_250 : f32 to vector<24x128xf32>
    %848 = arith.minimumf %847, %846 : vector<24x128xf32>
    %c600 = arith.constant 600 : index
    %c0_251 = arith.constant 0 : index
    %849 = vector.load %arg6[%c600, %c0_251] : memref<1536x128xf32, #tpu.memory_space<vmem>>, vector<24x128xf32>
    tpu.vector_store %arg6[%c600, %c0_251], %848 {strides = array<i32>} : memref<1536x128xf32, #tpu.memory_space<vmem>>, vector<24x128xf32>,
    %c156 = arith.constant 156 : index
    %c0_252 = arith.constant 0 : index
    %850 = vector.load %arg5[%c156, %c0_252] : memref<384x128xf32, #tpu.memory_space<vmem>>, vector<1x128xf32>
    %c159 = arith.constant 159 : index
    %c0_253 = arith.constant 0 : index
    %851 = vector.load %arg5[%c159, %c0_253] : memref<384x128xf32, #tpu.memory_space<vmem>>, vector<1x128xf32>
    %852 = vector.shape_cast %850 : vector<1x128xf32> to vector<1x128xf32>
    %853 = vector.broadcast %852 : vector<1x128xf32> to vector<24x128xf32>
    %854 = vector.shape_cast %851 : vector<1x128xf32> to vector<1x128xf32>
    %855 = vector.broadcast %854 : vector<1x128xf32> to vector<24x128xf32>
    %856 = arith.select %17, %853, %855 : vector<24x128xi1>, vector<24x128xf32>
    %857 = arith.mulf %5, %856 : vector<24x128xf32>
    %858 = arith.addf %14, %857 : vector<24x128xf32>
    %c157 = arith.constant 157 : index
    %c0_254 = arith.constant 0 : index
    %859 = vector.load %arg5[%c157, %c0_254] : memref<384x128xf32, #tpu.memory_space<vmem>>, vector<1x128xf32>
    %c160 = arith.constant 160 : index
    %c0_255 = arith.constant 0 : index
    %860 = vector.load %arg5[%c160, %c0_255] : memref<384x128xf32, #tpu.memory_space<vmem>>, vector<1x128xf32>
    %861 = vector.shape_cast %859 : vector<1x128xf32> to vector<1x128xf32>
    %862 = vector.broadcast %861 : vector<1x128xf32> to vector<24x128xf32>
    %863 = vector.shape_cast %860 : vector<1x128xf32> to vector<1x128xf32>
    %864 = vector.broadcast %863 : vector<1x128xf32> to vector<24x128xf32>
    %865 = arith.select %17, %862, %864 : vector<24x128xi1>, vector<24x128xf32>
    %866 = arith.mulf %8, %865 : vector<24x128xf32>
    %867 = arith.addf %858, %866 : vector<24x128xf32>
    %c158 = arith.constant 158 : index
    %c0_256 = arith.constant 0 : index
    %868 = vector.load %arg5[%c158, %c0_256] : memref<384x128xf32, #tpu.memory_space<vmem>>, vector<1x128xf32>
    %c161 = arith.constant 161 : index
    %c0_257 = arith.constant 0 : index
    %869 = vector.load %arg5[%c161, %c0_257] : memref<384x128xf32, #tpu.memory_space<vmem>>, vector<1x128xf32>
    %870 = vector.shape_cast %868 : vector<1x128xf32> to vector<1x128xf32>
    %871 = vector.broadcast %870 : vector<1x128xf32> to vector<24x128xf32>
    %872 = vector.shape_cast %869 : vector<1x128xf32> to vector<1x128xf32>
    %873 = vector.broadcast %872 : vector<1x128xf32> to vector<24x128xf32>
    %874 = arith.select %17, %871, %873 : vector<24x128xi1>, vector<24x128xf32>
    %875 = arith.mulf %11, %874 : vector<24x128xf32>
    %876 = arith.addf %867, %875 : vector<24x128xf32>
    %cst_258 = arith.constant -1.73205078 : f32
    %cst_259 = arith.constant 3.7320509 : f32
    %877 = vector.broadcast %cst_258 : f32 to vector<24x128xf32>
    %878 = arith.maximumf %877, %876 : vector<24x128xf32>
    %879 = vector.broadcast %cst_259 : f32 to vector<24x128xf32>
    %880 = arith.minimumf %879, %878 : vector<24x128xf32>
    %c624 = arith.constant 624 : index
    %c0_260 = arith.constant 0 : index
    %881 = vector.load %arg6[%c624, %c0_260] : memref<1536x128xf32, #tpu.memory_space<vmem>>, vector<24x128xf32>
    tpu.vector_store %arg6[%c624, %c0_260], %880 {strides = array<i32>} : memref<1536x128xf32, #tpu.memory_space<vmem>>, vector<24x128xf32>,
    %c162 = arith.constant 162 : index
    %c0_261 = arith.constant 0 : index
    %882 = vector.load %arg5[%c162, %c0_261] : memref<384x128xf32, #tpu.memory_space<vmem>>, vector<1x128xf32>
    %c165 = arith.constant 165 : index
    %c0_262 = arith.constant 0 : index
    %883 = vector.load %arg5[%c165, %c0_262] : memref<384x128xf32, #tpu.memory_space<vmem>>, vector<1x128xf32>
    %884 = vector.shape_cast %882 : vector<1x128xf32> to vector<1x128xf32>
    %885 = vector.broadcast %884 : vector<1x128xf32> to vector<24x128xf32>
    %886 = vector.shape_cast %883 : vector<1x128xf32> to vector<1x128xf32>
    %887 = vector.broadcast %886 : vector<1x128xf32> to vector<24x128xf32>
    %888 = arith.select %17, %885, %887 : vector<24x128xi1>, vector<24x128xf32>
    %889 = arith.mulf %5, %888 : vector<24x128xf32>
    %890 = arith.addf %14, %889 : vector<24x128xf32>
    %c163 = arith.constant 163 : index
    %c0_263 = arith.constant 0 : index
    %891 = vector.load %arg5[%c163, %c0_263] : memref<384x128xf32, #tpu.memory_space<vmem>>, vector<1x128xf32>
    %c166 = arith.constant 166 : index
    %c0_264 = arith.constant 0 : index
    %892 = vector.load %arg5[%c166, %c0_264] : memref<384x128xf32, #tpu.memory_space<vmem>>, vector<1x128xf32>
    %893 = vector.shape_cast %891 : vector<1x128xf32> to vector<1x128xf32>
    %894 = vector.broadcast %893 : vector<1x128xf32> to vector<24x128xf32>
    %895 = vector.shape_cast %892 : vector<1x128xf32> to vector<1x128xf32>
    %896 = vector.broadcast %895 : vector<1x128xf32> to vector<24x128xf32>
    %897 = arith.select %17, %894, %896 : vector<24x128xi1>, vector<24x128xf32>
    %898 = arith.mulf %8, %897 : vector<24x128xf32>
    %899 = arith.addf %890, %898 : vector<24x128xf32>
    %c164 = arith.constant 164 : index
    %c0_265 = arith.constant 0 : index
    %900 = vector.load %arg5[%c164, %c0_265] : memref<384x128xf32, #tpu.memory_space<vmem>>, vector<1x128xf32>
    %c167 = arith.constant 167 : index
    %c0_266 = arith.constant 0 : index
    %901 = vector.load %arg5[%c167, %c0_266] : memref<384x128xf32, #tpu.memory_space<vmem>>, vector<1x128xf32>
    %902 = vector.shape_cast %900 : vector<1x128xf32> to vector<1x128xf32>
    %903 = vector.broadcast %902 : vector<1x128xf32> to vector<24x128xf32>
    %904 = vector.shape_cast %901 : vector<1x128xf32> to vector<1x128xf32>
    %905 = vector.broadcast %904 : vector<1x128xf32> to vector<24x128xf32>
    %906 = arith.select %17, %903, %905 : vector<24x128xi1>, vector<24x128xf32>
    %907 = arith.mulf %11, %906 : vector<24x128xf32>
    %908 = arith.addf %899, %907 : vector<24x128xf32>
    %cst_267 = arith.constant -1.73205078 : f32
    %cst_268 = arith.constant 3.7320509 : f32
    %909 = vector.broadcast %cst_267 : f32 to vector<24x128xf32>
    %910 = arith.maximumf %909, %908 : vector<24x128xf32>
    %911 = vector.broadcast %cst_268 : f32 to vector<24x128xf32>
    %912 = arith.minimumf %911, %910 : vector<24x128xf32>
    %c648 = arith.constant 648 : index
    %c0_269 = arith.constant 0 : index
    %913 = vector.load %arg6[%c648, %c0_269] : memref<1536x128xf32, #tpu.memory_space<vmem>>, vector<24x128xf32>
    tpu.vector_store %arg6[%c648, %c0_269], %912 {strides = array<i32>} : memref<1536x128xf32, #tpu.memory_space<vmem>>, vector<24x128xf32>,
    %c168_270 = arith.constant 168 : index
    %c0_271 = arith.constant 0 : index
    %914 = vector.load %arg5[%c168_270, %c0_271] : memref<384x128xf32, #tpu.memory_space<vmem>>, vector<1x128xf32>
    %c171 = arith.constant 171 : index
    %c0_272 = arith.constant 0 : index
    %915 = vector.load %arg5[%c171, %c0_272] : memref<384x128xf32, #tpu.memory_space<vmem>>, vector<1x128xf32>
    %916 = vector.shape_cast %914 : vector<1x128xf32> to vector<1x128xf32>
    %917 = vector.broadcast %916 : vector<1x128xf32> to vector<24x128xf32>
    %918 = vector.shape_cast %915 : vector<1x128xf32> to vector<1x128xf32>
    %919 = vector.broadcast %918 : vector<1x128xf32> to vector<24x128xf32>
    %920 = arith.select %17, %917, %919 : vector<24x128xi1>, vector<24x128xf32>
    %921 = arith.mulf %5, %920 : vector<24x128xf32>
    %922 = arith.addf %14, %921 : vector<24x128xf32>
    %c169 = arith.constant 169 : index
    %c0_273 = arith.constant 0 : index
    %923 = vector.load %arg5[%c169, %c0_273] : memref<384x128xf32, #tpu.memory_space<vmem>>, vector<1x128xf32>
    %c172 = arith.constant 172 : index
    %c0_274 = arith.constant 0 : index
    %924 = vector.load %arg5[%c172, %c0_274] : memref<384x128xf32, #tpu.memory_space<vmem>>, vector<1x128xf32>
    %925 = vector.shape_cast %923 : vector<1x128xf32> to vector<1x128xf32>
    %926 = vector.broadcast %925 : vector<1x128xf32> to vector<24x128xf32>
    %927 = vector.shape_cast %924 : vector<1x128xf32> to vector<1x128xf32>
    %928 = vector.broadcast %927 : vector<1x128xf32> to vector<24x128xf32>
    %929 = arith.select %17, %926, %928 : vector<24x128xi1>, vector<24x128xf32>
    %930 = arith.mulf %8, %929 : vector<24x128xf32>
    %931 = arith.addf %922, %930 : vector<24x128xf32>
    %c170 = arith.constant 170 : index
    %c0_275 = arith.constant 0 : index
    %932 = vector.load %arg5[%c170, %c0_275] : memref<384x128xf32, #tpu.memory_space<vmem>>, vector<1x128xf32>
    %c173 = arith.constant 173 : index
    %c0_276 = arith.constant 0 : index
    %933 = vector.load %arg5[%c173, %c0_276] : memref<384x128xf32, #tpu.memory_space<vmem>>, vector<1x128xf32>
    %934 = vector.shape_cast %932 : vector<1x128xf32> to vector<1x128xf32>
    %935 = vector.broadcast %934 : vector<1x128xf32> to vector<24x128xf32>
    %936 = vector.shape_cast %933 : vector<1x128xf32> to vector<1x128xf32>
    %937 = vector.broadcast %936 : vector<1x128xf32> to vector<24x128xf32>
    %938 = arith.select %17, %935, %937 : vector<24x128xi1>, vector<24x128xf32>
    %939 = arith.mulf %11, %938 : vector<24x128xf32>
    %940 = arith.addf %931, %939 : vector<24x128xf32>
    %cst_277 = arith.constant -1.73205078 : f32
    %cst_278 = arith.constant 3.7320509 : f32
    %941 = vector.broadcast %cst_277 : f32 to vector<24x128xf32>
    %942 = arith.maximumf %941, %940 : vector<24x128xf32>
    %943 = vector.broadcast %cst_278 : f32 to vector<24x128xf32>
    %944 = arith.minimumf %943, %942 : vector<24x128xf32>
    %c672 = arith.constant 672 : index
    %c0_279 = arith.constant 0 : index
    %945 = vector.load %arg6[%c672, %c0_279] : memref<1536x128xf32, #tpu.memory_space<vmem>>, vector<24x128xf32>
    tpu.vector_store %arg6[%c672, %c0_279], %944 {strides = array<i32>} : memref<1536x128xf32, #tpu.memory_space<vmem>>, vector<24x128xf32>,
    %c174 = arith.constant 174 : index
    %c0_280 = arith.constant 0 : index
    %946 = vector.load %arg5[%c174, %c0_280] : memref<384x128xf32, #tpu.memory_space<vmem>>, vector<1x128xf32>
    %c177 = arith.constant 177 : index
    %c0_281 = arith.constant 0 : index
    %947 = vector.load %arg5[%c177, %c0_281] : memref<384x128xf32, #tpu.memory_space<vmem>>, vector<1x128xf32>
    %948 = vector.shape_cast %946 : vector<1x128xf32> to vector<1x128xf32>
    %949 = vector.broadcast %948 : vector<1x128xf32> to vector<24x128xf32>
    %950 = vector.shape_cast %947 : vector<1x128xf32> to vector<1x128xf32>
    %951 = vector.broadcast %950 : vector<1x128xf32> to vector<24x128xf32>
    %952 = arith.select %17, %949, %951 : vector<24x128xi1>, vector<24x128xf32>
    %953 = arith.mulf %5, %952 : vector<24x128xf32>
    %954 = arith.addf %14, %953 : vector<24x128xf32>
    %c175 = arith.constant 175 : index
    %c0_282 = arith.constant 0 : index
    %955 = vector.load %arg5[%c175, %c0_282] : memref<384x128xf32, #tpu.memory_space<vmem>>, vector<1x128xf32>
    %c178 = arith.constant 178 : index
    %c0_283 = arith.constant 0 : index
    %956 = vector.load %arg5[%c178, %c0_283] : memref<384x128xf32, #tpu.memory_space<vmem>>, vector<1x128xf32>
    %957 = vector.shape_cast %955 : vector<1x128xf32> to vector<1x128xf32>
    %958 = vector.broadcast %957 : vector<1x128xf32> to vector<24x128xf32>
    %959 = vector.shape_cast %956 : vector<1x128xf32> to vector<1x128xf32>
    %960 = vector.broadcast %959 : vector<1x128xf32> to vector<24x128xf32>
    %961 = arith.select %17, %958, %960 : vector<24x128xi1>, vector<24x128xf32>
    %962 = arith.mulf %8, %961 : vector<24x128xf32>
    %963 = arith.addf %954, %962 : vector<24x128xf32>
    %c176 = arith.constant 176 : index
    %c0_284 = arith.constant 0 : index
    %964 = vector.load %arg5[%c176, %c0_284] : memref<384x128xf32, #tpu.memory_space<vmem>>, vector<1x128xf32>
    %c179 = arith.constant 179 : index
    %c0_285 = arith.constant 0 : index
    %965 = vector.load %arg5[%c179, %c0_285] : memref<384x128xf32, #tpu.memory_space<vmem>>, vector<1x128xf32>
    %966 = vector.shape_cast %964 : vector<1x128xf32> to vector<1x128xf32>
    %967 = vector.broadcast %966 : vector<1x128xf32> to vector<24x128xf32>
    %968 = vector.shape_cast %965 : vector<1x128xf32> to vector<1x128xf32>
    %969 = vector.broadcast %968 : vector<1x128xf32> to vector<24x128xf32>
    %970 = arith.select %17, %967, %969 : vector<24x128xi1>, vector<24x128xf32>
    %971 = arith.mulf %11, %970 : vector<24x128xf32>
    %972 = arith.addf %963, %971 : vector<24x128xf32>
    %cst_286 = arith.constant -1.73205078 : f32
    %cst_287 = arith.constant 3.7320509 : f32
    %973 = vector.broadcast %cst_286 : f32 to vector<24x128xf32>
    %974 = arith.maximumf %973, %972 : vector<24x128xf32>
    %975 = vector.broadcast %cst_287 : f32 to vector<24x128xf32>
    %976 = arith.minimumf %975, %974 : vector<24x128xf32>
    %c696 = arith.constant 696 : index
    %c0_288 = arith.constant 0 : index
    %977 = vector.load %arg6[%c696, %c0_288] : memref<1536x128xf32, #tpu.memory_space<vmem>>, vector<24x128xf32>
    tpu.vector_store %arg6[%c696, %c0_288], %976 {strides = array<i32>} : memref<1536x128xf32, #tpu.memory_space<vmem>>, vector<24x128xf32>,
    %c180 = arith.constant 180 : index
    %c0_289 = arith.constant 0 : index
    %978 = vector.load %arg5[%c180, %c0_289] : memref<384x128xf32, #tpu.memory_space<vmem>>, vector<1x128xf32>
    %c183 = arith.constant 183 : index
    %c0_290 = arith.constant 0 : index
    %979 = vector.load %arg5[%c183, %c0_290] : memref<384x128xf32, #tpu.memory_space<vmem>>, vector<1x128xf32>
    %980 = vector.shape_cast %978 : vector<1x128xf32> to vector<1x128xf32>
    %981 = vector.broadcast %980 : vector<1x128xf32> to vector<24x128xf32>
    %982 = vector.shape_cast %979 : vector<1x128xf32> to vector<1x128xf32>
    %983 = vector.broadcast %982 : vector<1x128xf32> to vector<24x128xf32>
    %984 = arith.select %17, %981, %983 : vector<24x128xi1>, vector<24x128xf32>
    %985 = arith.mulf %5, %984 : vector<24x128xf32>
    %986 = arith.addf %14, %985 : vector<24x128xf32>
    %c181 = arith.constant 181 : index
    %c0_291 = arith.constant 0 : index
    %987 = vector.load %arg5[%c181, %c0_291] : memref<384x128xf32, #tpu.memory_space<vmem>>, vector<1x128xf32>
    %c184 = arith.constant 184 : index
    %c0_292 = arith.constant 0 : index
    %988 = vector.load %arg5[%c184, %c0_292] : memref<384x128xf32, #tpu.memory_space<vmem>>, vector<1x128xf32>
    %989 = vector.shape_cast %987 : vector<1x128xf32> to vector<1x128xf32>
    %990 = vector.broadcast %989 : vector<1x128xf32> to vector<24x128xf32>
    %991 = vector.shape_cast %988 : vector<1x128xf32> to vector<1x128xf32>
    %992 = vector.broadcast %991 : vector<1x128xf32> to vector<24x128xf32>
    %993 = arith.select %17, %990, %992 : vector<24x128xi1>, vector<24x128xf32>
    %994 = arith.mulf %8, %993 : vector<24x128xf32>
    %995 = arith.addf %986, %994 : vector<24x128xf32>
    %c182 = arith.constant 182 : index
    %c0_293 = arith.constant 0 : index
    %996 = vector.load %arg5[%c182, %c0_293] : memref<384x128xf32, #tpu.memory_space<vmem>>, vector<1x128xf32>
    %c185 = arith.constant 185 : index
    %c0_294 = arith.constant 0 : index
    %997 = vector.load %arg5[%c185, %c0_294] : memref<384x128xf32, #tpu.memory_space<vmem>>, vector<1x128xf32>
    %998 = vector.shape_cast %996 : vector<1x128xf32> to vector<1x128xf32>
    %999 = vector.broadcast %998 : vector<1x128xf32> to vector<24x128xf32>
    %1000 = vector.shape_cast %997 : vector<1x128xf32> to vector<1x128xf32>
    %1001 = vector.broadcast %1000 : vector<1x128xf32> to vector<24x128xf32>
    %1002 = arith.select %17, %999, %1001 : vector<24x128xi1>, vector<24x128xf32>
    %1003 = arith.mulf %11, %1002 : vector<24x128xf32>
    %1004 = arith.addf %995, %1003 : vector<24x128xf32>
    %cst_295 = arith.constant -1.73205078 : f32
    %cst_296 = arith.constant 3.7320509 : f32
    %1005 = vector.broadcast %cst_295 : f32 to vector<24x128xf32>
    %1006 = arith.maximumf %1005, %1004 : vector<24x128xf32>
    %1007 = vector.broadcast %cst_296 : f32 to vector<24x128xf32>
    %1008 = arith.minimumf %1007, %1006 : vector<24x128xf32>
    %c720 = arith.constant 720 : index
    %c0_297 = arith.constant 0 : index
    %1009 = vector.load %arg6[%c720, %c0_297] : memref<1536x128xf32, #tpu.memory_space<vmem>>, vector<24x128xf32>
    tpu.vector_store %arg6[%c720, %c0_297], %1008 {strides = array<i32>} : memref<1536x128xf32, #tpu.memory_space<vmem>>, vector<24x128xf32>,
    %c186 = arith.constant 186 : index
    %c0_298 = arith.constant 0 : index
    %1010 = vector.load %arg5[%c186, %c0_298] : memref<384x128xf32, #tpu.memory_space<vmem>>, vector<1x128xf32>
    %c189 = arith.constant 189 : index
    %c0_299 = arith.constant 0 : index
    %1011 = vector.load %arg5[%c189, %c0_299] : memref<384x128xf32, #tpu.memory_space<vmem>>, vector<1x128xf32>
    %1012 = vector.shape_cast %1010 : vector<1x128xf32> to vector<1x128xf32>
    %1013 = vector.broadcast %1012 : vector<1x128xf32> to vector<24x128xf32>
    %1014 = vector.shape_cast %1011 : vector<1x128xf32> to vector<1x128xf32>
    %1015 = vector.broadcast %1014 : vector<1x128xf32> to vector<24x128xf32>
    %1016 = arith.select %17, %1013, %1015 : vector<24x128xi1>, vector<24x128xf32>
    %1017 = arith.mulf %5, %1016 : vector<24x128xf32>
    %1018 = arith.addf %14, %1017 : vector<24x128xf32>
    %c187 = arith.constant 187 : index
    %c0_300 = arith.constant 0 : index
    %1019 = vector.load %arg5[%c187, %c0_300] : memref<384x128xf32, #tpu.memory_space<vmem>>, vector<1x128xf32>
    %c190 = arith.constant 190 : index
    %c0_301 = arith.constant 0 : index
    %1020 = vector.load %arg5[%c190, %c0_301] : memref<384x128xf32, #tpu.memory_space<vmem>>, vector<1x128xf32>
    %1021 = vector.shape_cast %1019 : vector<1x128xf32> to vector<1x128xf32>
    %1022 = vector.broadcast %1021 : vector<1x128xf32> to vector<24x128xf32>
    %1023 = vector.shape_cast %1020 : vector<1x128xf32> to vector<1x128xf32>
    %1024 = vector.broadcast %1023 : vector<1x128xf32> to vector<24x128xf32>
    %1025 = arith.select %17, %1022, %1024 : vector<24x128xi1>, vector<24x128xf32>
    %1026 = arith.mulf %8, %1025 : vector<24x128xf32>
    %1027 = arith.addf %1018, %1026 : vector<24x128xf32>
    %c188 = arith.constant 188 : index
    %c0_302 = arith.constant 0 : index
    %1028 = vector.load %arg5[%c188, %c0_302] : memref<384x128xf32, #tpu.memory_space<vmem>>, vector<1x128xf32>
    %c191 = arith.constant 191 : index
    %c0_303 = arith.constant 0 : index
    %1029 = vector.load %arg5[%c191, %c0_303] : memref<384x128xf32, #tpu.memory_space<vmem>>, vector<1x128xf32>
    %1030 = vector.shape_cast %1028 : vector<1x128xf32> to vector<1x128xf32>
    %1031 = vector.broadcast %1030 : vector<1x128xf32> to vector<24x128xf32>
    %1032 = vector.shape_cast %1029 : vector<1x128xf32> to vector<1x128xf32>
    %1033 = vector.broadcast %1032 : vector<1x128xf32> to vector<24x128xf32>
    %1034 = arith.select %17, %1031, %1033 : vector<24x128xi1>, vector<24x128xf32>
    %1035 = arith.mulf %11, %1034 : vector<24x128xf32>
    %1036 = arith.addf %1027, %1035 : vector<24x128xf32>
    %cst_304 = arith.constant -1.73205078 : f32
    %cst_305 = arith.constant 3.7320509 : f32
    %1037 = vector.broadcast %cst_304 : f32 to vector<24x128xf32>
    %1038 = arith.maximumf %1037, %1036 : vector<24x128xf32>
    %1039 = vector.broadcast %cst_305 : f32 to vector<24x128xf32>
    %1040 = arith.minimumf %1039, %1038 : vector<24x128xf32>
    %c744 = arith.constant 744 : index
    %c0_306 = arith.constant 0 : index
    %1041 = vector.load %arg6[%c744, %c0_306] : memref<1536x128xf32, #tpu.memory_space<vmem>>, vector<24x128xf32>
    tpu.vector_store %arg6[%c744, %c0_306], %1040 {strides = array<i32>} : memref<1536x128xf32, #tpu.memory_space<vmem>>, vector<24x128xf32>,
    %c192_307 = arith.constant 192 : index
    %c0_308 = arith.constant 0 : index
    %1042 = vector.load %arg5[%c192_307, %c0_308] : memref<384x128xf32, #tpu.memory_space<vmem>>, vector<1x128xf32>
    %c195 = arith.constant 195 : index
    %c0_309 = arith.constant 0 : index
    %1043 = vector.load %arg5[%c195, %c0_309] : memref<384x128xf32, #tpu.memory_space<vmem>>, vector<1x128xf32>
    %1044 = vector.shape_cast %1042 : vector<1x128xf32> to vector<1x128xf32>
    %1045 = vector.broadcast %1044 : vector<1x128xf32> to vector<24x128xf32>
    %1046 = vector.shape_cast %1043 : vector<1x128xf32> to vector<1x128xf32>
    %1047 = vector.broadcast %1046 : vector<1x128xf32> to vector<24x128xf32>
    %1048 = arith.select %17, %1045, %1047 : vector<24x128xi1>, vector<24x128xf32>
    %1049 = arith.mulf %5, %1048 : vector<24x128xf32>
    %1050 = arith.addf %14, %1049 : vector<24x128xf32>
    %c193 = arith.constant 193 : index
    %c0_310 = arith.constant 0 : index
    %1051 = vector.load %arg5[%c193, %c0_310] : memref<384x128xf32, #tpu.memory_space<vmem>>, vector<1x128xf32>
    %c196 = arith.constant 196 : index
    %c0_311 = arith.constant 0 : index
    %1052 = vector.load %arg5[%c196, %c0_311] : memref<384x128xf32, #tpu.memory_space<vmem>>, vector<1x128xf32>
    %1053 = vector.shape_cast %1051 : vector<1x128xf32> to vector<1x128xf32>
    %1054 = vector.broadcast %1053 : vector<1x128xf32> to vector<24x128xf32>
    %1055 = vector.shape_cast %1052 : vector<1x128xf32> to vector<1x128xf32>
    %1056 = vector.broadcast %1055 : vector<1x128xf32> to vector<24x128xf32>
    %1057 = arith.select %17, %1054, %1056 : vector<24x128xi1>, vector<24x128xf32>
    %1058 = arith.mulf %8, %1057 : vector<24x128xf32>
    %1059 = arith.addf %1050, %1058 : vector<24x128xf32>
    %c194 = arith.constant 194 : index
    %c0_312 = arith.constant 0 : index
    %1060 = vector.load %arg5[%c194, %c0_312] : memref<384x128xf32, #tpu.memory_space<vmem>>, vector<1x128xf32>
    %c197 = arith.constant 197 : index
    %c0_313 = arith.constant 0 : index
    %1061 = vector.load %arg5[%c197, %c0_313] : memref<384x128xf32, #tpu.memory_space<vmem>>, vector<1x128xf32>
    %1062 = vector.shape_cast %1060 : vector<1x128xf32> to vector<1x128xf32>
    %1063 = vector.broadcast %1062 : vector<1x128xf32> to vector<24x128xf32>
    %1064 = vector.shape_cast %1061 : vector<1x128xf32> to vector<1x128xf32>
    %1065 = vector.broadcast %1064 : vector<1x128xf32> to vector<24x128xf32>
    %1066 = arith.select %17, %1063, %1065 : vector<24x128xi1>, vector<24x128xf32>
    %1067 = arith.mulf %11, %1066 : vector<24x128xf32>
    %1068 = arith.addf %1059, %1067 : vector<24x128xf32>
    %cst_314 = arith.constant -1.73205078 : f32
    %cst_315 = arith.constant 3.7320509 : f32
    %1069 = vector.broadcast %cst_314 : f32 to vector<24x128xf32>
    %1070 = arith.maximumf %1069, %1068 : vector<24x128xf32>
    %1071 = vector.broadcast %cst_315 : f32 to vector<24x128xf32>
    %1072 = arith.minimumf %1071, %1070 : vector<24x128xf32>
    %c768 = arith.constant 768 : index
    %c0_316 = arith.constant 0 : index
    %1073 = vector.load %arg6[%c768, %c0_316] : memref<1536x128xf32, #tpu.memory_space<vmem>>, vector<24x128xf32>
    tpu.vector_store %arg6[%c768, %c0_316], %1072 {strides = array<i32>} : memref<1536x128xf32, #tpu.memory_space<vmem>>, vector<24x128xf32>,
    %c198 = arith.constant 198 : index
    %c0_317 = arith.constant 0 : index
    %1074 = vector.load %arg5[%c198, %c0_317] : memref<384x128xf32, #tpu.memory_space<vmem>>, vector<1x128xf32>
    %c201 = arith.constant 201 : index
    %c0_318 = arith.constant 0 : index
    %1075 = vector.load %arg5[%c201, %c0_318] : memref<384x128xf32, #tpu.memory_space<vmem>>, vector<1x128xf32>
    %1076 = vector.shape_cast %1074 : vector<1x128xf32> to vector<1x128xf32>
    %1077 = vector.broadcast %1076 : vector<1x128xf32> to vector<24x128xf32>
    %1078 = vector.shape_cast %1075 : vector<1x128xf32> to vector<1x128xf32>
    %1079 = vector.broadcast %1078 : vector<1x128xf32> to vector<24x128xf32>
    %1080 = arith.select %17, %1077, %1079 : vector<24x128xi1>, vector<24x128xf32>
    %1081 = arith.mulf %5, %1080 : vector<24x128xf32>
    %1082 = arith.addf %14, %1081 : vector<24x128xf32>
    %c199 = arith.constant 199 : index
    %c0_319 = arith.constant 0 : index
    %1083 = vector.load %arg5[%c199, %c0_319] : memref<384x128xf32, #tpu.memory_space<vmem>>, vector<1x128xf32>
    %c202 = arith.constant 202 : index
    %c0_320 = arith.constant 0 : index
    %1084 = vector.load %arg5[%c202, %c0_320] : memref<384x128xf32, #tpu.memory_space<vmem>>, vector<1x128xf32>
    %1085 = vector.shape_cast %1083 : vector<1x128xf32> to vector<1x128xf32>
    %1086 = vector.broadcast %1085 : vector<1x128xf32> to vector<24x128xf32>
    %1087 = vector.shape_cast %1084 : vector<1x128xf32> to vector<1x128xf32>
    %1088 = vector.broadcast %1087 : vector<1x128xf32> to vector<24x128xf32>
    %1089 = arith.select %17, %1086, %1088 : vector<24x128xi1>, vector<24x128xf32>
    %1090 = arith.mulf %8, %1089 : vector<24x128xf32>
    %1091 = arith.addf %1082, %1090 : vector<24x128xf32>
    %c200 = arith.constant 200 : index
    %c0_321 = arith.constant 0 : index
    %1092 = vector.load %arg5[%c200, %c0_321] : memref<384x128xf32, #tpu.memory_space<vmem>>, vector<1x128xf32>
    %c203 = arith.constant 203 : index
    %c0_322 = arith.constant 0 : index
    %1093 = vector.load %arg5[%c203, %c0_322] : memref<384x128xf32, #tpu.memory_space<vmem>>, vector<1x128xf32>
    %1094 = vector.shape_cast %1092 : vector<1x128xf32> to vector<1x128xf32>
    %1095 = vector.broadcast %1094 : vector<1x128xf32> to vector<24x128xf32>
    %1096 = vector.shape_cast %1093 : vector<1x128xf32> to vector<1x128xf32>
    %1097 = vector.broadcast %1096 : vector<1x128xf32> to vector<24x128xf32>
    %1098 = arith.select %17, %1095, %1097 : vector<24x128xi1>, vector<24x128xf32>
    %1099 = arith.mulf %11, %1098 : vector<24x128xf32>
    %1100 = arith.addf %1091, %1099 : vector<24x128xf32>
    %cst_323 = arith.constant -1.73205078 : f32
    %cst_324 = arith.constant 3.7320509 : f32
    %1101 = vector.broadcast %cst_323 : f32 to vector<24x128xf32>
    %1102 = arith.maximumf %1101, %1100 : vector<24x128xf32>
    %1103 = vector.broadcast %cst_324 : f32 to vector<24x128xf32>
    %1104 = arith.minimumf %1103, %1102 : vector<24x128xf32>
    %c792 = arith.constant 792 : index
    %c0_325 = arith.constant 0 : index
    %1105 = vector.load %arg6[%c792, %c0_325] : memref<1536x128xf32, #tpu.memory_space<vmem>>, vector<24x128xf32>
    tpu.vector_store %arg6[%c792, %c0_325], %1104 {strides = array<i32>} : memref<1536x128xf32, #tpu.memory_space<vmem>>, vector<24x128xf32>,
    %c204 = arith.constant 204 : index
    %c0_326 = arith.constant 0 : index
    %1106 = vector.load %arg5[%c204, %c0_326] : memref<384x128xf32, #tpu.memory_space<vmem>>, vector<1x128xf32>
    %c207 = arith.constant 207 : index
    %c0_327 = arith.constant 0 : index
    %1107 = vector.load %arg5[%c207, %c0_327] : memref<384x128xf32, #tpu.memory_space<vmem>>, vector<1x128xf32>
    %1108 = vector.shape_cast %1106 : vector<1x128xf32> to vector<1x128xf32>
    %1109 = vector.broadcast %1108 : vector<1x128xf32> to vector<24x128xf32>
    %1110 = vector.shape_cast %1107 : vector<1x128xf32> to vector<1x128xf32>
    %1111 = vector.broadcast %1110 : vector<1x128xf32> to vector<24x128xf32>
    %1112 = arith.select %17, %1109, %1111 : vector<24x128xi1>, vector<24x128xf32>
    %1113 = arith.mulf %5, %1112 : vector<24x128xf32>
    %1114 = arith.addf %14, %1113 : vector<24x128xf32>
    %c205 = arith.constant 205 : index
    %c0_328 = arith.constant 0 : index
    %1115 = vector.load %arg5[%c205, %c0_328] : memref<384x128xf32, #tpu.memory_space<vmem>>, vector<1x128xf32>
    %c208 = arith.constant 208 : index
    %c0_329 = arith.constant 0 : index
    %1116 = vector.load %arg5[%c208, %c0_329] : memref<384x128xf32, #tpu.memory_space<vmem>>, vector<1x128xf32>
    %1117 = vector.shape_cast %1115 : vector<1x128xf32> to vector<1x128xf32>
    %1118 = vector.broadcast %1117 : vector<1x128xf32> to vector<24x128xf32>
    %1119 = vector.shape_cast %1116 : vector<1x128xf32> to vector<1x128xf32>
    %1120 = vector.broadcast %1119 : vector<1x128xf32> to vector<24x128xf32>
    %1121 = arith.select %17, %1118, %1120 : vector<24x128xi1>, vector<24x128xf32>
    %1122 = arith.mulf %8, %1121 : vector<24x128xf32>
    %1123 = arith.addf %1114, %1122 : vector<24x128xf32>
    %c206 = arith.constant 206 : index
    %c0_330 = arith.constant 0 : index
    %1124 = vector.load %arg5[%c206, %c0_330] : memref<384x128xf32, #tpu.memory_space<vmem>>, vector<1x128xf32>
    %c209 = arith.constant 209 : index
    %c0_331 = arith.constant 0 : index
    %1125 = vector.load %arg5[%c209, %c0_331] : memref<384x128xf32, #tpu.memory_space<vmem>>, vector<1x128xf32>
    %1126 = vector.shape_cast %1124 : vector<1x128xf32> to vector<1x128xf32>
    %1127 = vector.broadcast %1126 : vector<1x128xf32> to vector<24x128xf32>
    %1128 = vector.shape_cast %1125 : vector<1x128xf32> to vector<1x128xf32>
    %1129 = vector.broadcast %1128 : vector<1x128xf32> to vector<24x128xf32>
    %1130 = arith.select %17, %1127, %1129 : vector<24x128xi1>, vector<24x128xf32>
    %1131 = arith.mulf %11, %1130 : vector<24x128xf32>
    %1132 = arith.addf %1123, %1131 : vector<24x128xf32>
    %cst_332 = arith.constant -1.73205078 : f32
    %cst_333 = arith.constant 3.7320509 : f32
    %1133 = vector.broadcast %cst_332 : f32 to vector<24x128xf32>
    %1134 = arith.maximumf %1133, %1132 : vector<24x128xf32>
    %1135 = vector.broadcast %cst_333 : f32 to vector<24x128xf32>
    %1136 = arith.minimumf %1135, %1134 : vector<24x128xf32>
    %c816 = arith.constant 816 : index
    %c0_334 = arith.constant 0 : index
    %1137 = vector.load %arg6[%c816, %c0_334] : memref<1536x128xf32, #tpu.memory_space<vmem>>, vector<24x128xf32>
    tpu.vector_store %arg6[%c816, %c0_334], %1136 {strides = array<i32>} : memref<1536x128xf32, #tpu.memory_space<vmem>>, vector<24x128xf32>,
    %c210 = arith.constant 210 : index
    %c0_335 = arith.constant 0 : index
    %1138 = vector.load %arg5[%c210, %c0_335] : memref<384x128xf32, #tpu.memory_space<vmem>>, vector<1x128xf32>
    %c213 = arith.constant 213 : index
    %c0_336 = arith.constant 0 : index
    %1139 = vector.load %arg5[%c213, %c0_336] : memref<384x128xf32, #tpu.memory_space<vmem>>, vector<1x128xf32>
    %1140 = vector.shape_cast %1138 : vector<1x128xf32> to vector<1x128xf32>
    %1141 = vector.broadcast %1140 : vector<1x128xf32> to vector<24x128xf32>
    %1142 = vector.shape_cast %1139 : vector<1x128xf32> to vector<1x128xf32>
    %1143 = vector.broadcast %1142 : vector<1x128xf32> to vector<24x128xf32>
    %1144 = arith.select %17, %1141, %1143 : vector<24x128xi1>, vector<24x128xf32>
    %1145 = arith.mulf %5, %1144 : vector<24x128xf32>
    %1146 = arith.addf %14, %1145 : vector<24x128xf32>
    %c211 = arith.constant 211 : index
    %c0_337 = arith.constant 0 : index
    %1147 = vector.load %arg5[%c211, %c0_337] : memref<384x128xf32, #tpu.memory_space<vmem>>, vector<1x128xf32>
    %c214 = arith.constant 214 : index
    %c0_338 = arith.constant 0 : index
    %1148 = vector.load %arg5[%c214, %c0_338] : memref<384x128xf32, #tpu.memory_space<vmem>>, vector<1x128xf32>
    %1149 = vector.shape_cast %1147 : vector<1x128xf32> to vector<1x128xf32>
    %1150 = vector.broadcast %1149 : vector<1x128xf32> to vector<24x128xf32>
    %1151 = vector.shape_cast %1148 : vector<1x128xf32> to vector<1x128xf32>
    %1152 = vector.broadcast %1151 : vector<1x128xf32> to vector<24x128xf32>
    %1153 = arith.select %17, %1150, %1152 : vector<24x128xi1>, vector<24x128xf32>
    %1154 = arith.mulf %8, %1153 : vector<24x128xf32>
    %1155 = arith.addf %1146, %1154 : vector<24x128xf32>
    %c212 = arith.constant 212 : index
    %c0_339 = arith.constant 0 : index
    %1156 = vector.load %arg5[%c212, %c0_339] : memref<384x128xf32, #tpu.memory_space<vmem>>, vector<1x128xf32>
    %c215 = arith.constant 215 : index
    %c0_340 = arith.constant 0 : index
    %1157 = vector.load %arg5[%c215, %c0_340] : memref<384x128xf32, #tpu.memory_space<vmem>>, vector<1x128xf32>
    %1158 = vector.shape_cast %1156 : vector<1x128xf32> to vector<1x128xf32>
    %1159 = vector.broadcast %1158 : vector<1x128xf32> to vector<24x128xf32>
    %1160 = vector.shape_cast %1157 : vector<1x128xf32> to vector<1x128xf32>
    %1161 = vector.broadcast %1160 : vector<1x128xf32> to vector<24x128xf32>
    %1162 = arith.select %17, %1159, %1161 : vector<24x128xi1>, vector<24x128xf32>
    %1163 = arith.mulf %11, %1162 : vector<24x128xf32>
    %1164 = arith.addf %1155, %1163 : vector<24x128xf32>
    %cst_341 = arith.constant -1.73205078 : f32
    %cst_342 = arith.constant 3.7320509 : f32
    %1165 = vector.broadcast %cst_341 : f32 to vector<24x128xf32>
    %1166 = arith.maximumf %1165, %1164 : vector<24x128xf32>
    %1167 = vector.broadcast %cst_342 : f32 to vector<24x128xf32>
    %1168 = arith.minimumf %1167, %1166 : vector<24x128xf32>
    %c840 = arith.constant 840 : index
    %c0_343 = arith.constant 0 : index
    %1169 = vector.load %arg6[%c840, %c0_343] : memref<1536x128xf32, #tpu.memory_space<vmem>>, vector<24x128xf32>
    tpu.vector_store %arg6[%c840, %c0_343], %1168 {strides = array<i32>} : memref<1536x128xf32, #tpu.memory_space<vmem>>, vector<24x128xf32>,
    %c216_344 = arith.constant 216 : index
    %c0_345 = arith.constant 0 : index
    %1170 = vector.load %arg5[%c216_344, %c0_345] : memref<384x128xf32, #tpu.memory_space<vmem>>, vector<1x128xf32>
    %c219 = arith.constant 219 : index
    %c0_346 = arith.constant 0 : index
    %1171 = vector.load %arg5[%c219, %c0_346] : memref<384x128xf32, #tpu.memory_space<vmem>>, vector<1x128xf32>
    %1172 = vector.shape_cast %1170 : vector<1x128xf32> to vector<1x128xf32>
    %1173 = vector.broadcast %1172 : vector<1x128xf32> to vector<24x128xf32>
    %1174 = vector.shape_cast %1171 : vector<1x128xf32> to vector<1x128xf32>
    %1175 = vector.broadcast %1174 : vector<1x128xf32> to vector<24x128xf32>
    %1176 = arith.select %17, %1173, %1175 : vector<24x128xi1>, vector<24x128xf32>
    %1177 = arith.mulf %5, %1176 : vector<24x128xf32>
    %1178 = arith.addf %14, %1177 : vector<24x128xf32>
    %c217 = arith.constant 217 : index
    %c0_347 = arith.constant 0 : index
    %1179 = vector.load %arg5[%c217, %c0_347] : memref<384x128xf32, #tpu.memory_space<vmem>>, vector<1x128xf32>
    %c220 = arith.constant 220 : index
    %c0_348 = arith.constant 0 : index
    %1180 = vector.load %arg5[%c220, %c0_348] : memref<384x128xf32, #tpu.memory_space<vmem>>, vector<1x128xf32>
    %1181 = vector.shape_cast %1179 : vector<1x128xf32> to vector<1x128xf32>
    %1182 = vector.broadcast %1181 : vector<1x128xf32> to vector<24x128xf32>
    %1183 = vector.shape_cast %1180 : vector<1x128xf32> to vector<1x128xf32>
    %1184 = vector.broadcast %1183 : vector<1x128xf32> to vector<24x128xf32>
    %1185 = arith.select %17, %1182, %1184 : vector<24x128xi1>, vector<24x128xf32>
    %1186 = arith.mulf %8, %1185 : vector<24x128xf32>
    %1187 = arith.addf %1178, %1186 : vector<24x128xf32>
    %c218 = arith.constant 218 : index
    %c0_349 = arith.constant 0 : index
    %1188 = vector.load %arg5[%c218, %c0_349] : memref<384x128xf32, #tpu.memory_space<vmem>>, vector<1x128xf32>
    %c221 = arith.constant 221 : index
    %c0_350 = arith.constant 0 : index
    %1189 = vector.load %arg5[%c221, %c0_350] : memref<384x128xf32, #tpu.memory_space<vmem>>, vector<1x128xf32>
    %1190 = vector.shape_cast %1188 : vector<1x128xf32> to vector<1x128xf32>
    %1191 = vector.broadcast %1190 : vector<1x128xf32> to vector<24x128xf32>
    %1192 = vector.shape_cast %1189 : vector<1x128xf32> to vector<1x128xf32>
    %1193 = vector.broadcast %1192 : vector<1x128xf32> to vector<24x128xf32>
    %1194 = arith.select %17, %1191, %1193 : vector<24x128xi1>, vector<24x128xf32>
    %1195 = arith.mulf %11, %1194 : vector<24x128xf32>
    %1196 = arith.addf %1187, %1195 : vector<24x128xf32>
    %cst_351 = arith.constant -1.73205078 : f32
    %cst_352 = arith.constant 3.7320509 : f32
    %1197 = vector.broadcast %cst_351 : f32 to vector<24x128xf32>
    %1198 = arith.maximumf %1197, %1196 : vector<24x128xf32>
    %1199 = vector.broadcast %cst_352 : f32 to vector<24x128xf32>
    %1200 = arith.minimumf %1199, %1198 : vector<24x128xf32>
    %c864 = arith.constant 864 : index
    %c0_353 = arith.constant 0 : index
    %1201 = vector.load %arg6[%c864, %c0_353] : memref<1536x128xf32, #tpu.memory_space<vmem>>, vector<24x128xf32>
    tpu.vector_store %arg6[%c864, %c0_353], %1200 {strides = array<i32>} : memref<1536x128xf32, #tpu.memory_space<vmem>>, vector<24x128xf32>,
    %c222 = arith.constant 222 : index
    %c0_354 = arith.constant 0 : index
    %1202 = vector.load %arg5[%c222, %c0_354] : memref<384x128xf32, #tpu.memory_space<vmem>>, vector<1x128xf32>
    %c225 = arith.constant 225 : index
    %c0_355 = arith.constant 0 : index
    %1203 = vector.load %arg5[%c225, %c0_355] : memref<384x128xf32, #tpu.memory_space<vmem>>, vector<1x128xf32>
    %1204 = vector.shape_cast %1202 : vector<1x128xf32> to vector<1x128xf32>
    %1205 = vector.broadcast %1204 : vector<1x128xf32> to vector<24x128xf32>
    %1206 = vector.shape_cast %1203 : vector<1x128xf32> to vector<1x128xf32>
    %1207 = vector.broadcast %1206 : vector<1x128xf32> to vector<24x128xf32>
    %1208 = arith.select %17, %1205, %1207 : vector<24x128xi1>, vector<24x128xf32>
    %1209 = arith.mulf %5, %1208 : vector<24x128xf32>
    %1210 = arith.addf %14, %1209 : vector<24x128xf32>
    %c223 = arith.constant 223 : index
    %c0_356 = arith.constant 0 : index
    %1211 = vector.load %arg5[%c223, %c0_356] : memref<384x128xf32, #tpu.memory_space<vmem>>, vector<1x128xf32>
    %c226 = arith.constant 226 : index
    %c0_357 = arith.constant 0 : index
    %1212 = vector.load %arg5[%c226, %c0_357] : memref<384x128xf32, #tpu.memory_space<vmem>>, vector<1x128xf32>
    %1213 = vector.shape_cast %1211 : vector<1x128xf32> to vector<1x128xf32>
    %1214 = vector.broadcast %1213 : vector<1x128xf32> to vector<24x128xf32>
    %1215 = vector.shape_cast %1212 : vector<1x128xf32> to vector<1x128xf32>
    %1216 = vector.broadcast %1215 : vector<1x128xf32> to vector<24x128xf32>
    %1217 = arith.select %17, %1214, %1216 : vector<24x128xi1>, vector<24x128xf32>
    %1218 = arith.mulf %8, %1217 : vector<24x128xf32>
    %1219 = arith.addf %1210, %1218 : vector<24x128xf32>
    %c224 = arith.constant 224 : index
    %c0_358 = arith.constant 0 : index
    %1220 = vector.load %arg5[%c224, %c0_358] : memref<384x128xf32, #tpu.memory_space<vmem>>, vector<1x128xf32>
    %c227 = arith.constant 227 : index
    %c0_359 = arith.constant 0 : index
    %1221 = vector.load %arg5[%c227, %c0_359] : memref<384x128xf32, #tpu.memory_space<vmem>>, vector<1x128xf32>
    %1222 = vector.shape_cast %1220 : vector<1x128xf32> to vector<1x128xf32>
    %1223 = vector.broadcast %1222 : vector<1x128xf32> to vector<24x128xf32>
    %1224 = vector.shape_cast %1221 : vector<1x128xf32> to vector<1x128xf32>
    %1225 = vector.broadcast %1224 : vector<1x128xf32> to vector<24x128xf32>
    %1226 = arith.select %17, %1223, %1225 : vector<24x128xi1>, vector<24x128xf32>
    %1227 = arith.mulf %11, %1226 : vector<24x128xf32>
    %1228 = arith.addf %1219, %1227 : vector<24x128xf32>
    %cst_360 = arith.constant -1.73205078 : f32
    %cst_361 = arith.constant 3.7320509 : f32
    %1229 = vector.broadcast %cst_360 : f32 to vector<24x128xf32>
    %1230 = arith.maximumf %1229, %1228 : vector<24x128xf32>
    %1231 = vector.broadcast %cst_361 : f32 to vector<24x128xf32>
    %1232 = arith.minimumf %1231, %1230 : vector<24x128xf32>
    %c888 = arith.constant 888 : index
    %c0_362 = arith.constant 0 : index
    %1233 = vector.load %arg6[%c888, %c0_362] : memref<1536x128xf32, #tpu.memory_space<vmem>>, vector<24x128xf32>
    tpu.vector_store %arg6[%c888, %c0_362], %1232 {strides = array<i32>} : memref<1536x128xf32, #tpu.memory_space<vmem>>, vector<24x128xf32>,
    %c228 = arith.constant 228 : index
    %c0_363 = arith.constant 0 : index
    %1234 = vector.load %arg5[%c228, %c0_363] : memref<384x128xf32, #tpu.memory_space<vmem>>, vector<1x128xf32>
    %c231 = arith.constant 231 : index
    %c0_364 = arith.constant 0 : index
    %1235 = vector.load %arg5[%c231, %c0_364] : memref<384x128xf32, #tpu.memory_space<vmem>>, vector<1x128xf32>
    %1236 = vector.shape_cast %1234 : vector<1x128xf32> to vector<1x128xf32>
    %1237 = vector.broadcast %1236 : vector<1x128xf32> to vector<24x128xf32>
    %1238 = vector.shape_cast %1235 : vector<1x128xf32> to vector<1x128xf32>
    %1239 = vector.broadcast %1238 : vector<1x128xf32> to vector<24x128xf32>
    %1240 = arith.select %17, %1237, %1239 : vector<24x128xi1>, vector<24x128xf32>
    %1241 = arith.mulf %5, %1240 : vector<24x128xf32>
    %1242 = arith.addf %14, %1241 : vector<24x128xf32>
    %c229 = arith.constant 229 : index
    %c0_365 = arith.constant 0 : index
    %1243 = vector.load %arg5[%c229, %c0_365] : memref<384x128xf32, #tpu.memory_space<vmem>>, vector<1x128xf32>
    %c232 = arith.constant 232 : index
    %c0_366 = arith.constant 0 : index
    %1244 = vector.load %arg5[%c232, %c0_366] : memref<384x128xf32, #tpu.memory_space<vmem>>, vector<1x128xf32>
    %1245 = vector.shape_cast %1243 : vector<1x128xf32> to vector<1x128xf32>
    %1246 = vector.broadcast %1245 : vector<1x128xf32> to vector<24x128xf32>
    %1247 = vector.shape_cast %1244 : vector<1x128xf32> to vector<1x128xf32>
    %1248 = vector.broadcast %1247 : vector<1x128xf32> to vector<24x128xf32>
    %1249 = arith.select %17, %1246, %1248 : vector<24x128xi1>, vector<24x128xf32>
    %1250 = arith.mulf %8, %1249 : vector<24x128xf32>
    %1251 = arith.addf %1242, %1250 : vector<24x128xf32>
    %c230 = arith.constant 230 : index
    %c0_367 = arith.constant 0 : index
    %1252 = vector.load %arg5[%c230, %c0_367] : memref<384x128xf32, #tpu.memory_space<vmem>>, vector<1x128xf32>
    %c233 = arith.constant 233 : index
    %c0_368 = arith.constant 0 : index
    %1253 = vector.load %arg5[%c233, %c0_368] : memref<384x128xf32, #tpu.memory_space<vmem>>, vector<1x128xf32>
    %1254 = vector.shape_cast %1252 : vector<1x128xf32> to vector<1x128xf32>
    %1255 = vector.broadcast %1254 : vector<1x128xf32> to vector<24x128xf32>
    %1256 = vector.shape_cast %1253 : vector<1x128xf32> to vector<1x128xf32>
    %1257 = vector.broadcast %1256 : vector<1x128xf32> to vector<24x128xf32>
    %1258 = arith.select %17, %1255, %1257 : vector<24x128xi1>, vector<24x128xf32>
    %1259 = arith.mulf %11, %1258 : vector<24x128xf32>
    %1260 = arith.addf %1251, %1259 : vector<24x128xf32>
    %cst_369 = arith.constant -1.73205078 : f32
    %cst_370 = arith.constant 3.7320509 : f32
    %1261 = vector.broadcast %cst_369 : f32 to vector<24x128xf32>
    %1262 = arith.maximumf %1261, %1260 : vector<24x128xf32>
    %1263 = vector.broadcast %cst_370 : f32 to vector<24x128xf32>
    %1264 = arith.minimumf %1263, %1262 : vector<24x128xf32>
    %c912 = arith.constant 912 : index
    %c0_371 = arith.constant 0 : index
    %1265 = vector.load %arg6[%c912, %c0_371] : memref<1536x128xf32, #tpu.memory_space<vmem>>, vector<24x128xf32>
    tpu.vector_store %arg6[%c912, %c0_371], %1264 {strides = array<i32>} : memref<1536x128xf32, #tpu.memory_space<vmem>>, vector<24x128xf32>,
    %c234 = arith.constant 234 : index
    %c0_372 = arith.constant 0 : index
    %1266 = vector.load %arg5[%c234, %c0_372] : memref<384x128xf32, #tpu.memory_space<vmem>>, vector<1x128xf32>
    %c237 = arith.constant 237 : index
    %c0_373 = arith.constant 0 : index
    %1267 = vector.load %arg5[%c237, %c0_373] : memref<384x128xf32, #tpu.memory_space<vmem>>, vector<1x128xf32>
    %1268 = vector.shape_cast %1266 : vector<1x128xf32> to vector<1x128xf32>
    %1269 = vector.broadcast %1268 : vector<1x128xf32> to vector<24x128xf32>
    %1270 = vector.shape_cast %1267 : vector<1x128xf32> to vector<1x128xf32>
    %1271 = vector.broadcast %1270 : vector<1x128xf32> to vector<24x128xf32>
    %1272 = arith.select %17, %1269, %1271 : vector<24x128xi1>, vector<24x128xf32>
    %1273 = arith.mulf %5, %1272 : vector<24x128xf32>
    %1274 = arith.addf %14, %1273 : vector<24x128xf32>
    %c235 = arith.constant 235 : index
    %c0_374 = arith.constant 0 : index
    %1275 = vector.load %arg5[%c235, %c0_374] : memref<384x128xf32, #tpu.memory_space<vmem>>, vector<1x128xf32>
    %c238 = arith.constant 238 : index
    %c0_375 = arith.constant 0 : index
    %1276 = vector.load %arg5[%c238, %c0_375] : memref<384x128xf32, #tpu.memory_space<vmem>>, vector<1x128xf32>
    %1277 = vector.shape_cast %1275 : vector<1x128xf32> to vector<1x128xf32>
    %1278 = vector.broadcast %1277 : vector<1x128xf32> to vector<24x128xf32>
    %1279 = vector.shape_cast %1276 : vector<1x128xf32> to vector<1x128xf32>
    %1280 = vector.broadcast %1279 : vector<1x128xf32> to vector<24x128xf32>
    %1281 = arith.select %17, %1278, %1280 : vector<24x128xi1>, vector<24x128xf32>
    %1282 = arith.mulf %8, %1281 : vector<24x128xf32>
    %1283 = arith.addf %1274, %1282 : vector<24x128xf32>
    %c236 = arith.constant 236 : index
    %c0_376 = arith.constant 0 : index
    %1284 = vector.load %arg5[%c236, %c0_376] : memref<384x128xf32, #tpu.memory_space<vmem>>, vector<1x128xf32>
    %c239 = arith.constant 239 : index
    %c0_377 = arith.constant 0 : index
    %1285 = vector.load %arg5[%c239, %c0_377] : memref<384x128xf32, #tpu.memory_space<vmem>>, vector<1x128xf32>
    %1286 = vector.shape_cast %1284 : vector<1x128xf32> to vector<1x128xf32>
    %1287 = vector.broadcast %1286 : vector<1x128xf32> to vector<24x128xf32>
    %1288 = vector.shape_cast %1285 : vector<1x128xf32> to vector<1x128xf32>
    %1289 = vector.broadcast %1288 : vector<1x128xf32> to vector<24x128xf32>
    %1290 = arith.select %17, %1287, %1289 : vector<24x128xi1>, vector<24x128xf32>
    %1291 = arith.mulf %11, %1290 : vector<24x128xf32>
    %1292 = arith.addf %1283, %1291 : vector<24x128xf32>
    %cst_378 = arith.constant -1.73205078 : f32
    %cst_379 = arith.constant 3.7320509 : f32
    %1293 = vector.broadcast %cst_378 : f32 to vector<24x128xf32>
    %1294 = arith.maximumf %1293, %1292 : vector<24x128xf32>
    %1295 = vector.broadcast %cst_379 : f32 to vector<24x128xf32>
    %1296 = arith.minimumf %1295, %1294 : vector<24x128xf32>
    %c936 = arith.constant 936 : index
    %c0_380 = arith.constant 0 : index
    %1297 = vector.load %arg6[%c936, %c0_380] : memref<1536x128xf32, #tpu.memory_space<vmem>>, vector<24x128xf32>
    tpu.vector_store %arg6[%c936, %c0_380], %1296 {strides = array<i32>} : memref<1536x128xf32, #tpu.memory_space<vmem>>, vector<24x128xf32>,
    %c240_381 = arith.constant 240 : index
    %c0_382 = arith.constant 0 : index
    %1298 = vector.load %arg5[%c240_381, %c0_382] : memref<384x128xf32, #tpu.memory_space<vmem>>, vector<1x128xf32>
    %c243 = arith.constant 243 : index
    %c0_383 = arith.constant 0 : index
    %1299 = vector.load %arg5[%c243, %c0_383] : memref<384x128xf32, #tpu.memory_space<vmem>>, vector<1x128xf32>
    %1300 = vector.shape_cast %1298 : vector<1x128xf32> to vector<1x128xf32>
    %1301 = vector.broadcast %1300 : vector<1x128xf32> to vector<24x128xf32>
    %1302 = vector.shape_cast %1299 : vector<1x128xf32> to vector<1x128xf32>
    %1303 = vector.broadcast %1302 : vector<1x128xf32> to vector<24x128xf32>
    %1304 = arith.select %17, %1301, %1303 : vector<24x128xi1>, vector<24x128xf32>
    %1305 = arith.mulf %5, %1304 : vector<24x128xf32>
    %1306 = arith.addf %14, %1305 : vector<24x128xf32>
    %c241 = arith.constant 241 : index
    %c0_384 = arith.constant 0 : index
    %1307 = vector.load %arg5[%c241, %c0_384] : memref<384x128xf32, #tpu.memory_space<vmem>>, vector<1x128xf32>
    %c244 = arith.constant 244 : index
    %c0_385 = arith.constant 0 : index
    %1308 = vector.load %arg5[%c244, %c0_385] : memref<384x128xf32, #tpu.memory_space<vmem>>, vector<1x128xf32>
    %1309 = vector.shape_cast %1307 : vector<1x128xf32> to vector<1x128xf32>
    %1310 = vector.broadcast %1309 : vector<1x128xf32> to vector<24x128xf32>
    %1311 = vector.shape_cast %1308 : vector<1x128xf32> to vector<1x128xf32>
    %1312 = vector.broadcast %1311 : vector<1x128xf32> to vector<24x128xf32>
    %1313 = arith.select %17, %1310, %1312 : vector<24x128xi1>, vector<24x128xf32>
    %1314 = arith.mulf %8, %1313 : vector<24x128xf32>
    %1315 = arith.addf %1306, %1314 : vector<24x128xf32>
    %c242 = arith.constant 242 : index
    %c0_386 = arith.constant 0 : index
    %1316 = vector.load %arg5[%c242, %c0_386] : memref<384x128xf32, #tpu.memory_space<vmem>>, vector<1x128xf32>
    %c245 = arith.constant 245 : index
    %c0_387 = arith.constant 0 : index
    %1317 = vector.load %arg5[%c245, %c0_387] : memref<384x128xf32, #tpu.memory_space<vmem>>, vector<1x128xf32>
    %1318 = vector.shape_cast %1316 : vector<1x128xf32> to vector<1x128xf32>
    %1319 = vector.broadcast %1318 : vector<1x128xf32> to vector<24x128xf32>
    %1320 = vector.shape_cast %1317 : vector<1x128xf32> to vector<1x128xf32>
    %1321 = vector.broadcast %1320 : vector<1x128xf32> to vector<24x128xf32>
    %1322 = arith.select %17, %1319, %1321 : vector<24x128xi1>, vector<24x128xf32>
    %1323 = arith.mulf %11, %1322 : vector<24x128xf32>
    %1324 = arith.addf %1315, %1323 : vector<24x128xf32>
    %cst_388 = arith.constant -1.73205078 : f32
    %cst_389 = arith.constant 3.7320509 : f32
    %1325 = vector.broadcast %cst_388 : f32 to vector<24x128xf32>
    %1326 = arith.maximumf %1325, %1324 : vector<24x128xf32>
    %1327 = vector.broadcast %cst_389 : f32 to vector<24x128xf32>
    %1328 = arith.minimumf %1327, %1326 : vector<24x128xf32>
    %c960 = arith.constant 960 : index
    %c0_390 = arith.constant 0 : index
    %1329 = vector.load %arg6[%c960, %c0_390] : memref<1536x128xf32, #tpu.memory_space<vmem>>, vector<24x128xf32>
    tpu.vector_store %arg6[%c960, %c0_390], %1328 {strides = array<i32>} : memref<1536x128xf32, #tpu.memory_space<vmem>>, vector<24x128xf32>,
    %c246 = arith.constant 246 : index
    %c0_391 = arith.constant 0 : index
    %1330 = vector.load %arg5[%c246, %c0_391] : memref<384x128xf32, #tpu.memory_space<vmem>>, vector<1x128xf32>
    %c249 = arith.constant 249 : index
    %c0_392 = arith.constant 0 : index
    %1331 = vector.load %arg5[%c249, %c0_392] : memref<384x128xf32, #tpu.memory_space<vmem>>, vector<1x128xf32>
    %1332 = vector.shape_cast %1330 : vector<1x128xf32> to vector<1x128xf32>
    %1333 = vector.broadcast %1332 : vector<1x128xf32> to vector<24x128xf32>
    %1334 = vector.shape_cast %1331 : vector<1x128xf32> to vector<1x128xf32>
    %1335 = vector.broadcast %1334 : vector<1x128xf32> to vector<24x128xf32>
    %1336 = arith.select %17, %1333, %1335 : vector<24x128xi1>, vector<24x128xf32>
    %1337 = arith.mulf %5, %1336 : vector<24x128xf32>
    %1338 = arith.addf %14, %1337 : vector<24x128xf32>
    %c247 = arith.constant 247 : index
    %c0_393 = arith.constant 0 : index
    %1339 = vector.load %arg5[%c247, %c0_393] : memref<384x128xf32, #tpu.memory_space<vmem>>, vector<1x128xf32>
    %c250 = arith.constant 250 : index
    %c0_394 = arith.constant 0 : index
    %1340 = vector.load %arg5[%c250, %c0_394] : memref<384x128xf32, #tpu.memory_space<vmem>>, vector<1x128xf32>
    %1341 = vector.shape_cast %1339 : vector<1x128xf32> to vector<1x128xf32>
    %1342 = vector.broadcast %1341 : vector<1x128xf32> to vector<24x128xf32>
    %1343 = vector.shape_cast %1340 : vector<1x128xf32> to vector<1x128xf32>
    %1344 = vector.broadcast %1343 : vector<1x128xf32> to vector<24x128xf32>
    %1345 = arith.select %17, %1342, %1344 : vector<24x128xi1>, vector<24x128xf32>
    %1346 = arith.mulf %8, %1345 : vector<24x128xf32>
    %1347 = arith.addf %1338, %1346 : vector<24x128xf32>
    %c248 = arith.constant 248 : index
    %c0_395 = arith.constant 0 : index
    %1348 = vector.load %arg5[%c248, %c0_395] : memref<384x128xf32, #tpu.memory_space<vmem>>, vector<1x128xf32>
    %c251 = arith.constant 251 : index
    %c0_396 = arith.constant 0 : index
    %1349 = vector.load %arg5[%c251, %c0_396] : memref<384x128xf32, #tpu.memory_space<vmem>>, vector<1x128xf32>
    %1350 = vector.shape_cast %1348 : vector<1x128xf32> to vector<1x128xf32>
    %1351 = vector.broadcast %1350 : vector<1x128xf32> to vector<24x128xf32>
    %1352 = vector.shape_cast %1349 : vector<1x128xf32> to vector<1x128xf32>
    %1353 = vector.broadcast %1352 : vector<1x128xf32> to vector<24x128xf32>
    %1354 = arith.select %17, %1351, %1353 : vector<24x128xi1>, vector<24x128xf32>
    %1355 = arith.mulf %11, %1354 : vector<24x128xf32>
    %1356 = arith.addf %1347, %1355 : vector<24x128xf32>
    %cst_397 = arith.constant -1.73205078 : f32
    %cst_398 = arith.constant 3.7320509 : f32
    %1357 = vector.broadcast %cst_397 : f32 to vector<24x128xf32>
    %1358 = arith.maximumf %1357, %1356 : vector<24x128xf32>
    %1359 = vector.broadcast %cst_398 : f32 to vector<24x128xf32>
    %1360 = arith.minimumf %1359, %1358 : vector<24x128xf32>
    %c984 = arith.constant 984 : index
    %c0_399 = arith.constant 0 : index
    %1361 = vector.load %arg6[%c984, %c0_399] : memref<1536x128xf32, #tpu.memory_space<vmem>>, vector<24x128xf32>
    tpu.vector_store %arg6[%c984, %c0_399], %1360 {strides = array<i32>} : memref<1536x128xf32, #tpu.memory_space<vmem>>, vector<24x128xf32>,
    %c252 = arith.constant 252 : index
    %c0_400 = arith.constant 0 : index
    %1362 = vector.load %arg5[%c252, %c0_400] : memref<384x128xf32, #tpu.memory_space<vmem>>, vector<1x128xf32>
    %c255 = arith.constant 255 : index
    %c0_401 = arith.constant 0 : index
    %1363 = vector.load %arg5[%c255, %c0_401] : memref<384x128xf32, #tpu.memory_space<vmem>>, vector<1x128xf32>
    %1364 = vector.shape_cast %1362 : vector<1x128xf32> to vector<1x128xf32>
    %1365 = vector.broadcast %1364 : vector<1x128xf32> to vector<24x128xf32>
    %1366 = vector.shape_cast %1363 : vector<1x128xf32> to vector<1x128xf32>
    %1367 = vector.broadcast %1366 : vector<1x128xf32> to vector<24x128xf32>
    %1368 = arith.select %17, %1365, %1367 : vector<24x128xi1>, vector<24x128xf32>
    %1369 = arith.mulf %5, %1368 : vector<24x128xf32>
    %1370 = arith.addf %14, %1369 : vector<24x128xf32>
    %c253 = arith.constant 253 : index
    %c0_402 = arith.constant 0 : index
    %1371 = vector.load %arg5[%c253, %c0_402] : memref<384x128xf32, #tpu.memory_space<vmem>>, vector<1x128xf32>
    %c256 = arith.constant 256 : index
    %c0_403 = arith.constant 0 : index
    %1372 = vector.load %arg5[%c256, %c0_403] : memref<384x128xf32, #tpu.memory_space<vmem>>, vector<1x128xf32>
    %1373 = vector.shape_cast %1371 : vector<1x128xf32> to vector<1x128xf32>
    %1374 = vector.broadcast %1373 : vector<1x128xf32> to vector<24x128xf32>
    %1375 = vector.shape_cast %1372 : vector<1x128xf32> to vector<1x128xf32>
    %1376 = vector.broadcast %1375 : vector<1x128xf32> to vector<24x128xf32>
    %1377 = arith.select %17, %1374, %1376 : vector<24x128xi1>, vector<24x128xf32>
    %1378 = arith.mulf %8, %1377 : vector<24x128xf32>
    %1379 = arith.addf %1370, %1378 : vector<24x128xf32>
    %c254 = arith.constant 254 : index
    %c0_404 = arith.constant 0 : index
    %1380 = vector.load %arg5[%c254, %c0_404] : memref<384x128xf32, #tpu.memory_space<vmem>>, vector<1x128xf32>
    %c257 = arith.constant 257 : index
    %c0_405 = arith.constant 0 : index
    %1381 = vector.load %arg5[%c257, %c0_405] : memref<384x128xf32, #tpu.memory_space<vmem>>, vector<1x128xf32>
    %1382 = vector.shape_cast %1380 : vector<1x128xf32> to vector<1x128xf32>
    %1383 = vector.broadcast %1382 : vector<1x128xf32> to vector<24x128xf32>
    %1384 = vector.shape_cast %1381 : vector<1x128xf32> to vector<1x128xf32>
    %1385 = vector.broadcast %1384 : vector<1x128xf32> to vector<24x128xf32>
    %1386 = arith.select %17, %1383, %1385 : vector<24x128xi1>, vector<24x128xf32>
    %1387 = arith.mulf %11, %1386 : vector<24x128xf32>
    %1388 = arith.addf %1379, %1387 : vector<24x128xf32>
    %cst_406 = arith.constant -1.73205078 : f32
    %cst_407 = arith.constant 3.7320509 : f32
    %1389 = vector.broadcast %cst_406 : f32 to vector<24x128xf32>
    %1390 = arith.maximumf %1389, %1388 : vector<24x128xf32>
    %1391 = vector.broadcast %cst_407 : f32 to vector<24x128xf32>
    %1392 = arith.minimumf %1391, %1390 : vector<24x128xf32>
    %c1008 = arith.constant 1008 : index
    %c0_408 = arith.constant 0 : index
    %1393 = vector.load %arg6[%c1008, %c0_408] : memref<1536x128xf32, #tpu.memory_space<vmem>>, vector<24x128xf32>
    tpu.vector_store %arg6[%c1008, %c0_408], %1392 {strides = array<i32>} : memref<1536x128xf32, #tpu.memory_space<vmem>>, vector<24x128xf32>,
    %c258 = arith.constant 258 : index
    %c0_409 = arith.constant 0 : index
    %1394 = vector.load %arg5[%c258, %c0_409] : memref<384x128xf32, #tpu.memory_space<vmem>>, vector<1x128xf32>
    %c261 = arith.constant 261 : index
    %c0_410 = arith.constant 0 : index
    %1395 = vector.load %arg5[%c261, %c0_410] : memref<384x128xf32, #tpu.memory_space<vmem>>, vector<1x128xf32>
    %1396 = vector.shape_cast %1394 : vector<1x128xf32> to vector<1x128xf32>
    %1397 = vector.broadcast %1396 : vector<1x128xf32> to vector<24x128xf32>
    %1398 = vector.shape_cast %1395 : vector<1x128xf32> to vector<1x128xf32>
    %1399 = vector.broadcast %1398 : vector<1x128xf32> to vector<24x128xf32>
    %1400 = arith.select %17, %1397, %1399 : vector<24x128xi1>, vector<24x128xf32>
    %1401 = arith.mulf %5, %1400 : vector<24x128xf32>
    %1402 = arith.addf %14, %1401 : vector<24x128xf32>
    %c259 = arith.constant 259 : index
    %c0_411 = arith.constant 0 : index
    %1403 = vector.load %arg5[%c259, %c0_411] : memref<384x128xf32, #tpu.memory_space<vmem>>, vector<1x128xf32>
    %c262 = arith.constant 262 : index
    %c0_412 = arith.constant 0 : index
    %1404 = vector.load %arg5[%c262, %c0_412] : memref<384x128xf32, #tpu.memory_space<vmem>>, vector<1x128xf32>
    %1405 = vector.shape_cast %1403 : vector<1x128xf32> to vector<1x128xf32>
    %1406 = vector.broadcast %1405 : vector<1x128xf32> to vector<24x128xf32>
    %1407 = vector.shape_cast %1404 : vector<1x128xf32> to vector<1x128xf32>
    %1408 = vector.broadcast %1407 : vector<1x128xf32> to vector<24x128xf32>
    %1409 = arith.select %17, %1406, %1408 : vector<24x128xi1>, vector<24x128xf32>
    %1410 = arith.mulf %8, %1409 : vector<24x128xf32>
    %1411 = arith.addf %1402, %1410 : vector<24x128xf32>
    %c260 = arith.constant 260 : index
    %c0_413 = arith.constant 0 : index
    %1412 = vector.load %arg5[%c260, %c0_413] : memref<384x128xf32, #tpu.memory_space<vmem>>, vector<1x128xf32>
    %c263 = arith.constant 263 : index
    %c0_414 = arith.constant 0 : index
    %1413 = vector.load %arg5[%c263, %c0_414] : memref<384x128xf32, #tpu.memory_space<vmem>>, vector<1x128xf32>
    %1414 = vector.shape_cast %1412 : vector<1x128xf32> to vector<1x128xf32>
    %1415 = vector.broadcast %1414 : vector<1x128xf32> to vector<24x128xf32>
    %1416 = vector.shape_cast %1413 : vector<1x128xf32> to vector<1x128xf32>
    %1417 = vector.broadcast %1416 : vector<1x128xf32> to vector<24x128xf32>
    %1418 = arith.select %17, %1415, %1417 : vector<24x128xi1>, vector<24x128xf32>
    %1419 = arith.mulf %11, %1418 : vector<24x128xf32>
    %1420 = arith.addf %1411, %1419 : vector<24x128xf32>
    %cst_415 = arith.constant -1.73205078 : f32
    %cst_416 = arith.constant 3.7320509 : f32
    %1421 = vector.broadcast %cst_415 : f32 to vector<24x128xf32>
    %1422 = arith.maximumf %1421, %1420 : vector<24x128xf32>
    %1423 = vector.broadcast %cst_416 : f32 to vector<24x128xf32>
    %1424 = arith.minimumf %1423, %1422 : vector<24x128xf32>
    %c1032 = arith.constant 1032 : index
    %c0_417 = arith.constant 0 : index
    %1425 = vector.load %arg6[%c1032, %c0_417] : memref<1536x128xf32, #tpu.memory_space<vmem>>, vector<24x128xf32>
    tpu.vector_store %arg6[%c1032, %c0_417], %1424 {strides = array<i32>} : memref<1536x128xf32, #tpu.memory_space<vmem>>, vector<24x128xf32>,
    %c264_418 = arith.constant 264 : index
    %c0_419 = arith.constant 0 : index
    %1426 = vector.load %arg5[%c264_418, %c0_419] : memref<384x128xf32, #tpu.memory_space<vmem>>, vector<1x128xf32>
    %c267 = arith.constant 267 : index
    %c0_420 = arith.constant 0 : index
    %1427 = vector.load %arg5[%c267, %c0_420] : memref<384x128xf32, #tpu.memory_space<vmem>>, vector<1x128xf32>
    %1428 = vector.shape_cast %1426 : vector<1x128xf32> to vector<1x128xf32>
    %1429 = vector.broadcast %1428 : vector<1x128xf32> to vector<24x128xf32>
    %1430 = vector.shape_cast %1427 : vector<1x128xf32> to vector<1x128xf32>
    %1431 = vector.broadcast %1430 : vector<1x128xf32> to vector<24x128xf32>
    %1432 = arith.select %17, %1429, %1431 : vector<24x128xi1>, vector<24x128xf32>
    %1433 = arith.mulf %5, %1432 : vector<24x128xf32>
    %1434 = arith.addf %14, %1433 : vector<24x128xf32>
    %c265 = arith.constant 265 : index
    %c0_421 = arith.constant 0 : index
    %1435 = vector.load %arg5[%c265, %c0_421] : memref<384x128xf32, #tpu.memory_space<vmem>>, vector<1x128xf32>
    %c268 = arith.constant 268 : index
    %c0_422 = arith.constant 0 : index
    %1436 = vector.load %arg5[%c268, %c0_422] : memref<384x128xf32, #tpu.memory_space<vmem>>, vector<1x128xf32>
    %1437 = vector.shape_cast %1435 : vector<1x128xf32> to vector<1x128xf32>
    %1438 = vector.broadcast %1437 : vector<1x128xf32> to vector<24x128xf32>
    %1439 = vector.shape_cast %1436 : vector<1x128xf32> to vector<1x128xf32>
    %1440 = vector.broadcast %1439 : vector<1x128xf32> to vector<24x128xf32>
    %1441 = arith.select %17, %1438, %1440 : vector<24x128xi1>, vector<24x128xf32>
    %1442 = arith.mulf %8, %1441 : vector<24x128xf32>
    %1443 = arith.addf %1434, %1442 : vector<24x128xf32>
    %c266 = arith.constant 266 : index
    %c0_423 = arith.constant 0 : index
    %1444 = vector.load %arg5[%c266, %c0_423] : memref<384x128xf32, #tpu.memory_space<vmem>>, vector<1x128xf32>
    %c269 = arith.constant 269 : index
    %c0_424 = arith.constant 0 : index
    %1445 = vector.load %arg5[%c269, %c0_424] : memref<384x128xf32, #tpu.memory_space<vmem>>, vector<1x128xf32>
    %1446 = vector.shape_cast %1444 : vector<1x128xf32> to vector<1x128xf32>
    %1447 = vector.broadcast %1446 : vector<1x128xf32> to vector<24x128xf32>
    %1448 = vector.shape_cast %1445 : vector<1x128xf32> to vector<1x128xf32>
    %1449 = vector.broadcast %1448 : vector<1x128xf32> to vector<24x128xf32>
    %1450 = arith.select %17, %1447, %1449 : vector<24x128xi1>, vector<24x128xf32>
    %1451 = arith.mulf %11, %1450 : vector<24x128xf32>
    %1452 = arith.addf %1443, %1451 : vector<24x128xf32>
    %cst_425 = arith.constant -1.73205078 : f32
    %cst_426 = arith.constant 3.7320509 : f32
    %1453 = vector.broadcast %cst_425 : f32 to vector<24x128xf32>
    %1454 = arith.maximumf %1453, %1452 : vector<24x128xf32>
    %1455 = vector.broadcast %cst_426 : f32 to vector<24x128xf32>
    %1456 = arith.minimumf %1455, %1454 : vector<24x128xf32>
    %c1056 = arith.constant 1056 : index
    %c0_427 = arith.constant 0 : index
    %1457 = vector.load %arg6[%c1056, %c0_427] : memref<1536x128xf32, #tpu.memory_space<vmem>>, vector<24x128xf32>
    tpu.vector_store %arg6[%c1056, %c0_427], %1456 {strides = array<i32>} : memref<1536x128xf32, #tpu.memory_space<vmem>>, vector<24x128xf32>,
    %c270 = arith.constant 270 : index
    %c0_428 = arith.constant 0 : index
    %1458 = vector.load %arg5[%c270, %c0_428] : memref<384x128xf32, #tpu.memory_space<vmem>>, vector<1x128xf32>
    %c273 = arith.constant 273 : index
    %c0_429 = arith.constant 0 : index
    %1459 = vector.load %arg5[%c273, %c0_429] : memref<384x128xf32, #tpu.memory_space<vmem>>, vector<1x128xf32>
    %1460 = vector.shape_cast %1458 : vector<1x128xf32> to vector<1x128xf32>
    %1461 = vector.broadcast %1460 : vector<1x128xf32> to vector<24x128xf32>
    %1462 = vector.shape_cast %1459 : vector<1x128xf32> to vector<1x128xf32>
    %1463 = vector.broadcast %1462 : vector<1x128xf32> to vector<24x128xf32>
    %1464 = arith.select %17, %1461, %1463 : vector<24x128xi1>, vector<24x128xf32>
    %1465 = arith.mulf %5, %1464 : vector<24x128xf32>
    %1466 = arith.addf %14, %1465 : vector<24x128xf32>
    %c271 = arith.constant 271 : index
    %c0_430 = arith.constant 0 : index
    %1467 = vector.load %arg5[%c271, %c0_430] : memref<384x128xf32, #tpu.memory_space<vmem>>, vector<1x128xf32>
    %c274 = arith.constant 274 : index
    %c0_431 = arith.constant 0 : index
    %1468 = vector.load %arg5[%c274, %c0_431] : memref<384x128xf32, #tpu.memory_space<vmem>>, vector<1x128xf32>
    %1469 = vector.shape_cast %1467 : vector<1x128xf32> to vector<1x128xf32>
    %1470 = vector.broadcast %1469 : vector<1x128xf32> to vector<24x128xf32>
    %1471 = vector.shape_cast %1468 : vector<1x128xf32> to vector<1x128xf32>
    %1472 = vector.broadcast %1471 : vector<1x128xf32> to vector<24x128xf32>
    %1473 = arith.select %17, %1470, %1472 : vector<24x128xi1>, vector<24x128xf32>
    %1474 = arith.mulf %8, %1473 : vector<24x128xf32>
    %1475 = arith.addf %1466, %1474 : vector<24x128xf32>
    %c272 = arith.constant 272 : index
    %c0_432 = arith.constant 0 : index
    %1476 = vector.load %arg5[%c272, %c0_432] : memref<384x128xf32, #tpu.memory_space<vmem>>, vector<1x128xf32>
    %c275 = arith.constant 275 : index
    %c0_433 = arith.constant 0 : index
    %1477 = vector.load %arg5[%c275, %c0_433] : memref<384x128xf32, #tpu.memory_space<vmem>>, vector<1x128xf32>
    %1478 = vector.shape_cast %1476 : vector<1x128xf32> to vector<1x128xf32>
    %1479 = vector.broadcast %1478 : vector<1x128xf32> to vector<24x128xf32>
    %1480 = vector.shape_cast %1477 : vector<1x128xf32> to vector<1x128xf32>
    %1481 = vector.broadcast %1480 : vector<1x128xf32> to vector<24x128xf32>
    %1482 = arith.select %17, %1479, %1481 : vector<24x128xi1>, vector<24x128xf32>
    %1483 = arith.mulf %11, %1482 : vector<24x128xf32>
    %1484 = arith.addf %1475, %1483 : vector<24x128xf32>
    %cst_434 = arith.constant -1.73205078 : f32
    %cst_435 = arith.constant 3.7320509 : f32
    %1485 = vector.broadcast %cst_434 : f32 to vector<24x128xf32>
    %1486 = arith.maximumf %1485, %1484 : vector<24x128xf32>
    %1487 = vector.broadcast %cst_435 : f32 to vector<24x128xf32>
    %1488 = arith.minimumf %1487, %1486 : vector<24x128xf32>
    %c1080 = arith.constant 1080 : index
    %c0_436 = arith.constant 0 : index
    %1489 = vector.load %arg6[%c1080, %c0_436] : memref<1536x128xf32, #tpu.memory_space<vmem>>, vector<24x128xf32>
    tpu.vector_store %arg6[%c1080, %c0_436], %1488 {strides = array<i32>} : memref<1536x128xf32, #tpu.memory_space<vmem>>, vector<24x128xf32>,
    %c276 = arith.constant 276 : index
    %c0_437 = arith.constant 0 : index
    %1490 = vector.load %arg5[%c276, %c0_437] : memref<384x128xf32, #tpu.memory_space<vmem>>, vector<1x128xf32>
    %c279 = arith.constant 279 : index
    %c0_438 = arith.constant 0 : index
    %1491 = vector.load %arg5[%c279, %c0_438] : memref<384x128xf32, #tpu.memory_space<vmem>>, vector<1x128xf32>
    %1492 = vector.shape_cast %1490 : vector<1x128xf32> to vector<1x128xf32>
    %1493 = vector.broadcast %1492 : vector<1x128xf32> to vector<24x128xf32>
    %1494 = vector.shape_cast %1491 : vector<1x128xf32> to vector<1x128xf32>
    %1495 = vector.broadcast %1494 : vector<1x128xf32> to vector<24x128xf32>
    %1496 = arith.select %17, %1493, %1495 : vector<24x128xi1>, vector<24x128xf32>
    %1497 = arith.mulf %5, %1496 : vector<24x128xf32>
    %1498 = arith.addf %14, %1497 : vector<24x128xf32>
    %c277 = arith.constant 277 : index
    %c0_439 = arith.constant 0 : index
    %1499 = vector.load %arg5[%c277, %c0_439] : memref<384x128xf32, #tpu.memory_space<vmem>>, vector<1x128xf32>
    %c280 = arith.constant 280 : index
    %c0_440 = arith.constant 0 : index
    %1500 = vector.load %arg5[%c280, %c0_440] : memref<384x128xf32, #tpu.memory_space<vmem>>, vector<1x128xf32>
    %1501 = vector.shape_cast %1499 : vector<1x128xf32> to vector<1x128xf32>
    %1502 = vector.broadcast %1501 : vector<1x128xf32> to vector<24x128xf32>
    %1503 = vector.shape_cast %1500 : vector<1x128xf32> to vector<1x128xf32>
    %1504 = vector.broadcast %1503 : vector<1x128xf32> to vector<24x128xf32>
    %1505 = arith.select %17, %1502, %1504 : vector<24x128xi1>, vector<24x128xf32>
    %1506 = arith.mulf %8, %1505 : vector<24x128xf32>
    %1507 = arith.addf %1498, %1506 : vector<24x128xf32>
    %c278 = arith.constant 278 : index
    %c0_441 = arith.constant 0 : index
    %1508 = vector.load %arg5[%c278, %c0_441] : memref<384x128xf32, #tpu.memory_space<vmem>>, vector<1x128xf32>
    %c281 = arith.constant 281 : index
    %c0_442 = arith.constant 0 : index
    %1509 = vector.load %arg5[%c281, %c0_442] : memref<384x128xf32, #tpu.memory_space<vmem>>, vector<1x128xf32>
    %1510 = vector.shape_cast %1508 : vector<1x128xf32> to vector<1x128xf32>
    %1511 = vector.broadcast %1510 : vector<1x128xf32> to vector<24x128xf32>
    %1512 = vector.shape_cast %1509 : vector<1x128xf32> to vector<1x128xf32>
    %1513 = vector.broadcast %1512 : vector<1x128xf32> to vector<24x128xf32>
    %1514 = arith.select %17, %1511, %1513 : vector<24x128xi1>, vector<24x128xf32>
    %1515 = arith.mulf %11, %1514 : vector<24x128xf32>
    %1516 = arith.addf %1507, %1515 : vector<24x128xf32>
    %cst_443 = arith.constant -1.73205078 : f32
    %cst_444 = arith.constant 3.7320509 : f32
    %1517 = vector.broadcast %cst_443 : f32 to vector<24x128xf32>
    %1518 = arith.maximumf %1517, %1516 : vector<24x128xf32>
    %1519 = vector.broadcast %cst_444 : f32 to vector<24x128xf32>
    %1520 = arith.minimumf %1519, %1518 : vector<24x128xf32>
    %c1104 = arith.constant 1104 : index
    %c0_445 = arith.constant 0 : index
    %1521 = vector.load %arg6[%c1104, %c0_445] : memref<1536x128xf32, #tpu.memory_space<vmem>>, vector<24x128xf32>
    tpu.vector_store %arg6[%c1104, %c0_445], %1520 {strides = array<i32>} : memref<1536x128xf32, #tpu.memory_space<vmem>>, vector<24x128xf32>,
    %c282 = arith.constant 282 : index
    %c0_446 = arith.constant 0 : index
    %1522 = vector.load %arg5[%c282, %c0_446] : memref<384x128xf32, #tpu.memory_space<vmem>>, vector<1x128xf32>
    %c285 = arith.constant 285 : index
    %c0_447 = arith.constant 0 : index
    %1523 = vector.load %arg5[%c285, %c0_447] : memref<384x128xf32, #tpu.memory_space<vmem>>, vector<1x128xf32>
    %1524 = vector.shape_cast %1522 : vector<1x128xf32> to vector<1x128xf32>
    %1525 = vector.broadcast %1524 : vector<1x128xf32> to vector<24x128xf32>
    %1526 = vector.shape_cast %1523 : vector<1x128xf32> to vector<1x128xf32>
    %1527 = vector.broadcast %1526 : vector<1x128xf32> to vector<24x128xf32>
    %1528 = arith.select %17, %1525, %1527 : vector<24x128xi1>, vector<24x128xf32>
    %1529 = arith.mulf %5, %1528 : vector<24x128xf32>
    %1530 = arith.addf %14, %1529 : vector<24x128xf32>
    %c283 = arith.constant 283 : index
    %c0_448 = arith.constant 0 : index
    %1531 = vector.load %arg5[%c283, %c0_448] : memref<384x128xf32, #tpu.memory_space<vmem>>, vector<1x128xf32>
    %c286 = arith.constant 286 : index
    %c0_449 = arith.constant 0 : index
    %1532 = vector.load %arg5[%c286, %c0_449] : memref<384x128xf32, #tpu.memory_space<vmem>>, vector<1x128xf32>
    %1533 = vector.shape_cast %1531 : vector<1x128xf32> to vector<1x128xf32>
    %1534 = vector.broadcast %1533 : vector<1x128xf32> to vector<24x128xf32>
    %1535 = vector.shape_cast %1532 : vector<1x128xf32> to vector<1x128xf32>
    %1536 = vector.broadcast %1535 : vector<1x128xf32> to vector<24x128xf32>
    %1537 = arith.select %17, %1534, %1536 : vector<24x128xi1>, vector<24x128xf32>
    %1538 = arith.mulf %8, %1537 : vector<24x128xf32>
    %1539 = arith.addf %1530, %1538 : vector<24x128xf32>
    %c284 = arith.constant 284 : index
    %c0_450 = arith.constant 0 : index
    %1540 = vector.load %arg5[%c284, %c0_450] : memref<384x128xf32, #tpu.memory_space<vmem>>, vector<1x128xf32>
    %c287 = arith.constant 287 : index
    %c0_451 = arith.constant 0 : index
    %1541 = vector.load %arg5[%c287, %c0_451] : memref<384x128xf32, #tpu.memory_space<vmem>>, vector<1x128xf32>
    %1542 = vector.shape_cast %1540 : vector<1x128xf32> to vector<1x128xf32>
    %1543 = vector.broadcast %1542 : vector<1x128xf32> to vector<24x128xf32>
    %1544 = vector.shape_cast %1541 : vector<1x128xf32> to vector<1x128xf32>
    %1545 = vector.broadcast %1544 : vector<1x128xf32> to vector<24x128xf32>
    %1546 = arith.select %17, %1543, %1545 : vector<24x128xi1>, vector<24x128xf32>
    %1547 = arith.mulf %11, %1546 : vector<24x128xf32>
    %1548 = arith.addf %1539, %1547 : vector<24x128xf32>
    %cst_452 = arith.constant -1.73205078 : f32
    %cst_453 = arith.constant 3.7320509 : f32
    %1549 = vector.broadcast %cst_452 : f32 to vector<24x128xf32>
    %1550 = arith.maximumf %1549, %1548 : vector<24x128xf32>
    %1551 = vector.broadcast %cst_453 : f32 to vector<24x128xf32>
    %1552 = arith.minimumf %1551, %1550 : vector<24x128xf32>
    %c1128 = arith.constant 1128 : index
    %c0_454 = arith.constant 0 : index
    %1553 = vector.load %arg6[%c1128, %c0_454] : memref<1536x128xf32, #tpu.memory_space<vmem>>, vector<24x128xf32>
    tpu.vector_store %arg6[%c1128, %c0_454], %1552 {strides = array<i32>} : memref<1536x128xf32, #tpu.memory_space<vmem>>, vector<24x128xf32>,
    %c288_455 = arith.constant 288 : index
    %c0_456 = arith.constant 0 : index
    %1554 = vector.load %arg5[%c288_455, %c0_456] : memref<384x128xf32, #tpu.memory_space<vmem>>, vector<1x128xf32>
    %c291 = arith.constant 291 : index
    %c0_457 = arith.constant 0 : index
    %1555 = vector.load %arg5[%c291, %c0_457] : memref<384x128xf32, #tpu.memory_space<vmem>>, vector<1x128xf32>
    %1556 = vector.shape_cast %1554 : vector<1x128xf32> to vector<1x128xf32>
    %1557 = vector.broadcast %1556 : vector<1x128xf32> to vector<24x128xf32>
    %1558 = vector.shape_cast %1555 : vector<1x128xf32> to vector<1x128xf32>
    %1559 = vector.broadcast %1558 : vector<1x128xf32> to vector<24x128xf32>
    %1560 = arith.select %17, %1557, %1559 : vector<24x128xi1>, vector<24x128xf32>
    %1561 = arith.mulf %5, %1560 : vector<24x128xf32>
    %1562 = arith.addf %14, %1561 : vector<24x128xf32>
    %c289 = arith.constant 289 : index
    %c0_458 = arith.constant 0 : index
    %1563 = vector.load %arg5[%c289, %c0_458] : memref<384x128xf32, #tpu.memory_space<vmem>>, vector<1x128xf32>
    %c292 = arith.constant 292 : index
    %c0_459 = arith.constant 0 : index
    %1564 = vector.load %arg5[%c292, %c0_459] : memref<384x128xf32, #tpu.memory_space<vmem>>, vector<1x128xf32>
    %1565 = vector.shape_cast %1563 : vector<1x128xf32> to vector<1x128xf32>
    %1566 = vector.broadcast %1565 : vector<1x128xf32> to vector<24x128xf32>
    %1567 = vector.shape_cast %1564 : vector<1x128xf32> to vector<1x128xf32>
    %1568 = vector.broadcast %1567 : vector<1x128xf32> to vector<24x128xf32>
    %1569 = arith.select %17, %1566, %1568 : vector<24x128xi1>, vector<24x128xf32>
    %1570 = arith.mulf %8, %1569 : vector<24x128xf32>
    %1571 = arith.addf %1562, %1570 : vector<24x128xf32>
    %c290 = arith.constant 290 : index
    %c0_460 = arith.constant 0 : index
    %1572 = vector.load %arg5[%c290, %c0_460] : memref<384x128xf32, #tpu.memory_space<vmem>>, vector<1x128xf32>
    %c293 = arith.constant 293 : index
    %c0_461 = arith.constant 0 : index
    %1573 = vector.load %arg5[%c293, %c0_461] : memref<384x128xf32, #tpu.memory_space<vmem>>, vector<1x128xf32>
    %1574 = vector.shape_cast %1572 : vector<1x128xf32> to vector<1x128xf32>
    %1575 = vector.broadcast %1574 : vector<1x128xf32> to vector<24x128xf32>
    %1576 = vector.shape_cast %1573 : vector<1x128xf32> to vector<1x128xf32>
    %1577 = vector.broadcast %1576 : vector<1x128xf32> to vector<24x128xf32>
    %1578 = arith.select %17, %1575, %1577 : vector<24x128xi1>, vector<24x128xf32>
    %1579 = arith.mulf %11, %1578 : vector<24x128xf32>
    %1580 = arith.addf %1571, %1579 : vector<24x128xf32>
    %cst_462 = arith.constant -1.73205078 : f32
    %cst_463 = arith.constant 3.7320509 : f32
    %1581 = vector.broadcast %cst_462 : f32 to vector<24x128xf32>
    %1582 = arith.maximumf %1581, %1580 : vector<24x128xf32>
    %1583 = vector.broadcast %cst_463 : f32 to vector<24x128xf32>
    %1584 = arith.minimumf %1583, %1582 : vector<24x128xf32>
    %c1152 = arith.constant 1152 : index
    %c0_464 = arith.constant 0 : index
    %1585 = vector.load %arg6[%c1152, %c0_464] : memref<1536x128xf32, #tpu.memory_space<vmem>>, vector<24x128xf32>
    tpu.vector_store %arg6[%c1152, %c0_464], %1584 {strides = array<i32>} : memref<1536x128xf32, #tpu.memory_space<vmem>>, vector<24x128xf32>,
    %c294 = arith.constant 294 : index
    %c0_465 = arith.constant 0 : index
    %1586 = vector.load %arg5[%c294, %c0_465] : memref<384x128xf32, #tpu.memory_space<vmem>>, vector<1x128xf32>
    %c297 = arith.constant 297 : index
    %c0_466 = arith.constant 0 : index
    %1587 = vector.load %arg5[%c297, %c0_466] : memref<384x128xf32, #tpu.memory_space<vmem>>, vector<1x128xf32>
    %1588 = vector.shape_cast %1586 : vector<1x128xf32> to vector<1x128xf32>
    %1589 = vector.broadcast %1588 : vector<1x128xf32> to vector<24x128xf32>
    %1590 = vector.shape_cast %1587 : vector<1x128xf32> to vector<1x128xf32>
    %1591 = vector.broadcast %1590 : vector<1x128xf32> to vector<24x128xf32>
    %1592 = arith.select %17, %1589, %1591 : vector<24x128xi1>, vector<24x128xf32>
    %1593 = arith.mulf %5, %1592 : vector<24x128xf32>
    %1594 = arith.addf %14, %1593 : vector<24x128xf32>
    %c295 = arith.constant 295 : index
    %c0_467 = arith.constant 0 : index
    %1595 = vector.load %arg5[%c295, %c0_467] : memref<384x128xf32, #tpu.memory_space<vmem>>, vector<1x128xf32>
    %c298 = arith.constant 298 : index
    %c0_468 = arith.constant 0 : index
    %1596 = vector.load %arg5[%c298, %c0_468] : memref<384x128xf32, #tpu.memory_space<vmem>>, vector<1x128xf32>
    %1597 = vector.shape_cast %1595 : vector<1x128xf32> to vector<1x128xf32>
    %1598 = vector.broadcast %1597 : vector<1x128xf32> to vector<24x128xf32>
    %1599 = vector.shape_cast %1596 : vector<1x128xf32> to vector<1x128xf32>
    %1600 = vector.broadcast %1599 : vector<1x128xf32> to vector<24x128xf32>
    %1601 = arith.select %17, %1598, %1600 : vector<24x128xi1>, vector<24x128xf32>
    %1602 = arith.mulf %8, %1601 : vector<24x128xf32>
    %1603 = arith.addf %1594, %1602 : vector<24x128xf32>
    %c296 = arith.constant 296 : index
    %c0_469 = arith.constant 0 : index
    %1604 = vector.load %arg5[%c296, %c0_469] : memref<384x128xf32, #tpu.memory_space<vmem>>, vector<1x128xf32>
    %c299 = arith.constant 299 : index
    %c0_470 = arith.constant 0 : index
    %1605 = vector.load %arg5[%c299, %c0_470] : memref<384x128xf32, #tpu.memory_space<vmem>>, vector<1x128xf32>
    %1606 = vector.shape_cast %1604 : vector<1x128xf32> to vector<1x128xf32>
    %1607 = vector.broadcast %1606 : vector<1x128xf32> to vector<24x128xf32>
    %1608 = vector.shape_cast %1605 : vector<1x128xf32> to vector<1x128xf32>
    %1609 = vector.broadcast %1608 : vector<1x128xf32> to vector<24x128xf32>
    %1610 = arith.select %17, %1607, %1609 : vector<24x128xi1>, vector<24x128xf32>
    %1611 = arith.mulf %11, %1610 : vector<24x128xf32>
    %1612 = arith.addf %1603, %1611 : vector<24x128xf32>
    %cst_471 = arith.constant -1.73205078 : f32
    %cst_472 = arith.constant 3.7320509 : f32
    %1613 = vector.broadcast %cst_471 : f32 to vector<24x128xf32>
    %1614 = arith.maximumf %1613, %1612 : vector<24x128xf32>
    %1615 = vector.broadcast %cst_472 : f32 to vector<24x128xf32>
    %1616 = arith.minimumf %1615, %1614 : vector<24x128xf32>
    %c1176 = arith.constant 1176 : index
    %c0_473 = arith.constant 0 : index
    %1617 = vector.load %arg6[%c1176, %c0_473] : memref<1536x128xf32, #tpu.memory_space<vmem>>, vector<24x128xf32>
    tpu.vector_store %arg6[%c1176, %c0_473], %1616 {strides = array<i32>} : memref<1536x128xf32, #tpu.memory_space<vmem>>, vector<24x128xf32>,
    %c300 = arith.constant 300 : index
    %c0_474 = arith.constant 0 : index
    %1618 = vector.load %arg5[%c300, %c0_474] : memref<384x128xf32, #tpu.memory_space<vmem>>, vector<1x128xf32>
    %c303 = arith.constant 303 : index
    %c0_475 = arith.constant 0 : index
    %1619 = vector.load %arg5[%c303, %c0_475] : memref<384x128xf32, #tpu.memory_space<vmem>>, vector<1x128xf32>
    %1620 = vector.shape_cast %1618 : vector<1x128xf32> to vector<1x128xf32>
    %1621 = vector.broadcast %1620 : vector<1x128xf32> to vector<24x128xf32>
    %1622 = vector.shape_cast %1619 : vector<1x128xf32> to vector<1x128xf32>
    %1623 = vector.broadcast %1622 : vector<1x128xf32> to vector<24x128xf32>
    %1624 = arith.select %17, %1621, %1623 : vector<24x128xi1>, vector<24x128xf32>
    %1625 = arith.mulf %5, %1624 : vector<24x128xf32>
    %1626 = arith.addf %14, %1625 : vector<24x128xf32>
    %c301 = arith.constant 301 : index
    %c0_476 = arith.constant 0 : index
    %1627 = vector.load %arg5[%c301, %c0_476] : memref<384x128xf32, #tpu.memory_space<vmem>>, vector<1x128xf32>
    %c304 = arith.constant 304 : index
    %c0_477 = arith.constant 0 : index
    %1628 = vector.load %arg5[%c304, %c0_477] : memref<384x128xf32, #tpu.memory_space<vmem>>, vector<1x128xf32>
    %1629 = vector.shape_cast %1627 : vector<1x128xf32> to vector<1x128xf32>
    %1630 = vector.broadcast %1629 : vector<1x128xf32> to vector<24x128xf32>
    %1631 = vector.shape_cast %1628 : vector<1x128xf32> to vector<1x128xf32>
    %1632 = vector.broadcast %1631 : vector<1x128xf32> to vector<24x128xf32>
    %1633 = arith.select %17, %1630, %1632 : vector<24x128xi1>, vector<24x128xf32>
    %1634 = arith.mulf %8, %1633 : vector<24x128xf32>
    %1635 = arith.addf %1626, %1634 : vector<24x128xf32>
    %c302 = arith.constant 302 : index
    %c0_478 = arith.constant 0 : index
    %1636 = vector.load %arg5[%c302, %c0_478] : memref<384x128xf32, #tpu.memory_space<vmem>>, vector<1x128xf32>
    %c305 = arith.constant 305 : index
    %c0_479 = arith.constant 0 : index
    %1637 = vector.load %arg5[%c305, %c0_479] : memref<384x128xf32, #tpu.memory_space<vmem>>, vector<1x128xf32>
    %1638 = vector.shape_cast %1636 : vector<1x128xf32> to vector<1x128xf32>
    %1639 = vector.broadcast %1638 : vector<1x128xf32> to vector<24x128xf32>
    %1640 = vector.shape_cast %1637 : vector<1x128xf32> to vector<1x128xf32>
    %1641 = vector.broadcast %1640 : vector<1x128xf32> to vector<24x128xf32>
    %1642 = arith.select %17, %1639, %1641 : vector<24x128xi1>, vector<24x128xf32>
    %1643 = arith.mulf %11, %1642 : vector<24x128xf32>
    %1644 = arith.addf %1635, %1643 : vector<24x128xf32>
    %cst_480 = arith.constant -1.73205078 : f32
    %cst_481 = arith.constant 3.7320509 : f32
    %1645 = vector.broadcast %cst_480 : f32 to vector<24x128xf32>
    %1646 = arith.maximumf %1645, %1644 : vector<24x128xf32>
    %1647 = vector.broadcast %cst_481 : f32 to vector<24x128xf32>
    %1648 = arith.minimumf %1647, %1646 : vector<24x128xf32>
    %c1200 = arith.constant 1200 : index
    %c0_482 = arith.constant 0 : index
    %1649 = vector.load %arg6[%c1200, %c0_482] : memref<1536x128xf32, #tpu.memory_space<vmem>>, vector<24x128xf32>
    tpu.vector_store %arg6[%c1200, %c0_482], %1648 {strides = array<i32>} : memref<1536x128xf32, #tpu.memory_space<vmem>>, vector<24x128xf32>,
    %c306 = arith.constant 306 : index
    %c0_483 = arith.constant 0 : index
    %1650 = vector.load %arg5[%c306, %c0_483] : memref<384x128xf32, #tpu.memory_space<vmem>>, vector<1x128xf32>
    %c309 = arith.constant 309 : index
    %c0_484 = arith.constant 0 : index
    %1651 = vector.load %arg5[%c309, %c0_484] : memref<384x128xf32, #tpu.memory_space<vmem>>, vector<1x128xf32>
    %1652 = vector.shape_cast %1650 : vector<1x128xf32> to vector<1x128xf32>
    %1653 = vector.broadcast %1652 : vector<1x128xf32> to vector<24x128xf32>
    %1654 = vector.shape_cast %1651 : vector<1x128xf32> to vector<1x128xf32>
    %1655 = vector.broadcast %1654 : vector<1x128xf32> to vector<24x128xf32>
    %1656 = arith.select %17, %1653, %1655 : vector<24x128xi1>, vector<24x128xf32>
    %1657 = arith.mulf %5, %1656 : vector<24x128xf32>
    %1658 = arith.addf %14, %1657 : vector<24x128xf32>
    %c307 = arith.constant 307 : index
    %c0_485 = arith.constant 0 : index
    %1659 = vector.load %arg5[%c307, %c0_485] : memref<384x128xf32, #tpu.memory_space<vmem>>, vector<1x128xf32>
    %c310 = arith.constant 310 : index
    %c0_486 = arith.constant 0 : index
    %1660 = vector.load %arg5[%c310, %c0_486] : memref<384x128xf32, #tpu.memory_space<vmem>>, vector<1x128xf32>
    %1661 = vector.shape_cast %1659 : vector<1x128xf32> to vector<1x128xf32>
    %1662 = vector.broadcast %1661 : vector<1x128xf32> to vector<24x128xf32>
    %1663 = vector.shape_cast %1660 : vector<1x128xf32> to vector<1x128xf32>
    %1664 = vector.broadcast %1663 : vector<1x128xf32> to vector<24x128xf32>
    %1665 = arith.select %17, %1662, %1664 : vector<24x128xi1>, vector<24x128xf32>
    %1666 = arith.mulf %8, %1665 : vector<24x128xf32>
    %1667 = arith.addf %1658, %1666 : vector<24x128xf32>
    %c308 = arith.constant 308 : index
    %c0_487 = arith.constant 0 : index
    %1668 = vector.load %arg5[%c308, %c0_487] : memref<384x128xf32, #tpu.memory_space<vmem>>, vector<1x128xf32>
    %c311 = arith.constant 311 : index
    %c0_488 = arith.constant 0 : index
    %1669 = vector.load %arg5[%c311, %c0_488] : memref<384x128xf32, #tpu.memory_space<vmem>>, vector<1x128xf32>
    %1670 = vector.shape_cast %1668 : vector<1x128xf32> to vector<1x128xf32>
    %1671 = vector.broadcast %1670 : vector<1x128xf32> to vector<24x128xf32>
    %1672 = vector.shape_cast %1669 : vector<1x128xf32> to vector<1x128xf32>
    %1673 = vector.broadcast %1672 : vector<1x128xf32> to vector<24x128xf32>
    %1674 = arith.select %17, %1671, %1673 : vector<24x128xi1>, vector<24x128xf32>
    %1675 = arith.mulf %11, %1674 : vector<24x128xf32>
    %1676 = arith.addf %1667, %1675 : vector<24x128xf32>
    %cst_489 = arith.constant -1.73205078 : f32
    %cst_490 = arith.constant 3.7320509 : f32
    %1677 = vector.broadcast %cst_489 : f32 to vector<24x128xf32>
    %1678 = arith.maximumf %1677, %1676 : vector<24x128xf32>
    %1679 = vector.broadcast %cst_490 : f32 to vector<24x128xf32>
    %1680 = arith.minimumf %1679, %1678 : vector<24x128xf32>
    %c1224 = arith.constant 1224 : index
    %c0_491 = arith.constant 0 : index
    %1681 = vector.load %arg6[%c1224, %c0_491] : memref<1536x128xf32, #tpu.memory_space<vmem>>, vector<24x128xf32>
    tpu.vector_store %arg6[%c1224, %c0_491], %1680 {strides = array<i32>} : memref<1536x128xf32, #tpu.memory_space<vmem>>, vector<24x128xf32>,
    %c312_492 = arith.constant 312 : index
    %c0_493 = arith.constant 0 : index
    %1682 = vector.load %arg5[%c312_492, %c0_493] : memref<384x128xf32, #tpu.memory_space<vmem>>, vector<1x128xf32>
    %c315 = arith.constant 315 : index
    %c0_494 = arith.constant 0 : index
    %1683 = vector.load %arg5[%c315, %c0_494] : memref<384x128xf32, #tpu.memory_space<vmem>>, vector<1x128xf32>
    %1684 = vector.shape_cast %1682 : vector<1x128xf32> to vector<1x128xf32>
    %1685 = vector.broadcast %1684 : vector<1x128xf32> to vector<24x128xf32>
    %1686 = vector.shape_cast %1683 : vector<1x128xf32> to vector<1x128xf32>
    %1687 = vector.broadcast %1686 : vector<1x128xf32> to vector<24x128xf32>
    %1688 = arith.select %17, %1685, %1687 : vector<24x128xi1>, vector<24x128xf32>
    %1689 = arith.mulf %5, %1688 : vector<24x128xf32>
    %1690 = arith.addf %14, %1689 : vector<24x128xf32>
    %c313 = arith.constant 313 : index
    %c0_495 = arith.constant 0 : index
    %1691 = vector.load %arg5[%c313, %c0_495] : memref<384x128xf32, #tpu.memory_space<vmem>>, vector<1x128xf32>
    %c316 = arith.constant 316 : index
    %c0_496 = arith.constant 0 : index
    %1692 = vector.load %arg5[%c316, %c0_496] : memref<384x128xf32, #tpu.memory_space<vmem>>, vector<1x128xf32>
    %1693 = vector.shape_cast %1691 : vector<1x128xf32> to vector<1x128xf32>
    %1694 = vector.broadcast %1693 : vector<1x128xf32> to vector<24x128xf32>
    %1695 = vector.shape_cast %1692 : vector<1x128xf32> to vector<1x128xf32>
    %1696 = vector.broadcast %1695 : vector<1x128xf32> to vector<24x128xf32>
    %1697 = arith.select %17, %1694, %1696 : vector<24x128xi1>, vector<24x128xf32>
    %1698 = arith.mulf %8, %1697 : vector<24x128xf32>
    %1699 = arith.addf %1690, %1698 : vector<24x128xf32>
    %c314 = arith.constant 314 : index
    %c0_497 = arith.constant 0 : index
    %1700 = vector.load %arg5[%c314, %c0_497] : memref<384x128xf32, #tpu.memory_space<vmem>>, vector<1x128xf32>
    %c317 = arith.constant 317 : index
    %c0_498 = arith.constant 0 : index
    %1701 = vector.load %arg5[%c317, %c0_498] : memref<384x128xf32, #tpu.memory_space<vmem>>, vector<1x128xf32>
    %1702 = vector.shape_cast %1700 : vector<1x128xf32> to vector<1x128xf32>
    %1703 = vector.broadcast %1702 : vector<1x128xf32> to vector<24x128xf32>
    %1704 = vector.shape_cast %1701 : vector<1x128xf32> to vector<1x128xf32>
    %1705 = vector.broadcast %1704 : vector<1x128xf32> to vector<24x128xf32>
    %1706 = arith.select %17, %1703, %1705 : vector<24x128xi1>, vector<24x128xf32>
    %1707 = arith.mulf %11, %1706 : vector<24x128xf32>
    %1708 = arith.addf %1699, %1707 : vector<24x128xf32>
    %cst_499 = arith.constant -1.73205078 : f32
    %cst_500 = arith.constant 3.7320509 : f32
    %1709 = vector.broadcast %cst_499 : f32 to vector<24x128xf32>
    %1710 = arith.maximumf %1709, %1708 : vector<24x128xf32>
    %1711 = vector.broadcast %cst_500 : f32 to vector<24x128xf32>
    %1712 = arith.minimumf %1711, %1710 : vector<24x128xf32>
    %c1248 = arith.constant 1248 : index
    %c0_501 = arith.constant 0 : index
    %1713 = vector.load %arg6[%c1248, %c0_501] : memref<1536x128xf32, #tpu.memory_space<vmem>>, vector<24x128xf32>
    tpu.vector_store %arg6[%c1248, %c0_501], %1712 {strides = array<i32>} : memref<1536x128xf32, #tpu.memory_space<vmem>>, vector<24x128xf32>,
    %c318 = arith.constant 318 : index
    %c0_502 = arith.constant 0 : index
    %1714 = vector.load %arg5[%c318, %c0_502] : memref<384x128xf32, #tpu.memory_space<vmem>>, vector<1x128xf32>
    %c321 = arith.constant 321 : index
    %c0_503 = arith.constant 0 : index
    %1715 = vector.load %arg5[%c321, %c0_503] : memref<384x128xf32, #tpu.memory_space<vmem>>, vector<1x128xf32>
    %1716 = vector.shape_cast %1714 : vector<1x128xf32> to vector<1x128xf32>
    %1717 = vector.broadcast %1716 : vector<1x128xf32> to vector<24x128xf32>
    %1718 = vector.shape_cast %1715 : vector<1x128xf32> to vector<1x128xf32>
    %1719 = vector.broadcast %1718 : vector<1x128xf32> to vector<24x128xf32>
    %1720 = arith.select %17, %1717, %1719 : vector<24x128xi1>, vector<24x128xf32>
    %1721 = arith.mulf %5, %1720 : vector<24x128xf32>
    %1722 = arith.addf %14, %1721 : vector<24x128xf32>
    %c319 = arith.constant 319 : index
    %c0_504 = arith.constant 0 : index
    %1723 = vector.load %arg5[%c319, %c0_504] : memref<384x128xf32, #tpu.memory_space<vmem>>, vector<1x128xf32>
    %c322 = arith.constant 322 : index
    %c0_505 = arith.constant 0 : index
    %1724 = vector.load %arg5[%c322, %c0_505] : memref<384x128xf32, #tpu.memory_space<vmem>>, vector<1x128xf32>
    %1725 = vector.shape_cast %1723 : vector<1x128xf32> to vector<1x128xf32>
    %1726 = vector.broadcast %1725 : vector<1x128xf32> to vector<24x128xf32>
    %1727 = vector.shape_cast %1724 : vector<1x128xf32> to vector<1x128xf32>
    %1728 = vector.broadcast %1727 : vector<1x128xf32> to vector<24x128xf32>
    %1729 = arith.select %17, %1726, %1728 : vector<24x128xi1>, vector<24x128xf32>
    %1730 = arith.mulf %8, %1729 : vector<24x128xf32>
    %1731 = arith.addf %1722, %1730 : vector<24x128xf32>
    %c320 = arith.constant 320 : index
    %c0_506 = arith.constant 0 : index
    %1732 = vector.load %arg5[%c320, %c0_506] : memref<384x128xf32, #tpu.memory_space<vmem>>, vector<1x128xf32>
    %c323 = arith.constant 323 : index
    %c0_507 = arith.constant 0 : index
    %1733 = vector.load %arg5[%c323, %c0_507] : memref<384x128xf32, #tpu.memory_space<vmem>>, vector<1x128xf32>
    %1734 = vector.shape_cast %1732 : vector<1x128xf32> to vector<1x128xf32>
    %1735 = vector.broadcast %1734 : vector<1x128xf32> to vector<24x128xf32>
    %1736 = vector.shape_cast %1733 : vector<1x128xf32> to vector<1x128xf32>
    %1737 = vector.broadcast %1736 : vector<1x128xf32> to vector<24x128xf32>
    %1738 = arith.select %17, %1735, %1737 : vector<24x128xi1>, vector<24x128xf32>
    %1739 = arith.mulf %11, %1738 : vector<24x128xf32>
    %1740 = arith.addf %1731, %1739 : vector<24x128xf32>
    %cst_508 = arith.constant -1.73205078 : f32
    %cst_509 = arith.constant 3.7320509 : f32
    %1741 = vector.broadcast %cst_508 : f32 to vector<24x128xf32>
    %1742 = arith.maximumf %1741, %1740 : vector<24x128xf32>
    %1743 = vector.broadcast %cst_509 : f32 to vector<24x128xf32>
    %1744 = arith.minimumf %1743, %1742 : vector<24x128xf32>
    %c1272 = arith.constant 1272 : index
    %c0_510 = arith.constant 0 : index
    %1745 = vector.load %arg6[%c1272, %c0_510] : memref<1536x128xf32, #tpu.memory_space<vmem>>, vector<24x128xf32>
    tpu.vector_store %arg6[%c1272, %c0_510], %1744 {strides = array<i32>} : memref<1536x128xf32, #tpu.memory_space<vmem>>, vector<24x128xf32>,
    %c324 = arith.constant 324 : index
    %c0_511 = arith.constant 0 : index
    %1746 = vector.load %arg5[%c324, %c0_511] : memref<384x128xf32, #tpu.memory_space<vmem>>, vector<1x128xf32>
    %c327 = arith.constant 327 : index
    %c0_512 = arith.constant 0 : index
    %1747 = vector.load %arg5[%c327, %c0_512] : memref<384x128xf32, #tpu.memory_space<vmem>>, vector<1x128xf32>
    %1748 = vector.shape_cast %1746 : vector<1x128xf32> to vector<1x128xf32>
    %1749 = vector.broadcast %1748 : vector<1x128xf32> to vector<24x128xf32>
    %1750 = vector.shape_cast %1747 : vector<1x128xf32> to vector<1x128xf32>
    %1751 = vector.broadcast %1750 : vector<1x128xf32> to vector<24x128xf32>
    %1752 = arith.select %17, %1749, %1751 : vector<24x128xi1>, vector<24x128xf32>
    %1753 = arith.mulf %5, %1752 : vector<24x128xf32>
    %1754 = arith.addf %14, %1753 : vector<24x128xf32>
    %c325 = arith.constant 325 : index
    %c0_513 = arith.constant 0 : index
    %1755 = vector.load %arg5[%c325, %c0_513] : memref<384x128xf32, #tpu.memory_space<vmem>>, vector<1x128xf32>
    %c328 = arith.constant 328 : index
    %c0_514 = arith.constant 0 : index
    %1756 = vector.load %arg5[%c328, %c0_514] : memref<384x128xf32, #tpu.memory_space<vmem>>, vector<1x128xf32>
    %1757 = vector.shape_cast %1755 : vector<1x128xf32> to vector<1x128xf32>
    %1758 = vector.broadcast %1757 : vector<1x128xf32> to vector<24x128xf32>
    %1759 = vector.shape_cast %1756 : vector<1x128xf32> to vector<1x128xf32>
    %1760 = vector.broadcast %1759 : vector<1x128xf32> to vector<24x128xf32>
    %1761 = arith.select %17, %1758, %1760 : vector<24x128xi1>, vector<24x128xf32>
    %1762 = arith.mulf %8, %1761 : vector<24x128xf32>
    %1763 = arith.addf %1754, %1762 : vector<24x128xf32>
    %c326 = arith.constant 326 : index
    %c0_515 = arith.constant 0 : index
    %1764 = vector.load %arg5[%c326, %c0_515] : memref<384x128xf32, #tpu.memory_space<vmem>>, vector<1x128xf32>
    %c329 = arith.constant 329 : index
    %c0_516 = arith.constant 0 : index
    %1765 = vector.load %arg5[%c329, %c0_516] : memref<384x128xf32, #tpu.memory_space<vmem>>, vector<1x128xf32>
    %1766 = vector.shape_cast %1764 : vector<1x128xf32> to vector<1x128xf32>
    %1767 = vector.broadcast %1766 : vector<1x128xf32> to vector<24x128xf32>
    %1768 = vector.shape_cast %1765 : vector<1x128xf32> to vector<1x128xf32>
    %1769 = vector.broadcast %1768 : vector<1x128xf32> to vector<24x128xf32>
    %1770 = arith.select %17, %1767, %1769 : vector<24x128xi1>, vector<24x128xf32>
    %1771 = arith.mulf %11, %1770 : vector<24x128xf32>
    %1772 = arith.addf %1763, %1771 : vector<24x128xf32>
    %cst_517 = arith.constant -1.73205078 : f32
    %cst_518 = arith.constant 3.7320509 : f32
    %1773 = vector.broadcast %cst_517 : f32 to vector<24x128xf32>
    %1774 = arith.maximumf %1773, %1772 : vector<24x128xf32>
    %1775 = vector.broadcast %cst_518 : f32 to vector<24x128xf32>
    %1776 = arith.minimumf %1775, %1774 : vector<24x128xf32>
    %c1296 = arith.constant 1296 : index
    %c0_519 = arith.constant 0 : index
    %1777 = vector.load %arg6[%c1296, %c0_519] : memref<1536x128xf32, #tpu.memory_space<vmem>>, vector<24x128xf32>
    tpu.vector_store %arg6[%c1296, %c0_519], %1776 {strides = array<i32>} : memref<1536x128xf32, #tpu.memory_space<vmem>>, vector<24x128xf32>,
    %c330 = arith.constant 330 : index
    %c0_520 = arith.constant 0 : index
    %1778 = vector.load %arg5[%c330, %c0_520] : memref<384x128xf32, #tpu.memory_space<vmem>>, vector<1x128xf32>
    %c333 = arith.constant 333 : index
    %c0_521 = arith.constant 0 : index
    %1779 = vector.load %arg5[%c333, %c0_521] : memref<384x128xf32, #tpu.memory_space<vmem>>, vector<1x128xf32>
    %1780 = vector.shape_cast %1778 : vector<1x128xf32> to vector<1x128xf32>
    %1781 = vector.broadcast %1780 : vector<1x128xf32> to vector<24x128xf32>
    %1782 = vector.shape_cast %1779 : vector<1x128xf32> to vector<1x128xf32>
    %1783 = vector.broadcast %1782 : vector<1x128xf32> to vector<24x128xf32>
    %1784 = arith.select %17, %1781, %1783 : vector<24x128xi1>, vector<24x128xf32>
    %1785 = arith.mulf %5, %1784 : vector<24x128xf32>
    %1786 = arith.addf %14, %1785 : vector<24x128xf32>
    %c331 = arith.constant 331 : index
    %c0_522 = arith.constant 0 : index
    %1787 = vector.load %arg5[%c331, %c0_522] : memref<384x128xf32, #tpu.memory_space<vmem>>, vector<1x128xf32>
    %c334 = arith.constant 334 : index
    %c0_523 = arith.constant 0 : index
    %1788 = vector.load %arg5[%c334, %c0_523] : memref<384x128xf32, #tpu.memory_space<vmem>>, vector<1x128xf32>
    %1789 = vector.shape_cast %1787 : vector<1x128xf32> to vector<1x128xf32>
    %1790 = vector.broadcast %1789 : vector<1x128xf32> to vector<24x128xf32>
    %1791 = vector.shape_cast %1788 : vector<1x128xf32> to vector<1x128xf32>
    %1792 = vector.broadcast %1791 : vector<1x128xf32> to vector<24x128xf32>
    %1793 = arith.select %17, %1790, %1792 : vector<24x128xi1>, vector<24x128xf32>
    %1794 = arith.mulf %8, %1793 : vector<24x128xf32>
    %1795 = arith.addf %1786, %1794 : vector<24x128xf32>
    %c332 = arith.constant 332 : index
    %c0_524 = arith.constant 0 : index
    %1796 = vector.load %arg5[%c332, %c0_524] : memref<384x128xf32, #tpu.memory_space<vmem>>, vector<1x128xf32>
    %c335 = arith.constant 335 : index
    %c0_525 = arith.constant 0 : index
    %1797 = vector.load %arg5[%c335, %c0_525] : memref<384x128xf32, #tpu.memory_space<vmem>>, vector<1x128xf32>
    %1798 = vector.shape_cast %1796 : vector<1x128xf32> to vector<1x128xf32>
    %1799 = vector.broadcast %1798 : vector<1x128xf32> to vector<24x128xf32>
    %1800 = vector.shape_cast %1797 : vector<1x128xf32> to vector<1x128xf32>
    %1801 = vector.broadcast %1800 : vector<1x128xf32> to vector<24x128xf32>
    %1802 = arith.select %17, %1799, %1801 : vector<24x128xi1>, vector<24x128xf32>
    %1803 = arith.mulf %11, %1802 : vector<24x128xf32>
    %1804 = arith.addf %1795, %1803 : vector<24x128xf32>
    %cst_526 = arith.constant -1.73205078 : f32
    %cst_527 = arith.constant 3.7320509 : f32
    %1805 = vector.broadcast %cst_526 : f32 to vector<24x128xf32>
    %1806 = arith.maximumf %1805, %1804 : vector<24x128xf32>
    %1807 = vector.broadcast %cst_527 : f32 to vector<24x128xf32>
    %1808 = arith.minimumf %1807, %1806 : vector<24x128xf32>
    %c1320 = arith.constant 1320 : index
    %c0_528 = arith.constant 0 : index
    %1809 = vector.load %arg6[%c1320, %c0_528] : memref<1536x128xf32, #tpu.memory_space<vmem>>, vector<24x128xf32>
    tpu.vector_store %arg6[%c1320, %c0_528], %1808 {strides = array<i32>} : memref<1536x128xf32, #tpu.memory_space<vmem>>, vector<24x128xf32>,
    %c336_529 = arith.constant 336 : index
    %c0_530 = arith.constant 0 : index
    %1810 = vector.load %arg5[%c336_529, %c0_530] : memref<384x128xf32, #tpu.memory_space<vmem>>, vector<1x128xf32>
    %c339 = arith.constant 339 : index
    %c0_531 = arith.constant 0 : index
    %1811 = vector.load %arg5[%c339, %c0_531] : memref<384x128xf32, #tpu.memory_space<vmem>>, vector<1x128xf32>
    %1812 = vector.shape_cast %1810 : vector<1x128xf32> to vector<1x128xf32>
    %1813 = vector.broadcast %1812 : vector<1x128xf32> to vector<24x128xf32>
    %1814 = vector.shape_cast %1811 : vector<1x128xf32> to vector<1x128xf32>
    %1815 = vector.broadcast %1814 : vector<1x128xf32> to vector<24x128xf32>
    %1816 = arith.select %17, %1813, %1815 : vector<24x128xi1>, vector<24x128xf32>
    %1817 = arith.mulf %5, %1816 : vector<24x128xf32>
    %1818 = arith.addf %14, %1817 : vector<24x128xf32>
    %c337 = arith.constant 337 : index
    %c0_532 = arith.constant 0 : index
    %1819 = vector.load %arg5[%c337, %c0_532] : memref<384x128xf32, #tpu.memory_space<vmem>>, vector<1x128xf32>
    %c340 = arith.constant 340 : index
    %c0_533 = arith.constant 0 : index
    %1820 = vector.load %arg5[%c340, %c0_533] : memref<384x128xf32, #tpu.memory_space<vmem>>, vector<1x128xf32>
    %1821 = vector.shape_cast %1819 : vector<1x128xf32> to vector<1x128xf32>
    %1822 = vector.broadcast %1821 : vector<1x128xf32> to vector<24x128xf32>
    %1823 = vector.shape_cast %1820 : vector<1x128xf32> to vector<1x128xf32>
    %1824 = vector.broadcast %1823 : vector<1x128xf32> to vector<24x128xf32>
    %1825 = arith.select %17, %1822, %1824 : vector<24x128xi1>, vector<24x128xf32>
    %1826 = arith.mulf %8, %1825 : vector<24x128xf32>
    %1827 = arith.addf %1818, %1826 : vector<24x128xf32>
    %c338 = arith.constant 338 : index
    %c0_534 = arith.constant 0 : index
    %1828 = vector.load %arg5[%c338, %c0_534] : memref<384x128xf32, #tpu.memory_space<vmem>>, vector<1x128xf32>
    %c341 = arith.constant 341 : index
    %c0_535 = arith.constant 0 : index
    %1829 = vector.load %arg5[%c341, %c0_535] : memref<384x128xf32, #tpu.memory_space<vmem>>, vector<1x128xf32>
    %1830 = vector.shape_cast %1828 : vector<1x128xf32> to vector<1x128xf32>
    %1831 = vector.broadcast %1830 : vector<1x128xf32> to vector<24x128xf32>
    %1832 = vector.shape_cast %1829 : vector<1x128xf32> to vector<1x128xf32>
    %1833 = vector.broadcast %1832 : vector<1x128xf32> to vector<24x128xf32>
    %1834 = arith.select %17, %1831, %1833 : vector<24x128xi1>, vector<24x128xf32>
    %1835 = arith.mulf %11, %1834 : vector<24x128xf32>
    %1836 = arith.addf %1827, %1835 : vector<24x128xf32>
    %cst_536 = arith.constant -1.73205078 : f32
    %cst_537 = arith.constant 3.7320509 : f32
    %1837 = vector.broadcast %cst_536 : f32 to vector<24x128xf32>
    %1838 = arith.maximumf %1837, %1836 : vector<24x128xf32>
    %1839 = vector.broadcast %cst_537 : f32 to vector<24x128xf32>
    %1840 = arith.minimumf %1839, %1838 : vector<24x128xf32>
    %c1344 = arith.constant 1344 : index
    %c0_538 = arith.constant 0 : index
    %1841 = vector.load %arg6[%c1344, %c0_538] : memref<1536x128xf32, #tpu.memory_space<vmem>>, vector<24x128xf32>
    tpu.vector_store %arg6[%c1344, %c0_538], %1840 {strides = array<i32>} : memref<1536x128xf32, #tpu.memory_space<vmem>>, vector<24x128xf32>,
    %c342 = arith.constant 342 : index
    %c0_539 = arith.constant 0 : index
    %1842 = vector.load %arg5[%c342, %c0_539] : memref<384x128xf32, #tpu.memory_space<vmem>>, vector<1x128xf32>
    %c345 = arith.constant 345 : index
    %c0_540 = arith.constant 0 : index
    %1843 = vector.load %arg5[%c345, %c0_540] : memref<384x128xf32, #tpu.memory_space<vmem>>, vector<1x128xf32>
    %1844 = vector.shape_cast %1842 : vector<1x128xf32> to vector<1x128xf32>
    %1845 = vector.broadcast %1844 : vector<1x128xf32> to vector<24x128xf32>
    %1846 = vector.shape_cast %1843 : vector<1x128xf32> to vector<1x128xf32>
    %1847 = vector.broadcast %1846 : vector<1x128xf32> to vector<24x128xf32>
    %1848 = arith.select %17, %1845, %1847 : vector<24x128xi1>, vector<24x128xf32>
    %1849 = arith.mulf %5, %1848 : vector<24x128xf32>
    %1850 = arith.addf %14, %1849 : vector<24x128xf32>
    %c343 = arith.constant 343 : index
    %c0_541 = arith.constant 0 : index
    %1851 = vector.load %arg5[%c343, %c0_541] : memref<384x128xf32, #tpu.memory_space<vmem>>, vector<1x128xf32>
    %c346 = arith.constant 346 : index
    %c0_542 = arith.constant 0 : index
    %1852 = vector.load %arg5[%c346, %c0_542] : memref<384x128xf32, #tpu.memory_space<vmem>>, vector<1x128xf32>
    %1853 = vector.shape_cast %1851 : vector<1x128xf32> to vector<1x128xf32>
    %1854 = vector.broadcast %1853 : vector<1x128xf32> to vector<24x128xf32>
    %1855 = vector.shape_cast %1852 : vector<1x128xf32> to vector<1x128xf32>
    %1856 = vector.broadcast %1855 : vector<1x128xf32> to vector<24x128xf32>
    %1857 = arith.select %17, %1854, %1856 : vector<24x128xi1>, vector<24x128xf32>
    %1858 = arith.mulf %8, %1857 : vector<24x128xf32>
    %1859 = arith.addf %1850, %1858 : vector<24x128xf32>
    %c344 = arith.constant 344 : index
    %c0_543 = arith.constant 0 : index
    %1860 = vector.load %arg5[%c344, %c0_543] : memref<384x128xf32, #tpu.memory_space<vmem>>, vector<1x128xf32>
    %c347 = arith.constant 347 : index
    %c0_544 = arith.constant 0 : index
    %1861 = vector.load %arg5[%c347, %c0_544] : memref<384x128xf32, #tpu.memory_space<vmem>>, vector<1x128xf32>
    %1862 = vector.shape_cast %1860 : vector<1x128xf32> to vector<1x128xf32>
    %1863 = vector.broadcast %1862 : vector<1x128xf32> to vector<24x128xf32>
    %1864 = vector.shape_cast %1861 : vector<1x128xf32> to vector<1x128xf32>
    %1865 = vector.broadcast %1864 : vector<1x128xf32> to vector<24x128xf32>
    %1866 = arith.select %17, %1863, %1865 : vector<24x128xi1>, vector<24x128xf32>
    %1867 = arith.mulf %11, %1866 : vector<24x128xf32>
    %1868 = arith.addf %1859, %1867 : vector<24x128xf32>
    %cst_545 = arith.constant -1.73205078 : f32
    %cst_546 = arith.constant 3.7320509 : f32
    %1869 = vector.broadcast %cst_545 : f32 to vector<24x128xf32>
    %1870 = arith.maximumf %1869, %1868 : vector<24x128xf32>
    %1871 = vector.broadcast %cst_546 : f32 to vector<24x128xf32>
    %1872 = arith.minimumf %1871, %1870 : vector<24x128xf32>
    %c1368 = arith.constant 1368 : index
    %c0_547 = arith.constant 0 : index
    %1873 = vector.load %arg6[%c1368, %c0_547] : memref<1536x128xf32, #tpu.memory_space<vmem>>, vector<24x128xf32>
    tpu.vector_store %arg6[%c1368, %c0_547], %1872 {strides = array<i32>} : memref<1536x128xf32, #tpu.memory_space<vmem>>, vector<24x128xf32>,
    %c348 = arith.constant 348 : index
    %c0_548 = arith.constant 0 : index
    %1874 = vector.load %arg5[%c348, %c0_548] : memref<384x128xf32, #tpu.memory_space<vmem>>, vector<1x128xf32>
    %c351 = arith.constant 351 : index
    %c0_549 = arith.constant 0 : index
    %1875 = vector.load %arg5[%c351, %c0_549] : memref<384x128xf32, #tpu.memory_space<vmem>>, vector<1x128xf32>
    %1876 = vector.shape_cast %1874 : vector<1x128xf32> to vector<1x128xf32>
    %1877 = vector.broadcast %1876 : vector<1x128xf32> to vector<24x128xf32>
    %1878 = vector.shape_cast %1875 : vector<1x128xf32> to vector<1x128xf32>
    %1879 = vector.broadcast %1878 : vector<1x128xf32> to vector<24x128xf32>
    %1880 = arith.select %17, %1877, %1879 : vector<24x128xi1>, vector<24x128xf32>
    %1881 = arith.mulf %5, %1880 : vector<24x128xf32>
    %1882 = arith.addf %14, %1881 : vector<24x128xf32>
    %c349 = arith.constant 349 : index
    %c0_550 = arith.constant 0 : index
    %1883 = vector.load %arg5[%c349, %c0_550] : memref<384x128xf32, #tpu.memory_space<vmem>>, vector<1x128xf32>
    %c352 = arith.constant 352 : index
    %c0_551 = arith.constant 0 : index
    %1884 = vector.load %arg5[%c352, %c0_551] : memref<384x128xf32, #tpu.memory_space<vmem>>, vector<1x128xf32>
    %1885 = vector.shape_cast %1883 : vector<1x128xf32> to vector<1x128xf32>
    %1886 = vector.broadcast %1885 : vector<1x128xf32> to vector<24x128xf32>
    %1887 = vector.shape_cast %1884 : vector<1x128xf32> to vector<1x128xf32>
    %1888 = vector.broadcast %1887 : vector<1x128xf32> to vector<24x128xf32>
    %1889 = arith.select %17, %1886, %1888 : vector<24x128xi1>, vector<24x128xf32>
    %1890 = arith.mulf %8, %1889 : vector<24x128xf32>
    %1891 = arith.addf %1882, %1890 : vector<24x128xf32>
    %c350 = arith.constant 350 : index
    %c0_552 = arith.constant 0 : index
    %1892 = vector.load %arg5[%c350, %c0_552] : memref<384x128xf32, #tpu.memory_space<vmem>>, vector<1x128xf32>
    %c353 = arith.constant 353 : index
    %c0_553 = arith.constant 0 : index
    %1893 = vector.load %arg5[%c353, %c0_553] : memref<384x128xf32, #tpu.memory_space<vmem>>, vector<1x128xf32>
    %1894 = vector.shape_cast %1892 : vector<1x128xf32> to vector<1x128xf32>
    %1895 = vector.broadcast %1894 : vector<1x128xf32> to vector<24x128xf32>
    %1896 = vector.shape_cast %1893 : vector<1x128xf32> to vector<1x128xf32>
    %1897 = vector.broadcast %1896 : vector<1x128xf32> to vector<24x128xf32>
    %1898 = arith.select %17, %1895, %1897 : vector<24x128xi1>, vector<24x128xf32>
    %1899 = arith.mulf %11, %1898 : vector<24x128xf32>
    %1900 = arith.addf %1891, %1899 : vector<24x128xf32>
    %cst_554 = arith.constant -1.73205078 : f32
    %cst_555 = arith.constant 3.7320509 : f32
    %1901 = vector.broadcast %cst_554 : f32 to vector<24x128xf32>
    %1902 = arith.maximumf %1901, %1900 : vector<24x128xf32>
    %1903 = vector.broadcast %cst_555 : f32 to vector<24x128xf32>
    %1904 = arith.minimumf %1903, %1902 : vector<24x128xf32>
    %c1392 = arith.constant 1392 : index
    %c0_556 = arith.constant 0 : index
    %1905 = vector.load %arg6[%c1392, %c0_556] : memref<1536x128xf32, #tpu.memory_space<vmem>>, vector<24x128xf32>
    tpu.vector_store %arg6[%c1392, %c0_556], %1904 {strides = array<i32>} : memref<1536x128xf32, #tpu.memory_space<vmem>>, vector<24x128xf32>,
    %c354 = arith.constant 354 : index
    %c0_557 = arith.constant 0 : index
    %1906 = vector.load %arg5[%c354, %c0_557] : memref<384x128xf32, #tpu.memory_space<vmem>>, vector<1x128xf32>
    %c357 = arith.constant 357 : index
    %c0_558 = arith.constant 0 : index
    %1907 = vector.load %arg5[%c357, %c0_558] : memref<384x128xf32, #tpu.memory_space<vmem>>, vector<1x128xf32>
    %1908 = vector.shape_cast %1906 : vector<1x128xf32> to vector<1x128xf32>
    %1909 = vector.broadcast %1908 : vector<1x128xf32> to vector<24x128xf32>
    %1910 = vector.shape_cast %1907 : vector<1x128xf32> to vector<1x128xf32>
    %1911 = vector.broadcast %1910 : vector<1x128xf32> to vector<24x128xf32>
    %1912 = arith.select %17, %1909, %1911 : vector<24x128xi1>, vector<24x128xf32>
    %1913 = arith.mulf %5, %1912 : vector<24x128xf32>
    %1914 = arith.addf %14, %1913 : vector<24x128xf32>
    %c355 = arith.constant 355 : index
    %c0_559 = arith.constant 0 : index
    %1915 = vector.load %arg5[%c355, %c0_559] : memref<384x128xf32, #tpu.memory_space<vmem>>, vector<1x128xf32>
    %c358 = arith.constant 358 : index
    %c0_560 = arith.constant 0 : index
    %1916 = vector.load %arg5[%c358, %c0_560] : memref<384x128xf32, #tpu.memory_space<vmem>>, vector<1x128xf32>
    %1917 = vector.shape_cast %1915 : vector<1x128xf32> to vector<1x128xf32>
    %1918 = vector.broadcast %1917 : vector<1x128xf32> to vector<24x128xf32>
    %1919 = vector.shape_cast %1916 : vector<1x128xf32> to vector<1x128xf32>
    %1920 = vector.broadcast %1919 : vector<1x128xf32> to vector<24x128xf32>
    %1921 = arith.select %17, %1918, %1920 : vector<24x128xi1>, vector<24x128xf32>
    %1922 = arith.mulf %8, %1921 : vector<24x128xf32>
    %1923 = arith.addf %1914, %1922 : vector<24x128xf32>
    %c356 = arith.constant 356 : index
    %c0_561 = arith.constant 0 : index
    %1924 = vector.load %arg5[%c356, %c0_561] : memref<384x128xf32, #tpu.memory_space<vmem>>, vector<1x128xf32>
    %c359 = arith.constant 359 : index
    %c0_562 = arith.constant 0 : index
    %1925 = vector.load %arg5[%c359, %c0_562] : memref<384x128xf32, #tpu.memory_space<vmem>>, vector<1x128xf32>
    %1926 = vector.shape_cast %1924 : vector<1x128xf32> to vector<1x128xf32>
    %1927 = vector.broadcast %1926 : vector<1x128xf32> to vector<24x128xf32>
    %1928 = vector.shape_cast %1925 : vector<1x128xf32> to vector<1x128xf32>
    %1929 = vector.broadcast %1928 : vector<1x128xf32> to vector<24x128xf32>
    %1930 = arith.select %17, %1927, %1929 : vector<24x128xi1>, vector<24x128xf32>
    %1931 = arith.mulf %11, %1930 : vector<24x128xf32>
    %1932 = arith.addf %1923, %1931 : vector<24x128xf32>
    %cst_563 = arith.constant -1.73205078 : f32
    %cst_564 = arith.constant 3.7320509 : f32
    %1933 = vector.broadcast %cst_563 : f32 to vector<24x128xf32>
    %1934 = arith.maximumf %1933, %1932 : vector<24x128xf32>
    %1935 = vector.broadcast %cst_564 : f32 to vector<24x128xf32>
    %1936 = arith.minimumf %1935, %1934 : vector<24x128xf32>
    %c1416 = arith.constant 1416 : index
    %c0_565 = arith.constant 0 : index
    %1937 = vector.load %arg6[%c1416, %c0_565] : memref<1536x128xf32, #tpu.memory_space<vmem>>, vector<24x128xf32>
    tpu.vector_store %arg6[%c1416, %c0_565], %1936 {strides = array<i32>} : memref<1536x128xf32, #tpu.memory_space<vmem>>, vector<24x128xf32>,
    %c360_566 = arith.constant 360 : index
    %c0_567 = arith.constant 0 : index
    %1938 = vector.load %arg5[%c360_566, %c0_567] : memref<384x128xf32, #tpu.memory_space<vmem>>, vector<1x128xf32>
    %c363 = arith.constant 363 : index
    %c0_568 = arith.constant 0 : index
    %1939 = vector.load %arg5[%c363, %c0_568] : memref<384x128xf32, #tpu.memory_space<vmem>>, vector<1x128xf32>
    %1940 = vector.shape_cast %1938 : vector<1x128xf32> to vector<1x128xf32>
    %1941 = vector.broadcast %1940 : vector<1x128xf32> to vector<24x128xf32>
    %1942 = vector.shape_cast %1939 : vector<1x128xf32> to vector<1x128xf32>
    %1943 = vector.broadcast %1942 : vector<1x128xf32> to vector<24x128xf32>
    %1944 = arith.select %17, %1941, %1943 : vector<24x128xi1>, vector<24x128xf32>
    %1945 = arith.mulf %5, %1944 : vector<24x128xf32>
    %1946 = arith.addf %14, %1945 : vector<24x128xf32>
    %c361 = arith.constant 361 : index
    %c0_569 = arith.constant 0 : index
    %1947 = vector.load %arg5[%c361, %c0_569] : memref<384x128xf32, #tpu.memory_space<vmem>>, vector<1x128xf32>
    %c364 = arith.constant 364 : index
    %c0_570 = arith.constant 0 : index
    %1948 = vector.load %arg5[%c364, %c0_570] : memref<384x128xf32, #tpu.memory_space<vmem>>, vector<1x128xf32>
    %1949 = vector.shape_cast %1947 : vector<1x128xf32> to vector<1x128xf32>
    %1950 = vector.broadcast %1949 : vector<1x128xf32> to vector<24x128xf32>
    %1951 = vector.shape_cast %1948 : vector<1x128xf32> to vector<1x128xf32>
    %1952 = vector.broadcast %1951 : vector<1x128xf32> to vector<24x128xf32>
    %1953 = arith.select %17, %1950, %1952 : vector<24x128xi1>, vector<24x128xf32>
    %1954 = arith.mulf %8, %1953 : vector<24x128xf32>
    %1955 = arith.addf %1946, %1954 : vector<24x128xf32>
    %c362 = arith.constant 362 : index
    %c0_571 = arith.constant 0 : index
    %1956 = vector.load %arg5[%c362, %c0_571] : memref<384x128xf32, #tpu.memory_space<vmem>>, vector<1x128xf32>
    %c365 = arith.constant 365 : index
    %c0_572 = arith.constant 0 : index
    %1957 = vector.load %arg5[%c365, %c0_572] : memref<384x128xf32, #tpu.memory_space<vmem>>, vector<1x128xf32>
    %1958 = vector.shape_cast %1956 : vector<1x128xf32> to vector<1x128xf32>
    %1959 = vector.broadcast %1958 : vector<1x128xf32> to vector<24x128xf32>
    %1960 = vector.shape_cast %1957 : vector<1x128xf32> to vector<1x128xf32>
    %1961 = vector.broadcast %1960 : vector<1x128xf32> to vector<24x128xf32>
    %1962 = arith.select %17, %1959, %1961 : vector<24x128xi1>, vector<24x128xf32>
    %1963 = arith.mulf %11, %1962 : vector<24x128xf32>
    %1964 = arith.addf %1955, %1963 : vector<24x128xf32>
    %cst_573 = arith.constant -1.73205078 : f32
    %cst_574 = arith.constant 3.7320509 : f32
    %1965 = vector.broadcast %cst_573 : f32 to vector<24x128xf32>
    %1966 = arith.maximumf %1965, %1964 : vector<24x128xf32>
    %1967 = vector.broadcast %cst_574 : f32 to vector<24x128xf32>
    %1968 = arith.minimumf %1967, %1966 : vector<24x128xf32>
    %c1440 = arith.constant 1440 : index
    %c0_575 = arith.constant 0 : index
    %1969 = vector.load %arg6[%c1440, %c0_575] : memref<1536x128xf32, #tpu.memory_space<vmem>>, vector<24x128xf32>
    tpu.vector_store %arg6[%c1440, %c0_575], %1968 {strides = array<i32>} : memref<1536x128xf32, #tpu.memory_space<vmem>>, vector<24x128xf32>,
    %c366 = arith.constant 366 : index
    %c0_576 = arith.constant 0 : index
    %1970 = vector.load %arg5[%c366, %c0_576] : memref<384x128xf32, #tpu.memory_space<vmem>>, vector<1x128xf32>
    %c369 = arith.constant 369 : index
    %c0_577 = arith.constant 0 : index
    %1971 = vector.load %arg5[%c369, %c0_577] : memref<384x128xf32, #tpu.memory_space<vmem>>, vector<1x128xf32>
    %1972 = vector.shape_cast %1970 : vector<1x128xf32> to vector<1x128xf32>
    %1973 = vector.broadcast %1972 : vector<1x128xf32> to vector<24x128xf32>
    %1974 = vector.shape_cast %1971 : vector<1x128xf32> to vector<1x128xf32>
    %1975 = vector.broadcast %1974 : vector<1x128xf32> to vector<24x128xf32>
    %1976 = arith.select %17, %1973, %1975 : vector<24x128xi1>, vector<24x128xf32>
    %1977 = arith.mulf %5, %1976 : vector<24x128xf32>
    %1978 = arith.addf %14, %1977 : vector<24x128xf32>
    %c367 = arith.constant 367 : index
    %c0_578 = arith.constant 0 : index
    %1979 = vector.load %arg5[%c367, %c0_578] : memref<384x128xf32, #tpu.memory_space<vmem>>, vector<1x128xf32>
    %c370 = arith.constant 370 : index
    %c0_579 = arith.constant 0 : index
    %1980 = vector.load %arg5[%c370, %c0_579] : memref<384x128xf32, #tpu.memory_space<vmem>>, vector<1x128xf32>
    %1981 = vector.shape_cast %1979 : vector<1x128xf32> to vector<1x128xf32>
    %1982 = vector.broadcast %1981 : vector<1x128xf32> to vector<24x128xf32>
    %1983 = vector.shape_cast %1980 : vector<1x128xf32> to vector<1x128xf32>
    %1984 = vector.broadcast %1983 : vector<1x128xf32> to vector<24x128xf32>
    %1985 = arith.select %17, %1982, %1984 : vector<24x128xi1>, vector<24x128xf32>
    %1986 = arith.mulf %8, %1985 : vector<24x128xf32>
    %1987 = arith.addf %1978, %1986 : vector<24x128xf32>
    %c368 = arith.constant 368 : index
    %c0_580 = arith.constant 0 : index
    %1988 = vector.load %arg5[%c368, %c0_580] : memref<384x128xf32, #tpu.memory_space<vmem>>, vector<1x128xf32>
    %c371 = arith.constant 371 : index
    %c0_581 = arith.constant 0 : index
    %1989 = vector.load %arg5[%c371, %c0_581] : memref<384x128xf32, #tpu.memory_space<vmem>>, vector<1x128xf32>
    %1990 = vector.shape_cast %1988 : vector<1x128xf32> to vector<1x128xf32>
    %1991 = vector.broadcast %1990 : vector<1x128xf32> to vector<24x128xf32>
    %1992 = vector.shape_cast %1989 : vector<1x128xf32> to vector<1x128xf32>
    %1993 = vector.broadcast %1992 : vector<1x128xf32> to vector<24x128xf32>
    %1994 = arith.select %17, %1991, %1993 : vector<24x128xi1>, vector<24x128xf32>
    %1995 = arith.mulf %11, %1994 : vector<24x128xf32>
    %1996 = arith.addf %1987, %1995 : vector<24x128xf32>
    %cst_582 = arith.constant -1.73205078 : f32
    %cst_583 = arith.constant 3.7320509 : f32
    %1997 = vector.broadcast %cst_582 : f32 to vector<24x128xf32>
    %1998 = arith.maximumf %1997, %1996 : vector<24x128xf32>
    %1999 = vector.broadcast %cst_583 : f32 to vector<24x128xf32>
    %2000 = arith.minimumf %1999, %1998 : vector<24x128xf32>
    %c1464 = arith.constant 1464 : index
    %c0_584 = arith.constant 0 : index
    %2001 = vector.load %arg6[%c1464, %c0_584] : memref<1536x128xf32, #tpu.memory_space<vmem>>, vector<24x128xf32>
    tpu.vector_store %arg6[%c1464, %c0_584], %2000 {strides = array<i32>} : memref<1536x128xf32, #tpu.memory_space<vmem>>, vector<24x128xf32>,
    %c372 = arith.constant 372 : index
    %c0_585 = arith.constant 0 : index
    %2002 = vector.load %arg5[%c372, %c0_585] : memref<384x128xf32, #tpu.memory_space<vmem>>, vector<1x128xf32>
    %c375 = arith.constant 375 : index
    %c0_586 = arith.constant 0 : index
    %2003 = vector.load %arg5[%c375, %c0_586] : memref<384x128xf32, #tpu.memory_space<vmem>>, vector<1x128xf32>
    %2004 = vector.shape_cast %2002 : vector<1x128xf32> to vector<1x128xf32>
    %2005 = vector.broadcast %2004 : vector<1x128xf32> to vector<24x128xf32>
    %2006 = vector.shape_cast %2003 : vector<1x128xf32> to vector<1x128xf32>
    %2007 = vector.broadcast %2006 : vector<1x128xf32> to vector<24x128xf32>
    %2008 = arith.select %17, %2005, %2007 : vector<24x128xi1>, vector<24x128xf32>
    %2009 = arith.mulf %5, %2008 : vector<24x128xf32>
    %2010 = arith.addf %14, %2009 : vector<24x128xf32>
    %c373 = arith.constant 373 : index
    %c0_587 = arith.constant 0 : index
    %2011 = vector.load %arg5[%c373, %c0_587] : memref<384x128xf32, #tpu.memory_space<vmem>>, vector<1x128xf32>
    %c376 = arith.constant 376 : index
    %c0_588 = arith.constant 0 : index
    %2012 = vector.load %arg5[%c376, %c0_588] : memref<384x128xf32, #tpu.memory_space<vmem>>, vector<1x128xf32>
    %2013 = vector.shape_cast %2011 : vector<1x128xf32> to vector<1x128xf32>
    %2014 = vector.broadcast %2013 : vector<1x128xf32> to vector<24x128xf32>
    %2015 = vector.shape_cast %2012 : vector<1x128xf32> to vector<1x128xf32>
    %2016 = vector.broadcast %2015 : vector<1x128xf32> to vector<24x128xf32>
    %2017 = arith.select %17, %2014, %2016 : vector<24x128xi1>, vector<24x128xf32>
    %2018 = arith.mulf %8, %2017 : vector<24x128xf32>
    %2019 = arith.addf %2010, %2018 : vector<24x128xf32>
    %c374 = arith.constant 374 : index
    %c0_589 = arith.constant 0 : index
    %2020 = vector.load %arg5[%c374, %c0_589] : memref<384x128xf32, #tpu.memory_space<vmem>>, vector<1x128xf32>
    %c377 = arith.constant 377 : index
    %c0_590 = arith.constant 0 : index
    %2021 = vector.load %arg5[%c377, %c0_590] : memref<384x128xf32, #tpu.memory_space<vmem>>, vector<1x128xf32>
    %2022 = vector.shape_cast %2020 : vector<1x128xf32> to vector<1x128xf32>
    %2023 = vector.broadcast %2022 : vector<1x128xf32> to vector<24x128xf32>
    %2024 = vector.shape_cast %2021 : vector<1x128xf32> to vector<1x128xf32>
    %2025 = vector.broadcast %2024 : vector<1x128xf32> to vector<24x128xf32>
    %2026 = arith.select %17, %2023, %2025 : vector<24x128xi1>, vector<24x128xf32>
    %2027 = arith.mulf %11, %2026 : vector<24x128xf32>
    %2028 = arith.addf %2019, %2027 : vector<24x128xf32>
    %cst_591 = arith.constant -1.73205078 : f32
    %cst_592 = arith.constant 3.7320509 : f32
    %2029 = vector.broadcast %cst_591 : f32 to vector<24x128xf32>
    %2030 = arith.maximumf %2029, %2028 : vector<24x128xf32>
    %2031 = vector.broadcast %cst_592 : f32 to vector<24x128xf32>
    %2032 = arith.minimumf %2031, %2030 : vector<24x128xf32>
    %c1488 = arith.constant 1488 : index
    %c0_593 = arith.constant 0 : index
    %2033 = vector.load %arg6[%c1488, %c0_593] : memref<1536x128xf32, #tpu.memory_space<vmem>>, vector<24x128xf32>
    tpu.vector_store %arg6[%c1488, %c0_593], %2032 {strides = array<i32>} : memref<1536x128xf32, #tpu.memory_space<vmem>>, vector<24x128xf32>,
    %c378 = arith.constant 378 : index
    %c0_594 = arith.constant 0 : index
    %2034 = vector.load %arg5[%c378, %c0_594] : memref<384x128xf32, #tpu.memory_space<vmem>>, vector<1x128xf32>
    %c381 = arith.constant 381 : index
    %c0_595 = arith.constant 0 : index
    %2035 = vector.load %arg5[%c381, %c0_595] : memref<384x128xf32, #tpu.memory_space<vmem>>, vector<1x128xf32>
    %2036 = vector.shape_cast %2034 : vector<1x128xf32> to vector<1x128xf32>
    %2037 = vector.broadcast %2036 : vector<1x128xf32> to vector<24x128xf32>
    %2038 = vector.shape_cast %2035 : vector<1x128xf32> to vector<1x128xf32>
    %2039 = vector.broadcast %2038 : vector<1x128xf32> to vector<24x128xf32>
    %2040 = arith.select %17, %2037, %2039 : vector<24x128xi1>, vector<24x128xf32>
    %2041 = arith.mulf %5, %2040 : vector<24x128xf32>
    %2042 = arith.addf %14, %2041 : vector<24x128xf32>
    %c379 = arith.constant 379 : index
    %c0_596 = arith.constant 0 : index
    %2043 = vector.load %arg5[%c379, %c0_596] : memref<384x128xf32, #tpu.memory_space<vmem>>, vector<1x128xf32>
    %c382 = arith.constant 382 : index
    %c0_597 = arith.constant 0 : index
    %2044 = vector.load %arg5[%c382, %c0_597] : memref<384x128xf32, #tpu.memory_space<vmem>>, vector<1x128xf32>
    %2045 = vector.shape_cast %2043 : vector<1x128xf32> to vector<1x128xf32>
    %2046 = vector.broadcast %2045 : vector<1x128xf32> to vector<24x128xf32>
    %2047 = vector.shape_cast %2044 : vector<1x128xf32> to vector<1x128xf32>
    %2048 = vector.broadcast %2047 : vector<1x128xf32> to vector<24x128xf32>
    %2049 = arith.select %17, %2046, %2048 : vector<24x128xi1>, vector<24x128xf32>
    %2050 = arith.mulf %8, %2049 : vector<24x128xf32>
    %2051 = arith.addf %2042, %2050 : vector<24x128xf32>
    %c380 = arith.constant 380 : index
    %c0_598 = arith.constant 0 : index
    %2052 = vector.load %arg5[%c380, %c0_598] : memref<384x128xf32, #tpu.memory_space<vmem>>, vector<1x128xf32>
    %c383 = arith.constant 383 : index
    %c0_599 = arith.constant 0 : index
    %2053 = vector.load %arg5[%c383, %c0_599] : memref<384x128xf32, #tpu.memory_space<vmem>>, vector<1x128xf32>
    %2054 = vector.shape_cast %2052 : vector<1x128xf32> to vector<1x128xf32>
    %2055 = vector.broadcast %2054 : vector<1x128xf32> to vector<24x128xf32>
    %2056 = vector.shape_cast %2053 : vector<1x128xf32> to vector<1x128xf32>
    %2057 = vector.broadcast %2056 : vector<1x128xf32> to vector<24x128xf32>
    %2058 = arith.select %17, %2055, %2057 : vector<24x128xi1>, vector<24x128xf32>
    %2059 = arith.mulf %11, %2058 : vector<24x128xf32>
    %2060 = arith.addf %2051, %2059 : vector<24x128xf32>
    %cst_600 = arith.constant -1.73205078 : f32
    %cst_601 = arith.constant 3.7320509 : f32
    %2061 = vector.broadcast %cst_600 : f32 to vector<24x128xf32>
    %2062 = arith.maximumf %2061, %2060 : vector<24x128xf32>
    %2063 = vector.broadcast %cst_601 : f32 to vector<24x128xf32>
    %2064 = arith.minimumf %2063, %2062 : vector<24x128xf32>
    %c1512 = arith.constant 1512 : index
    %c0_602 = arith.constant 0 : index
    %2065 = vector.load %arg6[%c1512, %c0_602] : memref<1536x128xf32, #tpu.memory_space<vmem>>, vector<24x128xf32>
    tpu.vector_store %arg6[%c1512, %c0_602], %2064 {strides = array<i32>} : memref<1536x128xf32, #tpu.memory_space<vmem>>, vector<24x128xf32>,
    %c0_603 = arith.constant 0 : index
    %c0_604 = arith.constant 0 : index
    %2066 = vector.load %arg6[%c0_603, %c0_604] : memref<1536x128xf32, #tpu.memory_space<vmem>>, vector<1536x128xf32>
    %2067 = tpu.transpose %2066, [1, 0] : vector<1536x128xf32> -> vector<128x1536xf32>
    %c0_605 = arith.constant 0 : index
    %c0_606 = arith.constant 0 : index
    %2068 = vector.load %arg4[%c0_605, %c0_606] : memref<128x1536xf32, #tpu.memory_space<vmem>>, vector<128x1536xf32>
    tpu.vector_store %arg4[%c0_605, %c0_606], %2067 {strides = array<i32>} : memref<128x1536xf32, #tpu.memory_space<vmem>>, vector<128x1536xf32>,
    return
  }
  func.func @transform_0(%arg0: i32) -> (i32, i32) {
    %c0_i32 = arith.constant 0 : i32
    %c0_i32_0 = arith.constant 0 : i32
    return %arg0, %c0_i32 : i32, i32
  }
  func.func @transform_1(%arg0: i32) -> (i32, i32) {
    %c0_i32 = arith.constant 0 : i32
    %c0_i32_0 = arith.constant 0 : i32
    %c0_i32_1 = arith.constant 0 : i32
    return %c0_i32, %c0_i32_0 : i32, i32
  }
  func.func @transform_2(%arg0: i32) -> (i32, i32) {
    %c0_i32 = arith.constant 0 : i32
    %c0_i32_0 = arith.constant 0 : i32
    %c0_i32_1 = arith.constant 0 : i32
    return %c0_i32, %c0_i32_0 : i32, i32
  }
  func.func @transform_3(%arg0: i32) -> (i32, i32) {
    %c0_i32 = arith.constant 0 : i32
    %c0_i32_0 = arith.constant 0 : i32
    return %arg0, %c0_i32 : i32, i32
  }
}

module attributes {stable_mosaic.version = 11 : i64} {
  func.func @_linear_clamp_colmajor_kernel(%arg0: i32, %arg1: memref<3x4096xf32, #tpu.memory_space<vmem>>, %arg2: memref<12x3xf32, #tpu.memory_space<vmem>>, %arg3: memref<12x1xf32, #tpu.memory_space<vmem>>, %arg4: memref<12x4096xf32, #tpu.memory_space<vmem>>) attributes {dimension_semantics = [#tpu.dimension_semantics<parallel>], iteration_bounds = array<i64: 1>, scalar_prefetch = 0 : i64, scratch_operands = 0 : i64, tpu.core_type = #tpu.core_type<tc>, window_params = [{transform_indices = @transform_0, window_bounds = array<i64: 3, 4096>}, {pipeline_mode = #tpu.pipeline_mode<synchronous>, transform_indices = @transform_1, window_bounds = array<i64: 12, 3>}, {pipeline_mode = #tpu.pipeline_mode<synchronous>, transform_indices = @transform_2, window_bounds = array<i64: 12, 1>}, {transform_indices = @transform_3, window_bounds = array<i64: 12, 4096>}]} {
    %c0 = arith.constant 0 : index
    %c0_0 = arith.constant 0 : index
    %0 = vector.load %arg1[%c0, %c0_0] : memref<3x4096xf32, #tpu.memory_space<vmem>>, vector<3x4096xf32>
    %c0_1 = arith.constant 0 : index
    %c0_2 = arith.constant 0 : index
    %1 = vector.load %arg2[%c0_1, %c0_2] : memref<12x3xf32, #tpu.memory_space<vmem>>, vector<12x3xf32>
    %c0_3 = arith.constant 0 : index
    %c0_4 = arith.constant 0 : index
    %2 = vector.load %arg3[%c0_3, %c0_4] : memref<12x1xf32, #tpu.memory_space<vmem>>, vector<12x1xf32>
    %3 = vector.extract_strided_slice %1 {offsets = [0, 0], sizes = [12, 1], strides = [1, 1]} : vector<12x3xf32> to vector<12x1xf32>
    %4 = vector.extract_strided_slice %0 {offsets = [0, 0], sizes = [1, 4096], strides = [1, 1]} : vector<3x4096xf32> to vector<1x4096xf32>
    %5 = vector.broadcast %3 : vector<12x1xf32> to vector<12x4096xf32>
    %6 = vector.broadcast %4 : vector<1x4096xf32> to vector<12x4096xf32>
    %7 = arith.mulf %5, %6 : vector<12x4096xf32>
    %8 = vector.extract_strided_slice %1 {offsets = [0, 1], sizes = [12, 1], strides = [1, 1]} : vector<12x3xf32> to vector<12x1xf32>
    %9 = vector.extract_strided_slice %0 {offsets = [1, 0], sizes = [1, 4096], strides = [1, 1]} : vector<3x4096xf32> to vector<1x4096xf32>
    %10 = vector.broadcast %8 : vector<12x1xf32> to vector<12x4096xf32>
    %11 = vector.broadcast %9 : vector<1x4096xf32> to vector<12x4096xf32>
    %12 = arith.mulf %10, %11 : vector<12x4096xf32>
    %13 = arith.addf %7, %12 : vector<12x4096xf32>
    %14 = vector.extract_strided_slice %1 {offsets = [0, 2], sizes = [12, 1], strides = [1, 1]} : vector<12x3xf32> to vector<12x1xf32>
    %15 = vector.extract_strided_slice %0 {offsets = [2, 0], sizes = [1, 4096], strides = [1, 1]} : vector<3x4096xf32> to vector<1x4096xf32>
    %16 = vector.broadcast %14 : vector<12x1xf32> to vector<12x4096xf32>
    %17 = vector.broadcast %15 : vector<1x4096xf32> to vector<12x4096xf32>
    %18 = arith.mulf %16, %17 : vector<12x4096xf32>
    %19 = arith.addf %13, %18 : vector<12x4096xf32>
    %20 = vector.broadcast %2 : vector<12x1xf32> to vector<12x4096xf32>
    %21 = arith.addf %19, %20 : vector<12x4096xf32>
    %cst = arith.constant -1.73205078 : f32
    %cst_5 = arith.constant 3.7320509 : f32
    %22 = vector.broadcast %cst : f32 to vector<12x4096xf32>
    %23 = arith.maximumf %22, %21 : vector<12x4096xf32>
    %24 = vector.broadcast %cst_5 : f32 to vector<12x4096xf32>
    %25 = arith.minimumf %24, %23 : vector<12x4096xf32>
    %c0_6 = arith.constant 0 : index
    %c0_7 = arith.constant 0 : index
    %26 = vector.load %arg4[%c0_6, %c0_7] : memref<12x4096xf32, #tpu.memory_space<vmem>>, vector<12x4096xf32>
    tpu.vector_store %arg4[%c0_6, %c0_7], %25 {strides = array<i32>} : memref<12x4096xf32, #tpu.memory_space<vmem>>, vector<12x4096xf32>,
    return
  }
  func.func @transform_0(%arg0: i32) -> (i32, i32) {
    %c0_i32 = arith.constant 0 : i32
    %c0_i32_0 = arith.constant 0 : i32
    return %c0_i32, %arg0 : i32, i32
  }
  func.func @transform_1(%arg0: i32) -> (i32, i32) {
    %c0_i32 = arith.constant 0 : i32
    %c0_i32_0 = arith.constant 0 : i32
    %c0_i32_1 = arith.constant 0 : i32
    return %c0_i32, %c0_i32_0 : i32, i32
  }
  func.func @transform_2(%arg0: i32) -> (i32, i32) {
    %c0_i32 = arith.constant 0 : i32
    %c0_i32_0 = arith.constant 0 : i32
    %c0_i32_1 = arith.constant 0 : i32
    return %c0_i32, %c0_i32_0 : i32, i32
  }
  func.func @transform_3(%arg0: i32) -> (i32, i32) {
    %c0_i32 = arith.constant 0 : i32
    %c0_i32_0 = arith.constant 0 : i32
    return %c0_i32, %arg0 : i32, i32
  }
}

</mosaic_0001>

<llo_original>
// kernel: tpu_custom_call.1
$region0: #{tpu_custom_call.1}
  #allocation0 [shape = 'u32[]', space=smem, size = 0x4, offset = 0x4, fixed_abs, tag = 'smem constant byte address 0x4 - core index']
  #allocation1 [shape = 'u32[72,128]{1,0:T(1,128)}', space=vmem, size = 0x9000, scoped, tag = 'internal scratch']
  #allocation2 [shape = 'f32[384,128]{1,0:T(8,128)}', space=vmem, size = 0x30000, scoped, tag = 'scratch operand']
  #allocation3 [shape = 'f32[1536,128]{1,0:T(8,128)}', space=vmem, size = 0xc0000, scoped, tag = 'scratch operand']
  %s0 = inlined_call_operand.hbm [shape: f32[128,384], index: 0, kind: input, shape index: {}]
  %s1 = inlined_call_operand.vmem [shape: f32[24,3], index: 1, kind: input, shape index: {}]
  %s2 = inlined_call_operand.vmem [shape: f32[24,1], index: 2, kind: input, shape index: {}]
  %s3 = inlined_call_operand.hbm [shape: f32[128,1536], index: 3, kind: output, shape index: {}]
  %s4 = sld [smem:[#allocation0]]
  $region26: #{tpu_custom_call.1} parent=0
    _
  %s6 = ssub.s32 1, %s4
  %s7 = scalar_select 0, %s6, %s4
  $region1: #{tpu_custom_call.1} parent=0
    #allocation4 [shape = 'u8[196608]{0}', space=vmem, size = 0x30000, scoped, tag = 'input window, operand 0, single buffered']
    #allocation5 [shape = 's32[1]{0}', space=sflag, size = 0x4, scoped, tag = 'scoped memory for tpu_custom_call.1']
    #allocation6 [shape = 's32[1]{0}', space=sflag, size = 0x4, scoped, tag = 'scoped memory for tpu_custom_call.1']
    #allocation7 [shape = 'u8[786432]{0}', space=vmem, size = 0xc0000, scoped, tag = 'output window, operand 0, single buffered']
    %8 = vsyncpa [#allocation5], 0
    %9 = vsyncpa [#allocation6], 0
    // Predicated region
    $region2: #{tpu_custom_call.1} parent=1 // pred_check
      _
    $region3: #{tpu_custom_call.1} parent=1 // pred_check_branch
      %11 = sbr.rel (0) target = $region5
    $region4: #{tpu_custom_call.1} parent=1 // pred_region
      %13 = vsyncadd [#allocation5], 0
      %s14 = sshll.u32 %s0, 4
      %s15 = int_to_ptr.hbm [resolvable:$true] %s14
      %s16 = sshll.u32 [#allocation4], 4
      %s17 = int_to_ptr.vmem [resolvable:$true] %s16
      %22 = dma.hbm_to_vmem [thread:$0]  %s15, 6144, %s17, [#allocation5], 384, 384, 24
    $region5: #{tpu_custom_call.1} parent=1 // pred_fallthru
      _
    // Predicated region
    $region6: #{tpu_custom_call.1} parent=1 // pred_check
      _
    $region7: #{tpu_custom_call.1} parent=1 // pred_check_branch
      %24 = sbr.rel (0) target = $region9
    $region8: #{tpu_custom_call.1} parent=1 // pred_region
      _
    $region9: #{tpu_custom_call.1} parent=1 // pred_fallthru
      _
    // Predicated region
    $region10: #{tpu_custom_call.1} parent=1 // pred_check
      _
    $region11: #{tpu_custom_call.1} parent=1 // pred_check_branch
      %26 = sbr.rel (0) target = $region13
    $region12: #{tpu_custom_call.1} parent=1 // pred_region
      _
    $region13: #{tpu_custom_call.1} parent=1 // pred_fallthru
      _
    // Predicated region
    $region14: #{tpu_custom_call.1} parent=1 // pred_check
      _
    $region15: #{tpu_custom_call.1} parent=1 // pred_check_branch
      %28 = sbr.rel (0) target = $region17
    $region16: #{tpu_custom_call.1} parent=1 // pred_region
      %30 = dma.done [#allocation5], 6144
    $region17: #{tpu_custom_call.1} parent=1 // pred_fallthru
      _
    %v31 = vld [vmem:[#allocation4] sm:$0xff]
    %v32 = vld [vmem:[#allocation4 + $0x8] sm:$0xff]
    %v33 = vld [vmem:[#allocation4 + $0x10] sm:$0xff]
    %v34 = vld [vmem:[#allocation4 + $0x18] sm:$0xff]
    %v35 = vld [vmem:[#allocation4 + $0x20] sm:$0xff]
    %v36 = vld [vmem:[#allocation4 + $0x28] sm:$0xff]
    %v37 = vld [vmem:[#allocation4 + $0x30] sm:$0xff]
    %v38 = vld [vmem:[#allocation4 + $0x38] sm:$0xff]
    %v39 = vld [vmem:[#allocation4 + $0x40] sm:$0xff]
    %v40 = vld [vmem:[#allocation4 + $0x48] sm:$0xff]
    %v41 = vld [vmem:[#allocation4 + $0x50] sm:$0xff]
    %v42 = vld [vmem:[#allocation4 + $0x58] sm:$0xff]
    %v43 = vld [vmem:[#allocation4 + $0x60] sm:$0xff]
    %v44 = vld [vmem:[#allocation4 + $0x68] sm:$0xff]
    %v45 = vld [vmem:[#allocation4 + $0x70] sm:$0xff]
    %v46 = vld [vmem:[#allocation4 + $0x78] sm:$0xff]
    %v47 = vld [vmem:[#allocation4 + $0x80] sm:$0xff]
    %v48 = vld [vmem:[#allocation4 + $0x88] sm:$0xff]
    %v49 = vld [vmem:[#allocation4 + $0x90] sm:$0xff]
    %v50 = vld [vmem:[#allocation4 + $0x98] sm:$0xff]
    %v51 = vld [vmem:[#allocation4 + $0xa0] sm:$0xff]
    %v52 = vld [vmem:[#allocation4 + $0xa8] sm:$0xff]
    %v53 = vld [vmem:[#allocation4 + $0xb0] sm:$0xff]
    %v54 = vld [vmem:[#allocation4 + $0xb8] sm:$0xff]
    %v55 = vld [vmem:[#allocation4 + $0xc0] sm:$0xff]
    %v56 = vld [vmem:[#allocation4 + $0xc8] sm:$0xff]
    %v57 = vld [vmem:[#allocation4 + $0xd0] sm:$0xff]
    %v58 = vld [vmem:[#allocation4 + $0xd8] sm:$0xff]
    %v59 = vld [vmem:[#allocation4 + $0xe0] sm:$0xff]
    %v60 = vld [vmem:[#allocation4 + $0xe8] sm:$0xff]
    %v61 = vld [vmem:[#allocation4 + $0xf0] sm:$0xff]
    %v62 = vld [vmem:[#allocation4 + $0xf8] sm:$0xff]
    %v63 = vld [vmem:[#allocation4 + $0x100] sm:$0xff]
    %v64 = vld [vmem:[#allocation4 + $0x108] sm:$0xff]
    %v65 = vld [vmem:[#allocation4 + $0x110] sm:$0xff]
    %v66 = vld [vmem:[#allocation4 + $0x118] sm:$0xff]
    %v67 = vld [vmem:[#allocation4 + $0x120] sm:$0xff]
    %v68 = vld [vmem:[#allocation4 + $0x128] sm:$0xff]
    %v69 = vld [vmem:[#allocation4 + $0x130] sm:$0xff]
    %v70 = vld [vmem:[#allocation4 + $0x138] sm:$0xff]
    %v71 = vld [vmem:[#allocation4 + $0x140] sm:$0xff]
    %v72 = vld [vmem:[#allocation4 + $0x148] sm:$0xff]
    %v73 = vld [vmem:[#allocation4 + $0x150] sm:$0xff]
    %v74 = vld [vmem:[#allocation4 + $0x158] sm:$0xff]
    %v75 = vld [vmem:[#allocation4 + $0x160] sm:$0xff]
    %v76 = vld [vmem:[#allocation4 + $0x168] sm:$0xff]
    %v77 = vld [vmem:[#allocation4 + $0x170] sm:$0xff]
    %v78 = vld [vmem:[#allocation4 + $0x178] sm:$0xff]
    %79 = vxpose.xlu0.b32.start [1/16] %v31, 128
    %80 = vxpose.xlu0.b32.cont [2/16] %v34, 128
    %81 = vxpose.xlu0.b32.cont [3/16] %v37, 128
    %82 = vxpose.xlu0.b32.cont [4/16] %v40, 128
    %83 = vxpose.xlu0.b32.cont [5/16] %v43, 128
    %84 = vxpose.xlu0.b32.cont [6/16] %v46, 128
    %85 = vxpose.xlu0.b32.cont [7/16] %v49, 128
    %86 = vxpose.xlu0.b32.cont [8/16] %v52, 128
    %87 = vxpose.xlu0.b32.cont [9/16] %v55, 128
    %88 = vxpose.xlu0.b32.cont [10/16] %v58, 128
    %89 = vxpose.xlu0.b32.cont [11/16] %v61, 128
    %90 = vxpose.xlu0.b32.cont [12/16] %v64, 128
    %91 = vxpose.xlu0.b32.cont [13/16] %v67, 128
    %92 = vxpose.xlu0.b32.cont [14/16] %v70, 128
    %93 = vxpose.xlu0.b32.cont [15/16] %v73, 128
    %94 = vxpose.xlu0.b32.end [16/16] %v76, 128
    %v95 = vpop.trf.xlu0
    %v96 = vpop.trf.xlu0
    %v97 = vpop.trf.xlu0
    %v98 = vpop.trf.xlu0
    %v99 = vpop.trf.xlu0
    %v100 = vpop.trf.xlu0
    %v101 = vpop.trf.xlu0
    %v102 = vpop.trf.xlu0
    %v103 = vpop.trf.xlu0
    %v104 = vpop.trf.xlu0
    %v105 = vpop.trf.xlu0
    %v106 = vpop.trf.xlu0
    %v107 = vpop.trf.xlu0
    %v108 = vpop.trf.xlu0
    %v109 = vpop.trf.xlu0
    %v110 = vpop.trf.xlu0
    %111 = vxpose.xlu0.b32.start [1/16] %v32, 128
    %112 = vxpose.xlu0.b32.cont [2/16] %v35, 128
    %113 = vxpose.xlu0.b32.cont [3/16] %v38, 128
    %114 = vxpose.xlu0.b32.cont [4/16] %v41, 128
    %115 = vxpose.xlu0.b32.cont [5/16] %v44, 128
    %116 = vxpose.xlu0.b32.cont [6/16] %v47, 128
    %117 = vxpose.xlu0.b32.cont [7/16] %v50, 128
    %118 = vxpose.xlu0.b32.cont [8/16] %v53, 128
    %119 = vxpose.xlu0.b32.cont [9/16] %v56, 128
    %120 = vxpose.xlu0.b32.cont [10/16] %v59, 128
    %121 = vxpose.xlu0.b32.cont [11/16] %v62, 128
    %122 = vxpose.xlu0.b32.cont [12/16] %v65, 128
    %123 = vxpose.xlu0.b32.cont [13/16] %v68, 128
    %124 = vxpose.xlu0.b32.cont [14/16] %v71, 128
    %125 = vxpose.xlu0.b32.cont [15/16] %v74, 128
    %126 = vxpose.xlu0.b32.end [16/16] %v77, 128
    %v127 = vpop.trf.xlu0
    %v128 = vpop.trf.xlu0
    %v129 = vpop.trf.xlu0
    %v130 = vpop.trf.xlu0
    %v131 = vpop.trf.xlu0
    %v132 = vpop.trf.xlu0
    %v133 = vpop.trf.xlu0
    %v134 = vpop.trf.xlu0
    %v135 = vpop.trf.xlu0
    %v136 = vpop.trf.xlu0
    %v137 = vpop.trf.xlu0
    %v138 = vpop.trf.xlu0
    %v139 = vpop.trf.xlu0
    %v140 = vpop.trf.xlu0
    %v141 = vpop.trf.xlu0
    %v142 = vpop.trf.xlu0
    %143 = vxpose.xlu0.b32.start [1/16] %v33, 128
    %144 = vxpose.xlu0.b32.cont [2/16] %v36, 128
    %145 = vxpose.xlu0.b32.cont [3/16] %v39, 128
    %146 = vxpose.xlu0.b32.cont [4/16] %v42, 128
    %147 = vxpose.xlu0.b32.cont [5/16] %v45, 128
    %148 = vxpose.xlu0.b32.cont [6/16] %v48, 128
    %149 = vxpose.xlu0.b32.cont [7/16] %v51, 128
    %150 = vxpose.xlu0.b32.cont [8/16] %v54, 128
    %151 = vxpose.xlu0.b32.cont [9/16] %v57, 128
    %152 = vxpose.xlu0.b32.cont [10/16] %v60, 128
    %153 = vxpose.xlu0.b32.cont [11/16] %v63, 128
    %154 = vxpose.xlu0.b32.cont [12/16] %v66, 128
    %155 = vxpose.xlu0.b32.cont [13/16] %v69, 128
    %156 = vxpose.xlu0.b32.cont [14/16] %v72, 128
    %157 = vxpose.xlu0.b32.cont [15/16] %v75, 128
    %158 = vxpose.xlu0.b32.end [16/16] %v78, 128
    %v159 = vpop.trf.xlu0
    %v160 = vpop.trf.xlu0
    %v161 = vpop.trf.xlu0
    %v162 = vpop.trf.xlu0
    %v163 = vpop.trf.xlu0
    %v164 = vpop.trf.xlu0
    %v165 = vpop.trf.xlu0
    %v166 = vpop.trf.xlu0
    %v167 = vpop.trf.xlu0
    %v168 = vpop.trf.xlu0
    %v169 = vpop.trf.xlu0
    %v170 = vpop.trf.xlu0
    %v171 = vpop.trf.xlu0
    %v172 = vpop.trf.xlu0
    %v173 = vpop.trf.xlu0
    %v174 = vpop.trf.xlu0
    %175 = vst [vmem:[#allocation2] sm:$0xff] %v95
    %176 = vst [vmem:[#allocation2 + $0x8] sm:$0xff] %v96
    %177 = vst [vmem:[#allocation2 + $0x10] sm:$0xff] %v97
    %178 = vst [vmem:[#allocation2 + $0x18] sm:$0xff] %v98
    %179 = vst [vmem:[#allocation2 + $0x20] sm:$0xff] %v99
    %180 = vst [vmem:[#allocation2 + $0x28] sm:$0xff] %v100
    %181 = vst [vmem:[#allocation2 + $0x30] sm:$0xff] %v101
    %182 = vst [vmem:[#allocation2 + $0x38] sm:$0xff] %v102
    %183 = vst [vmem:[#allocation2 + $0x40] sm:$0xff] %v103
    %184 = vst [vmem:[#allocation2 + $0x48] sm:$0xff] %v104
    %185 = vst [vmem:[#allocation2 + $0x50] sm:$0xff] %v105
    %186 = vst [vmem:[#allocation2 + $0x58] sm:$0xff] %v106
    %187 = vst [vmem:[#allocation2 + $0x60] sm:$0xff] %v107
    %188 = vst [vmem:[#allocation2 + $0x68] sm:$0xff] %v108
    %189 = vst [vmem:[#allocation2 + $0x70] sm:$0xff] %v109
    %190 = vst [vmem:[#allocation2 + $0x78] sm:$0xff] %v110
    %191 = vst [vmem:[#allocation2 + $0x80] sm:$0xff] %v127
    %192 = vst [vmem:[#allocation2 + $0x88] sm:$0xff] %v128
    %193 = vst [vmem:[#allocation2 + $0x90] sm:$0xff] %v129
    %194 = vst [vmem:[#allocation2 + $0x98] sm:$0xff] %v130
    %195 = vst [vmem:[#allocation2 + $0xa0] sm:$0xff] %v131
    %196 = vst [vmem:[#allocation2 + $0xa8] sm:$0xff] %v132
    %197 = vst [vmem:[#allocation2 + $0xb0] sm:$0xff] %v133
    %198 = vst [vmem:[#allocation2 + $0xb8] sm:$0xff] %v134
    %199 = vst [vmem:[#allocation2 + $0xc0] sm:$0xff] %v135
    %200 = vst [vmem:[#allocation2 + $0xc8] sm:$0xff] %v136
    %201 = vst [vmem:[#allocation2 + $0xd0] sm:$0xff] %v137
    %202 = vst [vmem:[#allocation2 + $0xd8] sm:$0xff] %v138
    %203 = vst [vmem:[#allocation2 + $0xe0] sm:$0xff] %v139
    %204 = vst [vmem:[#allocation2 + $0xe8] sm:$0xff] %v140
    %205 = vst [vmem:[#allocation2 + $0xf0] sm:$0xff] %v141
    %206 = vst [vmem:[#allocation2 + $0xf8] sm:$0xff] %v142
    %207 = vst [vmem:[#allocation2 + $0x100] sm:$0xff] %v159
    %208 = vst [vmem:[#allocation2 + $0x108] sm:$0xff] %v160
    %209 = vst [vmem:[#allocation2 + $0x110] sm:$0xff] %v161
    %210 = vst [vmem:[#allocation2 + $0x118] sm:$0xff] %v162
    %211 = vst [vmem:[#allocation2 + $0x120] sm:$0xff] %v163
    %212 = vst [vmem:[#allocation2 + $0x128] sm:$0xff] %v164
    %213 = vst [vmem:[#allocation2 + $0x130] sm:$0xff] %v165
    %214 = vst [vmem:[#allocation2 + $0x138] sm:$0xff] %v166
    %215 = vst [vmem:[#allocation2 + $0x140] sm:$0xff] %v167
    %216 = vst [vmem:[#allocation2 + $0x148] sm:$0xff] %v168
    %217 = vst [vmem:[#allocation2 + $0x150] sm:$0xff] %v169
    %218 = vst [vmem:[#allocation2 + $0x158] sm:$0xff] %v170
    %219 = vst [vmem:[#allocation2 + $0x160] sm:$0xff] %v171
    %220 = vst [vmem:[#allocation2 + $0x168] sm:$0xff] %v172
    %221 = vst [vmem:[#allocation2 + $0x170] sm:$0xff] %v173
    %222 = vst [vmem:[#allocation2 + $0x178] sm:$0xff] %v174
    %v223 = vld [vmem:[%s1] sm:$0xff]
    %v224 = vld [vmem:[%s1 + $0x8] sm:$0xff]
    %v225 = vld [vmem:[%s1 + $0x10] sm:$0xff]
    %227 = vset.pattern.permute.xlu0 0
    %228 = vperm.xlu0 %227, %v223
    %v229 = vpop.permute.xlu0 %228
    %232 = vset.pattern.permute.xlu0 0
    %233 = vperm.xlu0 %232, %v224
    %v234 = vpop.permute.xlu0 %233
    %237 = vset.pattern.permute.xlu0 0
    %238 = vperm.xlu0 %237, %v225
    %v239 = vpop.permute.xlu0 %238
    %241 = vset.pattern.permute.xlu0 1
    %242 = vperm.xlu0 %241, %v223
    %v243 = vpop.permute.xlu0 %242
    %245 = vset.pattern.permute.xlu0 1
    %246 = vperm.xlu0 %245, %v224
    %v247 = vpop.permute.xlu0 %246
    %249 = vset.pattern.permute.xlu0 1
    %250 = vperm.xlu0 %249, %v225
    %v251 = vpop.permute.xlu0 %250
    %253 = vset.pattern.permute.xlu0 2
    %254 = vperm.xlu0 %253, %v223
    %v255 = vpop.permute.xlu0 %254
    %257 = vset.pattern.permute.xlu0 2
    %258 = vperm.xlu0 %257, %v224
    %v259 = vpop.permute.xlu0 %258
    %261 = vset.pattern.permute.xlu0 2
    %262 = vperm.xlu0 %261, %v225
    %v263 = vpop.permute.xlu0 %262
    %v265 = vld [vmem:[%s2] sm:$0xff]
    %v266 = vld [vmem:[%s2 + $0x8] sm:$0xff]
    %v267 = vld [vmem:[%s2 + $0x10] sm:$0xff]
    %269 = vset.pattern.permute.xlu0 0
    %270 = vperm.xlu0 %269, %v265
    %v271 = vpop.permute.xlu0 %270
    %274 = vset.pattern.permute.xlu0 0
    %275 = vperm.xlu0 %274, %v266
    %v276 = vpop.permute.xlu0 %275
    %279 = vset.pattern.permute.xlu0 0
    %280 = vperm.xlu0 %279, %v267
    %v281 = vpop.permute.xlu0 %280
    %v283 = vlaneseq
    %v284 = vshrl.u32 %v283, 7
    %v285 = vadd.s32 %v284, 8
    %v286 = vadd.s32 %v284, 16
    %vm287 = vcmp.lt.s32.totalorder %v284, 12
    %vm288 = vcmp.lt.s32.totalorder %v285, 12
    %vm289 = vcmp.lt.s32.totalorder %v286, 12
    %v290 = vld [vmem:[#allocation2] sm:$0x1]
    %v291 = vld [vmem:[#allocation2 + $0x3] sm:$0x1]
    %v292 = vperm.slane %v290, 0
    %v293 = vperm.slane %v291, 0
    %v294 = vsel %vm287, %v292, %v293
    %v295 = vsel %vm288, %v292, %v293
    %v296 = vsel %vm289, %v292, %v293
    %v297 = vmul.f32 %v229, %v294
    %v298 = vmul.f32 %v234, %v295
    %v299 = vmul.f32 %v239, %v296
    %v300 = vadd.f32 %v271, %v297
    %v301 = vadd.f32 %v276, %v298
    %v302 = vadd.f32 %v281, %v299
    %v303 = vld [vmem:[#allocation2 + $0x1] sm:$0x1]
    %v304 = vld [vmem:[#allocation2 + $0x4] sm:$0x1]
    %v305 = vperm.slane %v303, 0
    %v306 = vperm.slane %v304, 0
    %v307 = vsel %vm287, %v305, %v306
    %v308 = vsel %vm288, %v305, %v306
    %v309 = vsel %vm289, %v305, %v306
    %v310 = vmul.f32 %v243, %v307
    %v311 = vmul.f32 %v247, %v308
    %v312 = vmul.f32 %v251, %v309
    %v313 = vadd.f32 %v300, %v310
    %v314 = vadd.f32 %v301, %v311
    %v315 = vadd.f32 %v302, %v312
    %v316 = vld [vmem:[#allocation2 + $0x2] sm:$0x1]
    %v317 = vld [vmem:[#allocation2 + $0x5] sm:$0x1]
    %v318 = vperm.slane %v316, 0
    %v319 = vperm.slane %v317, 0
    %v320 = vsel %vm287, %v318, %v319
    %v321 = vsel %vm288, %v318, %v319
    %v322 = vsel %vm289, %v318, %v319
    %v323 = vmul.f32 %v255, %v320
    %v324 = vmul.f32 %v259, %v321
    %v325 = vmul.f32 %v263, %v322
    %v326 = vadd.f32 %v313, %v323
    %v327 = vadd.f32 %v314, %v324
    %v328 = vadd.f32 %v315, %v325
    %v329 = vmax.f32 %v326, -1.7320508
    %v330 = vmax.f32 %v327, -1.7320508
    %v331 = vmax.f32 %v328, -1.7320508
    %v332 = vmin.f32 %v329, 3.732051
    %v333 = vmin.f32 %v330, 3.732051
    %v334 = vmin.f32 %v331, 3.732051
    %335 = vst [vmem:[#allocation3] sm:$0xff] %v332
    %336 = vst [vmem:[#allocation3 + $0x8] sm:$0xff] %v333
    %337 = vst [vmem:[#allocation3 + $0x10] sm:$0xff] %v334
    %v338 = vld [vmem:[#allocation2 + $0x6] sm:$0x1]
    %v339 = vld [vmem:[#allocation2 + $0x9] sm:$0x1]
    %v340 = vperm.slane %v338, 0
    %v341 = vperm.slane %v339, 0
    %v342 = vsel %vm287, %v340, %v341
    %v343 = vsel %vm288, %v340, %v341
    %v344 = vsel %vm289, %v340, %v341
    %v345 = vmul.f32 %v229, %v342
    %v346 = vmul.f32 %v234, %v343
    %v347 = vmul.f32 %v239, %v344
    %v348 = vadd.f32 %v271, %v345
    %v349 = vadd.f32 %v276, %v346
    %v350 = vadd.f32 %v281, %v347
    %v351 = vld [vmem:[#allocation2 + $0x7] sm:$0x1]
    %v352 = vld [vmem:[#allocation2 + $0xa] sm:$0x1]
    %v353 = vperm.slane %v351, 0
    %v354 = vperm.slane %v352, 0
    %v355 = vsel %vm287, %v353, %v354
    %v356 = vsel %vm288, %v353, %v354
    %v357 = vsel %vm289, %v353, %v354
    %v358 = vmul.f32 %v243, %v355
    %v359 = vmul.f32 %v247, %v356
    %v360 = vmul.f32 %v251, %v357
    %v361 = vadd.f32 %v348, %v358
    %v362 = vadd.f32 %v349, %v359
    %v363 = vadd.f32 %v350, %v360
    %v364 = vld [vmem:[#allocation2 + $0x8] sm:$0x1]
    %v365 = vld [vmem:[#allocation2 + $0xb] sm:$0x1]
    %v366 = vperm.slane %v364, 0
    %v367 = vperm.slane %v365, 0
    %v368 = vsel %vm287, %v366, %v367
    %v369 = vsel %vm288, %v366, %v367
    %v370 = vsel %vm289, %v366, %v367
    %v371 = vmul.f32 %v255, %v368
    %v372 = vmul.f32 %v259, %v369
    %v373 = vmul.f32 %v263, %v370
    %v374 = vadd.f32 %v361, %v371
    %v375 = vadd.f32 %v362, %v372
    %v376 = vadd.f32 %v363, %v373
    %v377 = vmax.f32 %v374, -1.7320508
    %v378 = vmax.f32 %v375, -1.7320508
    %v379 = vmax.f32 %v376, -1.7320508
    %v380 = vmin.f32 %v377, 3.732051
    %v381 = vmin.f32 %v378, 3.732051
    %v382 = vmin.f32 %v379, 3.732051
    %383 = vst [vmem:[#allocation3 + $0x18] sm:$0xff] %v380
    %384 = vst [vmem:[#allocation3 + $0x20] sm:$0xff] %v381
    %385 = vst [vmem:[#allocation3 + $0x28] sm:$0xff] %v382
    %v386 = vld [vmem:[#allocation2 + $0xc] sm:$0x1]
    %v387 = vld [vmem:[#allocation2 + $0xf] sm:$0x1]
    %v388 = vperm.slane %v386, 0
    %v389 = vperm.slane %v387, 0
    %v390 = vsel %vm287, %v388, %v389
    %v391 = vsel %vm288, %v388, %v389
    %v392 = vsel %vm289, %v388, %v389
    %v393 = vmul.f32 %v229, %v390
    %v394 = vmul.f32 %v234, %v391
    %v395 = vmul.f32 %v239, %v392
    %v396 = vadd.f32 %v271, %v393
    %v397 = vadd.f32 %v276, %v394
    %v398 = vadd.f32 %v281, %v395
    %v399 = vld [vmem:[#allocation2 + $0xd] sm:$0x1]
    %v400 = vld [vmem:[#allocation2 + $0x10] sm:$0x1]
    %v401 = vperm.slane %v399, 0
    %v402 = vperm.slane %v400, 0
    %v403 = vsel %vm287, %v401, %v402
    %v404 = vsel %vm288, %v401, %v402
    %v405 = vsel %vm289, %v401, %v402
    %v406 = vmul.f32 %v243, %v403
    %v407 = vmul.f32 %v247, %v404
    %v408 = vmul.f32 %v251, %v405
    %v409 = vadd.f32 %v396, %v406
    %v410 = vadd.f32 %v397, %v407
    %v411 = vadd.f32 %v398, %v408
    %v412 = vld [vmem:[#allocation2 + $0xe] sm:$0x1]
    %v413 = vld [vmem:[#allocation2 + $0x11] sm:$0x1]
    %v414 = vperm.slane %v412, 0
    %v415 = vperm.slane %v413, 0
    %v416 = vsel %vm287, %v414, %v415
    %v417 = vsel %vm288, %v414, %v415
    %v418 = vsel %vm289, %v414, %v415
    %v419 = vmul.f32 %v255, %v416
    %v420 = vmul.f32 %v259, %v417
    %v421 = vmul.f32 %v263, %v418
    %v422 = vadd.f32 %v409, %v419
    %v423 = vadd.f32 %v410, %v420
    %v424 = vadd.f32 %v411, %v421
    %v425 = vmax.f32 %v422, -1.7320508
    %v426 = vmax.f32 %v423, -1.7320508
    %v427 = vmax.f32 %v424, -1.7320508
    %v428 = vmin.f32 %v425, 3.732051
    %v429 = vmin.f32 %v426, 3.732051
    %v430 = vmin.f32 %v427, 3.732051
    %431 = vst [vmem:[#allocation3 + $0x30] sm:$0xff] %v428
    %432 = vst [vmem:[#allocation3 + $0x38] sm:$0xff] %v429
    %433 = vst [vmem:[#allocation3 + $0x40] sm:$0xff] %v430
    %v434 = vld [vmem:[#allocation2 + $0x12] sm:$0x1]
    %v435 = vld [vmem:[#allocation2 + $0x15] sm:$0x1]
    %v436 = vperm.slane %v434, 0
    %v437 = vperm.slane %v435, 0
    %v438 = vsel %vm287, %v436, %v437
    %v439 = vsel %vm288, %v436, %v437
    %v440 = vsel %vm289, %v436, %v437
    %v441 = vmul.f32 %v229, %v438
    %v442 = vmul.f32 %v234, %v439
    %v443 = vmul.f32 %v239, %v440
    %v444 = vadd.f32 %v271, %v441
    %v445 = vadd.f32 %v276, %v442
    %v446 = vadd.f32 %v281, %v443
    %v447 = vld [vmem:[#allocation2 + $0x13] sm:$0x1]
    %v448 = vld [vmem:[#allocation2 + $0x16] sm:$0x1]
    %v449 = vperm.slane %v447, 0
    %v450 = vperm.slane %v448, 0
    %v451 = vsel %vm287, %v449, %v450
    %v452 = vsel %vm288, %v449, %v450
    %v453 = vsel %vm289, %v449, %v450
    %v454 = vmul.f32 %v243, %v451
    %v455 = vmul.f32 %v247, %v452
    %v456 = vmul.f32 %v251, %v453
    %v457 = vadd.f32 %v444, %v454
    %v458 = vadd.f32 %v445, %v455
    %v459 = vadd.f32 %v446, %v456
    %v460 = vld [vmem:[#allocation2 + $0x14] sm:$0x1]
    %v461 = vld [vmem:[#allocation2 + $0x17] sm:$0x1]
    %v462 = vperm.slane %v460, 0
    %v463 = vperm.slane %v461, 0
    %v464 = vsel %vm287, %v462, %v463
    %v465 = vsel %vm288, %v462, %v463
    %v466 = vsel %vm289, %v462, %v463
    %v467 = vmul.f32 %v255, %v464
    %v468 = vmul.f32 %v259, %v465
    %v469 = vmul.f32 %v263, %v466
    %v470 = vadd.f32 %v457, %v467
    %v471 = vadd.f32 %v458, %v468
    %v472 = vadd.f32 %v459, %v469
    %v473 = vmax.f32 %v470, -1.7320508
    %v474 = vmax.f32 %v471, -1.7320508
    %v475 = vmax.f32 %v472, -1.7320508
    %v476 = vmin.f32 %v473, 3.732051
    %v477 = vmin.f32 %v474, 3.732051
    %v478 = vmin.f32 %v475, 3.732051
    %479 = vst [vmem:[#allocation3 + $0x48] sm:$0xff] %v476
    %480 = vst [vmem:[#allocation3 + $0x50] sm:$0xff] %v477
    %481 = vst [vmem:[#allocation3 + $0x58] sm:$0xff] %v478
    %v482 = vld [vmem:[#allocation2 + $0x18] sm:$0x1]
    %v483 = vld [vmem:[#allocation2 + $0x1b] sm:$0x1]
    %v484 = vperm.slane %v482, 0
    %v485 = vperm.slane %v483, 0
    %v486 = vsel %vm287, %v484, %v485
    %v487 = vsel %vm288, %v484, %v485
    %v488 = vsel %vm289, %v484, %v485
    %v489 = vmul.f32 %v229, %v486
    %v490 = vmul.f32 %v234, %v487
    %v491 = vmul.f32 %v239, %v488
    %v492 = vadd.f32 %v271, %v489
    %v493 = vadd.f32 %v276, %v490
    %v494 = vadd.f32 %v281, %v491
    %v495 = vld [vmem:[#allocation2 + $0x19] sm:$0x1]
    %v496 = vld [vmem:[#allocation2 + $0x1c] sm:$0x1]
    %v497 = vperm.slane %v495, 0
    %v498 = vperm.slane %v496, 0
    %v499 = vsel %vm287, %v497, %v498
    %v500 = vsel %vm288, %v497, %v498
    %v501 = vsel %vm289, %v497, %v498
    %v502 = vmul.f32 %v243, %v499
    %v503 = vmul.f32 %v247, %v500
    %v504 = vmul.f32 %v251, %v501
    %v505 = vadd.f32 %v492, %v502
    %v506 = vadd.f32 %v493, %v503
    %v507 = vadd.f32 %v494, %v504
    %v508 = vld [vmem:[#allocation2 + $0x1a] sm:$0x1]
    %v509 = vld [vmem:[#allocation2 + $0x1d] sm:$0x1]
    %v510 = vperm.slane %v508, 0
    %v511 = vperm.slane %v509, 0
    %v512 = vsel %vm287, %v510, %v511
    %v513 = vsel %vm288, %v510, %v511
    %v514 = vsel %vm289, %v510, %v511
    %v515 = vmul.f32 %v255, %v512
    %v516 = vmul.f32 %v259, %v513
    %v517 = vmul.f32 %v263, %v514
    %v518 = vadd.f32 %v505, %v515
    %v519 = vadd.f32 %v506, %v516
    %v520 = vadd.f32 %v507, %v517
    %v521 = vmax.f32 %v518, -1.7320508
    %v522 = vmax.f32 %v519, -1.7320508
    %v523 = vmax.f32 %v520, -1.7320508
    %v524 = vmin.f32 %v521, 3.732051
    %v525 = vmin.f32 %v522, 3.732051
    %v526 = vmin.f32 %v523, 3.732051
    %527 = vst [vmem:[#allocation3 + $0x60] sm:$0xff] %v524
    %528 = vst [vmem:[#allocation3 + $0x68] sm:$0xff] %v525
    %529 = vst [vmem:[#allocation3 + $0x70] sm:$0xff] %v526
    %v530 = vld [vmem:[#allocation2 + $0x1e] sm:$0x1]
    %v531 = vld [vmem:[#allocation2 + $0x21] sm:$0x1]
    %v532 = vperm.slane %v530, 0
    %v533 = vperm.slane %v531, 0
    %v534 = vsel %vm287, %v532, %v533
    %v535 = vsel %vm288, %v532, %v533
    %v536 = vsel %vm289, %v532, %v533
    %v537 = vmul.f32 %v229, %v534
    %v538 = vmul.f32 %v234, %v535
    %v539 = vmul.f32 %v239, %v536
    %v540 = vadd.f32 %v271, %v537
    %v541 = vadd.f32 %v276, %v538
    %v542 = vadd.f32 %v281, %v539
    %v543 = vld [vmem:[#allocation2 + $0x1f] sm:$0x1]
    %v544 = vld [vmem:[#allocation2 + $0x22] sm:$0x1]
    %v545 = vperm.slane %v543, 0
    %v546 = vperm.slane %v544, 0
    %v547 = vsel %vm287, %v545, %v546
    %v548 = vsel %vm288, %v545, %v546
    %v549 = vsel %vm289, %v545, %v546
    %v550 = vmul.f32 %v243, %v547
    %v551 = vmul.f32 %v247, %v548
    %v552 = vmul.f32 %v251, %v549
    %v553 = vadd.f32 %v540, %v550
    %v554 = vadd.f32 %v541, %v551
    %v555 = vadd.f32 %v542, %v552
    %v556 = vld [vmem:[#allocation2 + $0x20] sm:$0x1]
    %v557 = vld [vmem:[#allocation2 + $0x23] sm:$0x1]
    %v558 = vperm.slane %v556, 0
    %v559 = vperm.slane %v557, 0
    %v560 = vsel %vm287, %v558, %v559
    %v561 = vsel %vm288, %v558, %v559
    %v562 = vsel %vm289, %v558, %v559
    %v563 = vmul.f32 %v255, %v560
    %v564 = vmul.f32 %v259, %v561
    %v565 = vmul.f32 %v263, %v562
    %v566 = vadd.f32 %v553, %v563
    %v567 = vadd.f32 %v554, %v564
    %v568 = vadd.f32 %v555, %v565
    %v569 = vmax.f32 %v566, -1.7320508
    %v570 = vmax.f32 %v567, -1.7320508
    %v571 = vmax.f32 %v568, -1.7320508
    %v572 = vmin.f32 %v569, 3.732051
    %v573 = vmin.f32 %v570, 3.732051
    %v574 = vmin.f32 %v571, 3.732051
    %575 = vst [vmem:[#allocation3 + $0x78] sm:$0xff] %v572
    %576 = vst [vmem:[#allocation3 + $0x80] sm:$0xff] %v573
    %577 = vst [vmem:[#allocation3 + $0x88] sm:$0xff] %v574
    %v578 = vld [vmem:[#allocation2 + $0x24] sm:$0x1]
    %v579 = vld [vmem:[#allocation2 + $0x27] sm:$0x1]
    %v580 = vperm.slane %v578, 0
    %v581 = vperm.slane %v579, 0
    %v582 = vsel %vm287, %v580, %v581
    %v583 = vsel %vm288, %v580, %v581
    %v584 = vsel %vm289, %v580, %v581
    %v585 = vmul.f32 %v229, %v582
    %v586 = vmul.f32 %v234, %v583
    %v587 = vmul.f32 %v239, %v584
    %v588 = vadd.f32 %v271, %v585
    %v589 = vadd.f32 %v276, %v586
    %v590 = vadd.f32 %v281, %v587
    %v591 = vld [vmem:[#allocation2 + $0x25] sm:$0x1]
    %v592 = vld [vmem:[#allocation2 + $0x28] sm:$0x1]
    %v593 = vperm.slane %v591, 0
    %v594 = vperm.slane %v592, 0
    %v595 = vsel %vm287, %v593, %v594
    %v596 = vsel %vm288, %v593, %v594
    %v597 = vsel %vm289, %v593, %v594
    %v598 = vmul.f32 %v243, %v595
    %v599 = vmul.f32 %v247, %v596
    %v600 = vmul.f32 %v251, %v597
    %v601 = vadd.f32 %v588, %v598
    %v602 = vadd.f32 %v589, %v599
    %v603 = vadd.f32 %v590, %v600
    %v604 = vld [vmem:[#allocation2 + $0x26] sm:$0x1]
    %v605 = vld [vmem:[#allocation2 + $0x29] sm:$0x1]
    %v606 = vperm.slane %v604, 0
    %v607 = vperm.slane %v605, 0
    %v608 = vsel %vm287, %v606, %v607
    %v609 = vsel %vm288, %v606, %v607
    %v610 = vsel %vm289, %v606, %v607
    %v611 = vmul.f32 %v255, %v608
    %v612 = vmul.f32 %v259, %v609
    %v613 = vmul.f32 %v263, %v610
    %v614 = vadd.f32 %v601, %v611
    %v615 = vadd.f32 %v602, %v612
    %v616 = vadd.f32 %v603, %v613
    %v617 = vmax.f32 %v614, -1.7320508
    %v618 = vmax.f32 %v615, -1.7320508
    %v619 = vmax.f32 %v616, -1.7320508
    %v620 = vmin.f32 %v617, 3.732051
    %v621 = vmin.f32 %v618, 3.732051
    %v622 = vmin.f32 %v619, 3.732051
    %623 = vst [vmem:[#allocation3 + $0x90] sm:$0xff] %v620
    %624 = vst [vmem:[#allocation3 + $0x98] sm:$0xff] %v621
    %625 = vst [vmem:[#allocation3 + $0xa0] sm:$0xff] %v622
    %v626 = vld [vmem:[#allocation2 + $0x2a] sm:$0x1]
    %v627 = vld [vmem:[#allocation2 + $0x2d] sm:$0x1]
    %v628 = vperm.slane %v626, 0
    %v629 = vperm.slane %v627, 0
    %v630 = vsel %vm287, %v628, %v629
    %v631 = vsel %vm288, %v628, %v629
    %v632 = vsel %vm289, %v628, %v629
    %v633 = vmul.f32 %v229, %v630
    %v634 = vmul.f32 %v234, %v631
    %v635 = vmul.f32 %v239, %v632
    %v636 = vadd.f32 %v271, %v633
    %v637 = vadd.f32 %v276, %v634
    %v638 = vadd.f32 %v281, %v635
    %v639 = vld [vmem:[#allocation2 + $0x2b] sm:$0x1]
    %v640 = vld [vmem:[#allocation2 + $0x2e] sm:$0x1]
    %v641 = vperm.slane %v639, 0
    %v642 = vperm.slane %v640, 0
    %v643 = vsel %vm287, %v641, %v642
    %v644 = vsel %vm288, %v641, %v642
    %v645 = vsel %vm289, %v641, %v642
    %v646 = vmul.f32 %v243, %v643
    %v647 = vmul.f32 %v247, %v644
    %v648 = vmul.f32 %v251, %v645
    %v649 = vadd.f32 %v636, %v646
    %v650 = vadd.f32 %v637, %v647
    %v651 = vadd.f32 %v638, %v648
    %v652 = vld [vmem:[#allocation2 + $0x2c] sm:$0x1]
    %v653 = vld [vmem:[#allocation2 + $0x2f] sm:$0x1]
    %v654 = vperm.slane %v652, 0
    %v655 = vperm.slane %v653, 0
    %v656 = vsel %vm287, %v654, %v655
    %v657 = vsel %vm288, %v654, %v655
    %v658 = vsel %vm289, %v654, %v655
    %v659 = vmul.f32 %v255, %v656
    %v660 = vmul.f32 %v259, %v657
    %v661 = vmul.f32 %v263, %v658
    %v662 = vadd.f32 %v649, %v659
    %v663 = vadd.f32 %v650, %v660
    %v664 = vadd.f32 %v651, %v661
    %v665 = vmax.f32 %v662, -1.7320508
    %v666 = vmax.f32 %v663, -1.7320508
    %v667 = vmax.f32 %v664, -1.7320508
    %v668 = vmin.f32 %v665, 3.732051
    %v669 = vmin.f32 %v666, 3.732051
    %v670 = vmin.f32 %v667, 3.732051
    %671 = vst [vmem:[#allocation3 + $0xa8] sm:$0xff] %v668
    %672 = vst [vmem:[#allocation3 + $0xb0] sm:$0xff] %v669
    %673 = vst [vmem:[#allocation3 + $0xb8] sm:$0xff] %v670
    %v674 = vld [vmem:[#allocation2 + $0x30] sm:$0x1]
    %v675 = vld [vmem:[#allocation2 + $0x33] sm:$0x1]
    %v676 = vperm.slane %v674, 0
    %v677 = vperm.slane %v675, 0
    %v678 = vsel %vm287, %v676, %v677
    %v679 = vsel %vm288, %v676, %v677
    %v680 = vsel %vm289, %v676, %v677
    %v681 = vmul.f32 %v229, %v678
    %v682 = vmul.f32 %v234, %v679
    %v683 = vmul.f32 %v239, %v680
    %v684 = vadd.f32 %v271, %v681
    %v685 = vadd.f32 %v276, %v682
    %v686 = vadd.f32 %v281, %v683
    %v687 = vld [vmem:[#allocation2 + $0x31] sm:$0x1]
    %v688 = vld [vmem:[#allocation2 + $0x34] sm:$0x1]
    %v689 = vperm.slane %v687, 0
    %v690 = vperm.slane %v688, 0
    %v691 = vsel %vm287, %v689, %v690
    %v692 = vsel %vm288, %v689, %v690
    %v693 = vsel %vm289, %v689, %v690
    %v694 = vmul.f32 %v243, %v691
    %v695 = vmul.f32 %v247, %v692
    %v696 = vmul.f32 %v251, %v693
    %v697 = vadd.f32 %v684, %v694
    %v698 = vadd.f32 %v685, %v695
    %v699 = vadd.f32 %v686, %v696
    %v700 = vld [vmem:[#allocation2 + $0x32] sm:$0x1]
    %v701 = vld [vmem:[#allocation2 + $0x35] sm:$0x1]
    %v702 = vperm.slane %v700, 0
    %v703 = vperm.slane %v701, 0
    %v704 = vsel %vm287, %v702, %v703
    %v705 = vsel %vm288, %v702, %v703
    %v706 = vsel %vm289, %v702, %v703
    %v707 = vmul.f32 %v255, %v704
    %v708 = vmul.f32 %v259, %v705
    %v709 = vmul.f32 %v263, %v706
    %v710 = vadd.f32 %v697, %v707
    %v711 = vadd.f32 %v698, %v708
    %v712 = vadd.f32 %v699, %v709
    %v713 = vmax.f32 %v710, -1.7320508
    %v714 = vmax.f32 %v711, -1.7320508
    %v715 = vmax.f32 %v712, -1.7320508
    %v716 = vmin.f32 %v713, 3.732051
    %v717 = vmin.f32 %v714, 3.732051
    %v718 = vmin.f32 %v715, 3.732051
    %719 = vst [vmem:[#allocation3 + $0xc0] sm:$0xff] %v716
    %720 = vst [vmem:[#allocation3 + $0xc8] sm:$0xff] %v717
    %721 = vst [vmem:[#allocation3 + $0xd0] sm:$0xff] %v718
    %v722 = vld [vmem:[#allocation2 + $0x36] sm:$0x1]
    %v723 = vld [vmem:[#allocation2 + $0x39] sm:$0x1]
    %v724 = vperm.slane %v722, 0
    %v725 = vperm.slane %v723, 0
    %v726 = vsel %vm287, %v724, %v725
    %v727 = vsel %vm288, %v724, %v725
    %v728 = vsel %vm289, %v724, %v725
    %v729 = vmul.f32 %v229, %v726
    %v730 = vmul.f32 %v234, %v727
    %v731 = vmul.f32 %v239, %v728
    %v732 = vadd.f32 %v271, %v729
    %v733 = vadd.f32 %v276, %v730
    %v734 = vadd.f32 %v281, %v731
    %v735 = vld [vmem:[#allocation2 + $0x37] sm:$0x1]
    %v736 = vld [vmem:[#allocation2 + $0x3a] sm:$0x1]
    %v737 = vperm.slane %v735, 0
    %v738 = vperm.slane %v736, 0
    %v739 = vsel %vm287, %v737, %v738
    %v740 = vsel %vm288, %v737, %v738
    %v741 = vsel %vm289, %v737, %v738
    %v742 = vmul.f32 %v243, %v739
    %v743 = vmul.f32 %v247, %v740
    %v744 = vmul.f32 %v251, %v741
    %v745 = vadd.f32 %v732, %v742
    %v746 = vadd.f32 %v733, %v743
    %v747 = vadd.f32 %v734, %v744
    %v748 = vld [vmem:[#allocation2 + $0x38] sm:$0x1]
    %v749 = vld [vmem:[#allocation2 + $0x3b] sm:$0x1]
    %v750 = vperm.slane %v748, 0
    %v751 = vperm.slane %v749, 0
    %v752 = vsel %vm287, %v750, %v751
    %v753 = vsel %vm288, %v750, %v751
    %v754 = vsel %vm289, %v750, %v751
    %v755 = vmul.f32 %v255, %v752
    %v756 = vmul.f32 %v259, %v753
    %v757 = vmul.f32 %v263, %v754
    %v758 = vadd.f32 %v745, %v755
    %v759 = vadd.f32 %v746, %v756
    %v760 = vadd.f32 %v747, %v757
    %v761 = vmax.f32 %v758, -1.7320508
    %v762 = vmax.f32 %v759, -1.7320508
    %v763 = vmax.f32 %v760, -1.7320508
    %v764 = vmin.f32 %v761, 3.732051
    %v765 = vmin.f32 %v762, 3.732051
    %v766 = vmin.f32 %v763, 3.732051
    %767 = vst [vmem:[#allocation3 + $0xd8] sm:$0xff] %v764
    %768 = vst [vmem:[#allocation3 + $0xe0] sm:$0xff] %v765
    %769 = vst [vmem:[#allocation3 + $0xe8] sm:$0xff] %v766
    %v770 = vld [vmem:[#allocation2 + $0x3c] sm:$0x1]
    %v771 = vld [vmem:[#allocation2 + $0x3f] sm:$0x1]
    %v772 = vperm.slane %v770, 0
    %v773 = vperm.slane %v771, 0
    %v774 = vsel %vm287, %v772, %v773
    %v775 = vsel %vm288, %v772, %v773
    %v776 = vsel %vm289, %v772, %v773
    %v777 = vmul.f32 %v229, %v774
    %v778 = vmul.f32 %v234, %v775
    %v779 = vmul.f32 %v239, %v776
    %v780 = vadd.f32 %v271, %v777
    %v781 = vadd.f32 %v276, %v778
    %v782 = vadd.f32 %v281, %v779
    %v783 = vld [vmem:[#allocation2 + $0x3d] sm:$0x1]
    %v784 = vld [vmem:[#allocation2 + $0x40] sm:$0x1]
    %v785 = vperm.slane %v783, 0
    %v786 = vperm.slane %v784, 0
    %v787 = vsel %vm287, %v785, %v786
    %v788 = vsel %vm288, %v785, %v786
    %v789 = vsel %vm289, %v785, %v786
    %v790 = vmul.f32 %v243, %v787
    %v791 = vmul.f32 %v247, %v788
    %v792 = vmul.f32 %v251, %v789
    %v793 = vadd.f32 %v780, %v790
    %v794 = vadd.f32 %v781, %v791
    %v795 = vadd.f32 %v782, %v792
    %v796 = vld [vmem:[#allocation2 + $0x3e] sm:$0x1]
    %v797 = vld [vmem:[#allocation2 + $0x41] sm:$0x1]
    %v798 = vperm.slane %v796, 0
    %v799 = vperm.slane %v797, 0
    %v800 = vsel %vm287, %v798, %v799
    %v801 = vsel %vm288, %v798, %v799
    %v802 = vsel %vm289, %v798, %v799
    %v803 = vmul.f32 %v255, %v800
    %v804 = vmul.f32 %v259, %v801
    %v805 = vmul.f32 %v263, %v802
    %v806 = vadd.f32 %v793, %v803
    %v807 = vadd.f32 %v794, %v804
    %v808 = vadd.f32 %v795, %v805
    %v809 = vmax.f32 %v806, -1.7320508
    %v810 = vmax.f32 %v807, -1.7320508
    %v811 = vmax.f32 %v808, -1.7320508
    %v812 = vmin.f32 %v809, 3.732051
    %v813 = vmin.f32 %v810, 3.732051
    %v814 = vmin.f32 %v811, 3.732051
    %815 = vst [vmem:[#allocation3 + $0xf0] sm:$0xff] %v812
    %816 = vst [vmem:[#allocation3 + $0xf8] sm:$0xff] %v813
    %817 = vst [vmem:[#allocation3 + $0x100] sm:$0xff] %v814
    %v818 = vld [vmem:[#allocation2 + $0x42] sm:$0x1]
    %v819 = vld [vmem:[#allocation2 + $0x45] sm:$0x1]
    %v820 = vperm.slane %v818, 0
    %v821 = vperm.slane %v819, 0
    %v822 = vsel %vm287, %v820, %v821
    %v823 = vsel %vm288, %v820, %v821
    %v824 = vsel %vm289, %v820, %v821
    %v825 = vmul.f32 %v229, %v822
    %v826 = vmul.f32 %v234, %v823
    %v827 = vmul.f32 %v239, %v824
    %v828 = vadd.f32 %v271, %v825
    %v829 = vadd.f32 %v276, %v826
    %v830 = vadd.f32 %v281, %v827
    %v831 = vld [vmem:[#allocation2 + $0x43] sm:$0x1]
    %v832 = vld [vmem:[#allocation2 + $0x46] sm:$0x1]
    %v833 = vperm.slane %v831, 0
    %v834 = vperm.slane %v832, 0
    %v835 = vsel %vm287, %v833, %v834
    %v836 = vsel %vm288, %v833, %v834
    %v837 = vsel %vm289, %v833, %v834
    %v838 = vmul.f32 %v243, %v835
    %v839 = vmul.f32 %v247, %v836
    %v840 = vmul.f32 %v251, %v837
    %v841 = vadd.f32 %v828, %v838
    %v842 = vadd.f32 %v829, %v839
    %v843 = vadd.f32 %v830, %v840
    %v844 = vld [vmem:[#allocation2 + $0x44] sm:$0x1]
    %v845 = vld [vmem:[#allocation2 + $0x47] sm:$0x1]
    %v846 = vperm.slane %v844, 0
    %v847 = vperm.slane %v845, 0
    %v848 = vsel %vm287, %v846, %v847
    %v849 = vsel %vm288, %v846, %v847
    %v850 = vsel %vm289, %v846, %v847
    %v851 = vmul.f32 %v255, %v848
    %v852 = vmul.f32 %v259, %v849
    %v853 = vmul.f32 %v263, %v850
    %v854 = vadd.f32 %v841, %v851
    %v855 = vadd.f32 %v842, %v852
    %v856 = vadd.f32 %v843, %v853
    %v857 = vmax.f32 %v854, -1.7320508
    %v858 = vmax.f32 %v855, -1.7320508
    %v859 = vmax.f32 %v856, -1.7320508
    %v860 = vmin.f32 %v857, 3.732051
    %v861 = vmin.f32 %v858, 3.732051
    %v862 = vmin.f32 %v859, 3.732051
    %863 = vst [vmem:[#allocation3 + $0x108] sm:$0xff] %v860
    %864 = vst [vmem:[#allocation3 + $0x110] sm:$0xff] %v861
    %865 = vst [vmem:[#allocation3 + $0x118] sm:$0xff] %v862
    %v866 = vld [vmem:[#allocation2 + $0x48] sm:$0x1]
    %v867 = vld [vmem:[#allocation2 + $0x4b] sm:$0x1]
    %v868 = vperm.slane %v866, 0
    %v869 = vperm.slane %v867, 0
    %v870 = vsel %vm287, %v868, %v869
    %v871 = vsel %vm288, %v868, %v869
    %v872 = vsel %vm289, %v868, %v869
    %v873 = vmul.f32 %v229, %v870
    %v874 = vmul.f32 %v234, %v871
    %v875 = vmul.f32 %v239, %v872
    %v876 = vadd.f32 %v271, %v873
    %v877 = vadd.f32 %v276, %v874
    %v878 = vadd.f32 %v281, %v875
    %v879 = vld [vmem:[#allocation2 + $0x49] sm:$0x1]
    %v880 = vld [vmem:[#allocation2 + $0x4c] sm:$0x1]
    %v881 = vperm.slane %v879, 0
    %v882 = vperm.slane %v880, 0
    %v883 = vsel %vm287, %v881, %v882
    %v884 = vsel %vm288, %v881, %v882
    %v885 = vsel %vm289, %v881, %v882
    %v886 = vmul.f32 %v243, %v883
    %v887 = vmul.f32 %v247, %v884
    %v888 = vmul.f32 %v251, %v885
    %v889 = vadd.f32 %v876, %v886
    %v890 = vadd.f32 %v877, %v887
    %v891 = vadd.f32 %v878, %v888
    %v892 = vld [vmem:[#allocation2 + $0x4a] sm:$0x1]
    %v893 = vld [vmem:[#allocation2 + $0x4d] sm:$0x1]
    %v894 = vperm.slane %v892, 0
    %v895 = vperm.slane %v893, 0
    %v896 = vsel %vm287, %v894, %v895
    %v897 = vsel %vm288, %v894, %v895
    %v898 = vsel %vm289, %v894, %v895
    %v899 = vmul.f32 %v255, %v896
    %v900 = vmul.f32 %v259, %v897
    %v901 = vmul.f32 %v263, %v898
    %v902 = vadd.f32 %v889, %v899
    %v903 = vadd.f32 %v890, %v900
    %v904 = vadd.f32 %v891, %v901
    %v905 = vmax.f32 %v902, -1.7320508
    %v906 = vmax.f32 %v903, -1.7320508
    %v907 = vmax.f32 %v904, -1.7320508
    %v908 = vmin.f32 %v905, 3.732051
    %v909 = vmin.f32 %v906, 3.732051
    %v910 = vmin.f32 %v907, 3.732051
    %911 = vst [vmem:[#allocation3 + $0x120] sm:$0xff] %v908
    %912 = vst [vmem:[#allocation3 + $0x128] sm:$0xff] %v909
    %913 = vst [vmem:[#allocation3 + $0x130] sm:$0xff] %v910
    %v914 = vld [vmem:[#allocation2 + $0x4e] sm:$0x1]
    %v915 = vld [vmem:[#allocation2 + $0x51] sm:$0x1]
    %v916 = vperm.slane %v914, 0
    %v917 = vperm.slane %v915, 0
    %v918 = vsel %vm287, %v916, %v917
    %v919 = vsel %vm288, %v916, %v917
    %v920 = vsel %vm289, %v916, %v917
    %v921 = vmul.f32 %v229, %v918
    %v922 = vmul.f32 %v234, %v919
    %v923 = vmul.f32 %v239, %v920
    %v924 = vadd.f32 %v271, %v921
    %v925 = vadd.f32 %v276, %v922
    %v926 = vadd.f32 %v281, %v923
    %v927 = vld [vmem:[#allocation2 + $0x4f] sm:$0x1]
    %v928 = vld [vmem:[#allocation2 + $0x52] sm:$0x1]
    %v929 = vperm.slane %v927, 0
    %v930 = vperm.slane %v928, 0
    %v931 = vsel %vm287, %v929, %v930
    %v932 = vsel %vm288, %v929, %v930
    %v933 = vsel %vm289, %v929, %v930
    %v934 = vmul.f32 %v243, %v931
    %v935 = vmul.f32 %v247, %v932
    %v936 = vmul.f32 %v251, %v933
    %v937 = vadd.f32 %v924, %v934
    %v938 = vadd.f32 %v925, %v935
    %v939 = vadd.f32 %v926, %v936
    %v940 = vld [vmem:[#allocation2 + $0x50] sm:$0x1]
    %v941 = vld [vmem:[#allocation2 + $0x53] sm:$0x1]
    %v942 = vperm.slane %v940, 0
    %v943 = vperm.slane %v941, 0
    %v944 = vsel %vm287, %v942, %v943
    %v945 = vsel %vm288, %v942, %v943
    %v946 = vsel %vm289, %v942, %v943
    %v947 = vmul.f32 %v255, %v944
    %v948 = vmul.f32 %v259, %v945
    %v949 = vmul.f32 %v263, %v946
    %v950 = vadd.f32 %v937, %v947
    %v951 = vadd.f32 %v938, %v948
    %v952 = vadd.f32 %v939, %v949
    %v953 = vmax.f32 %v950, -1.7320508
    %v954 = vmax.f32 %v951, -1.7320508
    %v955 = vmax.f32 %v952, -1.7320508
    %v956 = vmin.f32 %v953, 3.732051
    %v957 = vmin.f32 %v954, 3.732051
    %v958 = vmin.f32 %v955, 3.732051
    %959 = vst [vmem:[#allocation3 + $0x138] sm:$0xff] %v956
    %960 = vst [vmem:[#allocation3 + $0x140] sm:$0xff] %v957
    %961 = vst [vmem:[#allocation3 + $0x148] sm:$0xff] %v958
    %v962 = vld [vmem:[#allocation2 + $0x54] sm:$0x1]
    %v963 = vld [vmem:[#allocation2 + $0x57] sm:$0x1]
    %v964 = vperm.slane %v962, 0
    %v965 = vperm.slane %v963, 0
    %v966 = vsel %vm287, %v964, %v965
    %v967 = vsel %vm288, %v964, %v965
    %v968 = vsel %vm289, %v964, %v965
    %v969 = vmul.f32 %v229, %v966
    %v970 = vmul.f32 %v234, %v967
    %v971 = vmul.f32 %v239, %v968
    %v972 = vadd.f32 %v271, %v969
    %v973 = vadd.f32 %v276, %v970
    %v974 = vadd.f32 %v281, %v971
    %v975 = vld [vmem:[#allocation2 + $0x55] sm:$0x1]
    %v976 = vld [vmem:[#allocation2 + $0x58] sm:$0x1]
    %v977 = vperm.slane %v975, 0
    %v978 = vperm.slane %v976, 0
    %v979 = vsel %vm287, %v977, %v978
    %v980 = vsel %vm288, %v977, %v978
    %v981 = vsel %vm289, %v977, %v978
    %v982 = vmul.f32 %v243, %v979
    %v983 = vmul.f32 %v247, %v980
    %v984 = vmul.f32 %v251, %v981
    %v985 = vadd.f32 %v972, %v982
    %v986 = vadd.f32 %v973, %v983
    %v987 = vadd.f32 %v974, %v984
    %v988 = vld [vmem:[#allocation2 + $0x56] sm:$0x1]
    %v989 = vld [vmem:[#allocation2 + $0x59] sm:$0x1]
    %v990 = vperm.slane %v988, 0
    %v991 = vperm.slane %v989, 0
    %v992 = vsel %vm287, %v990, %v991
    %v993 = vsel %vm288, %v990, %v991
    %v994 = vsel %vm289, %v990, %v991
    %v995 = vmul.f32 %v255, %v992
    %v996 = vmul.f32 %v259, %v993
    %v997 = vmul.f32 %v263, %v994
    %v998 = vadd.f32 %v985, %v995
    %v999 = vadd.f32 %v986, %v996
    %v1000 = vadd.f32 %v987, %v997
    %v1001 = vmax.f32 %v998, -1.7320508
    %v1002 = vmax.f32 %v999, -1.7320508
    %v1003 = vmax.f32 %v1000, -1.7320508
    %v1004 = vmin.f32 %v1001, 3.732051
    %v1005 = vmin.f32 %v1002, 3.732051
    %v1006 = vmin.f32 %v1003, 3.732051
    %1007 = vst [vmem:[#allocation3 + $0x150] sm:$0xff] %v1004
    %1008 = vst [vmem:[#allocation3 + $0x158] sm:$0xff] %v1005
    %1009 = vst [vmem:[#allocation3 + $0x160] sm:$0xff] %v1006
    %v1010 = vld [vmem:[#allocation2 + $0x5a] sm:$0x1]
    %v1011 = vld [vmem:[#allocation2 + $0x5d] sm:$0x1]
    %v1012 = vperm.slane %v1010, 0
    %v1013 = vperm.slane %v1011, 0
    %v1014 = vsel %vm287, %v1012, %v1013
    %v1015 = vsel %vm288, %v1012, %v1013
    %v1016 = vsel %vm289, %v1012, %v1013
    %v1017 = vmul.f32 %v229, %v1014
    %v1018 = vmul.f32 %v234, %v1015
    %v1019 = vmul.f32 %v239, %v1016
    %v1020 = vadd.f32 %v271, %v1017
    %v1021 = vadd.f32 %v276, %v1018
    %v1022 = vadd.f32 %v281, %v1019
    %v1023 = vld [vmem:[#allocation2 + $0x5b] sm:$0x1]
    %v1024 = vld [vmem:[#allocation2 + $0x5e] sm:$0x1]
    %v1025 = vperm.slane %v1023, 0
    %v1026 = vperm.slane %v1024, 0
    %v1027 = vsel %vm287, %v1025, %v1026
    %v1028 = vsel %vm288, %v1025, %v1026
    %v1029 = vsel %vm289, %v1025, %v1026
    %v1030 = vmul.f32 %v243, %v1027
    %v1031 = vmul.f32 %v247, %v1028
    %v1032 = vmul.f32 %v251, %v1029
    %v1033 = vadd.f32 %v1020, %v1030
    %v1034 = vadd.f32 %v1021, %v1031
    %v1035 = vadd.f32 %v1022, %v1032
    %v1036 = vld [vmem:[#allocation2 + $0x5c] sm:$0x1]
    %v1037 = vld [vmem:[#allocation2 + $0x5f] sm:$0x1]
    %v1038 = vperm.slane %v1036, 0
    %v1039 = vperm.slane %v1037, 0
    %v1040 = vsel %vm287, %v1038, %v1039
    %v1041 = vsel %vm288, %v1038, %v1039
    %v1042 = vsel %vm289, %v1038, %v1039
    %v1043 = vmul.f32 %v255, %v1040
    %v1044 = vmul.f32 %v259, %v1041
    %v1045 = vmul.f32 %v263, %v1042
    %v1046 = vadd.f32 %v1033, %v1043
    %v1047 = vadd.f32 %v1034, %v1044
    %v1048 = vadd.f32 %v1035, %v1045
    %v1049 = vmax.f32 %v1046, -1.7320508
    %v1050 = vmax.f32 %v1047, -1.7320508
    %v1051 = vmax.f32 %v1048, -1.7320508
    %v1052 = vmin.f32 %v1049, 3.732051
    %v1053 = vmin.f32 %v1050, 3.732051
    %v1054 = vmin.f32 %v1051, 3.732051
    %1055 = vst [vmem:[#allocation3 + $0x168] sm:$0xff] %v1052
    %1056 = vst [vmem:[#allocation3 + $0x170] sm:$0xff] %v1053
    %1057 = vst [vmem:[#allocation3 + $0x178] sm:$0xff] %v1054
    %v1058 = vld [vmem:[#allocation2 + $0x60] sm:$0x1]
    %v1059 = vld [vmem:[#allocation2 + $0x63] sm:$0x1]
    %v1060 = vperm.slane %v1058, 0
    %v1061 = vperm.slane %v1059, 0
    %v1062 = vsel %vm287, %v1060, %v1061
    %v1063 = vsel %vm288, %v1060, %v1061
    %v1064 = vsel %vm289, %v1060, %v1061
    %v1065 = vmul.f32 %v229, %v1062
    %v1066 = vmul.f32 %v234, %v1063
    %v1067 = vmul.f32 %v239, %v1064
    %v1068 = vadd.f32 %v271, %v1065
    %v1069 = vadd.f32 %v276, %v1066
    %v1070 = vadd.f32 %v281, %v1067
    %v1071 = vld [vmem:[#allocation2 + $0x61] sm:$0x1]
    %v1072 = vld [vmem:[#allocation2 + $0x64] sm:$0x1]
    %v1073 = vperm.slane %v1071, 0
    %v1074 = vperm.slane %v1072, 0
    %v1075 = vsel %vm287, %v1073, %v1074
    %v1076 = vsel %vm288, %v1073, %v1074
    %v1077 = vsel %vm289, %v1073, %v1074
    %v1078 = vmul.f32 %v243, %v1075
    %v1079 = vmul.f32 %v247, %v1076
    %v1080 = vmul.f32 %v251, %v1077
    %v1081 = vadd.f32 %v1068, %v1078
    %v1082 = vadd.f32 %v1069, %v1079
    %v1083 = vadd.f32 %v1070, %v1080
    %v1084 = vld [vmem:[#allocation2 + $0x62] sm:$0x1]
    %v1085 = vld [vmem:[#allocation2 + $0x65] sm:$0x1]
    %v1086 = vperm.slane %v1084, 0
    %v1087 = vperm.slane %v1085, 0
    %v1088 = vsel %vm287, %v1086, %v1087
    %v1089 = vsel %vm288, %v1086, %v1087
    %v1090 = vsel %vm289, %v1086, %v1087
    %v1091 = vmul.f32 %v255, %v1088
    %v1092 = vmul.f32 %v259, %v1089
    %v1093 = vmul.f32 %v263, %v1090
    %v1094 = vadd.f32 %v1081, %v1091
    %v1095 = vadd.f32 %v1082, %v1092
    %v1096 = vadd.f32 %v1083, %v1093
    %v1097 = vmax.f32 %v1094, -1.7320508
    %v1098 = vmax.f32 %v1095, -1.7320508
    %v1099 = vmax.f32 %v1096, -1.7320508
    %v1100 = vmin.f32 %v1097, 3.732051
    %v1101 = vmin.f32 %v1098, 3.732051
    %v1102 = vmin.f32 %v1099, 3.732051
    %1103 = vst [vmem:[#allocation3 + $0x180] sm:$0xff] %v1100
    %1104 = vst [vmem:[#allocation3 + $0x188] sm:$0xff] %v1101
    %1105 = vst [vmem:[#allocation3 + $0x190] sm:$0xff] %v1102
    %v1106 = vld [vmem:[#allocation2 + $0x66] sm:$0x1]
    %v1107 = vld [vmem:[#allocation2 + $0x69] sm:$0x1]
    %v1108 = vperm.slane %v1106, 0
    %v1109 = vperm.slane %v1107, 0
    %v1110 = vsel %vm287, %v1108, %v1109
    %v1111 = vsel %vm288, %v1108, %v1109
    %v1112 = vsel %vm289, %v1108, %v1109
    %v1113 = vmul.f32 %v229, %v1110
    %v1114 = vmul.f32 %v234, %v1111
    %v1115 = vmul.f32 %v239, %v1112
    %v1116 = vadd.f32 %v271, %v1113
    %v1117 = vadd.f32 %v276, %v1114
    %v1118 = vadd.f32 %v281, %v1115
    %v1119 = vld [vmem:[#allocation2 + $0x67] sm:$0x1]
    %v1120 = vld [vmem:[#allocation2 + $0x6a] sm:$0x1]
    %v1121 = vperm.slane %v1119, 0
    %v1122 = vperm.slane %v1120, 0
    %v1123 = vsel %vm287, %v1121, %v1122
    %v1124 = vsel %vm288, %v1121, %v1122
    %v1125 = vsel %vm289, %v1121, %v1122
    %v1126 = vmul.f32 %v243, %v1123
    %v1127 = vmul.f32 %v247, %v1124
    %v1128 = vmul.f32 %v251, %v1125
    %v1129 = vadd.f32 %v1116, %v1126
    %v1130 = vadd.f32 %v1117, %v1127
    %v1131 = vadd.f32 %v1118, %v1128
    %v1132 = vld [vmem:[#allocation2 + $0x68] sm:$0x1]
    %v1133 = vld [vmem:[#allocation2 + $0x6b] sm:$0x1]
    %v1134 = vperm.slane %v1132, 0
    %v1135 = vperm.slane %v1133, 0
    %v1136 = vsel %vm287, %v1134, %v1135
    %v1137 = vsel %vm288, %v1134, %v1135
    %v1138 = vsel %vm289, %v1134, %v1135
    %v1139 = vmul.f32 %v255, %v1136
    %v1140 = vmul.f32 %v259, %v1137
    %v1141 = vmul.f32 %v263, %v1138
    %v1142 = vadd.f32 %v1129, %v1139
    %v1143 = vadd.f32 %v1130, %v1140
    %v1144 = vadd.f32 %v1131, %v1141
    %v1145 = vmax.f32 %v1142, -1.7320508
    %v1146 = vmax.f32 %v1143, -1.7320508
    %v1147 = vmax.f32 %v1144, -1.7320508
    %v1148 = vmin.f32 %v1145, 3.732051
    %v1149 = vmin.f32 %v1146, 3.732051
    %v1150 = vmin.f32 %v1147, 3.732051
    %1151 = vst [vmem:[#allocation3 + $0x198] sm:$0xff] %v1148
    %1152 = vst [vmem:[#allocation3 + $0x1a0] sm:$0xff] %v1149
    %1153 = vst [vmem:[#allocation3 + $0x1a8] sm:$0xff] %v1150
    %v1154 = vld [vmem:[#allocation2 + $0x6c] sm:$0x1]
    %v1155 = vld [vmem:[#allocation2 + $0x6f] sm:$0x1]
    %v1156 = vperm.slane %v1154, 0
    %v1157 = vperm.slane %v1155, 0
    %v1158 = vsel %vm287, %v1156, %v1157
    %v1159 = vsel %vm288, %v1156, %v1157
    %v1160 = vsel %vm289, %v1156, %v1157
    %v1161 = vmul.f32 %v229, %v1158
    %v1162 = vmul.f32 %v234, %v1159
    %v1163 = vmul.f32 %v239, %v1160
    %v1164 = vadd.f32 %v271, %v1161
    %v1165 = vadd.f32 %v276, %v1162
    %v1166 = vadd.f32 %v281, %v1163
    %v1167 = vld [vmem:[#allocation2 + $0x6d] sm:$0x1]
    %v1168 = vld [vmem:[#allocation2 + $0x70] sm:$0x1]
    %v1169 = vperm.slane %v1167, 0
    %v1170 = vperm.slane %v1168, 0
    %v1171 = vsel %vm287, %v1169, %v1170
    %v1172 = vsel %vm288, %v1169, %v1170
    %v1173 = vsel %vm289, %v1169, %v1170
    %v1174 = vmul.f32 %v243, %v1171
    %v1175 = vmul.f32 %v247, %v1172
    %v1176 = vmul.f32 %v251, %v1173
    %v1177 = vadd.f32 %v1164, %v1174
    %v1178 = vadd.f32 %v1165, %v1175
    %v1179 = vadd.f32 %v1166, %v1176
    %v1180 = vld [vmem:[#allocation2 + $0x6e] sm:$0x1]
    %v1181 = vld [vmem:[#allocation2 + $0x71] sm:$0x1]
    %v1182 = vperm.slane %v1180, 0
    %v1183 = vperm.slane %v1181, 0
    %v1184 = vsel %vm287, %v1182, %v1183
    %v1185 = vsel %vm288, %v1182, %v1183
    %v1186 = vsel %vm289, %v1182, %v1183
    %v1187 = vmul.f32 %v255, %v1184
    %v1188 = vmul.f32 %v259, %v1185
    %v1189 = vmul.f32 %v263, %v1186
    %v1190 = vadd.f32 %v1177, %v1187
    %v1191 = vadd.f32 %v1178, %v1188
    %v1192 = vadd.f32 %v1179, %v1189
    %v1193 = vmax.f32 %v1190, -1.7320508
    %v1194 = vmax.f32 %v1191, -1.7320508
    %v1195 = vmax.f32 %v1192, -1.7320508
    %v1196 = vmin.f32 %v1193, 3.732051
    %v1197 = vmin.f32 %v1194, 3.732051
    %v1198 = vmin.f32 %v1195, 3.732051
    %1199 = vst [vmem:[#allocation3 + $0x1b0] sm:$0xff] %v1196
    %1200 = vst [vmem:[#allocation3 + $0x1b8] sm:$0xff] %v1197
    %1201 = vst [vmem:[#allocation3 + $0x1c0] sm:$0xff] %v1198
    %v1202 = vld [vmem:[#allocation2 + $0x72] sm:$0x1]
    %v1203 = vld [vmem:[#allocation2 + $0x75] sm:$0x1]
    %v1204 = vperm.slane %v1202, 0
    %v1205 = vperm.slane %v1203, 0
    %v1206 = vsel %vm287, %v1204, %v1205
    %v1207 = vsel %vm288, %v1204, %v1205
    %v1208 = vsel %vm289, %v1204, %v1205
    %v1209 = vmul.f32 %v229, %v1206
    %v1210 = vmul.f32 %v234, %v1207
    %v1211 = vmul.f32 %v239, %v1208
    %v1212 = vadd.f32 %v271, %v1209
    %v1213 = vadd.f32 %v276, %v1210
    %v1214 = vadd.f32 %v281, %v1211
    %v1215 = vld [vmem:[#allocation2 + $0x73] sm:$0x1]
    %v1216 = vld [vmem:[#allocation2 + $0x76] sm:$0x1]
    %v1217 = vperm.slane %v1215, 0
    %v1218 = vperm.slane %v1216, 0
    %v1219 = vsel %vm287, %v1217, %v1218
    %v1220 = vsel %vm288, %v1217, %v1218
    %v1221 = vsel %vm289, %v1217, %v1218
    %v1222 = vmul.f32 %v243, %v1219
    %v1223 = vmul.f32 %v247, %v1220
    %v1224 = vmul.f32 %v251, %v1221
    %v1225 = vadd.f32 %v1212, %v1222
    %v1226 = vadd.f32 %v1213, %v1223
    %v1227 = vadd.f32 %v1214, %v1224
    %v1228 = vld [vmem:[#allocation2 + $0x74] sm:$0x1]
    %v1229 = vld [vmem:[#allocation2 + $0x77] sm:$0x1]
    %v1230 = vperm.slane %v1228, 0
    %v1231 = vperm.slane %v1229, 0
    %v1232 = vsel %vm287, %v1230, %v1231
    %v1233 = vsel %vm288, %v1230, %v1231
    %v1234 = vsel %vm289, %v1230, %v1231
    %v1235 = vmul.f32 %v255, %v1232
    %v1236 = vmul.f32 %v259, %v1233
    %v1237 = vmul.f32 %v263, %v1234
    %v1238 = vadd.f32 %v1225, %v1235
    %v1239 = vadd.f32 %v1226, %v1236
    %v1240 = vadd.f32 %v1227, %v1237
    %v1241 = vmax.f32 %v1238, -1.7320508
    %v1242 = vmax.f32 %v1239, -1.7320508
    %v1243 = vmax.f32 %v1240, -1.7320508
    %v1244 = vmin.f32 %v1241, 3.732051
    %v1245 = vmin.f32 %v1242, 3.732051
    %v1246 = vmin.f32 %v1243, 3.732051
    %1247 = vst [vmem:[#allocation3 + $0x1c8] sm:$0xff] %v1244
    %1248 = vst [vmem:[#allocation3 + $0x1d0] sm:$0xff] %v1245
    %1249 = vst [vmem:[#allocation3 + $0x1d8] sm:$0xff] %v1246
    %v1250 = vld [vmem:[#allocation2 + $0x78] sm:$0x1]
    %v1251 = vld [vmem:[#allocation2 + $0x7b] sm:$0x1]
    %v1252 = vperm.slane %v1250, 0
    %v1253 = vperm.slane %v1251, 0
    %v1254 = vsel %vm287, %v1252, %v1253
    %v1255 = vsel %vm288, %v1252, %v1253
    %v1256 = vsel %vm289, %v1252, %v1253
    %v1257 = vmul.f32 %v229, %v1254
    %v1258 = vmul.f32 %v234, %v1255
    %v1259 = vmul.f32 %v239, %v1256
    %v1260 = vadd.f32 %v271, %v1257
    %v1261 = vadd.f32 %v276, %v1258
    %v1262 = vadd.f32 %v281, %v1259
    %v1263 = vld [vmem:[#allocation2 + $0x79] sm:$0x1]
    %v1264 = vld [vmem:[#allocation2 + $0x7c] sm:$0x1]
    %v1265 = vperm.slane %v1263, 0
    %v1266 = vperm.slane %v1264, 0
    %v1267 = vsel %vm287, %v1265, %v1266
    %v1268 = vsel %vm288, %v1265, %v1266
    %v1269 = vsel %vm289, %v1265, %v1266
    %v1270 = vmul.f32 %v243, %v1267
    %v1271 = vmul.f32 %v247, %v1268
    %v1272 = vmul.f32 %v251, %v1269
    %v1273 = vadd.f32 %v1260, %v1270
    %v1274 = vadd.f32 %v1261, %v1271
    %v1275 = vadd.f32 %v1262, %v1272
    %v1276 = vld [vmem:[#allocation2 + $0x7a] sm:$0x1]
    %v1277 = vld [vmem:[#allocation2 + $0x7d] sm:$0x1]
    %v1278 = vperm.slane %v1276, 0
    %v1279 = vperm.slane %v1277, 0
    %v1280 = vsel %vm287, %v1278, %v1279
    %v1281 = vsel %vm288, %v1278, %v1279
    %v1282 = vsel %vm289, %v1278, %v1279
    %v1283 = vmul.f32 %v255, %v1280
    %v1284 = vmul.f32 %v259, %v1281
    %v1285 = vmul.f32 %v263, %v1282
    %v1286 = vadd.f32 %v1273, %v1283
    %v1287 = vadd.f32 %v1274, %v1284
    %v1288 = vadd.f32 %v1275, %v1285
    %v1289 = vmax.f32 %v1286, -1.7320508
    %v1290 = vmax.f32 %v1287, -1.7320508
    %v1291 = vmax.f32 %v1288, -1.7320508
    %v1292 = vmin.f32 %v1289, 3.732051
    %v1293 = vmin.f32 %v1290, 3.732051
    %v1294 = vmin.f32 %v1291, 3.732051
    %1295 = vst [vmem:[#allocation3 + $0x1e0] sm:$0xff] %v1292
    %1296 = vst [vmem:[#allocation3 + $0x1e8] sm:$0xff] %v1293
    %1297 = vst [vmem:[#allocation3 + $0x1f0] sm:$0xff] %v1294
    %v1298 = vld [vmem:[#allocation2 + $0x7e] sm:$0x1]
    %v1299 = vld [vmem:[#allocation2 + $0x81] sm:$0x1]
    %v1300 = vperm.slane %v1298, 0
    %v1301 = vperm.slane %v1299, 0
    %v1302 = vsel %vm287, %v1300, %v1301
    %v1303 = vsel %vm288, %v1300, %v1301
    %v1304 = vsel %vm289, %v1300, %v1301
    %v1305 = vmul.f32 %v229, %v1302
    %v1306 = vmul.f32 %v234, %v1303
    %v1307 = vmul.f32 %v239, %v1304
    %v1308 = vadd.f32 %v271, %v1305
    %v1309 = vadd.f32 %v276, %v1306
    %v1310 = vadd.f32 %v281, %v1307
    %v1311 = vld [vmem:[#allocation2 + $0x7f] sm:$0x1]
    %v1312 = vld [vmem:[#allocation2 + $0x82] sm:$0x1]
    %v1313 = vperm.slane %v1311, 0
    %v1314 = vperm.slane %v1312, 0
    %v1315 = vsel %vm287, %v1313, %v1314
    %v1316 = vsel %vm288, %v1313, %v1314
    %v1317 = vsel %vm289, %v1313, %v1314
    %v1318 = vmul.f32 %v243, %v1315
    %v1319 = vmul.f32 %v247, %v1316
    %v1320 = vmul.f32 %v251, %v1317
    %v1321 = vadd.f32 %v1308, %v1318
    %v1322 = vadd.f32 %v1309, %v1319
    %v1323 = vadd.f32 %v1310, %v1320
    %v1324 = vld [vmem:[#allocation2 + $0x80] sm:$0x1]
    %v1325 = vld [vmem:[#allocation2 + $0x83] sm:$0x1]
    %v1326 = vperm.slane %v1324, 0
    %v1327 = vperm.slane %v1325, 0
    %v1328 = vsel %vm287, %v1326, %v1327
    %v1329 = vsel %vm288, %v1326, %v1327
    %v1330 = vsel %vm289, %v1326, %v1327
    %v1331 = vmul.f32 %v255, %v1328
    %v1332 = vmul.f32 %v259, %v1329
    %v1333 = vmul.f32 %v263, %v1330
    %v1334 = vadd.f32 %v1321, %v1331
    %v1335 = vadd.f32 %v1322, %v1332
    %v1336 = vadd.f32 %v1323, %v1333
    %v1337 = vmax.f32 %v1334, -1.7320508
    %v1338 = vmax.f32 %v1335, -1.7320508
    %v1339 = vmax.f32 %v1336, -1.7320508
    %v1340 = vmin.f32 %v1337, 3.732051
    %v1341 = vmin.f32 %v1338, 3.732051
    %v1342 = vmin.f32 %v1339, 3.732051
    %1343 = vst [vmem:[#allocation3 + $0x1f8] sm:$0xff] %v1340
    %1344 = vst [vmem:[#allocation3 + $0x200] sm:$0xff] %v1341
    %1345 = vst [vmem:[#allocation3 + $0x208] sm:$0xff] %v1342
    %v1346 = vld [vmem:[#allocation2 + $0x84] sm:$0x1]
    %v1347 = vld [vmem:[#allocation2 + $0x87] sm:$0x1]
    %v1348 = vperm.slane %v1346, 0
    %v1349 = vperm.slane %v1347, 0
    %v1350 = vsel %vm287, %v1348, %v1349
    %v1351 = vsel %vm288, %v1348, %v1349
    %v1352 = vsel %vm289, %v1348, %v1349
    %v1353 = vmul.f32 %v229, %v1350
    %v1354 = vmul.f32 %v234, %v1351
    %v1355 = vmul.f32 %v239, %v1352
    %v1356 = vadd.f32 %v271, %v1353
    %v1357 = vadd.f32 %v276, %v1354
    %v1358 = vadd.f32 %v281, %v1355
    %v1359 = vld [vmem:[#allocation2 + $0x85] sm:$0x1]
    %v1360 = vld [vmem:[#allocation2 + $0x88] sm:$0x1]
    %v1361 = vperm.slane %v1359, 0
    %v1362 = vperm.slane %v1360, 0
    %v1363 = vsel %vm287, %v1361, %v1362
    %v1364 = vsel %vm288, %v1361, %v1362
    %v1365 = vsel %vm289, %v1361, %v1362
    %v1366 = vmul.f32 %v243, %v1363
    %v1367 = vmul.f32 %v247, %v1364
    %v1368 = vmul.f32 %v251, %v1365
    %v1369 = vadd.f32 %v1356, %v1366
    %v1370 = vadd.f32 %v1357, %v1367
    %v1371 = vadd.f32 %v1358, %v1368
    %v1372 = vld [vmem:[#allocation2 + $0x86] sm:$0x1]
    %v1373 = vld [vmem:[#allocation2 + $0x89] sm:$0x1]
    %v1374 = vperm.slane %v1372, 0
    %v1375 = vperm.slane %v1373, 0
    %v1376 = vsel %vm287, %v1374, %v1375
    %v1377 = vsel %vm288, %v1374, %v1375
    %v1378 = vsel %vm289, %v1374, %v1375
    %v1379 = vmul.f32 %v255, %v1376
    %v1380 = vmul.f32 %v259, %v1377
    %v1381 = vmul.f32 %v263, %v1378
    %v1382 = vadd.f32 %v1369, %v1379
    %v1383 = vadd.f32 %v1370, %v1380
    %v1384 = vadd.f32 %v1371, %v1381
    %v1385 = vmax.f32 %v1382, -1.7320508
    %v1386 = vmax.f32 %v1383, -1.7320508
    %v1387 = vmax.f32 %v1384, -1.7320508
    %v1388 = vmin.f32 %v1385, 3.732051
    %v1389 = vmin.f32 %v1386, 3.732051
    %v1390 = vmin.f32 %v1387, 3.732051
    %1391 = vst [vmem:[#allocation3 + $0x210] sm:$0xff] %v1388
    %1392 = vst [vmem:[#allocation3 + $0x218] sm:$0xff] %v1389
    %1393 = vst [vmem:[#allocation3 + $0x220] sm:$0xff] %v1390
    %v1394 = vld [vmem:[#allocation2 + $0x8a] sm:$0x1]
    %v1395 = vld [vmem:[#allocation2 + $0x8d] sm:$0x1]
    %v1396 = vperm.slane %v1394, 0
    %v1397 = vperm.slane %v1395, 0
    %v1398 = vsel %vm287, %v1396, %v1397
    %v1399 = vsel %vm288, %v1396, %v1397
    %v1400 = vsel %vm289, %v1396, %v1397
    %v1401 = vmul.f32 %v229, %v1398
    %v1402 = vmul.f32 %v234, %v1399
    %v1403 = vmul.f32 %v239, %v1400
    %v1404 = vadd.f32 %v271, %v1401
    %v1405 = vadd.f32 %v276, %v1402
    %v1406 = vadd.f32 %v281, %v1403
    %v1407 = vld [vmem:[#allocation2 + $0x8b] sm:$0x1]
    %v1408 = vld [vmem:[#allocation2 + $0x8e] sm:$0x1]
    %v1409 = vperm.slane %v1407, 0
    %v1410 = vperm.slane %v1408, 0
    %v1411 = vsel %vm287, %v1409, %v1410
    %v1412 = vsel %vm288, %v1409, %v1410
    %v1413 = vsel %vm289, %v1409, %v1410
    %v1414 = vmul.f32 %v243, %v1411
    %v1415 = vmul.f32 %v247, %v1412
    %v1416 = vmul.f32 %v251, %v1413
    %v1417 = vadd.f32 %v1404, %v1414
    %v1418 = vadd.f32 %v1405, %v1415
    %v1419 = vadd.f32 %v1406, %v1416
    %v1420 = vld [vmem:[#allocation2 + $0x8c] sm:$0x1]
    %v1421 = vld [vmem:[#allocation2 + $0x8f] sm:$0x1]
    %v1422 = vperm.slane %v1420, 0
    %v1423 = vperm.slane %v1421, 0
    %v1424 = vsel %vm287, %v1422, %v1423
    %v1425 = vsel %vm288, %v1422, %v1423
    %v1426 = vsel %vm289, %v1422, %v1423
    %v1427 = vmul.f32 %v255, %v1424
    %v1428 = vmul.f32 %v259, %v1425
    %v1429 = vmul.f32 %v263, %v1426
    %v1430 = vadd.f32 %v1417, %v1427
    %v1431 = vadd.f32 %v1418, %v1428
    %v1432 = vadd.f32 %v1419, %v1429
    %v1433 = vmax.f32 %v1430, -1.7320508
    %v1434 = vmax.f32 %v1431, -1.7320508
    %v1435 = vmax.f32 %v1432, -1.7320508
    %v1436 = vmin.f32 %v1433, 3.732051
    %v1437 = vmin.f32 %v1434, 3.732051
    %v1438 = vmin.f32 %v1435, 3.732051
    %1439 = vst [vmem:[#allocation3 + $0x228] sm:$0xff] %v1436
    %1440 = vst [vmem:[#allocation3 + $0x230] sm:$0xff] %v1437
    %1441 = vst [vmem:[#allocation3 + $0x238] sm:$0xff] %v1438
    %v1442 = vld [vmem:[#allocation2 + $0x90] sm:$0x1]
    %v1443 = vld [vmem:[#allocation2 + $0x93] sm:$0x1]
    %v1444 = vperm.slane %v1442, 0
    %v1445 = vperm.slane %v1443, 0
    %v1446 = vsel %vm287, %v1444, %v1445
    %v1447 = vsel %vm288, %v1444, %v1445
    %v1448 = vsel %vm289, %v1444, %v1445
    %v1449 = vmul.f32 %v229, %v1446
    %v1450 = vmul.f32 %v234, %v1447
    %v1451 = vmul.f32 %v239, %v1448
    %v1452 = vadd.f32 %v271, %v1449
    %v1453 = vadd.f32 %v276, %v1450
    %v1454 = vadd.f32 %v281, %v1451
    %v1455 = vld [vmem:[#allocation2 + $0x91] sm:$0x1]
    %v1456 = vld [vmem:[#allocation2 + $0x94] sm:$0x1]
    %v1457 = vperm.slane %v1455, 0
    %v1458 = vperm.slane %v1456, 0
    %v1459 = vsel %vm287, %v1457, %v1458
    %v1460 = vsel %vm288, %v1457, %v1458
    %v1461 = vsel %vm289, %v1457, %v1458
    %v1462 = vmul.f32 %v243, %v1459
    %v1463 = vmul.f32 %v247, %v1460
    %v1464 = vmul.f32 %v251, %v1461
    %v1465 = vadd.f32 %v1452, %v1462
    %v1466 = vadd.f32 %v1453, %v1463
    %v1467 = vadd.f32 %v1454, %v1464
    %v1468 = vld [vmem:[#allocation2 + $0x92] sm:$0x1]
    %v1469 = vld [vmem:[#allocation2 + $0x95] sm:$0x1]
    %v1470 = vperm.slane %v1468, 0
    %v1471 = vperm.slane %v1469, 0
    %v1472 = vsel %vm287, %v1470, %v1471
    %v1473 = vsel %vm288, %v1470, %v1471
    %v1474 = vsel %vm289, %v1470, %v1471
    %v1475 = vmul.f32 %v255, %v1472
    %v1476 = vmul.f32 %v259, %v1473
    %v1477 = vmul.f32 %v263, %v1474
    %v1478 = vadd.f32 %v1465, %v1475
    %v1479 = vadd.f32 %v1466, %v1476
    %v1480 = vadd.f32 %v1467, %v1477
    %v1481 = vmax.f32 %v1478, -1.7320508
    %v1482 = vmax.f32 %v1479, -1.7320508
    %v1483 = vmax.f32 %v1480, -1.7320508
    %v1484 = vmin.f32 %v1481, 3.732051
    %v1485 = vmin.f32 %v1482, 3.732051
    %v1486 = vmin.f32 %v1483, 3.732051
    %1487 = vst [vmem:[#allocation3 + $0x240] sm:$0xff] %v1484
    %1488 = vst [vmem:[#allocation3 + $0x248] sm:$0xff] %v1485
    %1489 = vst [vmem:[#allocation3 + $0x250] sm:$0xff] %v1486
    %v1490 = vld [vmem:[#allocation2 + $0x96] sm:$0x1]
    %v1491 = vld [vmem:[#allocation2 + $0x99] sm:$0x1]
    %v1492 = vperm.slane %v1490, 0
    %v1493 = vperm.slane %v1491, 0
    %v1494 = vsel %vm287, %v1492, %v1493
    %v1495 = vsel %vm288, %v1492, %v1493
    %v1496 = vsel %vm289, %v1492, %v1493
    %v1497 = vmul.f32 %v229, %v1494
    %v1498 = vmul.f32 %v234, %v1495
    %v1499 = vmul.f32 %v239, %v1496
    %v1500 = vadd.f32 %v271, %v1497
    %v1501 = vadd.f32 %v276, %v1498
    %v1502 = vadd.f32 %v281, %v1499
    %v1503 = vld [vmem:[#allocation2 + $0x97] sm:$0x1]
    %v1504 = vld [vmem:[#allocation2 + $0x9a] sm:$0x1]
    %v1505 = vperm.slane %v1503, 0
    %v1506 = vperm.slane %v1504, 0
    %v1507 = vsel %vm287, %v1505, %v1506
    %v1508 = vsel %vm288, %v1505, %v1506
    %v1509 = vsel %vm289, %v1505, %v1506
    %v1510 = vmul.f32 %v243, %v1507
    %v1511 = vmul.f32 %v247, %v1508
    %v1512 = vmul.f32 %v251, %v1509
    %v1513 = vadd.f32 %v1500, %v1510
    %v1514 = vadd.f32 %v1501, %v1511
    %v1515 = vadd.f32 %v1502, %v1512
    %v1516 = vld [vmem:[#allocation2 + $0x98] sm:$0x1]
    %v1517 = vld [vmem:[#allocation2 + $0x9b] sm:$0x1]
    %v1518 = vperm.slane %v1516, 0
    %v1519 = vperm.slane %v1517, 0
    %v1520 = vsel %vm287, %v1518, %v1519
    %v1521 = vsel %vm288, %v1518, %v1519
    %v1522 = vsel %vm289, %v1518, %v1519
    %v1523 = vmul.f32 %v255, %v1520
    %v1524 = vmul.f32 %v259, %v1521
    %v1525 = vmul.f32 %v263, %v1522
    %v1526 = vadd.f32 %v1513, %v1523
    %v1527 = vadd.f32 %v1514, %v1524
    %v1528 = vadd.f32 %v1515, %v1525
    %v1529 = vmax.f32 %v1526, -1.7320508
    %v1530 = vmax.f32 %v1527, -1.7320508
    %v1531 = vmax.f32 %v1528, -1.7320508
    %v1532 = vmin.f32 %v1529, 3.732051
    %v1533 = vmin.f32 %v1530, 3.732051
    %v1534 = vmin.f32 %v1531, 3.732051
    %1535 = vst [vmem:[#allocation3 + $0x258] sm:$0xff] %v1532
    %1536 = vst [vmem:[#allocation3 + $0x260] sm:$0xff] %v1533
    %1537 = vst [vmem:[#allocation3 + $0x268] sm:$0xff] %v1534
    %v1538 = vld [vmem:[#allocation2 + $0x9c] sm:$0x1]
    %v1539 = vld [vmem:[#allocation2 + $0x9f] sm:$0x1]
    %v1540 = vperm.slane %v1538, 0
    %v1541 = vperm.slane %v1539, 0
    %v1542 = vsel %vm287, %v1540, %v1541
    %v1543 = vsel %vm288, %v1540, %v1541
    %v1544 = vsel %vm289, %v1540, %v1541
    %v1545 = vmul.f32 %v229, %v1542
    %v1546 = vmul.f32 %v234, %v1543
    %v1547 = vmul.f32 %v239, %v1544
    %v1548 = vadd.f32 %v271, %v1545
    %v1549 = vadd.f32 %v276, %v1546
    %v1550 = vadd.f32 %v281, %v1547
    %v1551 = vld [vmem:[#allocation2 + $0x9d] sm:$0x1]
    %v1552 = vld [vmem:[#allocation2 + $0xa0] sm:$0x1]
    %v1553 = vperm.slane %v1551, 0
    %v1554 = vperm.slane %v1552, 0
    %v1555 = vsel %vm287, %v1553, %v1554
    %v1556 = vsel %vm288, %v1553, %v1554
    %v1557 = vsel %vm289, %v1553, %v1554
    %v1558 = vmul.f32 %v243, %v1555
    %v1559 = vmul.f32 %v247, %v1556
    %v1560 = vmul.f32 %v251, %v1557
    %v1561 = vadd.f32 %v1548, %v1558
    %v1562 = vadd.f32 %v1549, %v1559
    %v1563 = vadd.f32 %v1550, %v1560
    %v1564 = vld [vmem:[#allocation2 + $0x9e] sm:$0x1]
    %v1565 = vld [vmem:[#allocation2 + $0xa1] sm:$0x1]
    %v1566 = vperm.slane %v1564, 0
    %v1567 = vperm.slane %v1565, 0
    %v1568 = vsel %vm287, %v1566, %v1567
    %v1569 = vsel %vm288, %v1566, %v1567
    %v1570 = vsel %vm289, %v1566, %v1567
    %v1571 = vmul.f32 %v255, %v1568
    %v1572 = vmul.f32 %v259, %v1569
    %v1573 = vmul.f32 %v263, %v1570
    %v1574 = vadd.f32 %v1561, %v1571
    %v1575 = vadd.f32 %v1562, %v1572
    %v1576 = vadd.f32 %v1563, %v1573
    %v1577 = vmax.f32 %v1574, -1.7320508
    %v1578 = vmax.f32 %v1575, -1.7320508
    %v1579 = vmax.f32 %v1576, -1.7320508
    %v1580 = vmin.f32 %v1577, 3.732051
    %v1581 = vmin.f32 %v1578, 3.732051
    %v1582 = vmin.f32 %v1579, 3.732051
    %1583 = vst [vmem:[#allocation3 + $0x270] sm:$0xff] %v1580
    %1584 = vst [vmem:[#allocation3 + $0x278] sm:$0xff] %v1581
    %1585 = vst [vmem:[#allocation3 + $0x280] sm:$0xff] %v1582
    %v1586 = vld [vmem:[#allocation2 + $0xa2] sm:$0x1]
    %v1587 = vld [vmem:[#allocation2 + $0xa5] sm:$0x1]
    %v1588 = vperm.slane %v1586, 0
    %v1589 = vperm.slane %v1587, 0
    %v1590 = vsel %vm287, %v1588, %v1589
    %v1591 = vsel %vm288, %v1588, %v1589
    %v1592 = vsel %vm289, %v1588, %v1589
    %v1593 = vmul.f32 %v229, %v1590
    %v1594 = vmul.f32 %v234, %v1591
    %v1595 = vmul.f32 %v239, %v1592
    %v1596 = vadd.f32 %v271, %v1593
    %v1597 = vadd.f32 %v276, %v1594
    %v1598 = vadd.f32 %v281, %v1595
    %v1599 = vld [vmem:[#allocation2 + $0xa3] sm:$0x1]
    %v1600 = vld [vmem:[#allocation2 + $0xa6] sm:$0x1]
    %v1601 = vperm.slane %v1599, 0
    %v1602 = vperm.slane %v1600, 0
    %v1603 = vsel %vm287, %v1601, %v1602
    %v1604 = vsel %vm288, %v1601, %v1602
    %v1605 = vsel %vm289, %v1601, %v1602
    %v1606 = vmul.f32 %v243, %v1603
    %v1607 = vmul.f32 %v247, %v1604
    %v1608 = vmul.f32 %v251, %v1605
    %v1609 = vadd.f32 %v1596, %v1606
    %v1610 = vadd.f32 %v1597, %v1607
    %v1611 = vadd.f32 %v1598, %v1608
    %v1612 = vld [vmem:[#allocation2 + $0xa4] sm:$0x1]
    %v1613 = vld [vmem:[#allocation2 + $0xa7] sm:$0x1]
    %v1614 = vperm.slane %v1612, 0
    %v1615 = vperm.slane %v1613, 0
    %v1616 = vsel %vm287, %v1614, %v1615
    %v1617 = vsel %vm288, %v1614, %v1615
    %v1618 = vsel %vm289, %v1614, %v1615
    %v1619 = vmul.f32 %v255, %v1616
    %v1620 = vmul.f32 %v259, %v1617
    %v1621 = vmul.f32 %v263, %v1618
    %v1622 = vadd.f32 %v1609, %v1619
    %v1623 = vadd.f32 %v1610, %v1620
    %v1624 = vadd.f32 %v1611, %v1621
    %v1625 = vmax.f32 %v1622, -1.7320508
    %v1626 = vmax.f32 %v1623, -1.7320508
    %v1627 = vmax.f32 %v1624, -1.7320508
    %v1628 = vmin.f32 %v1625, 3.732051
    %v1629 = vmin.f32 %v1626, 3.732051
    %v1630 = vmin.f32 %v1627, 3.732051
    %1631 = vst [vmem:[#allocation3 + $0x288] sm:$0xff] %v1628
    %1632 = vst [vmem:[#allocation3 + $0x290] sm:$0xff] %v1629
    %1633 = vst [vmem:[#allocation3 + $0x298] sm:$0xff] %v1630
    %v1634 = vld [vmem:[#allocation2 + $0xa8] sm:$0x1]
    %v1635 = vld [vmem:[#allocation2 + $0xab] sm:$0x1]
    %v1636 = vperm.slane %v1634, 0
    %v1637 = vperm.slane %v1635, 0
    %v1638 = vsel %vm287, %v1636, %v1637
    %v1639 = vsel %vm288, %v1636, %v1637
    %v1640 = vsel %vm289, %v1636, %v1637
    %v1641 = vmul.f32 %v229, %v1638
    %v1642 = vmul.f32 %v234, %v1639
    %v1643 = vmul.f32 %v239, %v1640
    %v1644 = vadd.f32 %v271, %v1641
    %v1645 = vadd.f32 %v276, %v1642
    %v1646 = vadd.f32 %v281, %v1643
    %v1647 = vld [vmem:[#allocation2 + $0xa9] sm:$0x1]
    %v1648 = vld [vmem:[#allocation2 + $0xac] sm:$0x1]
    %v1649 = vperm.slane %v1647, 0
    %v1650 = vperm.slane %v1648, 0
    %v1651 = vsel %vm287, %v1649, %v1650
    %v1652 = vsel %vm288, %v1649, %v1650
    %v1653 = vsel %vm289, %v1649, %v1650
    %v1654 = vmul.f32 %v243, %v1651
    %v1655 = vmul.f32 %v247, %v1652
    %v1656 = vmul.f32 %v251, %v1653
    %v1657 = vadd.f32 %v1644, %v1654
    %v1658 = vadd.f32 %v1645, %v1655
    %v1659 = vadd.f32 %v1646, %v1656
    %v1660 = vld [vmem:[#allocation2 + $0xaa] sm:$0x1]
    %v1661 = vld [vmem:[#allocation2 + $0xad] sm:$0x1]
    %v1662 = vperm.slane %v1660, 0
    %v1663 = vperm.slane %v1661, 0
    %v1664 = vsel %vm287, %v1662, %v1663
    %v1665 = vsel %vm288, %v1662, %v1663
    %v1666 = vsel %vm289, %v1662, %v1663
    %v1667 = vmul.f32 %v255, %v1664
    %v1668 = vmul.f32 %v259, %v1665
    %v1669 = vmul.f32 %v263, %v1666
    %v1670 = vadd.f32 %v1657, %v1667
    %v1671 = vadd.f32 %v1658, %v1668
    %v1672 = vadd.f32 %v1659, %v1669
    %v1673 = vmax.f32 %v1670, -1.7320508
    %v1674 = vmax.f32 %v1671, -1.7320508
    %v1675 = vmax.f32 %v1672, -1.7320508
    %v1676 = vmin.f32 %v1673, 3.732051
    %v1677 = vmin.f32 %v1674, 3.732051
    %v1678 = vmin.f32 %v1675, 3.732051
    %1679 = vst [vmem:[#allocation3 + $0x2a0] sm:$0xff] %v1676
    %1680 = vst [vmem:[#allocation3 + $0x2a8] sm:$0xff] %v1677
    %1681 = vst [vmem:[#allocation3 + $0x2b0] sm:$0xff] %v1678
    %v1682 = vld [vmem:[#allocation2 + $0xae] sm:$0x1]
    %v1683 = vld [vmem:[#allocation2 + $0xb1] sm:$0x1]
    %v1684 = vperm.slane %v1682, 0
    %v1685 = vperm.slane %v1683, 0
    %v1686 = vsel %vm287, %v1684, %v1685
    %v1687 = vsel %vm288, %v1684, %v1685
    %v1688 = vsel %vm289, %v1684, %v1685
    %v1689 = vmul.f32 %v229, %v1686
    %v1690 = vmul.f32 %v234, %v1687
    %v1691 = vmul.f32 %v239, %v1688
    %v1692 = vadd.f32 %v271, %v1689
    %v1693 = vadd.f32 %v276, %v1690
    %v1694 = vadd.f32 %v281, %v1691
    %v1695 = vld [vmem:[#allocation2 + $0xaf] sm:$0x1]
    %v1696 = vld [vmem:[#allocation2 + $0xb2] sm:$0x1]
    %v1697 = vperm.slane %v1695, 0
    %v1698 = vperm.slane %v1696, 0
    %v1699 = vsel %vm287, %v1697, %v1698
    %v1700 = vsel %vm288, %v1697, %v1698
    %v1701 = vsel %vm289, %v1697, %v1698
    %v1702 = vmul.f32 %v243, %v1699
    %v1703 = vmul.f32 %v247, %v1700
    %v1704 = vmul.f32 %v251, %v1701
    %v1705 = vadd.f32 %v1692, %v1702
    %v1706 = vadd.f32 %v1693, %v1703
    %v1707 = vadd.f32 %v1694, %v1704
    %v1708 = vld [vmem:[#allocation2 + $0xb0] sm:$0x1]
    %v1709 = vld [vmem:[#allocation2 + $0xb3] sm:$0x1]
    %v1710 = vperm.slane %v1708, 0
    %v1711 = vperm.slane %v1709, 0
    %v1712 = vsel %vm287, %v1710, %v1711
    %v1713 = vsel %vm288, %v1710, %v1711
    %v1714 = vsel %vm289, %v1710, %v1711
    %v1715 = vmul.f32 %v255, %v1712
    %v1716 = vmul.f32 %v259, %v1713
    %v1717 = vmul.f32 %v263, %v1714
    %v1718 = vadd.f32 %v1705, %v1715
    %v1719 = vadd.f32 %v1706, %v1716
    %v1720 = vadd.f32 %v1707, %v1717
    %v1721 = vmax.f32 %v1718, -1.7320508
    %v1722 = vmax.f32 %v1719, -1.7320508
    %v1723 = vmax.f32 %v1720, -1.7320508
    %v1724 = vmin.f32 %v1721, 3.732051
    %v1725 = vmin.f32 %v1722, 3.732051
    %v1726 = vmin.f32 %v1723, 3.732051
    %1727 = vst [vmem:[#allocation3 + $0x2b8] sm:$0xff] %v1724
    %1728 = vst [vmem:[#allocation3 + $0x2c0] sm:$0xff] %v1725
    %1729 = vst [vmem:[#allocation3 + $0x2c8] sm:$0xff] %v1726
    %v1730 = vld [vmem:[#allocation2 + $0xb4] sm:$0x1]
    %v1731 = vld [vmem:[#allocation2 + $0xb7] sm:$0x1]
    %v1732 = vperm.slane %v1730, 0
    %v1733 = vperm.slane %v1731, 0
    %v1734 = vsel %vm287, %v1732, %v1733
    %v1735 = vsel %vm288, %v1732, %v1733
    %v1736 = vsel %vm289, %v1732, %v1733
    %v1737 = vmul.f32 %v229, %v1734
    %v1738 = vmul.f32 %v234, %v1735
    %v1739 = vmul.f32 %v239, %v1736
    %v1740 = vadd.f32 %v271, %v1737
    %v1741 = vadd.f32 %v276, %v1738
    %v1742 = vadd.f32 %v281, %v1739
    %v1743 = vld [vmem:[#allocation2 + $0xb5] sm:$0x1]
    %v1744 = vld [vmem:[#allocation2 + $0xb8] sm:$0x1]
    %v1745 = vperm.slane %v1743, 0
    %v1746 = vperm.slane %v1744, 0
    %v1747 = vsel %vm287, %v1745, %v1746
    %v1748 = vsel %vm288, %v1745, %v1746
    %v1749 = vsel %vm289, %v1745, %v1746
    %v1750 = vmul.f32 %v243, %v1747
    %v1751 = vmul.f32 %v247, %v1748
    %v1752 = vmul.f32 %v251, %v1749
    %v1753 = vadd.f32 %v1740, %v1750
    %v1754 = vadd.f32 %v1741, %v1751
    %v1755 = vadd.f32 %v1742, %v1752
    %v1756 = vld [vmem:[#allocation2 + $0xb6] sm:$0x1]
    %v1757 = vld [vmem:[#allocation2 + $0xb9] sm:$0x1]
    %v1758 = vperm.slane %v1756, 0
    %v1759 = vperm.slane %v1757, 0
    %v1760 = vsel %vm287, %v1758, %v1759
    %v1761 = vsel %vm288, %v1758, %v1759
    %v1762 = vsel %vm289, %v1758, %v1759
    %v1763 = vmul.f32 %v255, %v1760
    %v1764 = vmul.f32 %v259, %v1761
    %v1765 = vmul.f32 %v263, %v1762
    %v1766 = vadd.f32 %v1753, %v1763
    %v1767 = vadd.f32 %v1754, %v1764
    %v1768 = vadd.f32 %v1755, %v1765
    %v1769 = vmax.f32 %v1766, -1.7320508
    %v1770 = vmax.f32 %v1767, -1.7320508
    %v1771 = vmax.f32 %v1768, -1.7320508
    %v1772 = vmin.f32 %v1769, 3.732051
    %v1773 = vmin.f32 %v1770, 3.732051
    %v1774 = vmin.f32 %v1771, 3.732051
    %1775 = vst [vmem:[#allocation3 + $0x2d0] sm:$0xff] %v1772
    %1776 = vst [vmem:[#allocation3 + $0x2d8] sm:$0xff] %v1773
    %1777 = vst [vmem:[#allocation3 + $0x2e0] sm:$0xff] %v1774
    %v1778 = vld [vmem:[#allocation2 + $0xba] sm:$0x1]
    %v1779 = vld [vmem:[#allocation2 + $0xbd] sm:$0x1]
    %v1780 = vperm.slane %v1778, 0
    %v1781 = vperm.slane %v1779, 0
    %v1782 = vsel %vm287, %v1780, %v1781
    %v1783 = vsel %vm288, %v1780, %v1781
    %v1784 = vsel %vm289, %v1780, %v1781
    %v1785 = vmul.f32 %v229, %v1782
    %v1786 = vmul.f32 %v234, %v1783
    %v1787 = vmul.f32 %v239, %v1784
    %v1788 = vadd.f32 %v271, %v1785
    %v1789 = vadd.f32 %v276, %v1786
    %v1790 = vadd.f32 %v281, %v1787
    %v1791 = vld [vmem:[#allocation2 + $0xbb] sm:$0x1]
    %v1792 = vld [vmem:[#allocation2 + $0xbe] sm:$0x1]
    %v1793 = vperm.slane %v1791, 0
    %v1794 = vperm.slane %v1792, 0
    %v1795 = vsel %vm287, %v1793, %v1794
    %v1796 = vsel %vm288, %v1793, %v1794
    %v1797 = vsel %vm289, %v1793, %v1794
    %v1798 = vmul.f32 %v243, %v1795
    %v1799 = vmul.f32 %v247, %v1796
    %v1800 = vmul.f32 %v251, %v1797
    %v1801 = vadd.f32 %v1788, %v1798
    %v1802 = vadd.f32 %v1789, %v1799
    %v1803 = vadd.f32 %v1790, %v1800
    %v1804 = vld [vmem:[#allocation2 + $0xbc] sm:$0x1]
    %v1805 = vld [vmem:[#allocation2 + $0xbf] sm:$0x1]
    %v1806 = vperm.slane %v1804, 0
    %v1807 = vperm.slane %v1805, 0
    %v1808 = vsel %vm287, %v1806, %v1807
    %v1809 = vsel %vm288, %v1806, %v1807
    %v1810 = vsel %vm289, %v1806, %v1807
    %v1811 = vmul.f32 %v255, %v1808
    %v1812 = vmul.f32 %v259, %v1809
    %v1813 = vmul.f32 %v263, %v1810
    %v1814 = vadd.f32 %v1801, %v1811
    %v1815 = vadd.f32 %v1802, %v1812
    %v1816 = vadd.f32 %v1803, %v1813
    %v1817 = vmax.f32 %v1814, -1.7320508
    %v1818 = vmax.f32 %v1815, -1.7320508
    %v1819 = vmax.f32 %v1816, -1.7320508
    %v1820 = vmin.f32 %v1817, 3.732051
    %v1821 = vmin.f32 %v1818, 3.732051
    %v1822 = vmin.f32 %v1819, 3.732051
    %1823 = vst [vmem:[#allocation3 + $0x2e8] sm:$0xff] %v1820
    %1824 = vst [vmem:[#allocation3 + $0x2f0] sm:$0xff] %v1821
    %1825 = vst [vmem:[#allocation3 + $0x2f8] sm:$0xff] %v1822
    %v1826 = vld [vmem:[#allocation2 + $0xc0] sm:$0x1]
    %v1827 = vld [vmem:[#allocation2 + $0xc3] sm:$0x1]
    %v1828 = vperm.slane %v1826, 0
    %v1829 = vperm.slane %v1827, 0
    %v1830 = vsel %vm287, %v1828, %v1829
    %v1831 = vsel %vm288, %v1828, %v1829
    %v1832 = vsel %vm289, %v1828, %v1829
    %v1833 = vmul.f32 %v229, %v1830
    %v1834 = vmul.f32 %v234, %v1831
    %v1835 = vmul.f32 %v239, %v1832
    %v1836 = vadd.f32 %v271, %v1833
    %v1837 = vadd.f32 %v276, %v1834
    %v1838 = vadd.f32 %v281, %v1835
    %v1839 = vld [vmem:[#allocation2 + $0xc1] sm:$0x1]
    %v1840 = vld [vmem:[#allocation2 + $0xc4] sm:$0x1]
    %v1841 = vperm.slane %v1839, 0
    %v1842 = vperm.slane %v1840, 0
    %v1843 = vsel %vm287, %v1841, %v1842
    %v1844 = vsel %vm288, %v1841, %v1842
    %v1845 = vsel %vm289, %v1841, %v1842
    %v1846 = vmul.f32 %v243, %v1843
    %v1847 = vmul.f32 %v247, %v1844
    %v1848 = vmul.f32 %v251, %v1845
    %v1849 = vadd.f32 %v1836, %v1846
    %v1850 = vadd.f32 %v1837, %v1847
    %v1851 = vadd.f32 %v1838, %v1848
    %v1852 = vld [vmem:[#allocation2 + $0xc2] sm:$0x1]
    %v1853 = vld [vmem:[#allocation2 + $0xc5] sm:$0x1]
    %v1854 = vperm.slane %v1852, 0
    %v1855 = vperm.slane %v1853, 0
    %v1856 = vsel %vm287, %v1854, %v1855
    %v1857 = vsel %vm288, %v1854, %v1855
    %v1858 = vsel %vm289, %v1854, %v1855
    %v1859 = vmul.f32 %v255, %v1856
    %v1860 = vmul.f32 %v259, %v1857
    %v1861 = vmul.f32 %v263, %v1858
    %v1862 = vadd.f32 %v1849, %v1859
    %v1863 = vadd.f32 %v1850, %v1860
    %v1864 = vadd.f32 %v1851, %v1861
    %v1865 = vmax.f32 %v1862, -1.7320508
    %v1866 = vmax.f32 %v1863, -1.7320508
    %v1867 = vmax.f32 %v1864, -1.7320508
    %v1868 = vmin.f32 %v1865, 3.732051
    %v1869 = vmin.f32 %v1866, 3.732051
    %v1870 = vmin.f32 %v1867, 3.732051
    %1871 = vst [vmem:[#allocation3 + $0x300] sm:$0xff] %v1868
    %1872 = vst [vmem:[#allocation3 + $0x308] sm:$0xff] %v1869
    %1873 = vst [vmem:[#allocation3 + $0x310] sm:$0xff] %v1870
    %v1874 = vld [vmem:[#allocation2 + $0xc6] sm:$0x1]
    %v1875 = vld [vmem:[#allocation2 + $0xc9] sm:$0x1]
    %v1876 = vperm.slane %v1874, 0
    %v1877 = vperm.slane %v1875, 0
    %v1878 = vsel %vm287, %v1876, %v1877
    %v1879 = vsel %vm288, %v1876, %v1877
    %v1880 = vsel %vm289, %v1876, %v1877
    %v1881 = vmul.f32 %v229, %v1878
    %v1882 = vmul.f32 %v234, %v1879
    %v1883 = vmul.f32 %v239, %v1880
    %v1884 = vadd.f32 %v271, %v1881
    %v1885 = vadd.f32 %v276, %v1882
    %v1886 = vadd.f32 %v281, %v1883
    %v1887 = vld [vmem:[#allocation2 + $0xc7] sm:$0x1]
    %v1888 = vld [vmem:[#allocation2 + $0xca] sm:$0x1]
    %v1889 = vperm.slane %v1887, 0
    %v1890 = vperm.slane %v1888, 0
    %v1891 = vsel %vm287, %v1889, %v1890
    %v1892 = vsel %vm288, %v1889, %v1890
    %v1893 = vsel %vm289, %v1889, %v1890
    %v1894 = vmul.f32 %v243, %v1891
    %v1895 = vmul.f32 %v247, %v1892
    %v1896 = vmul.f32 %v251, %v1893
    %v1897 = vadd.f32 %v1884, %v1894
    %v1898 = vadd.f32 %v1885, %v1895
    %v1899 = vadd.f32 %v1886, %v1896
    %v1900 = vld [vmem:[#allocation2 + $0xc8] sm:$0x1]
    %v1901 = vld [vmem:[#allocation2 + $0xcb] sm:$0x1]
    %v1902 = vperm.slane %v1900, 0
    %v1903 = vperm.slane %v1901, 0
    %v1904 = vsel %vm287, %v1902, %v1903
    %v1905 = vsel %vm288, %v1902, %v1903
    %v1906 = vsel %vm289, %v1902, %v1903
    %v1907 = vmul.f32 %v255, %v1904
    %v1908 = vmul.f32 %v259, %v1905
    %v1909 = vmul.f32 %v263, %v1906
    %v1910 = vadd.f32 %v1897, %v1907
    %v1911 = vadd.f32 %v1898, %v1908
    %v1912 = vadd.f32 %v1899, %v1909
    %v1913 = vmax.f32 %v1910, -1.7320508
    %v1914 = vmax.f32 %v1911, -1.7320508
    %v1915 = vmax.f32 %v1912, -1.7320508
    %v1916 = vmin.f32 %v1913, 3.732051
    %v1917 = vmin.f32 %v1914, 3.732051
    %v1918 = vmin.f32 %v1915, 3.732051
    %1919 = vst [vmem:[#allocation3 + $0x318] sm:$0xff] %v1916
    %1920 = vst [vmem:[#allocation3 + $0x320] sm:$0xff] %v1917
    %1921 = vst [vmem:[#allocation3 + $0x328] sm:$0xff] %v1918
    %v1922 = vld [vmem:[#allocation2 + $0xcc] sm:$0x1]
    %v1923 = vld [vmem:[#allocation2 + $0xcf] sm:$0x1]
    %v1924 = vperm.slane %v1922, 0
    %v1925 = vperm.slane %v1923, 0
    %v1926 = vsel %vm287, %v1924, %v1925
    %v1927 = vsel %vm288, %v1924, %v1925
    %v1928 = vsel %vm289, %v1924, %v1925
    %v1929 = vmul.f32 %v229, %v1926
    %v1930 = vmul.f32 %v234, %v1927
    %v1931 = vmul.f32 %v239, %v1928
    %v1932 = vadd.f32 %v271, %v1929
    %v1933 = vadd.f32 %v276, %v1930
    %v1934 = vadd.f32 %v281, %v1931
    %v1935 = vld [vmem:[#allocation2 + $0xcd] sm:$0x1]
    %v1936 = vld [vmem:[#allocation2 + $0xd0] sm:$0x1]
    %v1937 = vperm.slane %v1935, 0
    %v1938 = vperm.slane %v1936, 0
    %v1939 = vsel %vm287, %v1937, %v1938
    %v1940 = vsel %vm288, %v1937, %v1938
    %v1941 = vsel %vm289, %v1937, %v1938
    %v1942 = vmul.f32 %v243, %v1939
    %v1943 = vmul.f32 %v247, %v1940
    %v1944 = vmul.f32 %v251, %v1941
    %v1945 = vadd.f32 %v1932, %v1942
    %v1946 = vadd.f32 %v1933, %v1943
    %v1947 = vadd.f32 %v1934, %v1944
    %v1948 = vld [vmem:[#allocation2 + $0xce] sm:$0x1]
    %v1949 = vld [vmem:[#allocation2 + $0xd1] sm:$0x1]
    %v1950 = vperm.slane %v1948, 0
    %v1951 = vperm.slane %v1949, 0
    %v1952 = vsel %vm287, %v1950, %v1951
    %v1953 = vsel %vm288, %v1950, %v1951
    %v1954 = vsel %vm289, %v1950, %v1951
    %v1955 = vmul.f32 %v255, %v1952
    %v1956 = vmul.f32 %v259, %v1953
    %v1957 = vmul.f32 %v263, %v1954
    %v1958 = vadd.f32 %v1945, %v1955
    %v1959 = vadd.f32 %v1946, %v1956
    %v1960 = vadd.f32 %v1947, %v1957
    %v1961 = vmax.f32 %v1958, -1.7320508
    %v1962 = vmax.f32 %v1959, -1.7320508
    %v1963 = vmax.f32 %v1960, -1.7320508
    %v1964 = vmin.f32 %v1961, 3.732051
    %v1965 = vmin.f32 %v1962, 3.732051
    %v1966 = vmin.f32 %v1963, 3.732051
    %1967 = vst [vmem:[#allocation3 + $0x330] sm:$0xff] %v1964
    %1968 = vst [vmem:[#allocation3 + $0x338] sm:$0xff] %v1965
    %1969 = vst [vmem:[#allocation3 + $0x340] sm:$0xff] %v1966
    %v1970 = vld [vmem:[#allocation2 + $0xd2] sm:$0x1]
    %v1971 = vld [vmem:[#allocation2 + $0xd5] sm:$0x1]
    %v1972 = vperm.slane %v1970, 0
    %v1973 = vperm.slane %v1971, 0
    %v1974 = vsel %vm287, %v1972, %v1973
    %v1975 = vsel %vm288, %v1972, %v1973
    %v1976 = vsel %vm289, %v1972, %v1973
    %v1977 = vmul.f32 %v229, %v1974
    %v1978 = vmul.f32 %v234, %v1975
    %v1979 = vmul.f32 %v239, %v1976
    %v1980 = vadd.f32 %v271, %v1977
    %v1981 = vadd.f32 %v276, %v1978
    %v1982 = vadd.f32 %v281, %v1979
    %v1983 = vld [vmem:[#allocation2 + $0xd3] sm:$0x1]
    %v1984 = vld [vmem:[#allocation2 + $0xd6] sm:$0x1]
    %v1985 = vperm.slane %v1983, 0
    %v1986 = vperm.slane %v1984, 0
    %v1987 = vsel %vm287, %v1985, %v1986
    %v1988 = vsel %vm288, %v1985, %v1986
    %v1989 = vsel %vm289, %v1985, %v1986
    %v1990 = vmul.f32 %v243, %v1987
    %v1991 = vmul.f32 %v247, %v1988
    %v1992 = vmul.f32 %v251, %v1989
    %v1993 = vadd.f32 %v1980, %v1990
    %v1994 = vadd.f32 %v1981, %v1991
    %v1995 = vadd.f32 %v1982, %v1992
    %v1996 = vld [vmem:[#allocation2 + $0xd4] sm:$0x1]
    %v1997 = vld [vmem:[#allocation2 + $0xd7] sm:$0x1]
    %v1998 = vperm.slane %v1996, 0
    %v1999 = vperm.slane %v1997, 0
    %v2000 = vsel %vm287, %v1998, %v1999
    %v2001 = vsel %vm288, %v1998, %v1999
    %v2002 = vsel %vm289, %v1998, %v1999
    %v2003 = vmul.f32 %v255, %v2000
    %v2004 = vmul.f32 %v259, %v2001
    %v2005 = vmul.f32 %v263, %v2002
    %v2006 = vadd.f32 %v1993, %v2003
    %v2007 = vadd.f32 %v1994, %v2004
    %v2008 = vadd.f32 %v1995, %v2005
    %v2009 = vmax.f32 %v2006, -1.7320508
    %v2010 = vmax.f32 %v2007, -1.7320508
    %v2011 = vmax.f32 %v2008, -1.7320508
    %v2012 = vmin.f32 %v2009, 3.732051
    %v2013 = vmin.f32 %v2010, 3.732051
    %v2014 = vmin.f32 %v2011, 3.732051
    %2015 = vst [vmem:[#allocation3 + $0x348] sm:$0xff] %v2012
    %2016 = vst [vmem:[#allocation3 + $0x350] sm:$0xff] %v2013
    %2017 = vst [vmem:[#allocation3 + $0x358] sm:$0xff] %v2014
    %v2018 = vld [vmem:[#allocation2 + $0xd8] sm:$0x1]
    %v2019 = vld [vmem:[#allocation2 + $0xdb] sm:$0x1]
    %v2020 = vperm.slane %v2018, 0
    %v2021 = vperm.slane %v2019, 0
    %v2022 = vsel %vm287, %v2020, %v2021
    %v2023 = vsel %vm288, %v2020, %v2021
    %v2024 = vsel %vm289, %v2020, %v2021
    %v2025 = vmul.f32 %v229, %v2022
    %v2026 = vmul.f32 %v234, %v2023
    %v2027 = vmul.f32 %v239, %v2024
    %v2028 = vadd.f32 %v271, %v2025
    %v2029 = vadd.f32 %v276, %v2026
    %v2030 = vadd.f32 %v281, %v2027
    %v2031 = vld [vmem:[#allocation2 + $0xd9] sm:$0x1]
    %v2032 = vld [vmem:[#allocation2 + $0xdc] sm:$0x1]
    %v2033 = vperm.slane %v2031, 0
    %v2034 = vperm.slane %v2032, 0
    %v2035 = vsel %vm287, %v2033, %v2034
    %v2036 = vsel %vm288, %v2033, %v2034
    %v2037 = vsel %vm289, %v2033, %v2034
    %v2038 = vmul.f32 %v243, %v2035
    %v2039 = vmul.f32 %v247, %v2036
    %v2040 = vmul.f32 %v251, %v2037
    %v2041 = vadd.f32 %v2028, %v2038
    %v2042 = vadd.f32 %v2029, %v2039
    %v2043 = vadd.f32 %v2030, %v2040
    %v2044 = vld [vmem:[#allocation2 + $0xda] sm:$0x1]
    %v2045 = vld [vmem:[#allocation2 + $0xdd] sm:$0x1]
    %v2046 = vperm.slane %v2044, 0
    %v2047 = vperm.slane %v2045, 0
    %v2048 = vsel %vm287, %v2046, %v2047
    %v2049 = vsel %vm288, %v2046, %v2047
    %v2050 = vsel %vm289, %v2046, %v2047
    %v2051 = vmul.f32 %v255, %v2048
    %v2052 = vmul.f32 %v259, %v2049
    %v2053 = vmul.f32 %v263, %v2050
    %v2054 = vadd.f32 %v2041, %v2051
    %v2055 = vadd.f32 %v2042, %v2052
    %v2056 = vadd.f32 %v2043, %v2053
    %v2057 = vmax.f32 %v2054, -1.7320508
    %v2058 = vmax.f32 %v2055, -1.7320508
    %v2059 = vmax.f32 %v2056, -1.7320508
    %v2060 = vmin.f32 %v2057, 3.732051
    %v2061 = vmin.f32 %v2058, 3.732051
    %v2062 = vmin.f32 %v2059, 3.732051
    %2063 = vst [vmem:[#allocation3 + $0x360] sm:$0xff] %v2060
    %2064 = vst [vmem:[#allocation3 + $0x368] sm:$0xff] %v2061
    %2065 = vst [vmem:[#allocation3 + $0x370] sm:$0xff] %v2062
    %v2066 = vld [vmem:[#allocation2 + $0xde] sm:$0x1]
    %v2067 = vld [vmem:[#allocation2 + $0xe1] sm:$0x1]
    %v2068 = vperm.slane %v2066, 0
    %v2069 = vperm.slane %v2067, 0
    %v2070 = vsel %vm287, %v2068, %v2069
    %v2071 = vsel %vm288, %v2068, %v2069
    %v2072 = vsel %vm289, %v2068, %v2069
    %v2073 = vmul.f32 %v229, %v2070
    %v2074 = vmul.f32 %v234, %v2071
    %v2075 = vmul.f32 %v239, %v2072
    %v2076 = vadd.f32 %v271, %v2073
    %v2077 = vadd.f32 %v276, %v2074
    %v2078 = vadd.f32 %v281, %v2075
    %v2079 = vld [vmem:[#allocation2 + $0xdf] sm:$0x1]
    %v2080 = vld [vmem:[#allocation2 + $0xe2] sm:$0x1]
    %v2081 = vperm.slane %v2079, 0
    %v2082 = vperm.slane %v2080, 0
    %v2083 = vsel %vm287, %v2081, %v2082
    %v2084 = vsel %vm288, %v2081, %v2082
    %v2085 = vsel %vm289, %v2081, %v2082
    %v2086 = vmul.f32 %v243, %v2083
    %v2087 = vmul.f32 %v247, %v2084
    %v2088 = vmul.f32 %v251, %v2085
    %v2089 = vadd.f32 %v2076, %v2086
    %v2090 = vadd.f32 %v2077, %v2087
    %v2091 = vadd.f32 %v2078, %v2088
    %v2092 = vld [vmem:[#allocation2 + $0xe0] sm:$0x1]
    %v2093 = vld [vmem:[#allocation2 + $0xe3] sm:$0x1]
    %v2094 = vperm.slane %v2092, 0
    %v2095 = vperm.slane %v2093, 0
    %v2096 = vsel %vm287, %v2094, %v2095
    %v2097 = vsel %vm288, %v2094, %v2095
    %v2098 = vsel %vm289, %v2094, %v2095
    %v2099 = vmul.f32 %v255, %v2096
    %v2100 = vmul.f32 %v259, %v2097
    %v2101 = vmul.f32 %v263, %v2098
    %v2102 = vadd.f32 %v2089, %v2099
    %v2103 = vadd.f32 %v2090, %v2100
    %v2104 = vadd.f32 %v2091, %v2101
    %v2105 = vmax.f32 %v2102, -1.7320508
    %v2106 = vmax.f32 %v2103, -1.7320508
    %v2107 = vmax.f32 %v2104, -1.7320508
    %v2108 = vmin.f32 %v2105, 3.732051
    %v2109 = vmin.f32 %v2106, 3.732051
    %v2110 = vmin.f32 %v2107, 3.732051
    %2111 = vst [vmem:[#allocation3 + $0x378] sm:$0xff] %v2108
    %2112 = vst [vmem:[#allocation3 + $0x380] sm:$0xff] %v2109
    %2113 = vst [vmem:[#allocation3 + $0x388] sm:$0xff] %v2110
    %v2114 = vld [vmem:[#allocation2 + $0xe4] sm:$0x1]
    %v2115 = vld [vmem:[#allocation2 + $0xe7] sm:$0x1]
    %v2116 = vperm.slane %v2114, 0
    %v2117 = vperm.slane %v2115, 0
    %v2118 = vsel %vm287, %v2116, %v2117
    %v2119 = vsel %vm288, %v2116, %v2117
    %v2120 = vsel %vm289, %v2116, %v2117
    %v2121 = vmul.f32 %v229, %v2118
    %v2122 = vmul.f32 %v234, %v2119
    %v2123 = vmul.f32 %v239, %v2120
    %v2124 = vadd.f32 %v271, %v2121
    %v2125 = vadd.f32 %v276, %v2122
    %v2126 = vadd.f32 %v281, %v2123
    %v2127 = vld [vmem:[#allocation2 + $0xe5] sm:$0x1]
    %v2128 = vld [vmem:[#allocation2 + $0xe8] sm:$0x1]
    %v2129 = vperm.slane %v2127, 0
    %v2130 = vperm.slane %v2128, 0
    %v2131 = vsel %vm287, %v2129, %v2130
    %v2132 = vsel %vm288, %v2129, %v2130
    %v2133 = vsel %vm289, %v2129, %v2130
    %v2134 = vmul.f32 %v243, %v2131
    %v2135 = vmul.f32 %v247, %v2132
    %v2136 = vmul.f32 %v251, %v2133
    %v2137 = vadd.f32 %v2124, %v2134
    %v2138 = vadd.f32 %v2125, %v2135
    %v2139 = vadd.f32 %v2126, %v2136
    %v2140 = vld [vmem:[#allocation2 + $0xe6] sm:$0x1]
    %v2141 = vld [vmem:[#allocation2 + $0xe9] sm:$0x1]
    %v2142 = vperm.slane %v2140, 0
    %v2143 = vperm.slane %v2141, 0
    %v2144 = vsel %vm287, %v2142, %v2143
    %v2145 = vsel %vm288, %v2142, %v2143
    %v2146 = vsel %vm289, %v2142, %v2143
    %v2147 = vmul.f32 %v255, %v2144
    %v2148 = vmul.f32 %v259, %v2145
    %v2149 = vmul.f32 %v263, %v2146
    %v2150 = vadd.f32 %v2137, %v2147
    %v2151 = vadd.f32 %v2138, %v2148
    %v2152 = vadd.f32 %v2139, %v2149
    %v2153 = vmax.f32 %v2150, -1.7320508
    %v2154 = vmax.f32 %v2151, -1.7320508
    %v2155 = vmax.f32 %v2152, -1.7320508
    %v2156 = vmin.f32 %v2153, 3.732051
    %v2157 = vmin.f32 %v2154, 3.732051
    %v2158 = vmin.f32 %v2155, 3.732051
    %2159 = vst [vmem:[#allocation3 + $0x390] sm:$0xff] %v2156
    %2160 = vst [vmem:[#allocation3 + $0x398] sm:$0xff] %v2157
    %2161 = vst [vmem:[#allocation3 + $0x3a0] sm:$0xff] %v2158
    %v2162 = vld [vmem:[#allocation2 + $0xea] sm:$0x1]
    %v2163 = vld [vmem:[#allocation2 + $0xed] sm:$0x1]
    %v2164 = vperm.slane %v2162, 0
    %v2165 = vperm.slane %v2163, 0
    %v2166 = vsel %vm287, %v2164, %v2165
    %v2167 = vsel %vm288, %v2164, %v2165
    %v2168 = vsel %vm289, %v2164, %v2165
    %v2169 = vmul.f32 %v229, %v2166
    %v2170 = vmul.f32 %v234, %v2167
    %v2171 = vmul.f32 %v239, %v2168
    %v2172 = vadd.f32 %v271, %v2169
    %v2173 = vadd.f32 %v276, %v2170
    %v2174 = vadd.f32 %v281, %v2171
    %v2175 = vld [vmem:[#allocation2 + $0xeb] sm:$0x1]
    %v2176 = vld [vmem:[#allocation2 + $0xee] sm:$0x1]
    %v2177 = vperm.slane %v2175, 0
    %v2178 = vperm.slane %v2176, 0
    %v2179 = vsel %vm287, %v2177, %v2178
    %v2180 = vsel %vm288, %v2177, %v2178
    %v2181 = vsel %vm289, %v2177, %v2178
    %v2182 = vmul.f32 %v243, %v2179
    %v2183 = vmul.f32 %v247, %v2180
    %v2184 = vmul.f32 %v251, %v2181
    %v2185 = vadd.f32 %v2172, %v2182
    %v2186 = vadd.f32 %v2173, %v2183
    %v2187 = vadd.f32 %v2174, %v2184
    %v2188 = vld [vmem:[#allocation2 + $0xec] sm:$0x1]
    %v2189 = vld [vmem:[#allocation2 + $0xef] sm:$0x1]
    %v2190 = vperm.slane %v2188, 0
    %v2191 = vperm.slane %v2189, 0
    %v2192 = vsel %vm287, %v2190, %v2191
    %v2193 = vsel %vm288, %v2190, %v2191
    %v2194 = vsel %vm289, %v2190, %v2191
    %v2195 = vmul.f32 %v255, %v2192
    %v2196 = vmul.f32 %v259, %v2193
    %v2197 = vmul.f32 %v263, %v2194
    %v2198 = vadd.f32 %v2185, %v2195
    %v2199 = vadd.f32 %v2186, %v2196
    %v2200 = vadd.f32 %v2187, %v2197
    %v2201 = vmax.f32 %v2198, -1.7320508
    %v2202 = vmax.f32 %v2199, -1.7320508
    %v2203 = vmax.f32 %v2200, -1.7320508
    %v2204 = vmin.f32 %v2201, 3.732051
    %v2205 = vmin.f32 %v2202, 3.732051
    %v2206 = vmin.f32 %v2203, 3.732051
    %2207 = vst [vmem:[#allocation3 + $0x3a8] sm:$0xff] %v2204
    %2208 = vst [vmem:[#allocation3 + $0x3b0] sm:$0xff] %v2205
    %2209 = vst [vmem:[#allocation3 + $0x3b8] sm:$0xff] %v2206
    %v2210 = vld [vmem:[#allocation2 + $0xf0] sm:$0x1]
    %v2211 = vld [vmem:[#allocation2 + $0xf3] sm:$0x1]
    %v2212 = vperm.slane %v2210, 0
    %v2213 = vperm.slane %v2211, 0
    %v2214 = vsel %vm287, %v2212, %v2213
    %v2215 = vsel %vm288, %v2212, %v2213
    %v2216 = vsel %vm289, %v2212, %v2213
    %v2217 = vmul.f32 %v229, %v2214
    %v2218 = vmul.f32 %v234, %v2215
    %v2219 = vmul.f32 %v239, %v2216
    %v2220 = vadd.f32 %v271, %v2217
    %v2221 = vadd.f32 %v276, %v2218
    %v2222 = vadd.f32 %v281, %v2219
    %v2223 = vld [vmem:[#allocation2 + $0xf1] sm:$0x1]
    %v2224 = vld [vmem:[#allocation2 + $0xf4] sm:$0x1]
    %v2225 = vperm.slane %v2223, 0
    %v2226 = vperm.slane %v2224, 0
    %v2227 = vsel %vm287, %v2225, %v2226
    %v2228 = vsel %vm288, %v2225, %v2226
    %v2229 = vsel %vm289, %v2225, %v2226
    %v2230 = vmul.f32 %v243, %v2227
    %v2231 = vmul.f32 %v247, %v2228
    %v2232 = vmul.f32 %v251, %v2229
    %v2233 = vadd.f32 %v2220, %v2230
    %v2234 = vadd.f32 %v2221, %v2231
    %v2235 = vadd.f32 %v2222, %v2232
    %v2236 = vld [vmem:[#allocation2 + $0xf2] sm:$0x1]
    %v2237 = vld [vmem:[#allocation2 + $0xf5] sm:$0x1]
    %v2238 = vperm.slane %v2236, 0
    %v2239 = vperm.slane %v2237, 0
    %v2240 = vsel %vm287, %v2238, %v2239
    %v2241 = vsel %vm288, %v2238, %v2239
    %v2242 = vsel %vm289, %v2238, %v2239
    %v2243 = vmul.f32 %v255, %v2240
    %v2244 = vmul.f32 %v259, %v2241
    %v2245 = vmul.f32 %v263, %v2242
    %v2246 = vadd.f32 %v2233, %v2243
    %v2247 = vadd.f32 %v2234, %v2244
    %v2248 = vadd.f32 %v2235, %v2245
    %v2249 = vmax.f32 %v2246, -1.7320508
    %v2250 = vmax.f32 %v2247, -1.7320508
    %v2251 = vmax.f32 %v2248, -1.7320508
    %v2252 = vmin.f32 %v2249, 3.732051
    %v2253 = vmin.f32 %v2250, 3.732051
    %v2254 = vmin.f32 %v2251, 3.732051
    %2255 = vst [vmem:[#allocation3 + $0x3c0] sm:$0xff] %v2252
    %2256 = vst [vmem:[#allocation3 + $0x3c8] sm:$0xff] %v2253
    %2257 = vst [vmem:[#allocation3 + $0x3d0] sm:$0xff] %v2254
    %v2258 = vld [vmem:[#allocation2 + $0xf6] sm:$0x1]
    %v2259 = vld [vmem:[#allocation2 + $0xf9] sm:$0x1]
    %v2260 = vperm.slane %v2258, 0
    %v2261 = vperm.slane %v2259, 0
    %v2262 = vsel %vm287, %v2260, %v2261
    %v2263 = vsel %vm288, %v2260, %v2261
    %v2264 = vsel %vm289, %v2260, %v2261
    %v2265 = vmul.f32 %v229, %v2262
    %v2266 = vmul.f32 %v234, %v2263
    %v2267 = vmul.f32 %v239, %v2264
    %v2268 = vadd.f32 %v271, %v2265
    %v2269 = vadd.f32 %v276, %v2266
    %v2270 = vadd.f32 %v281, %v2267
    %v2271 = vld [vmem:[#allocation2 + $0xf7] sm:$0x1]
    %v2272 = vld [vmem:[#allocation2 + $0xfa] sm:$0x1]
    %v2273 = vperm.slane %v2271, 0
    %v2274 = vperm.slane %v2272, 0
    %v2275 = vsel %vm287, %v2273, %v2274
    %v2276 = vsel %vm288, %v2273, %v2274
    %v2277 = vsel %vm289, %v2273, %v2274
    %v2278 = vmul.f32 %v243, %v2275
    %v2279 = vmul.f32 %v247, %v2276
    %v2280 = vmul.f32 %v251, %v2277
    %v2281 = vadd.f32 %v2268, %v2278
    %v2282 = vadd.f32 %v2269, %v2279
    %v2283 = vadd.f32 %v2270, %v2280
    %v2284 = vld [vmem:[#allocation2 + $0xf8] sm:$0x1]
    %v2285 = vld [vmem:[#allocation2 + $0xfb] sm:$0x1]
    %v2286 = vperm.slane %v2284, 0
    %v2287 = vperm.slane %v2285, 0
    %v2288 = vsel %vm287, %v2286, %v2287
    %v2289 = vsel %vm288, %v2286, %v2287
    %v2290 = vsel %vm289, %v2286, %v2287
    %v2291 = vmul.f32 %v255, %v2288
    %v2292 = vmul.f32 %v259, %v2289
    %v2293 = vmul.f32 %v263, %v2290
    %v2294 = vadd.f32 %v2281, %v2291
    %v2295 = vadd.f32 %v2282, %v2292
    %v2296 = vadd.f32 %v2283, %v2293
    %v2297 = vmax.f32 %v2294, -1.7320508
    %v2298 = vmax.f32 %v2295, -1.7320508
    %v2299 = vmax.f32 %v2296, -1.7320508
    %v2300 = vmin.f32 %v2297, 3.732051
    %v2301 = vmin.f32 %v2298, 3.732051
    %v2302 = vmin.f32 %v2299, 3.732051
    %2303 = vst [vmem:[#allocation3 + $0x3d8] sm:$0xff] %v2300
    %2304 = vst [vmem:[#allocation3 + $0x3e0] sm:$0xff] %v2301
    %2305 = vst [vmem:[#allocation3 + $0x3e8] sm:$0xff] %v2302
    %v2306 = vld [vmem:[#allocation2 + $0xfc] sm:$0x1]
    %v2307 = vld [vmem:[#allocation2 + $0xff] sm:$0x1]
    %v2308 = vperm.slane %v2306, 0
    %v2309 = vperm.slane %v2307, 0
    %v2310 = vsel %vm287, %v2308, %v2309
    %v2311 = vsel %vm288, %v2308, %v2309
    %v2312 = vsel %vm289, %v2308, %v2309
    %v2313 = vmul.f32 %v229, %v2310
    %v2314 = vmul.f32 %v234, %v2311
    %v2315 = vmul.f32 %v239, %v2312
    %v2316 = vadd.f32 %v271, %v2313
    %v2317 = vadd.f32 %v276, %v2314
    %v2318 = vadd.f32 %v281, %v2315
    %v2319 = vld [vmem:[#allocation2 + $0xfd] sm:$0x1]
    %v2320 = vld [vmem:[#allocation2 + $0x100] sm:$0x1]
    %v2321 = vperm.slane %v2319, 0
    %v2322 = vperm.slane %v2320, 0
    %v2323 = vsel %vm287, %v2321, %v2322
    %v2324 = vsel %vm288, %v2321, %v2322
    %v2325 = vsel %vm289, %v2321, %v2322
    %v2326 = vmul.f32 %v243, %v2323
    %v2327 = vmul.f32 %v247, %v2324
    %v2328 = vmul.f32 %v251, %v2325
    %v2329 = vadd.f32 %v2316, %v2326
    %v2330 = vadd.f32 %v2317, %v2327
    %v2331 = vadd.f32 %v2318, %v2328
    %v2332 = vld [vmem:[#allocation2 + $0xfe] sm:$0x1]
    %v2333 = vld [vmem:[#allocation2 + $0x101] sm:$0x1]
    %v2334 = vperm.slane %v2332, 0
    %v2335 = vperm.slane %v2333, 0
    %v2336 = vsel %vm287, %v2334, %v2335
    %v2337 = vsel %vm288, %v2334, %v2335
    %v2338 = vsel %vm289, %v2334, %v2335
    %v2339 = vmul.f32 %v255, %v2336
    %v2340 = vmul.f32 %v259, %v2337
    %v2341 = vmul.f32 %v263, %v2338
    %v2342 = vadd.f32 %v2329, %v2339
    %v2343 = vadd.f32 %v2330, %v2340
    %v2344 = vadd.f32 %v2331, %v2341
    %v2345 = vmax.f32 %v2342, -1.7320508
    %v2346 = vmax.f32 %v2343, -1.7320508
    %v2347 = vmax.f32 %v2344, -1.7320508
    %v2348 = vmin.f32 %v2345, 3.732051
    %v2349 = vmin.f32 %v2346, 3.732051
    %v2350 = vmin.f32 %v2347, 3.732051
    %2351 = vst [vmem:[#allocation3 + $0x3f0] sm:$0xff] %v2348
    %2352 = vst [vmem:[#allocation3 + $0x3f8] sm:$0xff] %v2349
    %2353 = vst [vmem:[#allocation3 + $0x400] sm:$0xff] %v2350
    %v2354 = vld [vmem:[#allocation2 + $0x102] sm:$0x1]
    %v2355 = vld [vmem:[#allocation2 + $0x105] sm:$0x1]
    %v2356 = vperm.slane %v2354, 0
    %v2357 = vperm.slane %v2355, 0
    %v2358 = vsel %vm287, %v2356, %v2357
    %v2359 = vsel %vm288, %v2356, %v2357
    %v2360 = vsel %vm289, %v2356, %v2357
    %v2361 = vmul.f32 %v229, %v2358
    %v2362 = vmul.f32 %v234, %v2359
    %v2363 = vmul.f32 %v239, %v2360
    %v2364 = vadd.f32 %v271, %v2361
    %v2365 = vadd.f32 %v276, %v2362
    %v2366 = vadd.f32 %v281, %v2363
    %v2367 = vld [vmem:[#allocation2 + $0x103] sm:$0x1]
    %v2368 = vld [vmem:[#allocation2 + $0x106] sm:$0x1]
    %v2369 = vperm.slane %v2367, 0
    %v2370 = vperm.slane %v2368, 0
    %v2371 = vsel %vm287, %v2369, %v2370
    %v2372 = vsel %vm288, %v2369, %v2370
    %v2373 = vsel %vm289, %v2369, %v2370
    %v2374 = vmul.f32 %v243, %v2371
    %v2375 = vmul.f32 %v247, %v2372
    %v2376 = vmul.f32 %v251, %v2373
    %v2377 = vadd.f32 %v2364, %v2374
    %v2378 = vadd.f32 %v2365, %v2375
    %v2379 = vadd.f32 %v2366, %v2376
    %v2380 = vld [vmem:[#allocation2 + $0x104] sm:$0x1]
    %v2381 = vld [vmem:[#allocation2 + $0x107] sm:$0x1]
    %v2382 = vperm.slane %v2380, 0
    %v2383 = vperm.slane %v2381, 0
    %v2384 = vsel %vm287, %v2382, %v2383
    %v2385 = vsel %vm288, %v2382, %v2383
    %v2386 = vsel %vm289, %v2382, %v2383
    %v2387 = vmul.f32 %v255, %v2384
    %v2388 = vmul.f32 %v259, %v2385
    %v2389 = vmul.f32 %v263, %v2386
    %v2390 = vadd.f32 %v2377, %v2387
    %v2391 = vadd.f32 %v2378, %v2388
    %v2392 = vadd.f32 %v2379, %v2389
    %v2393 = vmax.f32 %v2390, -1.7320508
    %v2394 = vmax.f32 %v2391, -1.7320508
    %v2395 = vmax.f32 %v2392, -1.7320508
    %v2396 = vmin.f32 %v2393, 3.732051
    %v2397 = vmin.f32 %v2394, 3.732051
    %v2398 = vmin.f32 %v2395, 3.732051
    %2399 = vst [vmem:[#allocation3 + $0x408] sm:$0xff] %v2396
    %2400 = vst [vmem:[#allocation3 + $0x410] sm:$0xff] %v2397
    %2401 = vst [vmem:[#allocation3 + $0x418] sm:$0xff] %v2398
    %v2402 = vld [vmem:[#allocation2 + $0x108] sm:$0x1]
    %v2403 = vld [vmem:[#allocation2 + $0x10b] sm:$0x1]
    %v2404 = vperm.slane %v2402, 0
    %v2405 = vperm.slane %v2403, 0
    %v2406 = vsel %vm287, %v2404, %v2405
    %v2407 = vsel %vm288, %v2404, %v2405
    %v2408 = vsel %vm289, %v2404, %v2405
    %v2409 = vmul.f32 %v229, %v2406
    %v2410 = vmul.f32 %v234, %v2407
    %v2411 = vmul.f32 %v239, %v2408
    %v2412 = vadd.f32 %v271, %v2409
    %v2413 = vadd.f32 %v276, %v2410
    %v2414 = vadd.f32 %v281, %v2411
    %v2415 = vld [vmem:[#allocation2 + $0x109] sm:$0x1]
    %v2416 = vld [vmem:[#allocation2 + $0x10c] sm:$0x1]
    %v2417 = vperm.slane %v2415, 0
    %v2418 = vperm.slane %v2416, 0
    %v2419 = vsel %vm287, %v2417, %v2418
    %v2420 = vsel %vm288, %v2417, %v2418
    %v2421 = vsel %vm289, %v2417, %v2418
    %v2422 = vmul.f32 %v243, %v2419
    %v2423 = vmul.f32 %v247, %v2420
    %v2424 = vmul.f32 %v251, %v2421
    %v2425 = vadd.f32 %v2412, %v2422
    %v2426 = vadd.f32 %v2413, %v2423
    %v2427 = vadd.f32 %v2414, %v2424
    %v2428 = vld [vmem:[#allocation2 + $0x10a] sm:$0x1]
    %v2429 = vld [vmem:[#allocation2 + $0x10d] sm:$0x1]
    %v2430 = vperm.slane %v2428, 0
    %v2431 = vperm.slane %v2429, 0
    %v2432 = vsel %vm287, %v2430, %v2431
    %v2433 = vsel %vm288, %v2430, %v2431
    %v2434 = vsel %vm289, %v2430, %v2431
    %v2435 = vmul.f32 %v255, %v2432
    %v2436 = vmul.f32 %v259, %v2433
    %v2437 = vmul.f32 %v263, %v2434
    %v2438 = vadd.f32 %v2425, %v2435
    %v2439 = vadd.f32 %v2426, %v2436
    %v2440 = vadd.f32 %v2427, %v2437
    %v2441 = vmax.f32 %v2438, -1.7320508
    %v2442 = vmax.f32 %v2439, -1.7320508
    %v2443 = vmax.f32 %v2440, -1.7320508
    %v2444 = vmin.f32 %v2441, 3.732051
    %v2445 = vmin.f32 %v2442, 3.732051
    %v2446 = vmin.f32 %v2443, 3.732051
    %2447 = vst [vmem:[#allocation3 + $0x420] sm:$0xff] %v2444
    %2448 = vst [vmem:[#allocation3 + $0x428] sm:$0xff] %v2445
    %2449 = vst [vmem:[#allocation3 + $0x430] sm:$0xff] %v2446
    %v2450 = vld [vmem:[#allocation2 + $0x10e] sm:$0x1]
    %v2451 = vld [vmem:[#allocation2 + $0x111] sm:$0x1]
    %v2452 = vperm.slane %v2450, 0
    %v2453 = vperm.slane %v2451, 0
    %v2454 = vsel %vm287, %v2452, %v2453
    %v2455 = vsel %vm288, %v2452, %v2453
    %v2456 = vsel %vm289, %v2452, %v2453
    %v2457 = vmul.f32 %v229, %v2454
    %v2458 = vmul.f32 %v234, %v2455
    %v2459 = vmul.f32 %v239, %v2456
    %v2460 = vadd.f32 %v271, %v2457
    %v2461 = vadd.f32 %v276, %v2458
    %v2462 = vadd.f32 %v281, %v2459
    %v2463 = vld [vmem:[#allocation2 + $0x10f] sm:$0x1]
    %v2464 = vld [vmem:[#allocation2 + $0x112] sm:$0x1]
    %v2465 = vperm.slane %v2463, 0
    %v2466 = vperm.slane %v2464, 0
    %v2467 = vsel %vm287, %v2465, %v2466
    %v2468 = vsel %vm288, %v2465, %v2466
    %v2469 = vsel %vm289, %v2465, %v2466
    %v2470 = vmul.f32 %v243, %v2467
    %v2471 = vmul.f32 %v247, %v2468
    %v2472 = vmul.f32 %v251, %v2469
    %v2473 = vadd.f32 %v2460, %v2470
    %v2474 = vadd.f32 %v2461, %v2471
    %v2475 = vadd.f32 %v2462, %v2472
    %v2476 = vld [vmem:[#allocation2 + $0x110] sm:$0x1]
    %v2477 = vld [vmem:[#allocation2 + $0x113] sm:$0x1]
    %v2478 = vperm.slane %v2476, 0
    %v2479 = vperm.slane %v2477, 0
    %v2480 = vsel %vm287, %v2478, %v2479
    %v2481 = vsel %vm288, %v2478, %v2479
    %v2482 = vsel %vm289, %v2478, %v2479
    %v2483 = vmul.f32 %v255, %v2480
    %v2484 = vmul.f32 %v259, %v2481
    %v2485 = vmul.f32 %v263, %v2482
    %v2486 = vadd.f32 %v2473, %v2483
    %v2487 = vadd.f32 %v2474, %v2484
    %v2488 = vadd.f32 %v2475, %v2485
    %v2489 = vmax.f32 %v2486, -1.7320508
    %v2490 = vmax.f32 %v2487, -1.7320508
    %v2491 = vmax.f32 %v2488, -1.7320508
    %v2492 = vmin.f32 %v2489, 3.732051
    %v2493 = vmin.f32 %v2490, 3.732051
    %v2494 = vmin.f32 %v2491, 3.732051
    %2495 = vst [vmem:[#allocation3 + $0x438] sm:$0xff] %v2492
    %2496 = vst [vmem:[#allocation3 + $0x440] sm:$0xff] %v2493
    %2497 = vst [vmem:[#allocation3 + $0x448] sm:$0xff] %v2494
    %v2498 = vld [vmem:[#allocation2 + $0x114] sm:$0x1]
    %v2499 = vld [vmem:[#allocation2 + $0x117] sm:$0x1]
    %v2500 = vperm.slane %v2498, 0
    %v2501 = vperm.slane %v2499, 0
    %v2502 = vsel %vm287, %v2500, %v2501
    %v2503 = vsel %vm288, %v2500, %v2501
    %v2504 = vsel %vm289, %v2500, %v2501
    %v2505 = vmul.f32 %v229, %v2502
    %v2506 = vmul.f32 %v234, %v2503
    %v2507 = vmul.f32 %v239, %v2504
    %v2508 = vadd.f32 %v271, %v2505
    %v2509 = vadd.f32 %v276, %v2506
    %v2510 = vadd.f32 %v281, %v2507
    %v2511 = vld [vmem:[#allocation2 + $0x115] sm:$0x1]
    %v2512 = vld [vmem:[#allocation2 + $0x118] sm:$0x1]
    %v2513 = vperm.slane %v2511, 0
    %v2514 = vperm.slane %v2512, 0
    %v2515 = vsel %vm287, %v2513, %v2514
    %v2516 = vsel %vm288, %v2513, %v2514
    %v2517 = vsel %vm289, %v2513, %v2514
    %v2518 = vmul.f32 %v243, %v2515
    %v2519 = vmul.f32 %v247, %v2516
    %v2520 = vmul.f32 %v251, %v2517
    %v2521 = vadd.f32 %v2508, %v2518
    %v2522 = vadd.f32 %v2509, %v2519
    %v2523 = vadd.f32 %v2510, %v2520
    %v2524 = vld [vmem:[#allocation2 + $0x116] sm:$0x1]
    %v2525 = vld [vmem:[#allocation2 + $0x119] sm:$0x1]
    %v2526 = vperm.slane %v2524, 0
    %v2527 = vperm.slane %v2525, 0
    %v2528 = vsel %vm287, %v2526, %v2527
    %v2529 = vsel %vm288, %v2526, %v2527
    %v2530 = vsel %vm289, %v2526, %v2527
    %v2531 = vmul.f32 %v255, %v2528
    %v2532 = vmul.f32 %v259, %v2529
    %v2533 = vmul.f32 %v263, %v2530
    %v2534 = vadd.f32 %v2521, %v2531
    %v2535 = vadd.f32 %v2522, %v2532
    %v2536 = vadd.f32 %v2523, %v2533
    %v2537 = vmax.f32 %v2534, -1.7320508
    %v2538 = vmax.f32 %v2535, -1.7320508
    %v2539 = vmax.f32 %v2536, -1.7320508
    %v2540 = vmin.f32 %v2537, 3.732051
    %v2541 = vmin.f32 %v2538, 3.732051
    %v2542 = vmin.f32 %v2539, 3.732051
    %2543 = vst [vmem:[#allocation3 + $0x450] sm:$0xff] %v2540
    %2544 = vst [vmem:[#allocation3 + $0x458] sm:$0xff] %v2541
    %2545 = vst [vmem:[#allocation3 + $0x460] sm:$0xff] %v2542
    %v2546 = vld [vmem:[#allocation2 + $0x11a] sm:$0x1]
    %v2547 = vld [vmem:[#allocation2 + $0x11d] sm:$0x1]
    %v2548 = vperm.slane %v2546, 0
    %v2549 = vperm.slane %v2547, 0
    %v2550 = vsel %vm287, %v2548, %v2549
    %v2551 = vsel %vm288, %v2548, %v2549
    %v2552 = vsel %vm289, %v2548, %v2549
    %v2553 = vmul.f32 %v229, %v2550
    %v2554 = vmul.f32 %v234, %v2551
    %v2555 = vmul.f32 %v239, %v2552
    %v2556 = vadd.f32 %v271, %v2553
    %v2557 = vadd.f32 %v276, %v2554
    %v2558 = vadd.f32 %v281, %v2555
    %v2559 = vld [vmem:[#allocation2 + $0x11b] sm:$0x1]
    %v2560 = vld [vmem:[#allocation2 + $0x11e] sm:$0x1]
    %v2561 = vperm.slane %v2559, 0
    %v2562 = vperm.slane %v2560, 0
    %v2563 = vsel %vm287, %v2561, %v2562
    %v2564 = vsel %vm288, %v2561, %v2562
    %v2565 = vsel %vm289, %v2561, %v2562
    %v2566 = vmul.f32 %v243, %v2563
    %v2567 = vmul.f32 %v247, %v2564
    %v2568 = vmul.f32 %v251, %v2565
    %v2569 = vadd.f32 %v2556, %v2566
    %v2570 = vadd.f32 %v2557, %v2567
    %v2571 = vadd.f32 %v2558, %v2568
    %v2572 = vld [vmem:[#allocation2 + $0x11c] sm:$0x1]
    %v2573 = vld [vmem:[#allocation2 + $0x11f] sm:$0x1]
    %v2574 = vperm.slane %v2572, 0
    %v2575 = vperm.slane %v2573, 0
    %v2576 = vsel %vm287, %v2574, %v2575
    %v2577 = vsel %vm288, %v2574, %v2575
    %v2578 = vsel %vm289, %v2574, %v2575
    %v2579 = vmul.f32 %v255, %v2576
    %v2580 = vmul.f32 %v259, %v2577
    %v2581 = vmul.f32 %v263, %v2578
    %v2582 = vadd.f32 %v2569, %v2579
    %v2583 = vadd.f32 %v2570, %v2580
    %v2584 = vadd.f32 %v2571, %v2581
    %v2585 = vmax.f32 %v2582, -1.7320508
    %v2586 = vmax.f32 %v2583, -1.7320508
    %v2587 = vmax.f32 %v2584, -1.7320508
    %v2588 = vmin.f32 %v2585, 3.732051
    %v2589 = vmin.f32 %v2586, 3.732051
    %v2590 = vmin.f32 %v2587, 3.732051
    %2591 = vst [vmem:[#allocation3 + $0x468] sm:$0xff] %v2588
    %2592 = vst [vmem:[#allocation3 + $0x470] sm:$0xff] %v2589
    %2593 = vst [vmem:[#allocation3 + $0x478] sm:$0xff] %v2590
    %v2594 = vld [vmem:[#allocation2 + $0x120] sm:$0x1]
    %v2595 = vld [vmem:[#allocation2 + $0x123] sm:$0x1]
    %v2596 = vperm.slane %v2594, 0
    %v2597 = vperm.slane %v2595, 0
    %v2598 = vsel %vm287, %v2596, %v2597
    %v2599 = vsel %vm288, %v2596, %v2597
    %v2600 = vsel %vm289, %v2596, %v2597
    %v2601 = vmul.f32 %v229, %v2598
    %v2602 = vmul.f32 %v234, %v2599
    %v2603 = vmul.f32 %v239, %v2600
    %v2604 = vadd.f32 %v271, %v2601
    %v2605 = vadd.f32 %v276, %v2602
    %v2606 = vadd.f32 %v281, %v2603
    %v2607 = vld [vmem:[#allocation2 + $0x121] sm:$0x1]
    %v2608 = vld [vmem:[#allocation2 + $0x124] sm:$0x1]
    %v2609 = vperm.slane %v2607, 0
    %v2610 = vperm.slane %v2608, 0
    %v2611 = vsel %vm287, %v2609, %v2610
    %v2612 = vsel %vm288, %v2609, %v2610
    %v2613 = vsel %vm289, %v2609, %v2610
    %v2614 = vmul.f32 %v243, %v2611
    %v2615 = vmul.f32 %v247, %v2612
    %v2616 = vmul.f32 %v251, %v2613
    %v2617 = vadd.f32 %v2604, %v2614
    %v2618 = vadd.f32 %v2605, %v2615
    %v2619 = vadd.f32 %v2606, %v2616
    %v2620 = vld [vmem:[#allocation2 + $0x122] sm:$0x1]
    %v2621 = vld [vmem:[#allocation2 + $0x125] sm:$0x1]
    %v2622 = vperm.slane %v2620, 0
    %v2623 = vperm.slane %v2621, 0
    %v2624 = vsel %vm287, %v2622, %v2623
    %v2625 = vsel %vm288, %v2622, %v2623
    %v2626 = vsel %vm289, %v2622, %v2623
    %v2627 = vmul.f32 %v255, %v2624
    %v2628 = vmul.f32 %v259, %v2625
    %v2629 = vmul.f32 %v263, %v2626
    %v2630 = vadd.f32 %v2617, %v2627
    %v2631 = vadd.f32 %v2618, %v2628
    %v2632 = vadd.f32 %v2619, %v2629
    %v2633 = vmax.f32 %v2630, -1.7320508
    %v2634 = vmax.f32 %v2631, -1.7320508
    %v2635 = vmax.f32 %v2632, -1.7320508
    %v2636 = vmin.f32 %v2633, 3.732051
    %v2637 = vmin.f32 %v2634, 3.732051
    %v2638 = vmin.f32 %v2635, 3.732051
    %2639 = vst [vmem:[#allocation3 + $0x480] sm:$0xff] %v2636
    %2640 = vst [vmem:[#allocation3 + $0x488] sm:$0xff] %v2637
    %2641 = vst [vmem:[#allocation3 + $0x490] sm:$0xff] %v2638
    %v2642 = vld [vmem:[#allocation2 + $0x126] sm:$0x1]
    %v2643 = vld [vmem:[#allocation2 + $0x129] sm:$0x1]
    %v2644 = vperm.slane %v2642, 0
    %v2645 = vperm.slane %v2643, 0
    %v2646 = vsel %vm287, %v2644, %v2645
    %v2647 = vsel %vm288, %v2644, %v2645
    %v2648 = vsel %vm289, %v2644, %v2645
    %v2649 = vmul.f32 %v229, %v2646
    %v2650 = vmul.f32 %v234, %v2647
    %v2651 = vmul.f32 %v239, %v2648
    %v2652 = vadd.f32 %v271, %v2649
    %v2653 = vadd.f32 %v276, %v2650
    %v2654 = vadd.f32 %v281, %v2651
    %v2655 = vld [vmem:[#allocation2 + $0x127] sm:$0x1]
    %v2656 = vld [vmem:[#allocation2 + $0x12a] sm:$0x1]
    %v2657 = vperm.slane %v2655, 0
    %v2658 = vperm.slane %v2656, 0
    %v2659 = vsel %vm287, %v2657, %v2658
    %v2660 = vsel %vm288, %v2657, %v2658
    %v2661 = vsel %vm289, %v2657, %v2658
    %v2662 = vmul.f32 %v243, %v2659
    %v2663 = vmul.f32 %v247, %v2660
    %v2664 = vmul.f32 %v251, %v2661
    %v2665 = vadd.f32 %v2652, %v2662
    %v2666 = vadd.f32 %v2653, %v2663
    %v2667 = vadd.f32 %v2654, %v2664
    %v2668 = vld [vmem:[#allocation2 + $0x128] sm:$0x1]
    %v2669 = vld [vmem:[#allocation2 + $0x12b] sm:$0x1]
    %v2670 = vperm.slane %v2668, 0
    %v2671 = vperm.slane %v2669, 0
    %v2672 = vsel %vm287, %v2670, %v2671
    %v2673 = vsel %vm288, %v2670, %v2671
    %v2674 = vsel %vm289, %v2670, %v2671
    %v2675 = vmul.f32 %v255, %v2672
    %v2676 = vmul.f32 %v259, %v2673
    %v2677 = vmul.f32 %v263, %v2674
    %v2678 = vadd.f32 %v2665, %v2675
    %v2679 = vadd.f32 %v2666, %v2676
    %v2680 = vadd.f32 %v2667, %v2677
    %v2681 = vmax.f32 %v2678, -1.7320508
    %v2682 = vmax.f32 %v2679, -1.7320508
    %v2683 = vmax.f32 %v2680, -1.7320508
    %v2684 = vmin.f32 %v2681, 3.732051
    %v2685 = vmin.f32 %v2682, 3.732051
    %v2686 = vmin.f32 %v2683, 3.732051
    %2687 = vst [vmem:[#allocation3 + $0x498] sm:$0xff] %v2684
    %2688 = vst [vmem:[#allocation3 + $0x4a0] sm:$0xff] %v2685
    %2689 = vst [vmem:[#allocation3 + $0x4a8] sm:$0xff] %v2686
    %v2690 = vld [vmem:[#allocation2 + $0x12c] sm:$0x1]
    %v2691 = vld [vmem:[#allocation2 + $0x12f] sm:$0x1]
    %v2692 = vperm.slane %v2690, 0
    %v2693 = vperm.slane %v2691, 0
    %v2694 = vsel %vm287, %v2692, %v2693
    %v2695 = vsel %vm288, %v2692, %v2693
    %v2696 = vsel %vm289, %v2692, %v2693
    %v2697 = vmul.f32 %v229, %v2694
    %v2698 = vmul.f32 %v234, %v2695
    %v2699 = vmul.f32 %v239, %v2696
    %v2700 = vadd.f32 %v271, %v2697
    %v2701 = vadd.f32 %v276, %v2698
    %v2702 = vadd.f32 %v281, %v2699
    %v2703 = vld [vmem:[#allocation2 + $0x12d] sm:$0x1]
    %v2704 = vld [vmem:[#allocation2 + $0x130] sm:$0x1]
    %v2705 = vperm.slane %v2703, 0
    %v2706 = vperm.slane %v2704, 0
    %v2707 = vsel %vm287, %v2705, %v2706
    %v2708 = vsel %vm288, %v2705, %v2706
    %v2709 = vsel %vm289, %v2705, %v2706
    %v2710 = vmul.f32 %v243, %v2707
    %v2711 = vmul.f32 %v247, %v2708
    %v2712 = vmul.f32 %v251, %v2709
    %v2713 = vadd.f32 %v2700, %v2710
    %v2714 = vadd.f32 %v2701, %v2711
    %v2715 = vadd.f32 %v2702, %v2712
    %v2716 = vld [vmem:[#allocation2 + $0x12e] sm:$0x1]
    %v2717 = vld [vmem:[#allocation2 + $0x131] sm:$0x1]
    %v2718 = vperm.slane %v2716, 0
    %v2719 = vperm.slane %v2717, 0
    %v2720 = vsel %vm287, %v2718, %v2719
    %v2721 = vsel %vm288, %v2718, %v2719
    %v2722 = vsel %vm289, %v2718, %v2719
    %v2723 = vmul.f32 %v255, %v2720
    %v2724 = vmul.f32 %v259, %v2721
    %v2725 = vmul.f32 %v263, %v2722
    %v2726 = vadd.f32 %v2713, %v2723
    %v2727 = vadd.f32 %v2714, %v2724
    %v2728 = vadd.f32 %v2715, %v2725
    %v2729 = vmax.f32 %v2726, -1.7320508
    %v2730 = vmax.f32 %v2727, -1.7320508
    %v2731 = vmax.f32 %v2728, -1.7320508
    %v2732 = vmin.f32 %v2729, 3.732051
    %v2733 = vmin.f32 %v2730, 3.732051
    %v2734 = vmin.f32 %v2731, 3.732051
    %2735 = vst [vmem:[#allocation3 + $0x4b0] sm:$0xff] %v2732
    %2736 = vst [vmem:[#allocation3 + $0x4b8] sm:$0xff] %v2733
    %2737 = vst [vmem:[#allocation3 + $0x4c0] sm:$0xff] %v2734
    %v2738 = vld [vmem:[#allocation2 + $0x132] sm:$0x1]
    %v2739 = vld [vmem:[#allocation2 + $0x135] sm:$0x1]
    %v2740 = vperm.slane %v2738, 0
    %v2741 = vperm.slane %v2739, 0
    %v2742 = vsel %vm287, %v2740, %v2741
    %v2743 = vsel %vm288, %v2740, %v2741
    %v2744 = vsel %vm289, %v2740, %v2741
    %v2745 = vmul.f32 %v229, %v2742
    %v2746 = vmul.f32 %v234, %v2743
    %v2747 = vmul.f32 %v239, %v2744
    %v2748 = vadd.f32 %v271, %v2745
    %v2749 = vadd.f32 %v276, %v2746
    %v2750 = vadd.f32 %v281, %v2747
    %v2751 = vld [vmem:[#allocation2 + $0x133] sm:$0x1]
    %v2752 = vld [vmem:[#allocation2 + $0x136] sm:$0x1]
    %v2753 = vperm.slane %v2751, 0
    %v2754 = vperm.slane %v2752, 0
    %v2755 = vsel %vm287, %v2753, %v2754
    %v2756 = vsel %vm288, %v2753, %v2754
    %v2757 = vsel %vm289, %v2753, %v2754
    %v2758 = vmul.f32 %v243, %v2755
    %v2759 = vmul.f32 %v247, %v2756
    %v2760 = vmul.f32 %v251, %v2757
    %v2761 = vadd.f32 %v2748, %v2758
    %v2762 = vadd.f32 %v2749, %v2759
    %v2763 = vadd.f32 %v2750, %v2760
    %v2764 = vld [vmem:[#allocation2 + $0x134] sm:$0x1]
    %v2765 = vld [vmem:[#allocation2 + $0x137] sm:$0x1]
    %v2766 = vperm.slane %v2764, 0
    %v2767 = vperm.slane %v2765, 0
    %v2768 = vsel %vm287, %v2766, %v2767
    %v2769 = vsel %vm288, %v2766, %v2767
    %v2770 = vsel %vm289, %v2766, %v2767
    %v2771 = vmul.f32 %v255, %v2768
    %v2772 = vmul.f32 %v259, %v2769
    %v2773 = vmul.f32 %v263, %v2770
    %v2774 = vadd.f32 %v2761, %v2771
    %v2775 = vadd.f32 %v2762, %v2772
    %v2776 = vadd.f32 %v2763, %v2773
    %v2777 = vmax.f32 %v2774, -1.7320508
    %v2778 = vmax.f32 %v2775, -1.7320508
    %v2779 = vmax.f32 %v2776, -1.7320508
    %v2780 = vmin.f32 %v2777, 3.732051
    %v2781 = vmin.f32 %v2778, 3.732051
    %v2782 = vmin.f32 %v2779, 3.732051
    %2783 = vst [vmem:[#allocation3 + $0x4c8] sm:$0xff] %v2780
    %2784 = vst [vmem:[#allocation3 + $0x4d0] sm:$0xff] %v2781
    %2785 = vst [vmem:[#allocation3 + $0x4d8] sm:$0xff] %v2782
    %v2786 = vld [vmem:[#allocation2 + $0x138] sm:$0x1]
    %v2787 = vld [vmem:[#allocation2 + $0x13b] sm:$0x1]
    %v2788 = vperm.slane %v2786, 0
    %v2789 = vperm.slane %v2787, 0
    %v2790 = vsel %vm287, %v2788, %v2789
    %v2791 = vsel %vm288, %v2788, %v2789
    %v2792 = vsel %vm289, %v2788, %v2789
    %v2793 = vmul.f32 %v229, %v2790
    %v2794 = vmul.f32 %v234, %v2791
    %v2795 = vmul.f32 %v239, %v2792
    %v2796 = vadd.f32 %v271, %v2793
    %v2797 = vadd.f32 %v276, %v2794
    %v2798 = vadd.f32 %v281, %v2795
    %v2799 = vld [vmem:[#allocation2 + $0x139] sm:$0x1]
    %v2800 = vld [vmem:[#allocation2 + $0x13c] sm:$0x1]
    %v2801 = vperm.slane %v2799, 0
    %v2802 = vperm.slane %v2800, 0
    %v2803 = vsel %vm287, %v2801, %v2802
    %v2804 = vsel %vm288, %v2801, %v2802
    %v2805 = vsel %vm289, %v2801, %v2802
    %v2806 = vmul.f32 %v243, %v2803
    %v2807 = vmul.f32 %v247, %v2804
    %v2808 = vmul.f32 %v251, %v2805
    %v2809 = vadd.f32 %v2796, %v2806
    %v2810 = vadd.f32 %v2797, %v2807
    %v2811 = vadd.f32 %v2798, %v2808
    %v2812 = vld [vmem:[#allocation2 + $0x13a] sm:$0x1]
    %v2813 = vld [vmem:[#allocation2 + $0x13d] sm:$0x1]
    %v2814 = vperm.slane %v2812, 0
    %v2815 = vperm.slane %v2813, 0
    %v2816 = vsel %vm287, %v2814, %v2815
    %v2817 = vsel %vm288, %v2814, %v2815
    %v2818 = vsel %vm289, %v2814, %v2815
    %v2819 = vmul.f32 %v255, %v2816
    %v2820 = vmul.f32 %v259, %v2817
    %v2821 = vmul.f32 %v263, %v2818
    %v2822 = vadd.f32 %v2809, %v2819
    %v2823 = vadd.f32 %v2810, %v2820
    %v2824 = vadd.f32 %v2811, %v2821
    %v2825 = vmax.f32 %v2822, -1.7320508
    %v2826 = vmax.f32 %v2823, -1.7320508
    %v2827 = vmax.f32 %v2824, -1.7320508
    %v2828 = vmin.f32 %v2825, 3.732051
    %v2829 = vmin.f32 %v2826, 3.732051
    %v2830 = vmin.f32 %v2827, 3.732051
    %2831 = vst [vmem:[#allocation3 + $0x4e0] sm:$0xff] %v2828
    %2832 = vst [vmem:[#allocation3 + $0x4e8] sm:$0xff] %v2829
    %2833 = vst [vmem:[#allocation3 + $0x4f0] sm:$0xff] %v2830
    %v2834 = vld [vmem:[#allocation2 + $0x13e] sm:$0x1]
    %v2835 = vld [vmem:[#allocation2 + $0x141] sm:$0x1]
    %v2836 = vperm.slane %v2834, 0
    %v2837 = vperm.slane %v2835, 0
    %v2838 = vsel %vm287, %v2836, %v2837
    %v2839 = vsel %vm288, %v2836, %v2837
    %v2840 = vsel %vm289, %v2836, %v2837
    %v2841 = vmul.f32 %v229, %v2838
    %v2842 = vmul.f32 %v234, %v2839
    %v2843 = vmul.f32 %v239, %v2840
    %v2844 = vadd.f32 %v271, %v2841
    %v2845 = vadd.f32 %v276, %v2842
    %v2846 = vadd.f32 %v281, %v2843
    %v2847 = vld [vmem:[#allocation2 + $0x13f] sm:$0x1]
    %v2848 = vld [vmem:[#allocation2 + $0x142] sm:$0x1]
    %v2849 = vperm.slane %v2847, 0
    %v2850 = vperm.slane %v2848, 0
    %v2851 = vsel %vm287, %v2849, %v2850
    %v2852 = vsel %vm288, %v2849, %v2850
    %v2853 = vsel %vm289, %v2849, %v2850
    %v2854 = vmul.f32 %v243, %v2851
    %v2855 = vmul.f32 %v247, %v2852
    %v2856 = vmul.f32 %v251, %v2853
    %v2857 = vadd.f32 %v2844, %v2854
    %v2858 = vadd.f32 %v2845, %v2855
    %v2859 = vadd.f32 %v2846, %v2856
    %v2860 = vld [vmem:[#allocation2 + $0x140] sm:$0x1]
    %v2861 = vld [vmem:[#allocation2 + $0x143] sm:$0x1]
    %v2862 = vperm.slane %v2860, 0
    %v2863 = vperm.slane %v2861, 0
    %v2864 = vsel %vm287, %v2862, %v2863
    %v2865 = vsel %vm288, %v2862, %v2863
    %v2866 = vsel %vm289, %v2862, %v2863
    %v2867 = vmul.f32 %v255, %v2864
    %v2868 = vmul.f32 %v259, %v2865
    %v2869 = vmul.f32 %v263, %v2866
    %v2870 = vadd.f32 %v2857, %v2867
    %v2871 = vadd.f32 %v2858, %v2868
    %v2872 = vadd.f32 %v2859, %v2869
    %v2873 = vmax.f32 %v2870, -1.7320508
    %v2874 = vmax.f32 %v2871, -1.7320508
    %v2875 = vmax.f32 %v2872, -1.7320508
    %v2876 = vmin.f32 %v2873, 3.732051
    %v2877 = vmin.f32 %v2874, 3.732051
    %v2878 = vmin.f32 %v2875, 3.732051
    %2879 = vst [vmem:[#allocation3 + $0x4f8] sm:$0xff] %v2876
    %2880 = vst [vmem:[#allocation3 + $0x500] sm:$0xff] %v2877
    %2881 = vst [vmem:[#allocation3 + $0x508] sm:$0xff] %v2878
    %v2882 = vld [vmem:[#allocation2 + $0x144] sm:$0x1]
    %v2883 = vld [vmem:[#allocation2 + $0x147] sm:$0x1]
    %v2884 = vperm.slane %v2882, 0
    %v2885 = vperm.slane %v2883, 0
    %v2886 = vsel %vm287, %v2884, %v2885
    %v2887 = vsel %vm288, %v2884, %v2885
    %v2888 = vsel %vm289, %v2884, %v2885
    %v2889 = vmul.f32 %v229, %v2886
    %v2890 = vmul.f32 %v234, %v2887
    %v2891 = vmul.f32 %v239, %v2888
    %v2892 = vadd.f32 %v271, %v2889
    %v2893 = vadd.f32 %v276, %v2890
    %v2894 = vadd.f32 %v281, %v2891
    %v2895 = vld [vmem:[#allocation2 + $0x145] sm:$0x1]
    %v2896 = vld [vmem:[#allocation2 + $0x148] sm:$0x1]
    %v2897 = vperm.slane %v2895, 0
    %v2898 = vperm.slane %v2896, 0
    %v2899 = vsel %vm287, %v2897, %v2898
    %v2900 = vsel %vm288, %v2897, %v2898
    %v2901 = vsel %vm289, %v2897, %v2898
    %v2902 = vmul.f32 %v243, %v2899
    %v2903 = vmul.f32 %v247, %v2900
    %v2904 = vmul.f32 %v251, %v2901
    %v2905 = vadd.f32 %v2892, %v2902
    %v2906 = vadd.f32 %v2893, %v2903
    %v2907 = vadd.f32 %v2894, %v2904
    %v2908 = vld [vmem:[#allocation2 + $0x146] sm:$0x1]
    %v2909 = vld [vmem:[#allocation2 + $0x149] sm:$0x1]
    %v2910 = vperm.slane %v2908, 0
    %v2911 = vperm.slane %v2909, 0
    %v2912 = vsel %vm287, %v2910, %v2911
    %v2913 = vsel %vm288, %v2910, %v2911
    %v2914 = vsel %vm289, %v2910, %v2911
    %v2915 = vmul.f32 %v255, %v2912
    %v2916 = vmul.f32 %v259, %v2913
    %v2917 = vmul.f32 %v263, %v2914
    %v2918 = vadd.f32 %v2905, %v2915
    %v2919 = vadd.f32 %v2906, %v2916
    %v2920 = vadd.f32 %v2907, %v2917
    %v2921 = vmax.f32 %v2918, -1.7320508
    %v2922 = vmax.f32 %v2919, -1.7320508
    %v2923 = vmax.f32 %v2920, -1.7320508
    %v2924 = vmin.f32 %v2921, 3.732051
    %v2925 = vmin.f32 %v2922, 3.732051
    %v2926 = vmin.f32 %v2923, 3.732051
    %2927 = vst [vmem:[#allocation3 + $0x510] sm:$0xff] %v2924
    %2928 = vst [vmem:[#allocation3 + $0x518] sm:$0xff] %v2925
    %2929 = vst [vmem:[#allocation3 + $0x520] sm:$0xff] %v2926
    %v2930 = vld [vmem:[#allocation2 + $0x14a] sm:$0x1]
    %v2931 = vld [vmem:[#allocation2 + $0x14d] sm:$0x1]
    %v2932 = vperm.slane %v2930, 0
    %v2933 = vperm.slane %v2931, 0
    %v2934 = vsel %vm287, %v2932, %v2933
    %v2935 = vsel %vm288, %v2932, %v2933
    %v2936 = vsel %vm289, %v2932, %v2933
    %v2937 = vmul.f32 %v229, %v2934
    %v2938 = vmul.f32 %v234, %v2935
    %v2939 = vmul.f32 %v239, %v2936
    %v2940 = vadd.f32 %v271, %v2937
    %v2941 = vadd.f32 %v276, %v2938
    %v2942 = vadd.f32 %v281, %v2939
    %v2943 = vld [vmem:[#allocation2 + $0x14b] sm:$0x1]
    %v2944 = vld [vmem:[#allocation2 + $0x14e] sm:$0x1]
    %v2945 = vperm.slane %v2943, 0
    %v2946 = vperm.slane %v2944, 0
    %v2947 = vsel %vm287, %v2945, %v2946
    %v2948 = vsel %vm288, %v2945, %v2946
    %v2949 = vsel %vm289, %v2945, %v2946
    %v2950 = vmul.f32 %v243, %v2947
    %v2951 = vmul.f32 %v247, %v2948
    %v2952 = vmul.f32 %v251, %v2949
    %v2953 = vadd.f32 %v2940, %v2950
    %v2954 = vadd.f32 %v2941, %v2951
    %v2955 = vadd.f32 %v2942, %v2952
    %v2956 = vld [vmem:[#allocation2 + $0x14c] sm:$0x1]
    %v2957 = vld [vmem:[#allocation2 + $0x14f] sm:$0x1]
    %v2958 = vperm.slane %v2956, 0
    %v2959 = vperm.slane %v2957, 0
    %v2960 = vsel %vm287, %v2958, %v2959
    %v2961 = vsel %vm288, %v2958, %v2959
    %v2962 = vsel %vm289, %v2958, %v2959
    %v2963 = vmul.f32 %v255, %v2960
    %v2964 = vmul.f32 %v259, %v2961
    %v2965 = vmul.f32 %v263, %v2962
    %v2966 = vadd.f32 %v2953, %v2963
    %v2967 = vadd.f32 %v2954, %v2964
    %v2968 = vadd.f32 %v2955, %v2965
    %v2969 = vmax.f32 %v2966, -1.7320508
    %v2970 = vmax.f32 %v2967, -1.7320508
    %v2971 = vmax.f32 %v2968, -1.7320508
    %v2972 = vmin.f32 %v2969, 3.732051
    %v2973 = vmin.f32 %v2970, 3.732051
    %v2974 = vmin.f32 %v2971, 3.732051
    %2975 = vst [vmem:[#allocation3 + $0x528] sm:$0xff] %v2972
    %2976 = vst [vmem:[#allocation3 + $0x530] sm:$0xff] %v2973
    %2977 = vst [vmem:[#allocation3 + $0x538] sm:$0xff] %v2974
    %v2978 = vld [vmem:[#allocation2 + $0x150] sm:$0x1]
    %v2979 = vld [vmem:[#allocation2 + $0x153] sm:$0x1]
    %v2980 = vperm.slane %v2978, 0
    %v2981 = vperm.slane %v2979, 0
    %v2982 = vsel %vm287, %v2980, %v2981
    %v2983 = vsel %vm288, %v2980, %v2981
    %v2984 = vsel %vm289, %v2980, %v2981
    %v2985 = vmul.f32 %v229, %v2982
    %v2986 = vmul.f32 %v234, %v2983
    %v2987 = vmul.f32 %v239, %v2984
    %v2988 = vadd.f32 %v271, %v2985
    %v2989 = vadd.f32 %v276, %v2986
    %v2990 = vadd.f32 %v281, %v2987
    %v2991 = vld [vmem:[#allocation2 + $0x151] sm:$0x1]
    %v2992 = vld [vmem:[#allocation2 + $0x154] sm:$0x1]
    %v2993 = vperm.slane %v2991, 0
    %v2994 = vperm.slane %v2992, 0
    %v2995 = vsel %vm287, %v2993, %v2994
    %v2996 = vsel %vm288, %v2993, %v2994
    %v2997 = vsel %vm289, %v2993, %v2994
    %v2998 = vmul.f32 %v243, %v2995
    %v2999 = vmul.f32 %v247, %v2996
    %v3000 = vmul.f32 %v251, %v2997
    %v3001 = vadd.f32 %v2988, %v2998
    %v3002 = vadd.f32 %v2989, %v2999
    %v3003 = vadd.f32 %v2990, %v3000
    %v3004 = vld [vmem:[#allocation2 + $0x152] sm:$0x1]
    %v3005 = vld [vmem:[#allocation2 + $0x155] sm:$0x1]
    %v3006 = vperm.slane %v3004, 0
    %v3007 = vperm.slane %v3005, 0
    %v3008 = vsel %vm287, %v3006, %v3007
    %v3009 = vsel %vm288, %v3006, %v3007
    %v3010 = vsel %vm289, %v3006, %v3007
    %v3011 = vmul.f32 %v255, %v3008
    %v3012 = vmul.f32 %v259, %v3009
    %v3013 = vmul.f32 %v263, %v3010
    %v3014 = vadd.f32 %v3001, %v3011
    %v3015 = vadd.f32 %v3002, %v3012
    %v3016 = vadd.f32 %v3003, %v3013
    %v3017 = vmax.f32 %v3014, -1.7320508
    %v3018 = vmax.f32 %v3015, -1.7320508
    %v3019 = vmax.f32 %v3016, -1.7320508
    %v3020 = vmin.f32 %v3017, 3.732051
    %v3021 = vmin.f32 %v3018, 3.732051
    %v3022 = vmin.f32 %v3019, 3.732051
    %3023 = vst [vmem:[#allocation3 + $0x540] sm:$0xff] %v3020
    %3024 = vst [vmem:[#allocation3 + $0x548] sm:$0xff] %v3021
    %3025 = vst [vmem:[#allocation3 + $0x550] sm:$0xff] %v3022
    %v3026 = vld [vmem:[#allocation2 + $0x156] sm:$0x1]
    %v3027 = vld [vmem:[#allocation2 + $0x159] sm:$0x1]
    %v3028 = vperm.slane %v3026, 0
    %v3029 = vperm.slane %v3027, 0
    %v3030 = vsel %vm287, %v3028, %v3029
    %v3031 = vsel %vm288, %v3028, %v3029
    %v3032 = vsel %vm289, %v3028, %v3029
    %v3033 = vmul.f32 %v229, %v3030
    %v3034 = vmul.f32 %v234, %v3031
    %v3035 = vmul.f32 %v239, %v3032
    %v3036 = vadd.f32 %v271, %v3033
    %v3037 = vadd.f32 %v276, %v3034
    %v3038 = vadd.f32 %v281, %v3035
    %v3039 = vld [vmem:[#allocation2 + $0x157] sm:$0x1]
    %v3040 = vld [vmem:[#allocation2 + $0x15a] sm:$0x1]
    %v3041 = vperm.slane %v3039, 0
    %v3042 = vperm.slane %v3040, 0
    %v3043 = vsel %vm287, %v3041, %v3042
    %v3044 = vsel %vm288, %v3041, %v3042
    %v3045 = vsel %vm289, %v3041, %v3042
    %v3046 = vmul.f32 %v243, %v3043
    %v3047 = vmul.f32 %v247, %v3044
    %v3048 = vmul.f32 %v251, %v3045
    %v3049 = vadd.f32 %v3036, %v3046
    %v3050 = vadd.f32 %v3037, %v3047
    %v3051 = vadd.f32 %v3038, %v3048
    %v3052 = vld [vmem:[#allocation2 + $0x158] sm:$0x1]
    %v3053 = vld [vmem:[#allocation2 + $0x15b] sm:$0x1]
    %v3054 = vperm.slane %v3052, 0
    %v3055 = vperm.slane %v3053, 0
    %v3056 = vsel %vm287, %v3054, %v3055
    %v3057 = vsel %vm288, %v3054, %v3055
    %v3058 = vsel %vm289, %v3054, %v3055
    %v3059 = vmul.f32 %v255, %v3056
    %v3060 = vmul.f32 %v259, %v3057
    %v3061 = vmul.f32 %v263, %v3058
    %v3062 = vadd.f32 %v3049, %v3059
    %v3063 = vadd.f32 %v3050, %v3060
    %v3064 = vadd.f32 %v3051, %v3061
    %v3065 = vmax.f32 %v3062, -1.7320508
    %v3066 = vmax.f32 %v3063, -1.7320508
    %v3067 = vmax.f32 %v3064, -1.7320508
    %v3068 = vmin.f32 %v3065, 3.732051
    %v3069 = vmin.f32 %v3066, 3.732051
    %v3070 = vmin.f32 %v3067, 3.732051
    %3071 = vst [vmem:[#allocation3 + $0x558] sm:$0xff] %v3068
    %3072 = vst [vmem:[#allocation3 + $0x560] sm:$0xff] %v3069
    %3073 = vst [vmem:[#allocation3 + $0x568] sm:$0xff] %v3070
    %v3074 = vld [vmem:[#allocation2 + $0x15c] sm:$0x1]
    %v3075 = vld [vmem:[#allocation2 + $0x15f] sm:$0x1]
    %v3076 = vperm.slane %v3074, 0
    %v3077 = vperm.slane %v3075, 0
    %v3078 = vsel %vm287, %v3076, %v3077
    %v3079 = vsel %vm288, %v3076, %v3077
    %v3080 = vsel %vm289, %v3076, %v3077
    %v3081 = vmul.f32 %v229, %v3078
    %v3082 = vmul.f32 %v234, %v3079
    %v3083 = vmul.f32 %v239, %v3080
    %v3084 = vadd.f32 %v271, %v3081
    %v3085 = vadd.f32 %v276, %v3082
    %v3086 = vadd.f32 %v281, %v3083
    %v3087 = vld [vmem:[#allocation2 + $0x15d] sm:$0x1]
    %v3088 = vld [vmem:[#allocation2 + $0x160] sm:$0x1]
    %v3089 = vperm.slane %v3087, 0
    %v3090 = vperm.slane %v3088, 0
    %v3091 = vsel %vm287, %v3089, %v3090
    %v3092 = vsel %vm288, %v3089, %v3090
    %v3093 = vsel %vm289, %v3089, %v3090
    %v3094 = vmul.f32 %v243, %v3091
    %v3095 = vmul.f32 %v247, %v3092
    %v3096 = vmul.f32 %v251, %v3093
    %v3097 = vadd.f32 %v3084, %v3094
    %v3098 = vadd.f32 %v3085, %v3095
    %v3099 = vadd.f32 %v3086, %v3096
    %v3100 = vld [vmem:[#allocation2 + $0x15e] sm:$0x1]
    %v3101 = vld [vmem:[#allocation2 + $0x161] sm:$0x1]
    %v3102 = vperm.slane %v3100, 0
    %v3103 = vperm.slane %v3101, 0
    %v3104 = vsel %vm287, %v3102, %v3103
    %v3105 = vsel %vm288, %v3102, %v3103
    %v3106 = vsel %vm289, %v3102, %v3103
    %v3107 = vmul.f32 %v255, %v3104
    %v3108 = vmul.f32 %v259, %v3105
    %v3109 = vmul.f32 %v263, %v3106
    %v3110 = vadd.f32 %v3097, %v3107
    %v3111 = vadd.f32 %v3098, %v3108
    %v3112 = vadd.f32 %v3099, %v3109
    %v3113 = vmax.f32 %v3110, -1.7320508
    %v3114 = vmax.f32 %v3111, -1.7320508
    %v3115 = vmax.f32 %v3112, -1.7320508
    %v3116 = vmin.f32 %v3113, 3.732051
    %v3117 = vmin.f32 %v3114, 3.732051
    %v3118 = vmin.f32 %v3115, 3.732051
    %3119 = vst [vmem:[#allocation3 + $0x570] sm:$0xff] %v3116
    %3120 = vst [vmem:[#allocation3 + $0x578] sm:$0xff] %v3117
    %3121 = vst [vmem:[#allocation3 + $0x580] sm:$0xff] %v3118
    %v3122 = vld [vmem:[#allocation2 + $0x162] sm:$0x1]
    %v3123 = vld [vmem:[#allocation2 + $0x165] sm:$0x1]
    %v3124 = vperm.slane %v3122, 0
    %v3125 = vperm.slane %v3123, 0
    %v3126 = vsel %vm287, %v3124, %v3125
    %v3127 = vsel %vm288, %v3124, %v3125
    %v3128 = vsel %vm289, %v3124, %v3125
    %v3129 = vmul.f32 %v229, %v3126
    %v3130 = vmul.f32 %v234, %v3127
    %v3131 = vmul.f32 %v239, %v3128
    %v3132 = vadd.f32 %v271, %v3129
    %v3133 = vadd.f32 %v276, %v3130
    %v3134 = vadd.f32 %v281, %v3131
    %v3135 = vld [vmem:[#allocation2 + $0x163] sm:$0x1]
    %v3136 = vld [vmem:[#allocation2 + $0x166] sm:$0x1]
    %v3137 = vperm.slane %v3135, 0
    %v3138 = vperm.slane %v3136, 0
    %v3139 = vsel %vm287, %v3137, %v3138
    %v3140 = vsel %vm288, %v3137, %v3138
    %v3141 = vsel %vm289, %v3137, %v3138
    %v3142 = vmul.f32 %v243, %v3139
    %v3143 = vmul.f32 %v247, %v3140
    %v3144 = vmul.f32 %v251, %v3141
    %v3145 = vadd.f32 %v3132, %v3142
    %v3146 = vadd.f32 %v3133, %v3143
    %v3147 = vadd.f32 %v3134, %v3144
    %v3148 = vld [vmem:[#allocation2 + $0x164] sm:$0x1]
    %v3149 = vld [vmem:[#allocation2 + $0x167] sm:$0x1]
    %v3150 = vperm.slane %v3148, 0
    %v3151 = vperm.slane %v3149, 0
    %v3152 = vsel %vm287, %v3150, %v3151
    %v3153 = vsel %vm288, %v3150, %v3151
    %v3154 = vsel %vm289, %v3150, %v3151
    %v3155 = vmul.f32 %v255, %v3152
    %v3156 = vmul.f32 %v259, %v3153
    %v3157 = vmul.f32 %v263, %v3154
    %v3158 = vadd.f32 %v3145, %v3155
    %v3159 = vadd.f32 %v3146, %v3156
    %v3160 = vadd.f32 %v3147, %v3157
    %v3161 = vmax.f32 %v3158, -1.7320508
    %v3162 = vmax.f32 %v3159, -1.7320508
    %v3163 = vmax.f32 %v3160, -1.7320508
    %v3164 = vmin.f32 %v3161, 3.732051
    %v3165 = vmin.f32 %v3162, 3.732051
    %v3166 = vmin.f32 %v3163, 3.732051
    %3167 = vst [vmem:[#allocation3 + $0x588] sm:$0xff] %v3164
    %3168 = vst [vmem:[#allocation3 + $0x590] sm:$0xff] %v3165
    %3169 = vst [vmem:[#allocation3 + $0x598] sm:$0xff] %v3166
    %v3170 = vld [vmem:[#allocation2 + $0x168] sm:$0x1]
    %v3171 = vld [vmem:[#allocation2 + $0x16b] sm:$0x1]
    %v3172 = vperm.slane %v3170, 0
    %v3173 = vperm.slane %v3171, 0
    %v3174 = vsel %vm287, %v3172, %v3173
    %v3175 = vsel %vm288, %v3172, %v3173
    %v3176 = vsel %vm289, %v3172, %v3173
    %v3177 = vmul.f32 %v229, %v3174
    %v3178 = vmul.f32 %v234, %v3175
    %v3179 = vmul.f32 %v239, %v3176
    %v3180 = vadd.f32 %v271, %v3177
    %v3181 = vadd.f32 %v276, %v3178
    %v3182 = vadd.f32 %v281, %v3179
    %v3183 = vld [vmem:[#allocation2 + $0x169] sm:$0x1]
    %v3184 = vld [vmem:[#allocation2 + $0x16c] sm:$0x1]
    %v3185 = vperm.slane %v3183, 0
    %v3186 = vperm.slane %v3184, 0
    %v3187 = vsel %vm287, %v3185, %v3186
    %v3188 = vsel %vm288, %v3185, %v3186
    %v3189 = vsel %vm289, %v3185, %v3186
    %v3190 = vmul.f32 %v243, %v3187
    %v3191 = vmul.f32 %v247, %v3188
    %v3192 = vmul.f32 %v251, %v3189
    %v3193 = vadd.f32 %v3180, %v3190
    %v3194 = vadd.f32 %v3181, %v3191
    %v3195 = vadd.f32 %v3182, %v3192
    %v3196 = vld [vmem:[#allocation2 + $0x16a] sm:$0x1]
    %v3197 = vld [vmem:[#allocation2 + $0x16d] sm:$0x1]
    %v3198 = vperm.slane %v3196, 0
    %v3199 = vperm.slane %v3197, 0
    %v3200 = vsel %vm287, %v3198, %v3199
    %v3201 = vsel %vm288, %v3198, %v3199
    %v3202 = vsel %vm289, %v3198, %v3199
    %v3203 = vmul.f32 %v255, %v3200
    %v3204 = vmul.f32 %v259, %v3201
    %v3205 = vmul.f32 %v263, %v3202
    %v3206 = vadd.f32 %v3193, %v3203
    %v3207 = vadd.f32 %v3194, %v3204
    %v3208 = vadd.f32 %v3195, %v3205
    %v3209 = vmax.f32 %v3206, -1.7320508
    %v3210 = vmax.f32 %v3207, -1.7320508
    %v3211 = vmax.f32 %v3208, -1.7320508
    %v3212 = vmin.f32 %v3209, 3.732051
    %v3213 = vmin.f32 %v3210, 3.732051
    %v3214 = vmin.f32 %v3211, 3.732051
    %3215 = vst [vmem:[#allocation3 + $0x5a0] sm:$0xff] %v3212
    %3216 = vst [vmem:[#allocation3 + $0x5a8] sm:$0xff] %v3213
    %3217 = vst [vmem:[#allocation3 + $0x5b0] sm:$0xff] %v3214
    %v3218 = vld [vmem:[#allocation2 + $0x16e] sm:$0x1]
    %v3219 = vld [vmem:[#allocation2 + $0x171] sm:$0x1]
    %v3220 = vperm.slane %v3218, 0
    %v3221 = vperm.slane %v3219, 0
    %v3222 = vsel %vm287, %v3220, %v3221
    %v3223 = vsel %vm288, %v3220, %v3221
    %v3224 = vsel %vm289, %v3220, %v3221
    %v3225 = vmul.f32 %v229, %v3222
    %v3226 = vmul.f32 %v234, %v3223
    %v3227 = vmul.f32 %v239, %v3224
    %v3228 = vadd.f32 %v271, %v3225
    %v3229 = vadd.f32 %v276, %v3226
    %v3230 = vadd.f32 %v281, %v3227
    %v3231 = vld [vmem:[#allocation2 + $0x16f] sm:$0x1]
    %v3232 = vld [vmem:[#allocation2 + $0x172] sm:$0x1]
    %v3233 = vperm.slane %v3231, 0
    %v3234 = vperm.slane %v3232, 0
    %v3235 = vsel %vm287, %v3233, %v3234
    %v3236 = vsel %vm288, %v3233, %v3234
    %v3237 = vsel %vm289, %v3233, %v3234
    %v3238 = vmul.f32 %v243, %v3235
    %v3239 = vmul.f32 %v247, %v3236
    %v3240 = vmul.f32 %v251, %v3237
    %v3241 = vadd.f32 %v3228, %v3238
    %v3242 = vadd.f32 %v3229, %v3239
    %v3243 = vadd.f32 %v3230, %v3240
    %v3244 = vld [vmem:[#allocation2 + $0x170] sm:$0x1]
    %v3245 = vld [vmem:[#allocation2 + $0x173] sm:$0x1]
    %v3246 = vperm.slane %v3244, 0
    %v3247 = vperm.slane %v3245, 0
    %v3248 = vsel %vm287, %v3246, %v3247
    %v3249 = vsel %vm288, %v3246, %v3247
    %v3250 = vsel %vm289, %v3246, %v3247
    %v3251 = vmul.f32 %v255, %v3248
    %v3252 = vmul.f32 %v259, %v3249
    %v3253 = vmul.f32 %v263, %v3250
    %v3254 = vadd.f32 %v3241, %v3251
    %v3255 = vadd.f32 %v3242, %v3252
    %v3256 = vadd.f32 %v3243, %v3253
    %v3257 = vmax.f32 %v3254, -1.7320508
    %v3258 = vmax.f32 %v3255, -1.7320508
    %v3259 = vmax.f32 %v3256, -1.7320508
    %v3260 = vmin.f32 %v3257, 3.732051
    %v3261 = vmin.f32 %v3258, 3.732051
    %v3262 = vmin.f32 %v3259, 3.732051
    %3263 = vst [vmem:[#allocation3 + $0x5b8] sm:$0xff] %v3260
    %3264 = vst [vmem:[#allocation3 + $0x5c0] sm:$0xff] %v3261
    %3265 = vst [vmem:[#allocation3 + $0x5c8] sm:$0xff] %v3262
    %v3266 = vld [vmem:[#allocation2 + $0x174] sm:$0x1]
    %v3267 = vld [vmem:[#allocation2 + $0x177] sm:$0x1]
    %v3268 = vperm.slane %v3266, 0
    %v3269 = vperm.slane %v3267, 0
    %v3270 = vsel %vm287, %v3268, %v3269
    %v3271 = vsel %vm288, %v3268, %v3269
    %v3272 = vsel %vm289, %v3268, %v3269
    %v3273 = vmul.f32 %v229, %v3270
    %v3274 = vmul.f32 %v234, %v3271
    %v3275 = vmul.f32 %v239, %v3272
    %v3276 = vadd.f32 %v271, %v3273
    %v3277 = vadd.f32 %v276, %v3274
    %v3278 = vadd.f32 %v281, %v3275
    %v3279 = vld [vmem:[#allocation2 + $0x175] sm:$0x1]
    %v3280 = vld [vmem:[#allocation2 + $0x178] sm:$0x1]
    %v3281 = vperm.slane %v3279, 0
    %v3282 = vperm.slane %v3280, 0
    %v3283 = vsel %vm287, %v3281, %v3282
    %v3284 = vsel %vm288, %v3281, %v3282
    %v3285 = vsel %vm289, %v3281, %v3282
    %v3286 = vmul.f32 %v243, %v3283
    %v3287 = vmul.f32 %v247, %v3284
    %v3288 = vmul.f32 %v251, %v3285
    %v3289 = vadd.f32 %v3276, %v3286
    %v3290 = vadd.f32 %v3277, %v3287
    %v3291 = vadd.f32 %v3278, %v3288
    %v3292 = vld [vmem:[#allocation2 + $0x176] sm:$0x1]
    %v3293 = vld [vmem:[#allocation2 + $0x179] sm:$0x1]
    %v3294 = vperm.slane %v3292, 0
    %v3295 = vperm.slane %v3293, 0
    %v3296 = vsel %vm287, %v3294, %v3295
    %v3297 = vsel %vm288, %v3294, %v3295
    %v3298 = vsel %vm289, %v3294, %v3295
    %v3299 = vmul.f32 %v255, %v3296
    %v3300 = vmul.f32 %v259, %v3297
    %v3301 = vmul.f32 %v263, %v3298
    %v3302 = vadd.f32 %v3289, %v3299
    %v3303 = vadd.f32 %v3290, %v3300
    %v3304 = vadd.f32 %v3291, %v3301
    %v3305 = vmax.f32 %v3302, -1.7320508
    %v3306 = vmax.f32 %v3303, -1.7320508
    %v3307 = vmax.f32 %v3304, -1.7320508
    %v3308 = vmin.f32 %v3305, 3.732051
    %v3309 = vmin.f32 %v3306, 3.732051
    %v3310 = vmin.f32 %v3307, 3.732051
    %3311 = vst [vmem:[#allocation3 + $0x5d0] sm:$0xff] %v3308
    %3312 = vst [vmem:[#allocation3 + $0x5d8] sm:$0xff] %v3309
    %3313 = vst [vmem:[#allocation3 + $0x5e0] sm:$0xff] %v3310
    %v3314 = vld [vmem:[#allocation2 + $0x17a] sm:$0x1]
    %v3315 = vld [vmem:[#allocation2 + $0x17d] sm:$0x1]
    %v3316 = vperm.slane %v3314, 0
    %v3317 = vperm.slane %v3315, 0
    %v3318 = vsel %vm287, %v3316, %v3317
    %v3319 = vsel %vm288, %v3316, %v3317
    %v3320 = vsel %vm289, %v3316, %v3317
    %v3321 = vmul.f32 %v229, %v3318
    %v3322 = vmul.f32 %v234, %v3319
    %v3323 = vmul.f32 %v239, %v3320
    %v3324 = vadd.f32 %v271, %v3321
    %v3325 = vadd.f32 %v276, %v3322
    %v3326 = vadd.f32 %v281, %v3323
    %v3327 = vld [vmem:[#allocation2 + $0x17b] sm:$0x1]
    %v3328 = vld [vmem:[#allocation2 + $0x17e] sm:$0x1]
    %v3329 = vperm.slane %v3327, 0
    %v3330 = vperm.slane %v3328, 0
    %v3331 = vsel %vm287, %v3329, %v3330
    %v3332 = vsel %vm288, %v3329, %v3330
    %v3333 = vsel %vm289, %v3329, %v3330
    %v3334 = vmul.f32 %v243, %v3331
    %v3335 = vmul.f32 %v247, %v3332
    %v3336 = vmul.f32 %v251, %v3333
    %v3337 = vadd.f32 %v3324, %v3334
    %v3338 = vadd.f32 %v3325, %v3335
    %v3339 = vadd.f32 %v3326, %v3336
    %v3340 = vld [vmem:[#allocation2 + $0x17c] sm:$0x1]
    %v3341 = vld [vmem:[#allocation2 + $0x17f] sm:$0x1]
    %v3342 = vperm.slane %v3340, 0
    %v3343 = vperm.slane %v3341, 0
    %v3344 = vsel %vm287, %v3342, %v3343
    %v3345 = vsel %vm288, %v3342, %v3343
    %v3346 = vsel %vm289, %v3342, %v3343
    %v3347 = vmul.f32 %v255, %v3344
    %v3348 = vmul.f32 %v259, %v3345
    %v3349 = vmul.f32 %v263, %v3346
    %v3350 = vadd.f32 %v3337, %v3347
    %v3351 = vadd.f32 %v3338, %v3348
    %v3352 = vadd.f32 %v3339, %v3349
    %v3353 = vmax.f32 %v3350, -1.7320508
    %v3354 = vmax.f32 %v3351, -1.7320508
    %v3355 = vmax.f32 %v3352, -1.7320508
    %v3356 = vmin.f32 %v3353, 3.732051
    %v3357 = vmin.f32 %v3354, 3.732051
    %v3358 = vmin.f32 %v3355, 3.732051
    %3359 = vst [vmem:[#allocation3 + $0x5e8] sm:$0xff] %v3356
    %3360 = vst [vmem:[#allocation3 + $0x5f0] sm:$0xff] %v3357
    %3361 = vst [vmem:[#allocation3 + $0x5f8] sm:$0xff] %v3358
    %v3362 = vld [vmem:[#allocation3] sm:$0xff]
    %v3363 = vld [vmem:[#allocation3 + $0x8] sm:$0xff]
    %v3364 = vld [vmem:[#allocation3 + $0x10] sm:$0xff]
    %v3365 = vld [vmem:[#allocation3 + $0x18] sm:$0xff]
    %v3366 = vld [vmem:[#allocation3 + $0x20] sm:$0xff]
    %v3367 = vld [vmem:[#allocation3 + $0x28] sm:$0xff]
    %v3368 = vld [vmem:[#allocation3 + $0x30] sm:$0xff]
    %v3369 = vld [vmem:[#allocation3 + $0x38] sm:$0xff]
    %v3370 = vld [vmem:[#allocation3 + $0x40] sm:$0xff]
    %v3371 = vld [vmem:[#allocation3 + $0x48] sm:$0xff]
    %v3372 = vld [vmem:[#allocation3 + $0x50] sm:$0xff]
    %v3373 = vld [vmem:[#allocation3 + $0x58] sm:$0xff]
    %v3374 = vld [vmem:[#allocation3 + $0x60] sm:$0xff]
    %v3375 = vld [vmem:[#allocation3 + $0x68] sm:$0xff]
    %v3376 = vld [vmem:[#allocation3 + $0x70] sm:$0xff]
    %v3377 = vld [vmem:[#allocation3 + $0x78] sm:$0xff]
    %v3378 = vld [vmem:[#allocation3 + $0x80] sm:$0xff]
    %v3379 = vld [vmem:[#allocation3 + $0x88] sm:$0xff]
    %v3380 = vld [vmem:[#allocation3 + $0x90] sm:$0xff]
    %v3381 = vld [vmem:[#allocation3 + $0x98] sm:$0xff]
    %v3382 = vld [vmem:[#allocation3 + $0xa0] sm:$0xff]
    %v3383 = vld [vmem:[#allocation3 + $0xa8] sm:$0xff]
    %v3384 = vld [vmem:[#allocation3 + $0xb0] sm:$0xff]
    %v3385 = vld [vmem:[#allocation3 + $0xb8] sm:$0xff]
    %v3386 = vld [vmem:[#allocation3 + $0xc0] sm:$0xff]
    %v3387 = vld [vmem:[#allocation3 + $0xc8] sm:$0xff]
    %v3388 = vld [vmem:[#allocation3 + $0xd0] sm:$0xff]
    %v3389 = vld [vmem:[#allocation3 + $0xd8] sm:$0xff]
    %v3390 = vld [vmem:[#allocation3 + $0xe0] sm:$0xff]
    %v3391 = vld [vmem:[#allocation3 + $0xe8] sm:$0xff]
    %v3392 = vld [vmem:[#allocation3 + $0xf0] sm:$0xff]
    %v3393 = vld [vmem:[#allocation3 + $0xf8] sm:$0xff]
    %v3394 = vld [vmem:[#allocation3 + $0x100] sm:$0xff]
    %v3395 = vld [vmem:[#allocation3 + $0x108] sm:$0xff]
    %v3396 = vld [vmem:[#allocation3 + $0x110] sm:$0xff]
    %v3397 = vld [vmem:[#allocation3 + $0x118] sm:$0xff]
    %v3398 = vld [vmem:[#allocation3 + $0x120] sm:$0xff]
    %v3399 = vld [vmem:[#allocation3 + $0x128] sm:$0xff]
    %v3400 = vld [vmem:[#allocation3 + $0x130] sm:$0xff]
    %v3401 = vld [vmem:[#allocation3 + $0x138] sm:$0xff]
    %v3402 = vld [vmem:[#allocation3 + $0x140] sm:$0xff]
    %v3403 = vld [vmem:[#allocation3 + $0x148] sm:$0xff]
    %v3404 = vld [vmem:[#allocation3 + $0x150] sm:$0xff]
    %v3405 = vld [vmem:[#allocation3 + $0x158] sm:$0xff]
    %v3406 = vld [vmem:[#allocation3 + $0x160] sm:$0xff]
    %v3407 = vld [vmem:[#allocation3 + $0x168] sm:$0xff]
    %v3408 = vld [vmem:[#allocation3 + $0x170] sm:$0xff]
    %v3409 = vld [vmem:[#allocation3 + $0x178] sm:$0xff]
    %v3410 = vld [vmem:[#allocation3 + $0x180] sm:$0xff]
    %v3411 = vld [vmem:[#allocation3 + $0x188] sm:$0xff]
    %v3412 = vld [vmem:[#allocation3 + $0x190] sm:$0xff]
    %v3413 = vld [vmem:[#allocation3 + $0x198] sm:$0xff]
    %v3414 = vld [vmem:[#allocation3 + $0x1a0] sm:$0xff]
    %v3415 = vld [vmem:[#allocation3 + $0x1a8] sm:$0xff]
    %v3416 = vld [vmem:[#allocation3 + $0x1b0] sm:$0xff]
    %v3417 = vld [vmem:[#allocation3 + $0x1b8] sm:$0xff]
    %v3418 = vld [vmem:[#allocation3 + $0x1c0] sm:$0xff]
    %v3419 = vld [vmem:[#allocation3 + $0x1c8] sm:$0xff]
    %v3420 = vld [vmem:[#allocation3 + $0x1d0] sm:$0xff]
    %v3421 = vld [vmem:[#allocation3 + $0x1d8] sm:$0xff]
    %v3422 = vld [vmem:[#allocation3 + $0x1e0] sm:$0xff]
    %v3423 = vld [vmem:[#allocation3 + $0x1e8] sm:$0xff]
    %v3424 = vld [vmem:[#allocation3 + $0x1f0] sm:$0xff]
    %v3425 = vld [vmem:[#allocation3 + $0x1f8] sm:$0xff]
    %v3426 = vld [vmem:[#allocation3 + $0x200] sm:$0xff]
    %v3427 = vld [vmem:[#allocation3 + $0x208] sm:$0xff]
    %v3428 = vld [vmem:[#allocation3 + $0x210] sm:$0xff]
    %v3429 = vld [vmem:[#allocation3 + $0x218] sm:$0xff]
    %v3430 = vld [vmem:[#allocation3 + $0x220] sm:$0xff]
    %v3431 = vld [vmem:[#allocation3 + $0x228] sm:$0xff]
    %v3432 = vld [vmem:[#allocation3 + $0x230] sm:$0xff]
    %v3433 = vld [vmem:[#allocation3 + $0x238] sm:$0xff]
    %v3434 = vld [vmem:[#allocation3 + $0x240] sm:$0xff]
    %v3435 = vld [vmem:[#allocation3 + $0x248] sm:$0xff]
    %v3436 = vld [vmem:[#allocation3 + $0x250] sm:$0xff]
    %v3437 = vld [vmem:[#allocation3 + $0x258] sm:$0xff]
    %v3438 = vld [vmem:[#allocation3 + $0x260] sm:$0xff]
    %v3439 = vld [vmem:[#allocation3 + $0x268] sm:$0xff]
    %v3440 = vld [vmem:[#allocation3 + $0x270] sm:$0xff]
    %v3441 = vld [vmem:[#allocation3 + $0x278] sm:$0xff]
    %v3442 = vld [vmem:[#allocation3 + $0x280] sm:$0xff]
    %v3443 = vld [vmem:[#allocation3 + $0x288] sm:$0xff]
    %v3444 = vld [vmem:[#allocation3 + $0x290] sm:$0xff]
    %v3445 = vld [vmem:[#allocation3 + $0x298] sm:$0xff]
    %v3446 = vld [vmem:[#allocation3 + $0x2a0] sm:$0xff]
    %v3447 = vld [vmem:[#allocation3 + $0x2a8] sm:$0xff]
    %v3448 = vld [vmem:[#allocation3 + $0x2b0] sm:$0xff]
    %v3449 = vld [vmem:[#allocation3 + $0x2b8] sm:$0xff]
    %v3450 = vld [vmem:[#allocation3 + $0x2c0] sm:$0xff]
    %v3451 = vld [vmem:[#allocation3 + $0x2c8] sm:$0xff]
    %v3452 = vld [vmem:[#allocation3 + $0x2d0] sm:$0xff]
    %v3453 = vld [vmem:[#allocation3 + $0x2d8] sm:$0xff]
    %v3454 = vld [vmem:[#allocation3 + $0x2e0] sm:$0xff]
    %v3455 = vld [vmem:[#allocation3 + $0x2e8] sm:$0xff]
    %v3456 = vld [vmem:[#allocation3 + $0x2f0] sm:$0xff]
    %v3457 = vld [vmem:[#allocation3 + $0x2f8] sm:$0xff]
    %v3458 = vld [vmem:[#allocation3 + $0x300] sm:$0xff]
    %v3459 = vld [vmem:[#allocation3 + $0x308] sm:$0xff]
    %v3460 = vld [vmem:[#allocation3 + $0x310] sm:$0xff]
    %v3461 = vld [vmem:[#allocation3 + $0x318] sm:$0xff]
    %v3462 = vld [vmem:[#allocation3 + $0x320] sm:$0xff]
    %v3463 = vld [vmem:[#allocation3 + $0x328] sm:$0xff]
    %v3464 = vld [vmem:[#allocation3 + $0x330] sm:$0xff]
    %v3465 = vld [vmem:[#allocation3 + $0x338] sm:$0xff]
    %v3466 = vld [vmem:[#allocation3 + $0x340] sm:$0xff]
    %v3467 = vld [vmem:[#allocation3 + $0x348] sm:$0xff]
    %v3468 = vld [vmem:[#allocation3 + $0x350] sm:$0xff]
    %v3469 = vld [vmem:[#allocation3 + $0x358] sm:$0xff]
    %v3470 = vld [vmem:[#allocation3 + $0x360] sm:$0xff]
    %v3471 = vld [vmem:[#allocation3 + $0x368] sm:$0xff]
    %v3472 = vld [vmem:[#allocation3 + $0x370] sm:$0xff]
    %v3473 = vld [vmem:[#allocation3 + $0x378] sm:$0xff]
    %v3474 = vld [vmem:[#allocation3 + $0x380] sm:$0xff]
    %v3475 = vld [vmem:[#allocation3 + $0x388] sm:$0xff]
    %v3476 = vld [vmem:[#allocation3 + $0x390] sm:$0xff]
    %v3477 = vld [vmem:[#allocation3 + $0x398] sm:$0xff]
    %v3478 = vld [vmem:[#allocation3 + $0x3a0] sm:$0xff]
    %v3479 = vld [vmem:[#allocation3 + $0x3a8] sm:$0xff]
    %v3480 = vld [vmem:[#allocation3 + $0x3b0] sm:$0xff]
    %v3481 = vld [vmem:[#allocation3 + $0x3b8] sm:$0xff]
    %v3482 = vld [vmem:[#allocation3 + $0x3c0] sm:$0xff]
    %v3483 = vld [vmem:[#allocation3 + $0x3c8] sm:$0xff]
    %v3484 = vld [vmem:[#allocation3 + $0x3d0] sm:$0xff]
    %v3485 = vld [vmem:[#allocation3 + $0x3d8] sm:$0xff]
    %v3486 = vld [vmem:[#allocation3 + $0x3e0] sm:$0xff]
    %v3487 = vld [vmem:[#allocation3 + $0x3e8] sm:$0xff]
    %v3488 = vld [vmem:[#allocation3 + $0x3f0] sm:$0xff]
    %v3489 = vld [vmem:[#allocation3 + $0x3f8] sm:$0xff]
    %v3490 = vld [vmem:[#allocation3 + $0x400] sm:$0xff]
    %v3491 = vld [vmem:[#allocation3 + $0x408] sm:$0xff]
    %v3492 = vld [vmem:[#allocation3 + $0x410] sm:$0xff]
    %v3493 = vld [vmem:[#allocation3 + $0x418] sm:$0xff]
    %v3494 = vld [vmem:[#allocation3 + $0x420] sm:$0xff]
    %v3495 = vld [vmem:[#allocation3 + $0x428] sm:$0xff]
    %v3496 = vld [vmem:[#allocation3 + $0x430] sm:$0xff]
    %v3497 = vld [vmem:[#allocation3 + $0x438] sm:$0xff]
    %v3498 = vld [vmem:[#allocation3 + $0x440] sm:$0xff]
    %v3499 = vld [vmem:[#allocation3 + $0x448] sm:$0xff]
    %v3500 = vld [vmem:[#allocation3 + $0x450] sm:$0xff]
    %v3501 = vld [vmem:[#allocation3 + $0x458] sm:$0xff]
    %v3502 = vld [vmem:[#allocation3 + $0x460] sm:$0xff]
    %v3503 = vld [vmem:[#allocation3 + $0x468] sm:$0xff]
    %v3504 = vld [vmem:[#allocation3 + $0x470] sm:$0xff]
    %v3505 = vld [vmem:[#allocation3 + $0x478] sm:$0xff]
    %v3506 = vld [vmem:[#allocation3 + $0x480] sm:$0xff]
    %v3507 = vld [vmem:[#allocation3 + $0x488] sm:$0xff]
    %v3508 = vld [vmem:[#allocation3 + $0x490] sm:$0xff]
    %v3509 = vld [vmem:[#allocation3 + $0x498] sm:$0xff]
    %v3510 = vld [vmem:[#allocation3 + $0x4a0] sm:$0xff]
    %v3511 = vld [vmem:[#allocation3 + $0x4a8] sm:$0xff]
    %v3512 = vld [vmem:[#allocation3 + $0x4b0] sm:$0xff]
    %v3513 = vld [vmem:[#allocation3 + $0x4b8] sm:$0xff]
    %v3514 = vld [vmem:[#allocation3 + $0x4c0] sm:$0xff]
    %v3515 = vld [vmem:[#allocation3 + $0x4c8] sm:$0xff]
    %v3516 = vld [vmem:[#allocation3 + $0x4d0] sm:$0xff]
    %v3517 = vld [vmem:[#allocation3 + $0x4d8] sm:$0xff]
    %v3518 = vld [vmem:[#allocation3 + $0x4e0] sm:$0xff]
    %v3519 = vld [vmem:[#allocation3 + $0x4e8] sm:$0xff]
    %v3520 = vld [vmem:[#allocation3 + $0x4f0] sm:$0xff]
    %v3521 = vld [vmem:[#allocation3 + $0x4f8] sm:$0xff]
    %v3522 = vld [vmem:[#allocation3 + $0x500] sm:$0xff]
    %v3523 = vld [vmem:[#allocation3 + $0x508] sm:$0xff]
    %v3524 = vld [vmem:[#allocation3 + $0x510] sm:$0xff]
    %v3525 = vld [vmem:[#allocation3 + $0x518] sm:$0xff]
    %v3526 = vld [vmem:[#allocation3 + $0x520] sm:$0xff]
    %v3527 = vld [vmem:[#allocation3 + $0x528] sm:$0xff]
    %v3528 = vld [vmem:[#allocation3 + $0x530] sm:$0xff]
    %v3529 = vld [vmem:[#allocation3 + $0x538] sm:$0xff]
    %v3530 = vld [vmem:[#allocation3 + $0x540] sm:$0xff]
    %v3531 = vld [vmem:[#allocation3 + $0x548] sm:$0xff]
    %v3532 = vld [vmem:[#allocation3 + $0x550] sm:$0xff]
    %v3533 = vld [vmem:[#allocation3 + $0x558] sm:$0xff]
    %v3534 = vld [vmem:[#allocation3 + $0x560] sm:$0xff]
    %v3535 = vld [vmem:[#allocation3 + $0x568] sm:$0xff]
    %v3536 = vld [vmem:[#allocation3 + $0x570] sm:$0xff]
    %v3537 = vld [vmem:[#allocation3 + $0x578] sm:$0xff]
    %v3538 = vld [vmem:[#allocation3 + $0x580] sm:$0xff]
    %v3539 = vld [vmem:[#allocation3 + $0x588] sm:$0xff]
    %v3540 = vld [vmem:[#allocation3 + $0x590] sm:$0xff]
    %v3541 = vld [vmem:[#allocation3 + $0x598] sm:$0xff]
    %v3542 = vld [vmem:[#allocation3 + $0x5a0] sm:$0xff]
    %v3543 = vld [vmem:[#allocation3 + $0x5a8] sm:$0xff]
    %v3544 = vld [vmem:[#allocation3 + $0x5b0] sm:$0xff]
    %v3545 = vld [vmem:[#allocation3 + $0x5b8] sm:$0xff]
    %v3546 = vld [vmem:[#allocation3 + $0x5c0] sm:$0xff]
    %v3547 = vld [vmem:[#allocation3 + $0x5c8] sm:$0xff]
    %v3548 = vld [vmem:[#allocation3 + $0x5d0] sm:$0xff]
    %v3549 = vld [vmem:[#allocation3 + $0x5d8] sm:$0xff]
    %v3550 = vld [vmem:[#allocation3 + $0x5e0] sm:$0xff]
    %v3551 = vld [vmem:[#allocation3 + $0x5e8] sm:$0xff]
    %v3552 = vld [vmem:[#allocation3 + $0x5f0] sm:$0xff]
    %v3553 = vld [vmem:[#allocation3 + $0x5f8] sm:$0xff]
    %3554 = vxpose.xlu0.b32.start [1/16] %v3362, 128
    %3555 = vxpose.xlu0.b32.cont [2/16] %v3363, 128
    %3556 = vxpose.xlu0.b32.cont [3/16] %v3364, 128
    %3557 = vxpose.xlu0.b32.cont [4/16] %v3365, 128
    %3558 = vxpose.xlu0.b32.cont [5/16] %v3366, 128
    %3559 = vxpose.xlu0.b32.cont [6/16] %v3367, 128
    %3560 = vxpose.xlu0.b32.cont [7/16] %v3368, 128
    %3561 = vxpose.xlu0.b32.cont [8/16] %v3369, 128
    %3562 = vxpose.xlu0.b32.cont [9/16] %v3370, 128
    %3563 = vxpose.xlu0.b32.cont [10/16] %v3371, 128
    %3564 = vxpose.xlu0.b32.cont [11/16] %v3372, 128
    %3565 = vxpose.xlu0.b32.cont [12/16] %v3373, 128
    %3566 = vxpose.xlu0.b32.cont [13/16] %v3374, 128
    %3567 = vxpose.xlu0.b32.cont [14/16] %v3375, 128
    %3568 = vxpose.xlu0.b32.cont [15/16] %v3376, 128
    %3569 = vxpose.xlu0.b32.end [16/16] %v3377, 128
    %v3570 = vpop.trf.xlu0
    %v3571 = vpop.trf.xlu0
    %v3572 = vpop.trf.xlu0
    %v3573 = vpop.trf.xlu0
    %v3574 = vpop.trf.xlu0
    %v3575 = vpop.trf.xlu0
    %v3576 = vpop.trf.xlu0
    %v3577 = vpop.trf.xlu0
    %v3578 = vpop.trf.xlu0
    %v3579 = vpop.trf.xlu0
    %v3580 = vpop.trf.xlu0
    %v3581 = vpop.trf.xlu0
    %v3582 = vpop.trf.xlu0
    %v3583 = vpop.trf.xlu0
    %v3584 = vpop.trf.xlu0
    %v3585 = vpop.trf.xlu0
    %3586 = vxpose.xlu0.b32.start [1/16] %v3378, 128
    %3587 = vxpose.xlu0.b32.cont [2/16] %v3379, 128
    %3588 = vxpose.xlu0.b32.cont [3/16] %v3380, 128
    %3589 = vxpose.xlu0.b32.cont [4/16] %v3381, 128
    %3590 = vxpose.xlu0.b32.cont [5/16] %v3382, 128
    %3591 = vxpose.xlu0.b32.cont [6/16] %v3383, 128
    %3592 = vxpose.xlu0.b32.cont [7/16] %v3384, 128
    %3593 = vxpose.xlu0.b32.cont [8/16] %v3385, 128
    %3594 = vxpose.xlu0.b32.cont [9/16] %v3386, 128
    %3595 = vxpose.xlu0.b32.cont [10/16] %v3387, 128
    %3596 = vxpose.xlu0.b32.cont [11/16] %v3388, 128
    %3597 = vxpose.xlu0.b32.cont [12/16] %v3389, 128
    %3598 = vxpose.xlu0.b32.cont [13/16] %v3390, 128
    %3599 = vxpose.xlu0.b32.cont [14/16] %v3391, 128
    %3600 = vxpose.xlu0.b32.cont [15/16] %v3392, 128
    %3601 = vxpose.xlu0.b32.end [16/16] %v3393, 128
    %v3602 = vpop.trf.xlu0
    %v3603 = vpop.trf.xlu0
    %v3604 = vpop.trf.xlu0
    %v3605 = vpop.trf.xlu0
    %v3606 = vpop.trf.xlu0
    %v3607 = vpop.trf.xlu0
    %v3608 = vpop.trf.xlu0
    %v3609 = vpop.trf.xlu0
    %v3610 = vpop.trf.xlu0
    %v3611 = vpop.trf.xlu0
    %v3612 = vpop.trf.xlu0
    %v3613 = vpop.trf.xlu0
    %v3614 = vpop.trf.xlu0
    %v3615 = vpop.trf.xlu0
    %v3616 = vpop.trf.xlu0
    %v3617 = vpop.trf.xlu0
    %3618 = vxpose.xlu0.b32.start [1/16] %v3394, 128
    %3619 = vxpose.xlu0.b32.cont [2/16] %v3395, 128
    %3620 = vxpose.xlu0.b32.cont [3/16] %v3396, 128
    %3621 = vxpose.xlu0.b32.cont [4/16] %v3397, 128
    %3622 = vxpose.xlu0.b32.cont [5/16] %v3398, 128
    %3623 = vxpose.xlu0.b32.cont [6/16] %v3399, 128
    %3624 = vxpose.xlu0.b32.cont [7/16] %v3400, 128
    %3625 = vxpose.xlu0.b32.cont [8/16] %v3401, 128
    %3626 = vxpose.xlu0.b32.cont [9/16] %v3402, 128
    %3627 = vxpose.xlu0.b32.cont [10/16] %v3403, 128
    %3628 = vxpose.xlu0.b32.cont [11/16] %v3404, 128
    %3629 = vxpose.xlu0.b32.cont [12/16] %v3405, 128
    %3630 = vxpose.xlu0.b32.cont [13/16] %v3406, 128
    %3631 = vxpose.xlu0.b32.cont [14/16] %v3407, 128
    %3632 = vxpose.xlu0.b32.cont [15/16] %v3408, 128
    %3633 = vxpose.xlu0.b32.end [16/16] %v3409, 128
    %v3634 = vpop.trf.xlu0
    %v3635 = vpop.trf.xlu0
    %v3636 = vpop.trf.xlu0
    %v3637 = vpop.trf.xlu0
    %v3638 = vpop.trf.xlu0
    %v3639 = vpop.trf.xlu0
    %v3640 = vpop.trf.xlu0
    %v3641 = vpop.trf.xlu0
    %v3642 = vpop.trf.xlu0
    %v3643 = vpop.trf.xlu0
    %v3644 = vpop.trf.xlu0
    %v3645 = vpop.trf.xlu0
    %v3646 = vpop.trf.xlu0
    %v3647 = vpop.trf.xlu0
    %v3648 = vpop.trf.xlu0
    %v3649 = vpop.trf.xlu0
    %3650 = vxpose.xlu0.b32.start [1/16] %v3410, 128
    %3651 = vxpose.xlu0.b32.cont [2/16] %v3411, 128
    %3652 = vxpose.xlu0.b32.cont [3/16] %v3412, 128
    %3653 = vxpose.xlu0.b32.cont [4/16] %v3413, 128
    %3654 = vxpose.xlu0.b32.cont [5/16] %v3414, 128
    %3655 = vxpose.xlu0.b32.cont [6/16] %v3415, 128
    %3656 = vxpose.xlu0.b32.cont [7/16] %v3416, 128
    %3657 = vxpose.xlu0.b32.cont [8/16] %v3417, 128
    %3658 = vxpose.xlu0.b32.cont [9/16] %v3418, 128
    %3659 = vxpose.xlu0.b32.cont [10/16] %v3419, 128
    %3660 = vxpose.xlu0.b32.cont [11/16] %v3420, 128
    %3661 = vxpose.xlu0.b32.cont [12/16] %v3421, 128
    %3662 = vxpose.xlu0.b32.cont [13/16] %v3422, 128
    %3663 = vxpose.xlu0.b32.cont [14/16] %v3423, 128
    %3664 = vxpose.xlu0.b32.cont [15/16] %v3424, 128
    %3665 = vxpose.xlu0.b32.end [16/16] %v3425, 128
    %v3666 = vpop.trf.xlu0
    %v3667 = vpop.trf.xlu0
    %v3668 = vpop.trf.xlu0
    %v3669 = vpop.trf.xlu0
    %v3670 = vpop.trf.xlu0
    %v3671 = vpop.trf.xlu0
    %v3672 = vpop.trf.xlu0
    %v3673 = vpop.trf.xlu0
    %v3674 = vpop.trf.xlu0
    %v3675 = vpop.trf.xlu0
    %v3676 = vpop.trf.xlu0
    %v3677 = vpop.trf.xlu0
    %v3678 = vpop.trf.xlu0
    %v3679 = vpop.trf.xlu0
    %v3680 = vpop.trf.xlu0
    %v3681 = vpop.trf.xlu0
    %3682 = vxpose.xlu0.b32.start [1/16] %v3426, 128
    %3683 = vxpose.xlu0.b32.cont [2/16] %v3427, 128
    %3684 = vxpose.xlu0.b32.cont [3/16] %v3428, 128
    %3685 = vxpose.xlu0.b32.cont [4/16] %v3429, 128
    %3686 = vxpose.xlu0.b32.cont [5/16] %v3430, 128
    %3687 = vxpose.xlu0.b32.cont [6/16] %v3431, 128
    %3688 = vxpose.xlu0.b32.cont [7/16] %v3432, 128
    %3689 = vxpose.xlu0.b32.cont [8/16] %v3433, 128
    %3690 = vxpose.xlu0.b32.cont [9/16] %v3434, 128
    %3691 = vxpose.xlu0.b32.cont [10/16] %v3435, 128
    %3692 = vxpose.xlu0.b32.cont [11/16] %v3436, 128
    %3693 = vxpose.xlu0.b32.cont [12/16] %v3437, 128
    %3694 = vxpose.xlu0.b32.cont [13/16] %v3438, 128
    %3695 = vxpose.xlu0.b32.cont [14/16] %v3439, 128
    %3696 = vxpose.xlu0.b32.cont [15/16] %v3440, 128
    %3697 = vxpose.xlu0.b32.end [16/16] %v3441, 128
    %v3698 = vpop.trf.xlu0
    %v3699 = vpop.trf.xlu0
    %v3700 = vpop.trf.xlu0
    %v3701 = vpop.trf.xlu0
    %v3702 = vpop.trf.xlu0
    %v3703 = vpop.trf.xlu0
    %v3704 = vpop.trf.xlu0
    %v3705 = vpop.trf.xlu0
    %v3706 = vpop.trf.xlu0
    %v3707 = vpop.trf.xlu0
    %v3708 = vpop.trf.xlu0
    %v3709 = vpop.trf.xlu0
    %v3710 = vpop.trf.xlu0
    %v3711 = vpop.trf.xlu0
    %v3712 = vpop.trf.xlu0
    %v3713 = vpop.trf.xlu0
    %3714 = vxpose.xlu0.b32.start [1/16] %v3442, 128
    %3715 = vxpose.xlu0.b32.cont [2/16] %v3443, 128
    %3716 = vxpose.xlu0.b32.cont [3/16] %v3444, 128
    %3717 = vxpose.xlu0.b32.cont [4/16] %v3445, 128
    %3718 = vxpose.xlu0.b32.cont [5/16] %v3446, 128
    %3719 = vxpose.xlu0.b32.cont [6/16] %v3447, 128
    %3720 = vxpose.xlu0.b32.cont [7/16] %v3448, 128
    %3721 = vxpose.xlu0.b32.cont [8/16] %v3449, 128
    %3722 = vxpose.xlu0.b32.cont [9/16] %v3450, 128
    %3723 = vxpose.xlu0.b32.cont [10/16] %v3451, 128
    %3724 = vxpose.xlu0.b32.cont [11/16] %v3452, 128
    %3725 = vxpose.xlu0.b32.cont [12/16] %v3453, 128
    %3726 = vxpose.xlu0.b32.cont [13/16] %v3454, 128
    %3727 = vxpose.xlu0.b32.cont [14/16] %v3455, 128
    %3728 = vxpose.xlu0.b32.cont [15/16] %v3456, 128
    %3729 = vxpose.xlu0.b32.end [16/16] %v3457, 128
    %v3730 = vpop.trf.xlu0
    %v3731 = vpop.trf.xlu0
    %v3732 = vpop.trf.xlu0
    %v3733 = vpop.trf.xlu0
    %v3734 = vpop.trf.xlu0
    %v3735 = vpop.trf.xlu0
    %v3736 = vpop.trf.xlu0
    %v3737 = vpop.trf.xlu0
    %v3738 = vpop.trf.xlu0
    %v3739 = vpop.trf.xlu0
    %v3740 = vpop.trf.xlu0
    %v3741 = vpop.trf.xlu0
    %v3742 = vpop.trf.xlu0
    %v3743 = vpop.trf.xlu0
    %v3744 = vpop.trf.xlu0
    %v3745 = vpop.trf.xlu0
    %3746 = vxpose.xlu0.b32.start [1/16] %v3458, 128
    %3747 = vxpose.xlu0.b32.cont [2/16] %v3459, 128
    %3748 = vxpose.xlu0.b32.cont [3/16] %v3460, 128
    %3749 = vxpose.xlu0.b32.cont [4/16] %v3461, 128
    %3750 = vxpose.xlu0.b32.cont [5/16] %v3462, 128
    %3751 = vxpose.xlu0.b32.cont [6/16] %v3463, 128
    %3752 = vxpose.xlu0.b32.cont [7/16] %v3464, 128
    %3753 = vxpose.xlu0.b32.cont [8/16] %v3465, 128
    %3754 = vxpose.xlu0.b32.cont [9/16] %v3466, 128
    %3755 = vxpose.xlu0.b32.cont [10/16] %v3467, 128
    %3756 = vxpose.xlu0.b32.cont [11/16] %v3468, 128
    %3757 = vxpose.xlu0.b32.cont [12/16] %v3469, 128
    %3758 = vxpose.xlu0.b32.cont [13/16] %v3470, 128
    %3759 = vxpose.xlu0.b32.cont [14/16] %v3471, 128
    %3760 = vxpose.xlu0.b32.cont [15/16] %v3472, 128
    %3761 = vxpose.xlu0.b32.end [16/16] %v3473, 128
    %v3762 = vpop.trf.xlu0
    %v3763 = vpop.trf.xlu0
    %v3764 = vpop.trf.xlu0
    %v3765 = vpop.trf.xlu0
    %v3766 = vpop.trf.xlu0
    %v3767 = vpop.trf.xlu0
    %v3768 = vpop.trf.xlu0
    %v3769 = vpop.trf.xlu0
    %v3770 = vpop.trf.xlu0
    %v3771 = vpop.trf.xlu0
    %v3772 = vpop.trf.xlu0
    %v3773 = vpop.trf.xlu0
    %v3774 = vpop.trf.xlu0
    %v3775 = vpop.trf.xlu0
    %v3776 = vpop.trf.xlu0
    %v3777 = vpop.trf.xlu0
    %3778 = vxpose.xlu0.b32.start [1/16] %v3474, 128
    %3779 = vxpose.xlu0.b32.cont [2/16] %v3475, 128
    %3780 = vxpose.xlu0.b32.cont [3/16] %v3476, 128
    %3781 = vxpose.xlu0.b32.cont [4/16] %v3477, 128
    %3782 = vxpose.xlu0.b32.cont [5/16] %v3478, 128
    %3783 = vxpose.xlu0.b32.cont [6/16] %v3479, 128
    %3784 = vxpose.xlu0.b32.cont [7/16] %v3480, 128
    %3785 = vxpose.xlu0.b32.cont [8/16] %v3481, 128
    %3786 = vxpose.xlu0.b32.cont [9/16] %v3482, 128
    %3787 = vxpose.xlu0.b32.cont [10/16] %v3483, 128
    %3788 = vxpose.xlu0.b32.cont [11/16] %v3484, 128
    %3789 = vxpose.xlu0.b32.cont [12/16] %v3485, 128
    %3790 = vxpose.xlu0.b32.cont [13/16] %v3486, 128
    %3791 = vxpose.xlu0.b32.cont [14/16] %v3487, 128
    %3792 = vxpose.xlu0.b32.cont [15/16] %v3488, 128
    %3793 = vxpose.xlu0.b32.end [16/16] %v3489, 128
    %v3794 = vpop.trf.xlu0
    %v3795 = vpop.trf.xlu0
    %v3796 = vpop.trf.xlu0
    %v3797 = vpop.trf.xlu0
    %v3798 = vpop.trf.xlu0
    %v3799 = vpop.trf.xlu0
    %v3800 = vpop.trf.xlu0
    %v3801 = vpop.trf.xlu0
    %v3802 = vpop.trf.xlu0
    %v3803 = vpop.trf.xlu0
    %v3804 = vpop.trf.xlu0
    %v3805 = vpop.trf.xlu0
    %v3806 = vpop.trf.xlu0
    %v3807 = vpop.trf.xlu0
    %v3808 = vpop.trf.xlu0
    %v3809 = vpop.trf.xlu0
    %3810 = vxpose.xlu0.b32.start [1/16] %v3490, 128
    %3811 = vxpose.xlu0.b32.cont [2/16] %v3491, 128
    %3812 = vxpose.xlu0.b32.cont [3/16] %v3492, 128
    %3813 = vxpose.xlu0.b32.cont [4/16] %v3493, 128
    %3814 = vxpose.xlu0.b32.cont [5/16] %v3494, 128
    %3815 = vxpose.xlu0.b32.cont [6/16] %v3495, 128
    %3816 = vxpose.xlu0.b32.cont [7/16] %v3496, 128
    %3817 = vxpose.xlu0.b32.cont [8/16] %v3497, 128
    %3818 = vxpose.xlu0.b32.cont [9/16] %v3498, 128
    %3819 = vxpose.xlu0.b32.cont [10/16] %v3499, 128
    %3820 = vxpose.xlu0.b32.cont [11/16] %v3500, 128
    %3821 = vxpose.xlu0.b32.cont [12/16] %v3501, 128
    %3822 = vxpose.xlu0.b32.cont [13/16] %v3502, 128
    %3823 = vxpose.xlu0.b32.cont [14/16] %v3503, 128
    %3824 = vxpose.xlu0.b32.cont [15/16] %v3504, 128
    %3825 = vxpose.xlu0.b32.end [16/16] %v3505, 128
    %v3826 = vpop.trf.xlu0
    %v3827 = vpop.trf.xlu0
    %v3828 = vpop.trf.xlu0
    %v3829 = vpop.trf.xlu0
    %v3830 = vpop.trf.xlu0
    %v3831 = vpop.trf.xlu0
    %v3832 = vpop.trf.xlu0
    %v3833 = vpop.trf.xlu0
    %v3834 = vpop.trf.xlu0
    %v3835 = vpop.trf.xlu0
    %v3836 = vpop.trf.xlu0
    %v3837 = vpop.trf.xlu0
    %v3838 = vpop.trf.xlu0
    %v3839 = vpop.trf.xlu0
    %v3840 = vpop.trf.xlu0
    %v3841 = vpop.trf.xlu0
    %3842 = vxpose.xlu0.b32.start [1/16] %v3506, 128
    %3843 = vxpose.xlu0.b32.cont [2/16] %v3507, 128
    %3844 = vxpose.xlu0.b32.cont [3/16] %v3508, 128
    %3845 = vxpose.xlu0.b32.cont [4/16] %v3509, 128
    %3846 = vxpose.xlu0.b32.cont [5/16] %v3510, 128
    %3847 = vxpose.xlu0.b32.cont [6/16] %v3511, 128
    %3848 = vxpose.xlu0.b32.cont [7/16] %v3512, 128
    %3849 = vxpose.xlu0.b32.cont [8/16] %v3513, 128
    %3850 = vxpose.xlu0.b32.cont [9/16] %v3514, 128
    %3851 = vxpose.xlu0.b32.cont [10/16] %v3515, 128
    %3852 = vxpose.xlu0.b32.cont [11/16] %v3516, 128
    %3853 = vxpose.xlu0.b32.cont [12/16] %v3517, 128
    %3854 = vxpose.xlu0.b32.cont [13/16] %v3518, 128
    %3855 = vxpose.xlu0.b32.cont [14/16] %v3519, 128
    %3856 = vxpose.xlu0.b32.cont [15/16] %v3520, 128
    %3857 = vxpose.xlu0.b32.end [16/16] %v3521, 128
    %v3858 = vpop.trf.xlu0
    %v3859 = vpop.trf.xlu0
    %v3860 = vpop.trf.xlu0
    %v3861 = vpop.trf.xlu0
    %v3862 = vpop.trf.xlu0
    %v3863 = vpop.trf.xlu0
    %v3864 = vpop.trf.xlu0
    %v3865 = vpop.trf.xlu0
    %v3866 = vpop.trf.xlu0
    %v3867 = vpop.trf.xlu0
    %v3868 = vpop.trf.xlu0
    %v3869 = vpop.trf.xlu0
    %v3870 = vpop.trf.xlu0
    %v3871 = vpop.trf.xlu0
    %v3872 = vpop.trf.xlu0
    %v3873 = vpop.trf.xlu0
    %3874 = vxpose.xlu0.b32.start [1/16] %v3522, 128
    %3875 = vxpose.xlu0.b32.cont [2/16] %v3523, 128
    %3876 = vxpose.xlu0.b32.cont [3/16] %v3524, 128
    %3877 = vxpose.xlu0.b32.cont [4/16] %v3525, 128
    %3878 = vxpose.xlu0.b32.cont [5/16] %v3526, 128
    %3879 = vxpose.xlu0.b32.cont [6/16] %v3527, 128
    %3880 = vxpose.xlu0.b32.cont [7/16] %v3528, 128
    %3881 = vxpose.xlu0.b32.cont [8/16] %v3529, 128
    %3882 = vxpose.xlu0.b32.cont [9/16] %v3530, 128
    %3883 = vxpose.xlu0.b32.cont [10/16] %v3531, 128
    %3884 = vxpose.xlu0.b32.cont [11/16] %v3532, 128
    %3885 = vxpose.xlu0.b32.cont [12/16] %v3533, 128
    %3886 = vxpose.xlu0.b32.cont [13/16] %v3534, 128
    %3887 = vxpose.xlu0.b32.cont [14/16] %v3535, 128
    %3888 = vxpose.xlu0.b32.cont [15/16] %v3536, 128
    %3889 = vxpose.xlu0.b32.end [16/16] %v3537, 128
    %v3890 = vpop.trf.xlu0
    %v3891 = vpop.trf.xlu0
    %v3892 = vpop.trf.xlu0
    %v3893 = vpop.trf.xlu0
    %v3894 = vpop.trf.xlu0
    %v3895 = vpop.trf.xlu0
    %v3896 = vpop.trf.xlu0
    %v3897 = vpop.trf.xlu0
    %v3898 = vpop.trf.xlu0
    %v3899 = vpop.trf.xlu0
    %v3900 = vpop.trf.xlu0
    %v3901 = vpop.trf.xlu0
    %v3902 = vpop.trf.xlu0
    %v3903 = vpop.trf.xlu0
    %v3904 = vpop.trf.xlu0
    %v3905 = vpop.trf.xlu0
    %3906 = vxpose.xlu0.b32.start [1/16] %v3538, 128
    %3907 = vxpose.xlu0.b32.cont [2/16] %v3539, 128
    %3908 = vxpose.xlu0.b32.cont [3/16] %v3540, 128
    %3909 = vxpose.xlu0.b32.cont [4/16] %v3541, 128
    %3910 = vxpose.xlu0.b32.cont [5/16] %v3542, 128
    %3911 = vxpose.xlu0.b32.cont [6/16] %v3543, 128
    %3912 = vxpose.xlu0.b32.cont [7/16] %v3544, 128
    %3913 = vxpose.xlu0.b32.cont [8/16] %v3545, 128
    %3914 = vxpose.xlu0.b32.cont [9/16] %v3546, 128
    %3915 = vxpose.xlu0.b32.cont [10/16] %v3547, 128
    %3916 = vxpose.xlu0.b32.cont [11/16] %v3548, 128
    %3917 = vxpose.xlu0.b32.cont [12/16] %v3549, 128
    %3918 = vxpose.xlu0.b32.cont [13/16] %v3550, 128
    %3919 = vxpose.xlu0.b32.cont [14/16] %v3551, 128
    %3920 = vxpose.xlu0.b32.cont [15/16] %v3552, 128
    %3921 = vxpose.xlu0.b32.end [16/16] %v3553, 128
    %v3922 = vpop.trf.xlu0
    %v3923 = vpop.trf.xlu0
    %v3924 = vpop.trf.xlu0
    %v3925 = vpop.trf.xlu0
    %v3926 = vpop.trf.xlu0
    %v3927 = vpop.trf.xlu0
    %v3928 = vpop.trf.xlu0
    %v3929 = vpop.trf.xlu0
    %v3930 = vpop.trf.xlu0
    %v3931 = vpop.trf.xlu0
    %v3932 = vpop.trf.xlu0
    %v3933 = vpop.trf.xlu0
    %v3934 = vpop.trf.xlu0
    %v3935 = vpop.trf.xlu0
    %v3936 = vpop.trf.xlu0
    %v3937 = vpop.trf.xlu0
    %3938 = vst [vmem:[#allocation7] sm:$0xff] %v3570
    %3939 = vst [vmem:[#allocation7 + $0x8] sm:$0xff] %v3602
    %3940 = vst [vmem:[#allocation7 + $0x10] sm:$0xff] %v3634
    %3941 = vst [vmem:[#allocation7 + $0x18] sm:$0xff] %v3666
    %3942 = vst [vmem:[#allocation7 + $0x20] sm:$0xff] %v3698
    %3943 = vst [vmem:[#allocation7 + $0x28] sm:$0xff] %v3730
    %3944 = vst [vmem:[#allocation7 + $0x30] sm:$0xff] %v3762
    %3945 = vst [vmem:[#allocation7 + $0x38] sm:$0xff] %v3794
    %3946 = vst [vmem:[#allocation7 + $0x40] sm:$0xff] %v3826
    %3947 = vst [vmem:[#allocation7 + $0x48] sm:$0xff] %v3858
    %3948 = vst [vmem:[#allocation7 + $0x50] sm:$0xff] %v3890
    %3949 = vst [vmem:[#allocation7 + $0x58] sm:$0xff] %v3922
    %3950 = vst [vmem:[#allocation7 + $0x60] sm:$0xff] %v3571
    %3951 = vst [vmem:[#allocation7 + $0x68] sm:$0xff] %v3603
    %3952 = vst [vmem:[#allocation7 + $0x70] sm:$0xff] %v3635
    %3953 = vst [vmem:[#allocation7 + $0x78] sm:$0xff] %v3667
    %3954 = vst [vmem:[#allocation7 + $0x80] sm:$0xff] %v3699
    %3955 = vst [vmem:[#allocation7 + $0x88] sm:$0xff] %v3731
    %3956 = vst [vmem:[#allocation7 + $0x90] sm:$0xff] %v3763
    %3957 = vst [vmem:[#allocation7 + $0x98] sm:$0xff] %v3795
    %3958 = vst [vmem:[#allocation7 + $0xa0] sm:$0xff] %v3827
    %3959 = vst [vmem:[#allocation7 + $0xa8] sm:$0xff] %v3859
    %3960 = vst [vmem:[#allocation7 + $0xb0] sm:$0xff] %v3891
    %3961 = vst [vmem:[#allocation7 + $0xb8] sm:$0xff] %v3923
    %3962 = vst [vmem:[#allocation7 + $0xc0] sm:$0xff] %v3572
    %3963 = vst [vmem:[#allocation7 + $0xc8] sm:$0xff] %v3604
    %3964 = vst [vmem:[#allocation7 + $0xd0] sm:$0xff] %v3636
    %3965 = vst [vmem:[#allocation7 + $0xd8] sm:$0xff] %v3668
    %3966 = vst [vmem:[#allocation7 + $0xe0] sm:$0xff] %v3700
    %3967 = vst [vmem:[#allocation7 + $0xe8] sm:$0xff] %v3732
    %3968 = vst [vmem:[#allocation7 + $0xf0] sm:$0xff] %v3764
    %3969 = vst [vmem:[#allocation7 + $0xf8] sm:$0xff] %v3796
    %3970 = vst [vmem:[#allocation7 + $0x100] sm:$0xff] %v3828
    %3971 = vst [vmem:[#allocation7 + $0x108] sm:$0xff] %v3860
    %3972 = vst [vmem:[#allocation7 + $0x110] sm:$0xff] %v3892
    %3973 = vst [vmem:[#allocation7 + $0x118] sm:$0xff] %v3924
    %3974 = vst [vmem:[#allocation7 + $0x120] sm:$0xff] %v3573
    %3975 = vst [vmem:[#allocation7 + $0x128] sm:$0xff] %v3605
    %3976 = vst [vmem:[#allocation7 + $0x130] sm:$0xff] %v3637
    %3977 = vst [vmem:[#allocation7 + $0x138] sm:$0xff] %v3669
    %3978 = vst [vmem:[#allocation7 + $0x140] sm:$0xff] %v3701
    %3979 = vst [vmem:[#allocation7 + $0x148] sm:$0xff] %v3733
    %3980 = vst [vmem:[#allocation7 + $0x150] sm:$0xff] %v3765
    %3981 = vst [vmem:[#allocation7 + $0x158] sm:$0xff] %v3797
    %3982 = vst [vmem:[#allocation7 + $0x160] sm:$0xff] %v3829
    %3983 = vst [vmem:[#allocation7 + $0x168] sm:$0xff] %v3861
    %3984 = vst [vmem:[#allocation7 + $0x170] sm:$0xff] %v3893
    %3985 = vst [vmem:[#allocation7 + $0x178] sm:$0xff] %v3925
    %3986 = vst [vmem:[#allocation7 + $0x180] sm:$0xff] %v3574
    %3987 = vst [vmem:[#allocation7 + $0x188] sm:$0xff] %v3606
    %3988 = vst [vmem:[#allocation7 + $0x190] sm:$0xff] %v3638
    %3989 = vst [vmem:[#allocation7 + $0x198] sm:$0xff] %v3670
    %3990 = vst [vmem:[#allocation7 + $0x1a0] sm:$0xff] %v3702
    %3991 = vst [vmem:[#allocation7 + $0x1a8] sm:$0xff] %v3734
    %3992 = vst [vmem:[#allocation7 + $0x1b0] sm:$0xff] %v3766
    %3993 = vst [vmem:[#allocation7 + $0x1b8] sm:$0xff] %v3798
    %3994 = vst [vmem:[#allocation7 + $0x1c0] sm:$0xff] %v3830
    %3995 = vst [vmem:[#allocation7 + $0x1c8] sm:$0xff] %v3862
    %3996 = vst [vmem:[#allocation7 + $0x1d0] sm:$0xff] %v3894
    %3997 = vst [vmem:[#allocation7 + $0x1d8] sm:$0xff] %v3926
    %3998 = vst [vmem:[#allocation7 + $0x1e0] sm:$0xff] %v3575
    %3999 = vst [vmem:[#allocation7 + $0x1e8] sm:$0xff] %v3607
    %4000 = vst [vmem:[#allocation7 + $0x1f0] sm:$0xff] %v3639
    %4001 = vst [vmem:[#allocation7 + $0x1f8] sm:$0xff] %v3671
    %4002 = vst [vmem:[#allocation7 + $0x200] sm:$0xff] %v3703
    %4003 = vst [vmem:[#allocation7 + $0x208] sm:$0xff] %v3735
    %4004 = vst [vmem:[#allocation7 + $0x210] sm:$0xff] %v3767
    %4005 = vst [vmem:[#allocation7 + $0x218] sm:$0xff] %v3799
    %4006 = vst [vmem:[#allocation7 + $0x220] sm:$0xff] %v3831
    %4007 = vst [vmem:[#allocation7 + $0x228] sm:$0xff] %v3863
    %4008 = vst [vmem:[#allocation7 + $0x230] sm:$0xff] %v3895
    %4009 = vst [vmem:[#allocation7 + $0x238] sm:$0xff] %v3927
    %4010 = vst [vmem:[#allocation7 + $0x240] sm:$0xff] %v3576
    %4011 = vst [vmem:[#allocation7 + $0x248] sm:$0xff] %v3608
    %4012 = vst [vmem:[#allocation7 + $0x250] sm:$0xff] %v3640
    %4013 = vst [vmem:[#allocation7 + $0x258] sm:$0xff] %v3672
    %4014 = vst [vmem:[#allocation7 + $0x260] sm:$0xff] %v3704
    %4015 = vst [vmem:[#allocation7 + $0x268] sm:$0xff] %v3736
    %4016 = vst [vmem:[#allocation7 + $0x270] sm:$0xff] %v3768
    %4017 = vst [vmem:[#allocation7 + $0x278] sm:$0xff] %v3800
    %4018 = vst [vmem:[#allocation7 + $0x280] sm:$0xff] %v3832
    %4019 = vst [vmem:[#allocation7 + $0x288] sm:$0xff] %v3864
    %4020 = vst [vmem:[#allocation7 + $0x290] sm:$0xff] %v3896
    %4021 = vst [vmem:[#allocation7 + $0x298] sm:$0xff] %v3928
    %4022 = vst [vmem:[#allocation7 + $0x2a0] sm:$0xff] %v3577
    %4023 = vst [vmem:[#allocation7 + $0x2a8] sm:$0xff] %v3609
    %4024 = vst [vmem:[#allocation7 + $0x2b0] sm:$0xff] %v3641
    %4025 = vst [vmem:[#allocation7 + $0x2b8] sm:$0xff] %v3673
    %4026 = vst [vmem:[#allocation7 + $0x2c0] sm:$0xff] %v3705
    %4027 = vst [vmem:[#allocation7 + $0x2c8] sm:$0xff] %v3737
    %4028 = vst [vmem:[#allocation7 + $0x2d0] sm:$0xff] %v3769
    %4029 = vst [vmem:[#allocation7 + $0x2d8] sm:$0xff] %v3801
    %4030 = vst [vmem:[#allocation7 + $0x2e0] sm:$0xff] %v3833
    %4031 = vst [vmem:[#allocation7 + $0x2e8] sm:$0xff] %v3865
    %4032 = vst [vmem:[#allocation7 + $0x2f0] sm:$0xff] %v3897
    %4033 = vst [vmem:[#allocation7 + $0x2f8] sm:$0xff] %v3929
    %4034 = vst [vmem:[#allocation7 + $0x300] sm:$0xff] %v3578
    %4035 = vst [vmem:[#allocation7 + $0x308] sm:$0xff] %v3610
    %4036 = vst [vmem:[#allocation7 + $0x310] sm:$0xff] %v3642
    %4037 = vst [vmem:[#allocation7 + $0x318] sm:$0xff] %v3674
    %4038 = vst [vmem:[#allocation7 + $0x320] sm:$0xff] %v3706
    %4039 = vst [vmem:[#allocation7 + $0x328] sm:$0xff] %v3738
    %4040 = vst [vmem:[#allocation7 + $0x330] sm:$0xff] %v3770
    %4041 = vst [vmem:[#allocation7 + $0x338] sm:$0xff] %v3802
    %4042 = vst [vmem:[#allocation7 + $0x340] sm:$0xff] %v3834
    %4043 = vst [vmem:[#allocation7 + $0x348] sm:$0xff] %v3866
    %4044 = vst [vmem:[#allocation7 + $0x350] sm:$0xff] %v3898
    %4045 = vst [vmem:[#allocation7 + $0x358] sm:$0xff] %v3930
    %4046 = vst [vmem:[#allocation7 + $0x360] sm:$0xff] %v3579
    %4047 = vst [vmem:[#allocation7 + $0x368] sm:$0xff] %v3611
    %4048 = vst [vmem:[#allocation7 + $0x370] sm:$0xff] %v3643
    %4049 = vst [vmem:[#allocation7 + $0x378] sm:$0xff] %v3675
    %4050 = vst [vmem:[#allocation7 + $0x380] sm:$0xff] %v3707
    %4051 = vst [vmem:[#allocation7 + $0x388] sm:$0xff] %v3739
    %4052 = vst [vmem:[#allocation7 + $0x390] sm:$0xff] %v3771
    %4053 = vst [vmem:[#allocation7 + $0x398] sm:$0xff] %v3803
    %4054 = vst [vmem:[#allocation7 + $0x3a0] sm:$0xff] %v3835
    %4055 = vst [vmem:[#allocation7 + $0x3a8] sm:$0xff] %v3867
    %4056 = vst [vmem:[#allocation7 + $0x3b0] sm:$0xff] %v3899
    %4057 = vst [vmem:[#allocation7 + $0x3b8] sm:$0xff] %v3931
    %4058 = vst [vmem:[#allocation7 + $0x3c0] sm:$0xff] %v3580
    %4059 = vst [vmem:[#allocation7 + $0x3c8] sm:$0xff] %v3612
    %4060 = vst [vmem:[#allocation7 + $0x3d0] sm:$0xff] %v3644
    %4061 = vst [vmem:[#allocation7 + $0x3d8] sm:$0xff] %v3676
    %4062 = vst [vmem:[#allocation7 + $0x3e0] sm:$0xff] %v3708
    %4063 = vst [vmem:[#allocation7 + $0x3e8] sm:$0xff] %v3740
    %4064 = vst [vmem:[#allocation7 + $0x3f0] sm:$0xff] %v3772
    %4065 = vst [vmem:[#allocation7 + $0x3f8] sm:$0xff] %v3804
    %4066 = vst [vmem:[#allocation7 + $0x400] sm:$0xff] %v3836
    %4067 = vst [vmem:[#allocation7 + $0x408] sm:$0xff] %v3868
    %4068 = vst [vmem:[#allocation7 + $0x410] sm:$0xff] %v3900
    %4069 = vst [vmem:[#allocation7 + $0x418] sm:$0xff] %v3932
    %4070 = vst [vmem:[#allocation7 + $0x420] sm:$0xff] %v3581
    %4071 = vst [vmem:[#allocation7 + $0x428] sm:$0xff] %v3613
    %4072 = vst [vmem:[#allocation7 + $0x430] sm:$0xff] %v3645
    %4073 = vst [vmem:[#allocation7 + $0x438] sm:$0xff] %v3677
    %4074 = vst [vmem:[#allocation7 + $0x440] sm:$0xff] %v3709
    %4075 = vst [vmem:[#allocation7 + $0x448] sm:$0xff] %v3741
    %4076 = vst [vmem:[#allocation7 + $0x450] sm:$0xff] %v3773
    %4077 = vst [vmem:[#allocation7 + $0x458] sm:$0xff] %v3805
    %4078 = vst [vmem:[#allocation7 + $0x460] sm:$0xff] %v3837
    %4079 = vst [vmem:[#allocation7 + $0x468] sm:$0xff] %v3869
    %4080 = vst [vmem:[#allocation7 + $0x470] sm:$0xff] %v3901
    %4081 = vst [vmem:[#allocation7 + $0x478] sm:$0xff] %v3933
    %4082 = vst [vmem:[#allocation7 + $0x480] sm:$0xff] %v3582
    %4083 = vst [vmem:[#allocation7 + $0x488] sm:$0xff] %v3614
    %4084 = vst [vmem:[#allocation7 + $0x490] sm:$0xff] %v3646
    %4085 = vst [vmem:[#allocation7 + $0x498] sm:$0xff] %v3678
    %4086 = vst [vmem:[#allocation7 + $0x4a0] sm:$0xff] %v3710
    %4087 = vst [vmem:[#allocation7 + $0x4a8] sm:$0xff] %v3742
    %4088 = vst [vmem:[#allocation7 + $0x4b0] sm:$0xff] %v3774
    %4089 = vst [vmem:[#allocation7 + $0x4b8] sm:$0xff] %v3806
    %4090 = vst [vmem:[#allocation7 + $0x4c0] sm:$0xff] %v3838
    %4091 = vst [vmem:[#allocation7 + $0x4c8] sm:$0xff] %v3870
    %4092 = vst [vmem:[#allocation7 + $0x4d0] sm:$0xff] %v3902
    %4093 = vst [vmem:[#allocation7 + $0x4d8] sm:$0xff] %v3934
    %4094 = vst [vmem:[#allocation7 + $0x4e0] sm:$0xff] %v3583
    %4095 = vst [vmem:[#allocation7 + $0x4e8] sm:$0xff] %v3615
    %4096 = vst [vmem:[#allocation7 + $0x4f0] sm:$0xff] %v3647
    %4097 = vst [vmem:[#allocation7 + $0x4f8] sm:$0xff] %v3679
    %4098 = vst [vmem:[#allocation7 + $0x500] sm:$0xff] %v3711
    %4099 = vst [vmem:[#allocation7 + $0x508] sm:$0xff] %v3743
    %4100 = vst [vmem:[#allocation7 + $0x510] sm:$0xff] %v3775
    %4101 = vst [vmem:[#allocation7 + $0x518] sm:$0xff] %v3807
    %4102 = vst [vmem:[#allocation7 + $0x520] sm:$0xff] %v3839
    %4103 = vst [vmem:[#allocation7 + $0x528] sm:$0xff] %v3871
    %4104 = vst [vmem:[#allocation7 + $0x530] sm:$0xff] %v3903
    %4105 = vst [vmem:[#allocation7 + $0x538] sm:$0xff] %v3935
    %4106 = vst [vmem:[#allocation7 + $0x540] sm:$0xff] %v3584
    %4107 = vst [vmem:[#allocation7 + $0x548] sm:$0xff] %v3616
    %4108 = vst [vmem:[#allocation7 + $0x550] sm:$0xff] %v3648
    %4109 = vst [vmem:[#allocation7 + $0x558] sm:$0xff] %v3680
    %4110 = vst [vmem:[#allocation7 + $0x560] sm:$0xff] %v3712
    %4111 = vst [vmem:[#allocation7 + $0x568] sm:$0xff] %v3744
    %4112 = vst [vmem:[#allocation7 + $0x570] sm:$0xff] %v3776
    %4113 = vst [vmem:[#allocation7 + $0x578] sm:$0xff] %v3808
    %4114 = vst [vmem:[#allocation7 + $0x580] sm:$0xff] %v3840
    %4115 = vst [vmem:[#allocation7 + $0x588] sm:$0xff] %v3872
    %4116 = vst [vmem:[#allocation7 + $0x590] sm:$0xff] %v3904
    %4117 = vst [vmem:[#allocation7 + $0x598] sm:$0xff] %v3936
    %4118 = vst [vmem:[#allocation7 + $0x5a0] sm:$0xff] %v3585
    %4119 = vst [vmem:[#allocation7 + $0x5a8] sm:$0xff] %v3617
    %4120 = vst [vmem:[#allocation7 + $0x5b0] sm:$0xff] %v3649
    %4121 = vst [vmem:[#allocation7 + $0x5b8] sm:$0xff] %v3681
    %4122 = vst [vmem:[#allocation7 + $0x5c0] sm:$0xff] %v3713
    %4123 = vst [vmem:[#allocation7 + $0x5c8] sm:$0xff] %v3745
    %4124 = vst [vmem:[#allocation7 + $0x5d0] sm:$0xff] %v3777
    %4125 = vst [vmem:[#allocation7 + $0x5d8] sm:$0xff] %v3809
    %4126 = vst [vmem:[#allocation7 + $0x5e0] sm:$0xff] %v3841
    %4127 = vst [vmem:[#allocation7 + $0x5e8] sm:$0xff] %v3873
    %4128 = vst [vmem:[#allocation7 + $0x5f0] sm:$0xff] %v3905
    %4129 = vst [vmem:[#allocation7 + $0x5f8] sm:$0xff] %v3937
    // Predicated region
    $region18: #{tpu_custom_call.1} parent=1 // pred_check
      _
    $region19: #{tpu_custom_call.1} parent=1 // pred_check_branch
      %4131 = sbr.rel (0) target = $region21
    $region20: #{tpu_custom_call.1} parent=1 // pred_region
      %4133 = vsyncadd [#allocation6], 0
      %s4134 = sshll.u32 [#allocation7], 4
      %s4135 = int_to_ptr.vmem [resolvable:$true] %s4134
      %s4136 = sshll.u32 %s3, 4
      %s4137 = int_to_ptr.hbm [resolvable:$true] %s4136
      %4142 = dma.vmem_to_hbm [thread:$0]  %s4135, 24576, %s4137, [#allocation6], 1536, 1536, 96
    $region21: #{tpu_custom_call.1} parent=1 // pred_fallthru
      _
    // Predicated region
    $region22: #{tpu_custom_call.1} parent=1 // pred_check
      _
    $region23: #{tpu_custom_call.1} parent=1 // pred_check_branch
      %4144 = sbr.rel (0) target = $region25
    $region24: #{tpu_custom_call.1} parent=1 // pred_region
      %4146 = dma.done [#allocation6], 24576
    $region25: #{tpu_custom_call.1} parent=1 // pred_fallthru
      _
    %4147 = vsyncpa [#allocation5], 1
    %4148 = vsyncpa [#allocation6], 1

// kernel: tpu_custom_call.1
$region0: #{tpu_custom_call.1}
  #allocation0 [shape = 'u32[]', space=smem, size = 0x4, offset = 0x4, fixed_abs, tag = 'smem constant byte address 0x4 - core index']
  #allocation1 [shape = 'u32[72,128]{1,0:T(1,128)}', space=vmem, size = 0x9000, scoped, tag = 'internal scratch']
  %s0 = inlined_call_operand.hbm [shape: f32[3,4096], index: 0, kind: input, shape index: {}]
  %s1 = inlined_call_operand.vmem [shape: f32[12,3], index: 1, kind: input, shape index: {}]
  %s2 = inlined_call_operand.vmem [shape: f32[12,1], index: 2, kind: input, shape index: {}]
  %s3 = inlined_call_operand.hbm [shape: f32[12,4096], index: 3, kind: output, shape index: {}]
  %s4 = sld [smem:[#allocation0]]
  $region26: #{tpu_custom_call.1} parent=0
    _
  %s6 = ssub.s32 1, %s4
  %s7 = scalar_select 0, %s6, %s4
  $region1: #{tpu_custom_call.1} parent=0
    #allocation2 [shape = 'u8[65536]{0}', space=vmem, size = 0x10000, scoped, tag = 'input window, operand 0, single buffered']
    #allocation3 [shape = 's32[1]{0}', space=sflag, size = 0x4, scoped, tag = 'scoped memory for tpu_custom_call.1']
    #allocation4 [shape = 's32[1]{0}', space=sflag, size = 0x4, scoped, tag = 'scoped memory for tpu_custom_call.1']
    #allocation5 [shape = 'u8[262144]{0}', space=vmem, size = 0x40000, scoped, tag = 'output window, operand 0, single buffered']
    %8 = vsyncpa [#allocation3], 0
    %9 = vsyncpa [#allocation4], 0
    // Predicated region
    $region2: #{tpu_custom_call.1} parent=1 // pred_check
      _
    $region3: #{tpu_custom_call.1} parent=1 // pred_check_branch
      %11 = sbr.rel (0) target = $region5
    $region4: #{tpu_custom_call.1} parent=1 // pred_region
      %13 = vsyncadd [#allocation3], 0
      %s15 = sshll.u32 %s0, 4
      %s16 = int_to_ptr.hbm [resolvable:$true] %s15
      %s17 = sshll.u32 [#allocation2], 4
      %s18 = int_to_ptr.vmem [resolvable:$true] %s17
      %20 = dma.hbm_to_vmem [thread:$0]  %s16, 2048, %s18, [#allocation3]
    $region5: #{tpu_custom_call.1} parent=1 // pred_fallthru
      _
    // Predicated region
    $region6: #{tpu_custom_call.1} parent=1 // pred_check
      _
    $region7: #{tpu_custom_call.1} parent=1 // pred_check_branch
      %22 = sbr.rel (0) target = $region9
    $region8: #{tpu_custom_call.1} parent=1 // pred_region
      _
    $region9: #{tpu_custom_call.1} parent=1 // pred_fallthru
      _
    // Predicated region
    $region10: #{tpu_custom_call.1} parent=1 // pred_check
      _
    $region11: #{tpu_custom_call.1} parent=1 // pred_check_branch
      %24 = sbr.rel (0) target = $region13
    $region12: #{tpu_custom_call.1} parent=1 // pred_region
      _
    $region13: #{tpu_custom_call.1} parent=1 // pred_fallthru
      _
    // Predicated region
    $region14: #{tpu_custom_call.1} parent=1 // pred_check
      _
    $region15: #{tpu_custom_call.1} parent=1 // pred_check_branch
      %26 = sbr.rel (0) target = $region17
    $region16: #{tpu_custom_call.1} parent=1 // pred_region
      %28 = dma.done [#allocation3], 2048
    $region17: #{tpu_custom_call.1} parent=1 // pred_fallthru
      _
    %v29 = vld [vmem:[#allocation2] sm:$0x77]
    %v30 = vld [vmem:[#allocation2 + $0x8] sm:$0x77]
    %v31 = vld [vmem:[#allocation2 + $0x10] sm:$0x77]
    %v32 = vld [vmem:[#allocation2 + $0x18] sm:$0x77]
    %v33 = vld [vmem:[#allocation2 + $0x20] sm:$0x77]
    %v34 = vld [vmem:[#allocation2 + $0x28] sm:$0x77]
    %v35 = vld [vmem:[#allocation2 + $0x30] sm:$0x77]
    %v36 = vld [vmem:[#allocation2 + $0x38] sm:$0x77]
    %v37 = vld [vmem:[#allocation2 + $0x40] sm:$0x77]
    %v38 = vld [vmem:[#allocation2 + $0x48] sm:$0x77]
    %v39 = vld [vmem:[#allocation2 + $0x50] sm:$0x77]
    %v40 = vld [vmem:[#allocation2 + $0x58] sm:$0x77]
    %v41 = vld [vmem:[#allocation2 + $0x60] sm:$0x77]
    %v42 = vld [vmem:[#allocation2 + $0x68] sm:$0x77]
    %v43 = vld [vmem:[#allocation2 + $0x70] sm:$0x77]
    %v44 = vld [vmem:[#allocation2 + $0x78] sm:$0x77]
    %v45 = vld [vmem:[%s1] sm:$0xff]
    %v46 = vld [vmem:[%s1 + $0x8] sm:$0xf]
    %v47 = vld [vmem:[%s2] sm:$0xff]
    %v48 = vld [vmem:[%s2 + $0x8] sm:$0xf]
    %50 = vset.pattern.permute.xlu0 0
    %51 = vperm.xlu0 %50, %v45
    %v52 = vpop.permute.xlu0 %51
    %55 = vset.pattern.permute.xlu0 0
    %56 = vperm.xlu0 %55, %v46
    %v57 = vpop.permute.xlu0 %56
    %v75 = vperm.slane %v29, 0
    %v76 = vperm.slane %v29, 4
    %v77 = vperm.slane %v30, 0
    %v78 = vperm.slane %v30, 4
    %v79 = vperm.slane %v31, 0
    %v80 = vperm.slane %v31, 4
    %v81 = vperm.slane %v32, 0
    %v82 = vperm.slane %v32, 4
    %v83 = vperm.slane %v33, 0
    %v84 = vperm.slane %v33, 4
    %v85 = vperm.slane %v34, 0
    %v86 = vperm.slane %v34, 4
    %v87 = vperm.slane %v35, 0
    %v88 = vperm.slane %v35, 4
    %v89 = vperm.slane %v36, 0
    %v90 = vperm.slane %v36, 4
    %v91 = vperm.slane %v37, 0
    %v92 = vperm.slane %v37, 4
    %v93 = vperm.slane %v38, 0
    %v94 = vperm.slane %v38, 4
    %v95 = vperm.slane %v39, 0
    %v96 = vperm.slane %v39, 4
    %v97 = vperm.slane %v40, 0
    %v98 = vperm.slane %v40, 4
    %v99 = vperm.slane %v41, 0
    %v100 = vperm.slane %v41, 4
    %v101 = vperm.slane %v42, 0
    %v102 = vperm.slane %v42, 4
    %v103 = vperm.slane %v43, 0
    %v104 = vperm.slane %v43, 4
    %v105 = vperm.slane %v44, 0
    %v106 = vperm.slane %v44, 4
    %v139 = vperm.slane %v75, 0
    %v140 = vperm.slane %v76, 0
    %v141 = vperm.slane %v77, 0
    %v142 = vperm.slane %v78, 0
    %v143 = vperm.slane %v79, 0
    %v144 = vperm.slane %v80, 0
    %v145 = vperm.slane %v81, 0
    %v146 = vperm.slane %v82, 0
    %v147 = vperm.slane %v83, 0
    %v148 = vperm.slane %v84, 0
    %v149 = vperm.slane %v85, 0
    %v150 = vperm.slane %v86, 0
    %v151 = vperm.slane %v87, 0
    %v152 = vperm.slane %v88, 0
    %v153 = vperm.slane %v89, 0
    %v154 = vperm.slane %v90, 0
    %v155 = vperm.slane %v91, 0
    %v156 = vperm.slane %v92, 0
    %v157 = vperm.slane %v93, 0
    %v158 = vperm.slane %v94, 0
    %v159 = vperm.slane %v95, 0
    %v160 = vperm.slane %v96, 0
    %v161 = vperm.slane %v97, 0
    %v162 = vperm.slane %v98, 0
    %v163 = vperm.slane %v99, 0
    %v164 = vperm.slane %v100, 0
    %v165 = vperm.slane %v101, 0
    %v166 = vperm.slane %v102, 0
    %v167 = vperm.slane %v103, 0
    %v168 = vperm.slane %v104, 0
    %v169 = vperm.slane %v105, 0
    %v170 = vperm.slane %v106, 0
    %v171 = vmul.f32 %v52, %v139
    %v172 = vmul.f32 %v52, %v140
    %v173 = vmul.f32 %v52, %v141
    %v174 = vmul.f32 %v52, %v142
    %v175 = vmul.f32 %v52, %v143
    %v176 = vmul.f32 %v52, %v144
    %v177 = vmul.f32 %v52, %v145
    %v178 = vmul.f32 %v52, %v146
    %v179 = vmul.f32 %v52, %v147
    %v180 = vmul.f32 %v52, %v148
    %v181 = vmul.f32 %v52, %v149
    %v182 = vmul.f32 %v52, %v150
    %v183 = vmul.f32 %v52, %v151
    %v184 = vmul.f32 %v52, %v152
    %v185 = vmul.f32 %v52, %v153
    %v186 = vmul.f32 %v52, %v154
    %v187 = vmul.f32 %v52, %v155
    %v188 = vmul.f32 %v52, %v156
    %v189 = vmul.f32 %v52, %v157
    %v190 = vmul.f32 %v52, %v158
    %v191 = vmul.f32 %v52, %v159
    %v192 = vmul.f32 %v52, %v160
    %v193 = vmul.f32 %v52, %v161
    %v194 = vmul.f32 %v52, %v162
    %v195 = vmul.f32 %v52, %v163
    %v196 = vmul.f32 %v52, %v164
    %v197 = vmul.f32 %v52, %v165
    %v198 = vmul.f32 %v52, %v166
    %v199 = vmul.f32 %v52, %v167
    %v200 = vmul.f32 %v52, %v168
    %v201 = vmul.f32 %v52, %v169
    %v202 = vmul.f32 %v52, %v170
    %v203 = vmul.f32 %v57, %v139
    %v204 = vmul.f32 %v57, %v140
    %v205 = vmul.f32 %v57, %v141
    %v206 = vmul.f32 %v57, %v142
    %v207 = vmul.f32 %v57, %v143
    %v208 = vmul.f32 %v57, %v144
    %v209 = vmul.f32 %v57, %v145
    %v210 = vmul.f32 %v57, %v146
    %v211 = vmul.f32 %v57, %v147
    %v212 = vmul.f32 %v57, %v148
    %v213 = vmul.f32 %v57, %v149
    %v214 = vmul.f32 %v57, %v150
    %v215 = vmul.f32 %v57, %v151
    %v216 = vmul.f32 %v57, %v152
    %v217 = vmul.f32 %v57, %v153
    %v218 = vmul.f32 %v57, %v154
    %v219 = vmul.f32 %v57, %v155
    %v220 = vmul.f32 %v57, %v156
    %v221 = vmul.f32 %v57, %v157
    %v222 = vmul.f32 %v57, %v158
    %v223 = vmul.f32 %v57, %v159
    %v224 = vmul.f32 %v57, %v160
    %v225 = vmul.f32 %v57, %v161
    %v226 = vmul.f32 %v57, %v162
    %v227 = vmul.f32 %v57, %v163
    %v228 = vmul.f32 %v57, %v164
    %v229 = vmul.f32 %v57, %v165
    %v230 = vmul.f32 %v57, %v166
    %v231 = vmul.f32 %v57, %v167
    %v232 = vmul.f32 %v57, %v168
    %v233 = vmul.f32 %v57, %v169
    %v234 = vmul.f32 %v57, %v170
    %235 = vset.pattern.permute.xlu0 1
    %236 = vperm.xlu0 %235, %v45
    %v237 = vpop.permute.xlu0 %236
    %239 = vset.pattern.permute.xlu0 1
    %240 = vperm.xlu0 %239, %v46
    %v241 = vpop.permute.xlu0 %240
    %v243 = vperm.slane %v29, 1
    %v244 = vperm.slane %v29, 5
    %v245 = vperm.slane %v30, 1
    %v246 = vperm.slane %v30, 5
    %v247 = vperm.slane %v31, 1
    %v248 = vperm.slane %v31, 5
    %v249 = vperm.slane %v32, 1
    %v250 = vperm.slane %v32, 5
    %v251 = vperm.slane %v33, 1
    %v252 = vperm.slane %v33, 5
    %v253 = vperm.slane %v34, 1
    %v254 = vperm.slane %v34, 5
    %v255 = vperm.slane %v35, 1
    %v256 = vperm.slane %v35, 5
    %v257 = vperm.slane %v36, 1
    %v258 = vperm.slane %v36, 5
    %v259 = vperm.slane %v37, 1
    %v260 = vperm.slane %v37, 5
    %v261 = vperm.slane %v38, 1
    %v262 = vperm.slane %v38, 5
    %v263 = vperm.slane %v39, 1
    %v264 = vperm.slane %v39, 5
    %v265 = vperm.slane %v40, 1
    %v266 = vperm.slane %v40, 5
    %v267 = vperm.slane %v41, 1
    %v268 = vperm.slane %v41, 5
    %v269 = vperm.slane %v42, 1
    %v270 = vperm.slane %v42, 5
    %v271 = vperm.slane %v43, 1
    %v272 = vperm.slane %v43, 5
    %v273 = vperm.slane %v44, 1
    %v274 = vperm.slane %v44, 5
    %v307 = vperm.slane %v243, 1
    %v308 = vperm.slane %v244, 1
    %v309 = vperm.slane %v245, 1
    %v310 = vperm.slane %v246, 1
    %v311 = vperm.slane %v247, 1
    %v312 = vperm.slane %v248, 1
    %v313 = vperm.slane %v249, 1
    %v314 = vperm.slane %v250, 1
    %v315 = vperm.slane %v251, 1
    %v316 = vperm.slane %v252, 1
    %v317 = vperm.slane %v253, 1
    %v318 = vperm.slane %v254, 1
    %v319 = vperm.slane %v255, 1
    %v320 = vperm.slane %v256, 1
    %v321 = vperm.slane %v257, 1
    %v322 = vperm.slane %v258, 1
    %v323 = vperm.slane %v259, 1
    %v324 = vperm.slane %v260, 1
    %v325 = vperm.slane %v261, 1
    %v326 = vperm.slane %v262, 1
    %v327 = vperm.slane %v263, 1
    %v328 = vperm.slane %v264, 1
    %v329 = vperm.slane %v265, 1
    %v330 = vperm.slane %v266, 1
    %v331 = vperm.slane %v267, 1
    %v332 = vperm.slane %v268, 1
    %v333 = vperm.slane %v269, 1
    %v334 = vperm.slane %v270, 1
    %v335 = vperm.slane %v271, 1
    %v336 = vperm.slane %v272, 1
    %v337 = vperm.slane %v273, 1
    %v338 = vperm.slane %v274, 1
    %v339 = vmul.f32 %v237, %v307
    %v340 = vmul.f32 %v237, %v308
    %v341 = vmul.f32 %v237, %v309
    %v342 = vmul.f32 %v237, %v310
    %v343 = vmul.f32 %v237, %v311
    %v344 = vmul.f32 %v237, %v312
    %v345 = vmul.f32 %v237, %v313
    %v346 = vmul.f32 %v237, %v314
    %v347 = vmul.f32 %v237, %v315
    %v348 = vmul.f32 %v237, %v316
    %v349 = vmul.f32 %v237, %v317
    %v350 = vmul.f32 %v237, %v318
    %v351 = vmul.f32 %v237, %v319
    %v352 = vmul.f32 %v237, %v320
    %v353 = vmul.f32 %v237, %v321
    %v354 = vmul.f32 %v237, %v322
    %v355 = vmul.f32 %v237, %v323
    %v356 = vmul.f32 %v237, %v324
    %v357 = vmul.f32 %v237, %v325
    %v358 = vmul.f32 %v237, %v326
    %v359 = vmul.f32 %v237, %v327
    %v360 = vmul.f32 %v237, %v328
    %v361 = vmul.f32 %v237, %v329
    %v362 = vmul.f32 %v237, %v330
    %v363 = vmul.f32 %v237, %v331
    %v364 = vmul.f32 %v237, %v332
    %v365 = vmul.f32 %v237, %v333
    %v366 = vmul.f32 %v237, %v334
    %v367 = vmul.f32 %v237, %v335
    %v368 = vmul.f32 %v237, %v336
    %v369 = vmul.f32 %v237, %v337
    %v370 = vmul.f32 %v237, %v338
    %v371 = vmul.f32 %v241, %v307
    %v372 = vmul.f32 %v241, %v308
    %v373 = vmul.f32 %v241, %v309
    %v374 = vmul.f32 %v241, %v310
    %v375 = vmul.f32 %v241, %v311
    %v376 = vmul.f32 %v241, %v312
    %v377 = vmul.f32 %v241, %v313
    %v378 = vmul.f32 %v241, %v314
    %v379 = vmul.f32 %v241, %v315
    %v380 = vmul.f32 %v241, %v316
    %v381 = vmul.f32 %v241, %v317
    %v382 = vmul.f32 %v241, %v318
    %v383 = vmul.f32 %v241, %v319
    %v384 = vmul.f32 %v241, %v320
    %v385 = vmul.f32 %v241, %v321
    %v386 = vmul.f32 %v241, %v322
    %v387 = vmul.f32 %v241, %v323
    %v388 = vmul.f32 %v241, %v324
    %v389 = vmul.f32 %v241, %v325
    %v390 = vmul.f32 %v241, %v326
    %v391 = vmul.f32 %v241, %v327
    %v392 = vmul.f32 %v241, %v328
    %v393 = vmul.f32 %v241, %v329
    %v394 = vmul.f32 %v241, %v330
    %v395 = vmul.f32 %v241, %v331
    %v396 = vmul.f32 %v241, %v332
    %v397 = vmul.f32 %v241, %v333
    %v398 = vmul.f32 %v241, %v334
    %v399 = vmul.f32 %v241, %v335
    %v400 = vmul.f32 %v241, %v336
    %v401 = vmul.f32 %v241, %v337
    %v402 = vmul.f32 %v241, %v338
    %v403 = vadd.f32 %v171, %v339
    %v404 = vadd.f32 %v172, %v340
    %v405 = vadd.f32 %v173, %v341
    %v406 = vadd.f32 %v174, %v342
    %v407 = vadd.f32 %v175, %v343
    %v408 = vadd.f32 %v176, %v344
    %v409 = vadd.f32 %v177, %v345
    %v410 = vadd.f32 %v178, %v346
    %v411 = vadd.f32 %v179, %v347
    %v412 = vadd.f32 %v180, %v348
    %v413 = vadd.f32 %v181, %v349
    %v414 = vadd.f32 %v182, %v350
    %v415 = vadd.f32 %v183, %v351
    %v416 = vadd.f32 %v184, %v352
    %v417 = vadd.f32 %v185, %v353
    %v418 = vadd.f32 %v186, %v354
    %v419 = vadd.f32 %v187, %v355
    %v420 = vadd.f32 %v188, %v356
    %v421 = vadd.f32 %v189, %v357
    %v422 = vadd.f32 %v190, %v358
    %v423 = vadd.f32 %v191, %v359
    %v424 = vadd.f32 %v192, %v360
    %v425 = vadd.f32 %v193, %v361
    %v426 = vadd.f32 %v194, %v362
    %v427 = vadd.f32 %v195, %v363
    %v428 = vadd.f32 %v196, %v364
    %v429 = vadd.f32 %v197, %v365
    %v430 = vadd.f32 %v198, %v366
    %v431 = vadd.f32 %v199, %v367
    %v432 = vadd.f32 %v200, %v368
    %v433 = vadd.f32 %v201, %v369
    %v434 = vadd.f32 %v202, %v370
    %v435 = vadd.f32 %v203, %v371
    %v436 = vadd.f32 %v204, %v372
    %v437 = vadd.f32 %v205, %v373
    %v438 = vadd.f32 %v206, %v374
    %v439 = vadd.f32 %v207, %v375
    %v440 = vadd.f32 %v208, %v376
    %v441 = vadd.f32 %v209, %v377
    %v442 = vadd.f32 %v210, %v378
    %v443 = vadd.f32 %v211, %v379
    %v444 = vadd.f32 %v212, %v380
    %v445 = vadd.f32 %v213, %v381
    %v446 = vadd.f32 %v214, %v382
    %v447 = vadd.f32 %v215, %v383
    %v448 = vadd.f32 %v216, %v384
    %v449 = vadd.f32 %v217, %v385
    %v450 = vadd.f32 %v218, %v386
    %v451 = vadd.f32 %v219, %v387
    %v452 = vadd.f32 %v220, %v388
    %v453 = vadd.f32 %v221, %v389
    %v454 = vadd.f32 %v222, %v390
    %v455 = vadd.f32 %v223, %v391
    %v456 = vadd.f32 %v224, %v392
    %v457 = vadd.f32 %v225, %v393
    %v458 = vadd.f32 %v226, %v394
    %v459 = vadd.f32 %v227, %v395
    %v460 = vadd.f32 %v228, %v396
    %v461 = vadd.f32 %v229, %v397
    %v462 = vadd.f32 %v230, %v398
    %v463 = vadd.f32 %v231, %v399
    %v464 = vadd.f32 %v232, %v400
    %v465 = vadd.f32 %v233, %v401
    %v466 = vadd.f32 %v234, %v402
    %467 = vset.pattern.permute.xlu0 2
    %468 = vperm.xlu0 %467, %v45
    %v469 = vpop.permute.xlu0 %468
    %471 = vset.pattern.permute.xlu0 2
    %472 = vperm.xlu0 %471, %v46
    %v473 = vpop.permute.xlu0 %472
    %v475 = vperm.slane %v29, 2
    %v476 = vperm.slane %v29, 6
    %v477 = vperm.slane %v30, 2
    %v478 = vperm.slane %v30, 6
    %v479 = vperm.slane %v31, 2
    %v480 = vperm.slane %v31, 6
    %v481 = vperm.slane %v32, 2
    %v482 = vperm.slane %v32, 6
    %v483 = vperm.slane %v33, 2
    %v484 = vperm.slane %v33, 6
    %v485 = vperm.slane %v34, 2
    %v486 = vperm.slane %v34, 6
    %v487 = vperm.slane %v35, 2
    %v488 = vperm.slane %v35, 6
    %v489 = vperm.slane %v36, 2
    %v490 = vperm.slane %v36, 6
    %v491 = vperm.slane %v37, 2
    %v492 = vperm.slane %v37, 6
    %v493 = vperm.slane %v38, 2
    %v494 = vperm.slane %v38, 6
    %v495 = vperm.slane %v39, 2
    %v496 = vperm.slane %v39, 6
    %v497 = vperm.slane %v40, 2
    %v498 = vperm.slane %v40, 6
    %v499 = vperm.slane %v41, 2
    %v500 = vperm.slane %v41, 6
    %v501 = vperm.slane %v42, 2
    %v502 = vperm.slane %v42, 6
    %v503 = vperm.slane %v43, 2
    %v504 = vperm.slane %v43, 6
    %v505 = vperm.slane %v44, 2
    %v506 = vperm.slane %v44, 6
    %v539 = vperm.slane %v475, 2
    %v540 = vperm.slane %v476, 2
    %v541 = vperm.slane %v477, 2
    %v542 = vperm.slane %v478, 2
    %v543 = vperm.slane %v479, 2
    %v544 = vperm.slane %v480, 2
    %v545 = vperm.slane %v481, 2
    %v546 = vperm.slane %v482, 2
    %v547 = vperm.slane %v483, 2
    %v548 = vperm.slane %v484, 2
    %v549 = vperm.slane %v485, 2
    %v550 = vperm.slane %v486, 2
    %v551 = vperm.slane %v487, 2
    %v552 = vperm.slane %v488, 2
    %v553 = vperm.slane %v489, 2
    %v554 = vperm.slane %v490, 2
    %v555 = vperm.slane %v491, 2
    %v556 = vperm.slane %v492, 2
    %v557 = vperm.slane %v493, 2
    %v558 = vperm.slane %v494, 2
    %v559 = vperm.slane %v495, 2
    %v560 = vperm.slane %v496, 2
    %v561 = vperm.slane %v497, 2
    %v562 = vperm.slane %v498, 2
    %v563 = vperm.slane %v499, 2
    %v564 = vperm.slane %v500, 2
    %v565 = vperm.slane %v501, 2
    %v566 = vperm.slane %v502, 2
    %v567 = vperm.slane %v503, 2
    %v568 = vperm.slane %v504, 2
    %v569 = vperm.slane %v505, 2
    %v570 = vperm.slane %v506, 2
    %v571 = vmul.f32 %v469, %v539
    %v572 = vmul.f32 %v469, %v540
    %v573 = vmul.f32 %v469, %v541
    %v574 = vmul.f32 %v469, %v542
    %v575 = vmul.f32 %v469, %v543
    %v576 = vmul.f32 %v469, %v544
    %v577 = vmul.f32 %v469, %v545
    %v578 = vmul.f32 %v469, %v546
    %v579 = vmul.f32 %v469, %v547
    %v580 = vmul.f32 %v469, %v548
    %v581 = vmul.f32 %v469, %v549
    %v582 = vmul.f32 %v469, %v550
    %v583 = vmul.f32 %v469, %v551
    %v584 = vmul.f32 %v469, %v552
    %v585 = vmul.f32 %v469, %v553
    %v586 = vmul.f32 %v469, %v554
    %v587 = vmul.f32 %v469, %v555
    %v588 = vmul.f32 %v469, %v556
    %v589 = vmul.f32 %v469, %v557
    %v590 = vmul.f32 %v469, %v558
    %v591 = vmul.f32 %v469, %v559
    %v592 = vmul.f32 %v469, %v560
    %v593 = vmul.f32 %v469, %v561
    %v594 = vmul.f32 %v469, %v562
    %v595 = vmul.f32 %v469, %v563
    %v596 = vmul.f32 %v469, %v564
    %v597 = vmul.f32 %v469, %v565
    %v598 = vmul.f32 %v469, %v566
    %v599 = vmul.f32 %v469, %v567
    %v600 = vmul.f32 %v469, %v568
    %v601 = vmul.f32 %v469, %v569
    %v602 = vmul.f32 %v469, %v570
    %v603 = vmul.f32 %v473, %v539
    %v604 = vmul.f32 %v473, %v540
    %v605 = vmul.f32 %v473, %v541
    %v606 = vmul.f32 %v473, %v542
    %v607 = vmul.f32 %v473, %v543
    %v608 = vmul.f32 %v473, %v544
    %v609 = vmul.f32 %v473, %v545
    %v610 = vmul.f32 %v473, %v546
    %v611 = vmul.f32 %v473, %v547
    %v612 = vmul.f32 %v473, %v548
    %v613 = vmul.f32 %v473, %v549
    %v614 = vmul.f32 %v473, %v550
    %v615 = vmul.f32 %v473, %v551
    %v616 = vmul.f32 %v473, %v552
    %v617 = vmul.f32 %v473, %v553
    %v618 = vmul.f32 %v473, %v554
    %v619 = vmul.f32 %v473, %v555
    %v620 = vmul.f32 %v473, %v556
    %v621 = vmul.f32 %v473, %v557
    %v622 = vmul.f32 %v473, %v558
    %v623 = vmul.f32 %v473, %v559
    %v624 = vmul.f32 %v473, %v560
    %v625 = vmul.f32 %v473, %v561
    %v626 = vmul.f32 %v473, %v562
    %v627 = vmul.f32 %v473, %v563
    %v628 = vmul.f32 %v473, %v564
    %v629 = vmul.f32 %v473, %v565
    %v630 = vmul.f32 %v473, %v566
    %v631 = vmul.f32 %v473, %v567
    %v632 = vmul.f32 %v473, %v568
    %v633 = vmul.f32 %v473, %v569
    %v634 = vmul.f32 %v473, %v570
    %v635 = vadd.f32 %v403, %v571
    %v636 = vadd.f32 %v404, %v572
    %v637 = vadd.f32 %v405, %v573
    %v638 = vadd.f32 %v406, %v574
    %v639 = vadd.f32 %v407, %v575
    %v640 = vadd.f32 %v408, %v576
    %v641 = vadd.f32 %v409, %v577
    %v642 = vadd.f32 %v410, %v578
    %v643 = vadd.f32 %v411, %v579
    %v644 = vadd.f32 %v412, %v580
    %v645 = vadd.f32 %v413, %v581
    %v646 = vadd.f32 %v414, %v582
    %v647 = vadd.f32 %v415, %v583
    %v648 = vadd.f32 %v416, %v584
    %v649 = vadd.f32 %v417, %v585
    %v650 = vadd.f32 %v418, %v586
    %v651 = vadd.f32 %v419, %v587
    %v652 = vadd.f32 %v420, %v588
    %v653 = vadd.f32 %v421, %v589
    %v654 = vadd.f32 %v422, %v590
    %v655 = vadd.f32 %v423, %v591
    %v656 = vadd.f32 %v424, %v592
    %v657 = vadd.f32 %v425, %v593
    %v658 = vadd.f32 %v426, %v594
    %v659 = vadd.f32 %v427, %v595
    %v660 = vadd.f32 %v428, %v596
    %v661 = vadd.f32 %v429, %v597
    %v662 = vadd.f32 %v430, %v598
    %v663 = vadd.f32 %v431, %v599
    %v664 = vadd.f32 %v432, %v600
    %v665 = vadd.f32 %v433, %v601
    %v666 = vadd.f32 %v434, %v602
    %v667 = vadd.f32 %v435, %v603
    %v668 = vadd.f32 %v436, %v604
    %v669 = vadd.f32 %v437, %v605
    %v670 = vadd.f32 %v438, %v606
    %v671 = vadd.f32 %v439, %v607
    %v672 = vadd.f32 %v440, %v608
    %v673 = vadd.f32 %v441, %v609
    %v674 = vadd.f32 %v442, %v610
    %v675 = vadd.f32 %v443, %v611
    %v676 = vadd.f32 %v444, %v612
    %v677 = vadd.f32 %v445, %v613
    %v678 = vadd.f32 %v446, %v614
    %v679 = vadd.f32 %v447, %v615
    %v680 = vadd.f32 %v448, %v616
    %v681 = vadd.f32 %v449, %v617
    %v682 = vadd.f32 %v450, %v618
    %v683 = vadd.f32 %v451, %v619
    %v684 = vadd.f32 %v452, %v620
    %v685 = vadd.f32 %v453, %v621
    %v686 = vadd.f32 %v454, %v622
    %v687 = vadd.f32 %v455, %v623
    %v688 = vadd.f32 %v456, %v624
    %v689 = vadd.f32 %v457, %v625
    %v690 = vadd.f32 %v458, %v626
    %v691 = vadd.f32 %v459, %v627
    %v692 = vadd.f32 %v460, %v628
    %v693 = vadd.f32 %v461, %v629
    %v694 = vadd.f32 %v462, %v630
    %v695 = vadd.f32 %v463, %v631
    %v696 = vadd.f32 %v464, %v632
    %v697 = vadd.f32 %v465, %v633
    %v698 = vadd.f32 %v466, %v634
    %700 = vset.pattern.permute.xlu0 0
    %701 = vperm.xlu0 %700, %v47
    %v702 = vpop.permute.xlu0 %701
    %705 = vset.pattern.permute.xlu0 0
    %706 = vperm.xlu0 %705, %v48
    %v707 = vpop.permute.xlu0 %706
    %v709 = vadd.f32 %v635, %v702
    %v710 = vadd.f32 %v636, %v702
    %v711 = vadd.f32 %v637, %v702
    %v712 = vadd.f32 %v638, %v702
    %v713 = vadd.f32 %v639, %v702
    %v714 = vadd.f32 %v640, %v702
    %v715 = vadd.f32 %v641, %v702
    %v716 = vadd.f32 %v642, %v702
    %v717 = vadd.f32 %v643, %v702
    %v718 = vadd.f32 %v644, %v702
    %v719 = vadd.f32 %v645, %v702
    %v720 = vadd.f32 %v646, %v702
    %v721 = vadd.f32 %v647, %v702
    %v722 = vadd.f32 %v648, %v702
    %v723 = vadd.f32 %v649, %v702
    %v724 = vadd.f32 %v650, %v702
    %v725 = vadd.f32 %v651, %v702
    %v726 = vadd.f32 %v652, %v702
    %v727 = vadd.f32 %v653, %v702
    %v728 = vadd.f32 %v654, %v702
    %v729 = vadd.f32 %v655, %v702
    %v730 = vadd.f32 %v656, %v702
    %v731 = vadd.f32 %v657, %v702
    %v732 = vadd.f32 %v658, %v702
    %v733 = vadd.f32 %v659, %v702
    %v734 = vadd.f32 %v660, %v702
    %v735 = vadd.f32 %v661, %v702
    %v736 = vadd.f32 %v662, %v702
    %v737 = vadd.f32 %v663, %v702
    %v738 = vadd.f32 %v664, %v702
    %v739 = vadd.f32 %v665, %v702
    %v740 = vadd.f32 %v666, %v702
    %v741 = vadd.f32 %v667, %v707
    %v742 = vadd.f32 %v668, %v707
    %v743 = vadd.f32 %v669, %v707
    %v744 = vadd.f32 %v670, %v707
    %v745 = vadd.f32 %v671, %v707
    %v746 = vadd.f32 %v672, %v707
    %v747 = vadd.f32 %v673, %v707
    %v748 = vadd.f32 %v674, %v707
    %v749 = vadd.f32 %v675, %v707
    %v750 = vadd.f32 %v676, %v707
    %v751 = vadd.f32 %v677, %v707
    %v752 = vadd.f32 %v678, %v707
    %v753 = vadd.f32 %v679, %v707
    %v754 = vadd.f32 %v680, %v707
    %v755 = vadd.f32 %v681, %v707
    %v756 = vadd.f32 %v682, %v707
    %v757 = vadd.f32 %v683, %v707
    %v758 = vadd.f32 %v684, %v707
    %v759 = vadd.f32 %v685, %v707
    %v760 = vadd.f32 %v686, %v707
    %v761 = vadd.f32 %v687, %v707
    %v762 = vadd.f32 %v688, %v707
    %v763 = vadd.f32 %v689, %v707
    %v764 = vadd.f32 %v690, %v707
    %v765 = vadd.f32 %v691, %v707
    %v766 = vadd.f32 %v692, %v707
    %v767 = vadd.f32 %v693, %v707
    %v768 = vadd.f32 %v694, %v707
    %v769 = vadd.f32 %v695, %v707
    %v770 = vadd.f32 %v696, %v707
    %v771 = vadd.f32 %v697, %v707
    %v772 = vadd.f32 %v698, %v707
    %v773 = vmax.f32 %v709, -1.7320508
    %v774 = vmax.f32 %v710, -1.7320508
    %v775 = vmax.f32 %v711, -1.7320508
    %v776 = vmax.f32 %v712, -1.7320508
    %v777 = vmax.f32 %v713, -1.7320508
    %v778 = vmax.f32 %v714, -1.7320508
    %v779 = vmax.f32 %v715, -1.7320508
    %v780 = vmax.f32 %v716, -1.7320508
    %v781 = vmax.f32 %v717, -1.7320508
    %v782 = vmax.f32 %v718, -1.7320508
    %v783 = vmax.f32 %v719, -1.7320508
    %v784 = vmax.f32 %v720, -1.7320508
    %v785 = vmax.f32 %v721, -1.7320508
    %v786 = vmax.f32 %v722, -1.7320508
    %v787 = vmax.f32 %v723, -1.7320508
    %v788 = vmax.f32 %v724, -1.7320508
    %v789 = vmax.f32 %v725, -1.7320508
    %v790 = vmax.f32 %v726, -1.7320508
    %v791 = vmax.f32 %v727, -1.7320508
    %v792 = vmax.f32 %v728, -1.7320508
    %v793 = vmax.f32 %v729, -1.7320508
    %v794 = vmax.f32 %v730, -1.7320508
    %v795 = vmax.f32 %v731, -1.7320508
    %v796 = vmax.f32 %v732, -1.7320508
    %v797 = vmax.f32 %v733, -1.7320508
    %v798 = vmax.f32 %v734, -1.7320508
    %v799 = vmax.f32 %v735, -1.7320508
    %v800 = vmax.f32 %v736, -1.7320508
    %v801 = vmax.f32 %v737, -1.7320508
    %v802 = vmax.f32 %v738, -1.7320508
    %v803 = vmax.f32 %v739, -1.7320508
    %v804 = vmax.f32 %v740, -1.7320508
    %v805 = vmax.f32 %v741, -1.7320508
    %v806 = vmax.f32 %v742, -1.7320508
    %v807 = vmax.f32 %v743, -1.7320508
    %v808 = vmax.f32 %v744, -1.7320508
    %v809 = vmax.f32 %v745, -1.7320508
    %v810 = vmax.f32 %v746, -1.7320508
    %v811 = vmax.f32 %v747, -1.7320508
    %v812 = vmax.f32 %v748, -1.7320508
    %v813 = vmax.f32 %v749, -1.7320508
    %v814 = vmax.f32 %v750, -1.7320508
    %v815 = vmax.f32 %v751, -1.7320508
    %v816 = vmax.f32 %v752, -1.7320508
    %v817 = vmax.f32 %v753, -1.7320508
    %v818 = vmax.f32 %v754, -1.7320508
    %v819 = vmax.f32 %v755, -1.7320508
    %v820 = vmax.f32 %v756, -1.7320508
    %v821 = vmax.f32 %v757, -1.7320508
    %v822 = vmax.f32 %v758, -1.7320508
    %v823 = vmax.f32 %v759, -1.7320508
    %v824 = vmax.f32 %v760, -1.7320508
    %v825 = vmax.f32 %v761, -1.7320508
    %v826 = vmax.f32 %v762, -1.7320508
    %v827 = vmax.f32 %v763, -1.7320508
    %v828 = vmax.f32 %v764, -1.7320508
    %v829 = vmax.f32 %v765, -1.7320508
    %v830 = vmax.f32 %v766, -1.7320508
    %v831 = vmax.f32 %v767, -1.7320508
    %v832 = vmax.f32 %v768, -1.7320508
    %v833 = vmax.f32 %v769, -1.7320508
    %v834 = vmax.f32 %v770, -1.7320508
    %v835 = vmax.f32 %v771, -1.7320508
    %v836 = vmax.f32 %v772, -1.7320508
    %v837 = vmin.f32 %v773, 3.732051
    %v838 = vmin.f32 %v774, 3.732051
    %v839 = vmin.f32 %v775, 3.732051
    %v840 = vmin.f32 %v776, 3.732051
    %v841 = vmin.f32 %v777, 3.732051
    %v842 = vmin.f32 %v778, 3.732051
    %v843 = vmin.f32 %v779, 3.732051
    %v844 = vmin.f32 %v780, 3.732051
    %v845 = vmin.f32 %v781, 3.732051
    %v846 = vmin.f32 %v782, 3.732051
    %v847 = vmin.f32 %v783, 3.732051
    %v848 = vmin.f32 %v784, 3.732051
    %v849 = vmin.f32 %v785, 3.732051
    %v850 = vmin.f32 %v786, 3.732051
    %v851 = vmin.f32 %v787, 3.732051
    %v852 = vmin.f32 %v788, 3.732051
    %v853 = vmin.f32 %v789, 3.732051
    %v854 = vmin.f32 %v790, 3.732051
    %v855 = vmin.f32 %v791, 3.732051
    %v856 = vmin.f32 %v792, 3.732051
    %v857 = vmin.f32 %v793, 3.732051
    %v858 = vmin.f32 %v794, 3.732051
    %v859 = vmin.f32 %v795, 3.732051
    %v860 = vmin.f32 %v796, 3.732051
    %v861 = vmin.f32 %v797, 3.732051
    %v862 = vmin.f32 %v798, 3.732051
    %v863 = vmin.f32 %v799, 3.732051
    %v864 = vmin.f32 %v800, 3.732051
    %v865 = vmin.f32 %v801, 3.732051
    %v866 = vmin.f32 %v802, 3.732051
    %v867 = vmin.f32 %v803, 3.732051
    %v868 = vmin.f32 %v804, 3.732051
    %v869 = vmin.f32 %v805, 3.732051
    %v870 = vmin.f32 %v806, 3.732051
    %v871 = vmin.f32 %v807, 3.732051
    %v872 = vmin.f32 %v808, 3.732051
    %v873 = vmin.f32 %v809, 3.732051
    %v874 = vmin.f32 %v810, 3.732051
    %v875 = vmin.f32 %v811, 3.732051
    %v876 = vmin.f32 %v812, 3.732051
    %v877 = vmin.f32 %v813, 3.732051
    %v878 = vmin.f32 %v814, 3.732051
    %v879 = vmin.f32 %v815, 3.732051
    %v880 = vmin.f32 %v816, 3.732051
    %v881 = vmin.f32 %v817, 3.732051
    %v882 = vmin.f32 %v818, 3.732051
    %v883 = vmin.f32 %v819, 3.732051
    %v884 = vmin.f32 %v820, 3.732051
    %v885 = vmin.f32 %v821, 3.732051
    %v886 = vmin.f32 %v822, 3.732051
    %v887 = vmin.f32 %v823, 3.732051
    %v888 = vmin.f32 %v824, 3.732051
    %v889 = vmin.f32 %v825, 3.732051
    %v890 = vmin.f32 %v826, 3.732051
    %v891 = vmin.f32 %v827, 3.732051
    %v892 = vmin.f32 %v828, 3.732051
    %v893 = vmin.f32 %v829, 3.732051
    %v894 = vmin.f32 %v830, 3.732051
    %v895 = vmin.f32 %v831, 3.732051
    %v896 = vmin.f32 %v832, 3.732051
    %v897 = vmin.f32 %v833, 3.732051
    %v898 = vmin.f32 %v834, 3.732051
    %v899 = vmin.f32 %v835, 3.732051
    %v900 = vmin.f32 %v836, 3.732051
    %901 = vst [vmem:[#allocation5] sm:$0xff] %v837
    %902 = vst [vmem:[#allocation5 + $0x8] sm:$0xff] %v838
    %903 = vst [vmem:[#allocation5 + $0x10] sm:$0xff] %v839
    %904 = vst [vmem:[#allocation5 + $0x18] sm:$0xff] %v840
    %905 = vst [vmem:[#allocation5 + $0x20] sm:$0xff] %v841
    %906 = vst [vmem:[#allocation5 + $0x28] sm:$0xff] %v842
    %907 = vst [vmem:[#allocation5 + $0x30] sm:$0xff] %v843
    %908 = vst [vmem:[#allocation5 + $0x38] sm:$0xff] %v844
    %909 = vst [vmem:[#allocation5 + $0x40] sm:$0xff] %v845
    %910 = vst [vmem:[#allocation5 + $0x48] sm:$0xff] %v846
    %911 = vst [vmem:[#allocation5 + $0x50] sm:$0xff] %v847
    %912 = vst [vmem:[#allocation5 + $0x58] sm:$0xff] %v848
    %913 = vst [vmem:[#allocation5 + $0x60] sm:$0xff] %v849
    %914 = vst [vmem:[#allocation5 + $0x68] sm:$0xff] %v850
    %915 = vst [vmem:[#allocation5 + $0x70] sm:$0xff] %v851
    %916 = vst [vmem:[#allocation5 + $0x78] sm:$0xff] %v852
    %917 = vst [vmem:[#allocation5 + $0x80] sm:$0xff] %v853
    %918 = vst [vmem:[#allocation5 + $0x88] sm:$0xff] %v854
    %919 = vst [vmem:[#allocation5 + $0x90] sm:$0xff] %v855
    %920 = vst [vmem:[#allocation5 + $0x98] sm:$0xff] %v856
    %921 = vst [vmem:[#allocation5 + $0xa0] sm:$0xff] %v857
    %922 = vst [vmem:[#allocation5 + $0xa8] sm:$0xff] %v858
    %923 = vst [vmem:[#allocation5 + $0xb0] sm:$0xff] %v859
    %924 = vst [vmem:[#allocation5 + $0xb8] sm:$0xff] %v860
    %925 = vst [vmem:[#allocation5 + $0xc0] sm:$0xff] %v861
    %926 = vst [vmem:[#allocation5 + $0xc8] sm:$0xff] %v862
    %927 = vst [vmem:[#allocation5 + $0xd0] sm:$0xff] %v863
    %928 = vst [vmem:[#allocation5 + $0xd8] sm:$0xff] %v864
    %929 = vst [vmem:[#allocation5 + $0xe0] sm:$0xff] %v865
    %930 = vst [vmem:[#allocation5 + $0xe8] sm:$0xff] %v866
    %931 = vst [vmem:[#allocation5 + $0xf0] sm:$0xff] %v867
    %932 = vst [vmem:[#allocation5 + $0xf8] sm:$0xff] %v868
    %933 = vst [vmem:[#allocation5 + $0x100] sm:$0xf] %v869
    %934 = vst [vmem:[#allocation5 + $0x108] sm:$0xf] %v870
    %935 = vst [vmem:[#allocation5 + $0x110] sm:$0xf] %v871
    %936 = vst [vmem:[#allocation5 + $0x118] sm:$0xf] %v872
    %937 = vst [vmem:[#allocation5 + $0x120] sm:$0xf] %v873
    %938 = vst [vmem:[#allocation5 + $0x128] sm:$0xf] %v874
    %939 = vst [vmem:[#allocation5 + $0x130] sm:$0xf] %v875
    %940 = vst [vmem:[#allocation5 + $0x138] sm:$0xf] %v876
    %941 = vst [vmem:[#allocation5 + $0x140] sm:$0xf] %v877
    %942 = vst [vmem:[#allocation5 + $0x148] sm:$0xf] %v878
    %943 = vst [vmem:[#allocation5 + $0x150] sm:$0xf] %v879
    %944 = vst [vmem:[#allocation5 + $0x158] sm:$0xf] %v880
    %945 = vst [vmem:[#allocation5 + $0x160] sm:$0xf] %v881
    %946 = vst [vmem:[#allocation5 + $0x168] sm:$0xf] %v882
    %947 = vst [vmem:[#allocation5 + $0x170] sm:$0xf] %v883
    %948 = vst [vmem:[#allocation5 + $0x178] sm:$0xf] %v884
    %949 = vst [vmem:[#allocation5 + $0x180] sm:$0xf] %v885
    %950 = vst [vmem:[#allocation5 + $0x188] sm:$0xf] %v886
    %951 = vst [vmem:[#allocation5 + $0x190] sm:$0xf] %v887
    %952 = vst [vmem:[#allocation5 + $0x198] sm:$0xf] %v888
    %953 = vst [vmem:[#allocation5 + $0x1a0] sm:$0xf] %v889
    %954 = vst [vmem:[#allocation5 + $0x1a8] sm:$0xf] %v890
    %955 = vst [vmem:[#allocation5 + $0x1b0] sm:$0xf] %v891
    %956 = vst [vmem:[#allocation5 + $0x1b8] sm:$0xf] %v892
    %957 = vst [vmem:[#allocation5 + $0x1c0] sm:$0xf] %v893
    %958 = vst [vmem:[#allocation5 + $0x1c8] sm:$0xf] %v894
    %959 = vst [vmem:[#allocation5 + $0x1d0] sm:$0xf] %v895
    %960 = vst [vmem:[#allocation5 + $0x1d8] sm:$0xf] %v896
    %961 = vst [vmem:[#allocation5 + $0x1e0] sm:$0xf] %v897
    %962 = vst [vmem:[#allocation5 + $0x1e8] sm:$0xf] %v898
    %963 = vst [vmem:[#allocation5 + $0x1f0] sm:$0xf] %v899
    %964 = vst [vmem:[#allocation5 + $0x1f8] sm:$0xf] %v900
    // Predicated region
    $region18: #{tpu_custom_call.1} parent=1 // pred_check
      _
    $region19: #{tpu_custom_call.1} parent=1 // pred_check_branch
      %966 = sbr.rel (0) target = $region21
    $region20: #{tpu_custom_call.1} parent=1 // pred_region
      %968 = vsyncadd [#allocation4], 0
      %s969 = sshll.u32 [#allocation5], 4
      %s970 = int_to_ptr.vmem [resolvable:$true] %s969
      %s971 = sshll.u32 %s3, 4
      %s972 = int_to_ptr.hbm [resolvable:$true] %s971
      %977 = dma.vmem_to_hbm [thread:$0]  %s970, 8192, %s972, [#allocation4], 4096, 4096, 256
    $region21: #{tpu_custom_call.1} parent=1 // pred_fallthru
      _
    // Predicated region
    $region22: #{tpu_custom_call.1} parent=1 // pred_check
      _
    $region23: #{tpu_custom_call.1} parent=1 // pred_check_branch
      %979 = sbr.rel (0) target = $region25
    $region24: #{tpu_custom_call.1} parent=1 // pred_region
      %981 = dma.done [#allocation4], 8192
    $region25: #{tpu_custom_call.1} parent=1 // pred_fallthru
      _
    %982 = vsyncpa [#allocation3], 1
    %983 = vsyncpa [#allocation4], 1

</llo_original>
